<compile_context>
chip_gen: v6e
topology: v6e:2x2x1
jax: 0.10.0
libtpu: 0.0.40
codegen_flags: <defaults>
</compile_context>

<pallas_src>
import functools

import numpy as np
import jax
import jax.numpy as jnp
from jax import lax
from jax.experimental import pallas as pl
from jax.experimental.pallas import tpu as pltpu

EPS = 1e-5


# ----------------------------------------------------------------------------
# Pallas kernel: full Connect4Network forward for one block of boards
# ----------------------------------------------------------------------------
def connect4_kernel(
    x_ref, tap_ref, sel_ref,
    stem_w_ref, res_w_ref, head_w_ref,
    bias_ref, fc_ref,
    out_ref,
    shift_ref,
    *, W, A,
):
    f32, bf16 = jnp.float32, jnp.bfloat16
    P = tap_ref.shape[0]                     # rows this step = B_blk * H * W
    F = stem_w_ref.shape[1]
    B_blk = sel_ref.shape[0]
    NW = out_ref.shape[-1]                   # 128 lane-dense output width
    R0 = W + 1                               # max |row offset| of a 3x3 tap
    taps = [(dy, dx) for dy in (-1, 0, 1) for dx in (-1, 0, 1)]

    def relu(v):
        return jnp.maximum(v, 0.0)

    # Zero only the border rows of the shift buffer (conv zero-padding); the
    # interior is fully overwritten before every read.
    shift_ref[0:R0, :] = jnp.zeros((R0, F), f32)
    shift_ref[R0 + P:R0 + P + R0, :] = jnp.zeros((R0, F), f32)

    def conv3x3(h, w, shift):
        # h: (P, F) f32 -> single K=9F bf16 im2col matmul; BN scale is already
        # folded into w, only the additive shift remains.
        shift_ref[R0:R0 + P, :] = h
        cols = []
        for t, (dy, dx) in enumerate(taps):
            s = dy * W + dx
            col = shift_ref[R0 + s:R0 + s + P, :] * tap_ref[:, t:t + 1]
            cols.append(col.astype(bf16))
        im = jnp.concatenate(cols, axis=-1)                      # (P, 9F) bf16
        return jnp.dot(im, w, preferred_element_type=f32) + shift

    # ---- stem (im2col precomputed in the wrapper; K padded/aligned) ----
    h = jnp.dot(x_ref[0], stem_w_ref[...], preferred_element_type=f32)
    h = relu(h + bias_ref[0:1, :F])                               # (P, F)

    # ---- residual blocks ----
    for j in range(2):
        res = h
        h = relu(conv3x3(h, res_w_ref[2 * j],
                         bias_ref[2 * j + 1:2 * j + 2, :F]))
        h = conv3x3(h, res_w_ref[2 * j + 1],
                    bias_ref[2 * j + 2:2 * j + 3, :F])
        h = relu(h + res)

    # ---- merged 1x1 policy/value conv head (cols: [pol0, pol1, val, pad]) ---
    head = jnp.dot(h.astype(bf16), head_w_ref[...], preferred_element_type=f32)
    head = relu(head + bias_ref[5:6, :head_w_ref.shape[1]])       # (P, 8)
    pol0, pol1, val = head[:, 0:1], head[:, 1:2], head[:, 2:3]

    # Per-row weighted FC products in one lane-dense (P, 128) slab:
    #   cols [0:A)      : pol0*Wp0 + pol1*Wp1   (policy logits contributions)
    #   cols [A:A+64)   : val*Wv1               (value hidden contributions)
    prod = (pol0 * fc_ref[0] + pol1 * fc_ref[1] + val * fc_ref[2]).astype(bf16)

    # One per-board reduction via the block-local 0/1 selector matmul (bf16).
    red = jnp.dot(sel_ref[...], prod, preferred_element_type=f32)
    red = red + bias_ref[6:7, :]                                  # (B_blk, 128)

    col = lax.broadcasted_iota(jnp.int32, (B_blk, NW), 1)
    is_logit = col < A

    # value head: relu(red) dotted with the vfc2 weight row (zero outside the
    # hidden columns), then tanh.
    hidden = relu(red)
    v = jnp.tanh(jnp.sum(hidden * bias_ref[7:8, :], axis=-1, keepdims=True)
                 + bias_ref[6:7, A + 64:A + 65])                  # (B_blk, 1)

    # stable log-softmax over the A action columns (pads masked to -inf)
    logits = jnp.where(is_logit, red, -jnp.inf)
    m = jnp.max(logits, axis=-1, keepdims=True)
    z = logits - m
    lse = jnp.log(jnp.sum(jnp.exp(z), axis=-1, keepdims=True))
    logpol = z - lse

    # packed lane-dense output: cols 0..A-1 = log-policy, col A = value
    out_ref[0] = jnp.where(is_logit, logpol, jnp.where(col == A, v, 0.0))


# ----------------------------------------------------------------------------
# Wrapper: parameter packing, block constants, pallas_call
# ----------------------------------------------------------------------------
@functools.lru_cache(maxsize=None)
def _block_constants(B_blk, H, W):
    """Per-row 3x3 edge masks and block-local board selector (block-sized)."""
    HW = H * W
    P = B_blk * HW
    r = np.arange(P)
    hh = (r // W) % H
    ww = r % W
    taps = [(dy, dx) for dy in (-1, 0, 1) for dx in (-1, 0, 1)]
    tap_mask = np.stack(
        [((hh + dy >= 0) & (hh + dy < H) & (ww + dx >= 0) & (ww + dx < W))
         for dy, dx in taps], axis=1).astype(np.float32)            # (P, 9)
    board_sel = (r[None, :] // HW ==
                 np.arange(B_blk)[:, None]).astype(np.float32)      # (B_blk, P)
    return tap_mask, board_sel


def _scale_shift(p):
    scale = p["gamma"] / jnp.sqrt(p["var"] + EPS)
    shift = p["beta"] + (p["b"] - p["mean"]) * scale    # conv bias folded in
    return scale, shift


def _pack_conv3(p, cin):
    # (cout, cin, 3, 3) -> (9*cin, cout) with BN scale folded (in f32) then bf16
    scale, shift = _scale_shift(p)
    w = jnp.transpose(p["w"], (2, 3, 1, 0)).reshape(9 * cin, -1)
    return (w * scale[None, :]).astype(jnp.bfloat16), shift


def connect4_forward(x_nchw, params, *, block_b=32):
    B, Cin, H, W = x_nchw.shape
    F = params["stem"]["w"].shape[0]
    A = params["pfc"]["w"].shape[0]
    HW = H * W
    assert F <= 128 and A + 64 + 1 <= 128

    # ---- batch-block selection (multiple of 4 boards, capped for v7x VMEM) --
    B_blk = min(block_b, -(-B // 4) * 4)
    B_blk = max(4, -(-B_blk // 4) * 4)
    B_blk = min(B_blk, 128)               # v7x has 64 MiB VMEM -> lower ceiling
    nb = -(-B // B_blk)
    if nb == 1 and B_blk % 8 == 0:        # keep >=2 grid steps (v7x megacore)
        B_blk //= 2
        nb = -(-B // B_blk)
    B_pad = nb * B_blk
    P_blk = B_blk * HW
    K0 = 9 * Cin
    K0p = max(32, ((K0 + 7) // 8) * 8)    # pad stem im2col K (27 -> 32)

    # ---- stem im2col in the wrapper (layout plumbing; one aligned matmul) ---
    x = x_nchw
    if B_pad != B:
        x = jnp.pad(x, ((0, B_pad - B), (0, 0), (0, 0), (0, 0)))
    xh = jnp.transpose(x, (0, 2, 3, 1))                             # NHWC
    xp = jnp.pad(xh, ((0, 0), (1, 1), (1, 1), (0, 0)))
    patches = jnp.concatenate(
        [xp[:, ky:ky + H, kx:kx + W, :] for ky in range(3) for kx in range(3)],
        axis=-1)                                                    # (B_pad,H,W,9*Cin)
    patches = jnp.pad(patches, ((0, 0), (0, 0), (0, 0), (0, K0p - K0)))
    x_patch = patches.reshape(nb, P_blk, K0p).astype(jnp.bfloat16)

    tap_np, sel_np = _block_constants(B_blk, H, W)
    tap_mask = jnp.asarray(tap_np, dtype=jnp.bfloat16)              # (P_blk, 9)
    board_sel = jnp.asarray(sel_np, dtype=jnp.bfloat16)             # (B_blk, P_blk)

    # ---- conv weights with folded BN scale ----
    stem_w, stem_shift = _pack_conv3(params["stem"], Cin)
    stem_w = jnp.pad(stem_w, ((0, K0p - K0), (0, 0)))               # (K0p, F)

    res_ws, res_shifts = [], []
    for name in ("r1a", "r1b", "r2a", "r2b"):
        w, sh = _pack_conv3(params[name], F)
        res_ws.append(w)
        res_shifts.append(sh)
    res_w = jnp.stack(res_ws, axis=0)                               # (4, 9F, F)

    # ---- merged 1x1 heads: columns [policy0, policy1, value, 0...] ----
    HPAD = 8
    ps, pshift = _scale_shift(params["pconv"])
    vs, vshift = _scale_shift(params["vconv"])
    pw = params["pconv"]["w"][:, :, 0, 0].T * ps[None, :]           # (F, 2)
    vw = params["vconv"]["w"][:, :, 0, 0].T * vs[None, :]           # (F, 1)
    head_w = jnp.concatenate(
        [pw, vw, jnp.zeros((F, HPAD - 3), jnp.float32)], axis=1
    ).astype(jnp.bfloat16)                                          # (F, 8)
    head_shift = jnp.concatenate(
        [pshift, vshift, jnp.zeros((HPAD - 3,), jnp.float32)])      # (8,)

    # ---- consolidated bias/shift table (8, 128) f32 ----
    def row128(v):
        v = v.reshape(-1).astype(jnp.float32)
        return jnp.pad(v, (0, 128 - v.shape[0]))

    fc_bias_row = jnp.zeros((128,), jnp.float32)
    fc_bias_row = fc_bias_row.at[:A].set(params["pfc"]["b"])
    fc_bias_row = fc_bias_row.at[A:A + 64].set(params["vfc1"]["b"])
    fc_bias_row = fc_bias_row.at[A + 64].set(params["vfc2"]["b"][0])
    w2_row = jnp.zeros((128,), jnp.float32).at[A:A + 64].set(
        params["vfc2"]["w"].reshape(-1))
    bias_tbl = jnp.stack(
        [row128(stem_shift),
         row128(res_shifts[0]), row128(res_shifts[1]),
         row128(res_shifts[2]), row128(res_shifts[3]),
         row128(head_shift),
         fc_bias_row,
         w2_row], axis=0)                                           # (8, 128)

    # ---- lane-dense per-row FC weight planes (block-tiled, NOT batch-tiled) -
    w0 = jnp.tile(params["pfc"]["w"][:, :HW].T, (B_blk, 1))         # (P_blk, A)
    w1 = jnp.tile(params["pfc"]["w"][:, HW:].T, (B_blk, 1))         # (P_blk, A)
    vw1 = jnp.tile(params["vfc1"]["w"].T, (B_blk, 1))               # (P_blk, 64)
    zpolA = jnp.zeros((P_blk, 128 - A), jnp.float32)
    plane0 = jnp.concatenate([w0, zpolA], axis=1)
    plane1 = jnp.concatenate([w1, zpolA], axis=1)
    plane2 = jnp.concatenate([jnp.zeros((P_blk, A), jnp.float32), vw1,
                              jnp.zeros((P_blk, 128 - A - 64), jnp.float32)],
                             axis=1)
    fc_planes = jnp.stack([plane0, plane1, plane2], axis=0).astype(jnp.bfloat16)

    inputs = [x_patch, tap_mask, board_sel, stem_w, res_w, head_w,
              bias_tbl, fc_planes]

    def _rep(a):
        n = a.ndim
        return pl.BlockSpec(a.shape, lambda i, n=n: (0,) * n)

    in_specs = [pl.BlockSpec((1, P_blk, K0p), lambda i: (i, 0, 0))]
    in_specs += [_rep(a) for a in inputs[1:]]

    out_shape = jax.ShapeDtypeStruct((nb, B_blk, 128), jnp.float32)
    out_specs = pl.BlockSpec((1, B_blk, 128), lambda i: (i, 0, 0))

    fn = pl.pallas_call(
        functools.partial(connect4_kernel, W=W, A=A),
        out_shape=out_shape,
        grid=(nb,),
        in_specs=in_specs,
        out_specs=out_specs,
        scratch_shapes=[pltpu.VMEM((P_blk + 2 * (W + 1), F), jnp.float32)],
        compiler_params=pltpu.CompilerParams(
            dimension_semantics=("parallel",),
            vmem_limit_bytes=64 * 1024 * 1024),
    )
    packed = fn(*inputs).reshape(B_pad, 128)[:B]
    log_policy = packed[:, :A]
    value = packed[:, A:A + 1]
    return value, log_policy


# ----------------------------------------------------------------------------
# Deterministic parameter init + pure-JAX reference for verification
# ----------------------------------------------------------------------------
def init_params(key, Cin, H, W, F, A):
    keys = iter(jax.random.split(key, 64))

    def nrm(shape, scale=0.1):
        return jax.random.normal(next(keys), shape, jnp.float32) * scale

    def conv_bn(cin, cout, k):
        return dict(
            w=nrm((cout, cin, k, k)),
            b=nrm((cout,), 0.05),
            gamma=1.0 + 0.1 * jax.random.normal(next(keys), (cout,), jnp.float32),
            beta=nrm((cout,), 0.05),
            mean=nrm((cout,), 0.05),
            var=1.0 + 0.1 * jax.random.uniform(next(keys), (cout,), jnp.float32),
        )

    p = {}
    p["stem"] = conv_bn(Cin, F, 3)
    p["r1a"] = conv_bn(F, F, 3)
    p["r1b"] = conv_bn(F, F, 3)
    p["r2a"] = conv_bn(F, F, 3)
    p["r2b"] = conv_bn(F, F, 3)
    p["pconv"] = conv_bn(F, 2, 1)
    p["vconv"] = conv_bn(F, 1, 1)
    p["pfc"] = dict(w=nrm((A, 2 * H * W)), b=nrm((A,), 0.05))
    p["vfc1"] = dict(w=nrm((64, H * W)), b=nrm((64,), 0.05))
    p["vfc2"] = dict(w=nrm((1, 64)), b=nrm((1,), 0.05))
    return p


def reference_forward(x, params):
    def bn(y, p):
        scale = p["gamma"] / jnp.sqrt(p["var"] + EPS)
        shift = p["beta"] - p["mean"] * scale
        return y * scale[None, :, None, None] + shift[None, :, None, None]

    def conv(y, p, k):
        pad = 1 if k == 3 else 0
        out = lax.conv_general_dilated(
            y, p["w"], (1, 1), [(pad, pad), (pad, pad)],
            dimension_numbers=("NCHW", "OIHW", "NCHW"))
        return out + p["b"][None, :, None, None]

    def cbr(y, p, k):
        return jax.nn.relu(bn(conv(y, p, k), p))

    def cb(y, p, k):
        return bn(conv(y, p, k), p)

    h = cbr(x, params["stem"], 3)
    r = h; h = cbr(h, params["r1a"], 3); h = cb(h, params["r1b"], 3); h = jax.nn.relu(h + r)
    r = h; h = cbr(h, params["r2a"], 3); h = cb(h, params["r2b"], 3); h = jax.nn.relu(h + r)

    pol = cbr(h, params["pconv"], 1).reshape(x.shape[0], -1)
    logits = pol @ params["pfc"]["w"].T + params["pfc"]["b"]
    logpol = jax.nn.log_softmax(logits, axis=-1)

    val = cbr(h, params["vconv"], 1).reshape(x.shape[0], -1)
    hid = jax.nn.relu(val @ params["vfc1"]["w"].T + params["vfc1"]["b"])
    v = jnp.tanh(hid @ params["vfc2"]["w"].T + params["vfc2"]["b"])
    return v, logpol


if __name__ == "__main__":
    # Connect4: input_shape = (3, 6, 7), action_space = 7.  Batch of 8 boards;
    # the block heuristic picks 4 boards/step -> grid=(2,) parallel steps.
    B, Cin, H, W, A = 8, 3, 6, 7, 7
    key = jax.random.PRNGKey(0)
    kx, kp = jax.random.split(key)
    x = jax.random.normal(kx, (B, Cin, H, W), jnp.float32)
    params = init_params(kp, Cin, H, W, 64, A)

    fwd = jax.jit(connect4_forward)
    value, log_policy = fwd(x, params)
    value, log_policy = jax.block_until_ready((value, log_policy))

    v_ref, lp_ref = reference_forward(x, params)
    assert value.shape == (B, 1) and log_policy.shape == (B, A)
    assert np.allclose(np.asarray(value), np.asarray(v_ref), atol=5e-2, rtol=5e-2)
    assert np.allclose(np.asarray(log_policy), np.asarray(lp_ref), atol=5e-2, rtol=5e-2)
    print("KERNEL_OK")
</pallas_src>

<mosaic_0001>
module attributes {stable_mosaic.version = 11 : i64} {
  func.func @connect4_kernel(%arg0: i32, %arg1: memref<1x168x32xbf16, #tpu.memory_space<vmem>>, %arg2: memref<168x9xbf16, #tpu.memory_space<vmem>>, %arg3: memref<4x168xbf16, #tpu.memory_space<vmem>>, %arg4: memref<32x64xbf16, #tpu.memory_space<vmem>>, %arg5: memref<4x576x64xbf16, #tpu.memory_space<vmem>>, %arg6: memref<64x8xbf16, #tpu.memory_space<vmem>>, %arg7: memref<8x128xf32, #tpu.memory_space<vmem>>, %arg8: memref<3x168x128xbf16, #tpu.memory_space<vmem>>, %arg9: memref<1x4x128xf32, #tpu.memory_space<vmem>>, %arg10: memref<184x64xf32, #tpu.memory_space<vmem>>) attributes {dimension_semantics = [#tpu.dimension_semantics<parallel>], iteration_bounds = array<i64: 2>, scalar_prefetch = 0 : i64, scratch_operands = 1 : i64, tpu.core_type = #tpu.core_type<tc>, window_params = [{transform_indices = @transform_0, window_bounds = array<i64: 1, 168, 32>}, {pipeline_mode = #tpu.pipeline_mode<synchronous>, transform_indices = @transform_1, window_bounds = array<i64: 168, 9>}, {pipeline_mode = #tpu.pipeline_mode<synchronous>, transform_indices = @transform_2, window_bounds = array<i64: 4, 168>}, {pipeline_mode = #tpu.pipeline_mode<synchronous>, transform_indices = @transform_3, window_bounds = array<i64: 32, 64>}, {pipeline_mode = #tpu.pipeline_mode<synchronous>, transform_indices = @transform_4, window_bounds = array<i64: 4, 576, 64>}, {pipeline_mode = #tpu.pipeline_mode<synchronous>, transform_indices = @transform_5, window_bounds = array<i64: 64, 8>}, {pipeline_mode = #tpu.pipeline_mode<synchronous>, transform_indices = @transform_6, window_bounds = array<i64: 8, 128>}, {pipeline_mode = #tpu.pipeline_mode<synchronous>, transform_indices = @transform_7, window_bounds = array<i64: 3, 168, 128>}, {transform_indices = @transform_8, window_bounds = array<i64: 1, 4, 128>}]} {
    %cst = arith.constant 0.000000e+00 : f32
    %0 = vector.broadcast %cst : f32 to vector<8x64xf32>
    %c0 = arith.constant 0 : index
    %c0_0 = arith.constant 0 : index
    %1 = vector.load %arg10[%c0, %c0_0] : memref<184x64xf32, #tpu.memory_space<vmem>>, vector<8x64xf32>
    tpu.vector_store %arg10[%c0, %c0_0], %0 {strides = array<i32>} : memref<184x64xf32, #tpu.memory_space<vmem>>, vector<8x64xf32>,
    %cst_1 = arith.constant 0.000000e+00 : f32
    %2 = vector.broadcast %cst_1 : f32 to vector<8x64xf32>
    %c176 = arith.constant 176 : index
    %c0_2 = arith.constant 0 : index
    %3 = vector.load %arg10[%c176, %c0_2] : memref<184x64xf32, #tpu.memory_space<vmem>>, vector<8x64xf32>
    tpu.vector_store %arg10[%c176, %c0_2], %2 {strides = array<i32>} : memref<184x64xf32, #tpu.memory_space<vmem>>, vector<8x64xf32>,
    %c0_3 = arith.constant 0 : index
    %c0_4 = arith.constant 0 : index
    %c0_5 = arith.constant 0 : index
    %4 = vector.load %arg1[%c0_3, %c0_4, %c0_5] : memref<1x168x32xbf16, #tpu.memory_space<vmem>>, vector<1x168x32xbf16>
    %5 = vector.shape_cast %4 : vector<1x168x32xbf16> to vector<168x32xbf16>
    %c0_6 = arith.constant 0 : index
    %c0_7 = arith.constant 0 : index
    %6 = vector.load %arg4[%c0_6, %c0_7] : memref<32x64xbf16, #tpu.memory_space<vmem>>, vector<32x64xbf16>
    %cst_8 = arith.constant dense<0.000000e+00> : vector<168x64xf32>
    %7 = tpu.matmul %5, %6, %cst_8 {dimension_numbers = #tpu.dot_dimension_numbers<[1], [0], [0], [1], [0, 0, 1, 1], [], []>} : vector<168x32xbf16>, vector<32x64xbf16>, vector<168x64xf32> -> vector<168x64xf32>
    %c0_9 = arith.constant 0 : index
    %c0_10 = arith.constant 0 : index
    %8 = vector.load %arg7[%c0_9, %c0_10] : memref<8x128xf32, #tpu.memory_space<vmem>>, vector<1x64xf32>
    %9 = vector.broadcast %8 : vector<1x64xf32> to vector<168x64xf32>
    %10 = arith.addf %7, %9 : vector<168x64xf32>
    %cst_11 = arith.constant 0.000000e+00 : f32
    %11 = vector.broadcast %cst_11 : f32 to vector<168x64xf32>
    %12 = arith.maximumf %10, %11 : vector<168x64xf32>
    %c0_12 = arith.constant 0 : index
    %c0_13 = arith.constant 0 : index
    %c0_14 = arith.constant 0 : index
    %13 = vector.load %arg5[%c0_12, %c0_13, %c0_14] : memref<4x576x64xbf16, #tpu.memory_space<vmem>>, vector<1x576x64xbf16>
    %14 = vector.shape_cast %13 : vector<1x576x64xbf16> to vector<576x64xbf16>
    %c1 = arith.constant 1 : index
    %c0_15 = arith.constant 0 : index
    %15 = vector.load %arg7[%c1, %c0_15] : memref<8x128xf32, #tpu.memory_space<vmem>>, vector<1x64xf32>
    %c8 = arith.constant 8 : index
    %c0_16 = arith.constant 0 : index
    %16 = vector.load %arg10[%c8, %c0_16] : memref<184x64xf32, #tpu.memory_space<vmem>>, vector<168x64xf32>
    tpu.vector_store %arg10[%c8, %c0_16], %12 {strides = array<i32>} : memref<184x64xf32, #tpu.memory_space<vmem>>, vector<168x64xf32>,
    %c0_17 = arith.constant 0 : index
    %c0_18 = arith.constant 0 : index
    %17 = vector.load %arg10[%c0_17, %c0_18] : memref<184x64xf32, #tpu.memory_space<vmem>>, vector<168x64xf32>
    %c0_19 = arith.constant 0 : index
    %c0_20 = arith.constant 0 : index
    %18 = vector.load %arg2[%c0_19, %c0_20] : memref<168x9xbf16, #tpu.memory_space<vmem>>, vector<168x1xbf16>
    %19 = arith.extf %18 : vector<168x1xbf16> to vector<168x1xf32>
    %20 = vector.broadcast %19 : vector<168x1xf32> to vector<168x64xf32>
    %21 = arith.mulf %17, %20 : vector<168x64xf32>
    %22 = arith.truncf %21 : vector<168x64xf32> to vector<168x64xbf16>
    %c1_21 = arith.constant 1 : index
    %c0_22 = arith.constant 0 : index
    %23 = vector.load %arg10[%c1_21, %c0_22] : memref<184x64xf32, #tpu.memory_space<vmem>>, vector<168x64xf32>
    %c0_23 = arith.constant 0 : index
    %c1_24 = arith.constant 1 : index
    %24 = vector.load %arg2[%c0_23, %c1_24] : memref<168x9xbf16, #tpu.memory_space<vmem>>, vector<168x1xbf16>
    %25 = arith.extf %24 : vector<168x1xbf16> to vector<168x1xf32>
    %26 = vector.broadcast %25 : vector<168x1xf32> to vector<168x64xf32>
    %27 = arith.mulf %23, %26 : vector<168x64xf32>
    %28 = arith.truncf %27 : vector<168x64xf32> to vector<168x64xbf16>
    %c2 = arith.constant 2 : index
    %c0_25 = arith.constant 0 : index
    %29 = vector.load %arg10[%c2, %c0_25] : memref<184x64xf32, #tpu.memory_space<vmem>>, vector<168x64xf32>
    %c0_26 = arith.constant 0 : index
    %c2_27 = arith.constant 2 : index
    %30 = vector.load %arg2[%c0_26, %c2_27] : memref<168x9xbf16, #tpu.memory_space<vmem>>, vector<168x1xbf16>
    %31 = arith.extf %30 : vector<168x1xbf16> to vector<168x1xf32>
    %32 = vector.broadcast %31 : vector<168x1xf32> to vector<168x64xf32>
    %33 = arith.mulf %29, %32 : vector<168x64xf32>
    %34 = arith.truncf %33 : vector<168x64xf32> to vector<168x64xbf16>
    %c7 = arith.constant 7 : index
    %c0_28 = arith.constant 0 : index
    %35 = vector.load %arg10[%c7, %c0_28] : memref<184x64xf32, #tpu.memory_space<vmem>>, vector<168x64xf32>
    %c0_29 = arith.constant 0 : index
    %c3 = arith.constant 3 : index
    %36 = vector.load %arg2[%c0_29, %c3] : memref<168x9xbf16, #tpu.memory_space<vmem>>, vector<168x1xbf16>
    %37 = arith.extf %36 : vector<168x1xbf16> to vector<168x1xf32>
    %38 = vector.broadcast %37 : vector<168x1xf32> to vector<168x64xf32>
    %39 = arith.mulf %35, %38 : vector<168x64xf32>
    %40 = arith.truncf %39 : vector<168x64xf32> to vector<168x64xbf16>
    %c8_30 = arith.constant 8 : index
    %c0_31 = arith.constant 0 : index
    %41 = vector.load %arg10[%c8_30, %c0_31] : memref<184x64xf32, #tpu.memory_space<vmem>>, vector<168x64xf32>
    %c0_32 = arith.constant 0 : index
    %c4 = arith.constant 4 : index
    %42 = vector.load %arg2[%c0_32, %c4] : memref<168x9xbf16, #tpu.memory_space<vmem>>, vector<168x1xbf16>
    %43 = arith.extf %42 : vector<168x1xbf16> to vector<168x1xf32>
    %44 = vector.broadcast %43 : vector<168x1xf32> to vector<168x64xf32>
    %45 = arith.mulf %41, %44 : vector<168x64xf32>
    %46 = arith.truncf %45 : vector<168x64xf32> to vector<168x64xbf16>
    %c9 = arith.constant 9 : index
    %c0_33 = arith.constant 0 : index
    %47 = vector.load %arg10[%c9, %c0_33] : memref<184x64xf32, #tpu.memory_space<vmem>>, vector<168x64xf32>
    %c0_34 = arith.constant 0 : index
    %c5 = arith.constant 5 : index
    %48 = vector.load %arg2[%c0_34, %c5] : memref<168x9xbf16, #tpu.memory_space<vmem>>, vector<168x1xbf16>
    %49 = arith.extf %48 : vector<168x1xbf16> to vector<168x1xf32>
    %50 = vector.broadcast %49 : vector<168x1xf32> to vector<168x64xf32>
    %51 = arith.mulf %47, %50 : vector<168x64xf32>
    %52 = arith.truncf %51 : vector<168x64xf32> to vector<168x64xbf16>
    %c14 = arith.constant 14 : index
    %c0_35 = arith.constant 0 : index
    %53 = vector.load %arg10[%c14, %c0_35] : memref<184x64xf32, #tpu.memory_space<vmem>>, vector<168x64xf32>
    %c0_36 = arith.constant 0 : index
    %c6 = arith.constant 6 : index
    %54 = vector.load %arg2[%c0_36, %c6] : memref<168x9xbf16, #tpu.memory_space<vmem>>, vector<168x1xbf16>
    %55 = arith.extf %54 : vector<168x1xbf16> to vector<168x1xf32>
    %56 = vector.broadcast %55 : vector<168x1xf32> to vector<168x64xf32>
    %57 = arith.mulf %53, %56 : vector<168x64xf32>
    %58 = arith.truncf %57 : vector<168x64xf32> to vector<168x64xbf16>
    %c15 = arith.constant 15 : index
    %c0_37 = arith.constant 0 : index
    %59 = vector.load %arg10[%c15, %c0_37] : memref<184x64xf32, #tpu.memory_space<vmem>>, vector<168x64xf32>
    %c0_38 = arith.constant 0 : index
    %c7_39 = arith.constant 7 : index
    %60 = vector.load %arg2[%c0_38, %c7_39] : memref<168x9xbf16, #tpu.memory_space<vmem>>, vector<168x1xbf16>
    %61 = arith.extf %60 : vector<168x1xbf16> to vector<168x1xf32>
    %62 = vector.broadcast %61 : vector<168x1xf32> to vector<168x64xf32>
    %63 = arith.mulf %59, %62 : vector<168x64xf32>
    %64 = arith.truncf %63 : vector<168x64xf32> to vector<168x64xbf16>
    %c16 = arith.constant 16 : index
    %c0_40 = arith.constant 0 : index
    %65 = vector.load %arg10[%c16, %c0_40] : memref<184x64xf32, #tpu.memory_space<vmem>>, vector<168x64xf32>
    %c0_41 = arith.constant 0 : index
    %c8_42 = arith.constant 8 : index
    %66 = vector.load %arg2[%c0_41, %c8_42] : memref<168x9xbf16, #tpu.memory_space<vmem>>, vector<168x1xbf16>
    %67 = arith.extf %66 : vector<168x1xbf16> to vector<168x1xf32>
    %68 = vector.broadcast %67 : vector<168x1xf32> to vector<168x64xf32>
    %69 = arith.mulf %65, %68 : vector<168x64xf32>
    %70 = arith.truncf %69 : vector<168x64xf32> to vector<168x64xbf16>
    %71 = tpu.concatenate %22, %28, %34, %40, %46, %52, %58, %64, %70 in 1 : vector<168x64xbf16>, vector<168x64xbf16>, vector<168x64xbf16>, vector<168x64xbf16>, vector<168x64xbf16>, vector<168x64xbf16>, vector<168x64xbf16>, vector<168x64xbf16>, vector<168x64xbf16> -> vector<168x576xbf16>
    %cst_43 = arith.constant dense<0.000000e+00> : vector<168x64xf32>
    %72 = tpu.matmul %71, %14, %cst_43 {dimension_numbers = #tpu.dot_dimension_numbers<[1], [0], [0], [1], [0, 0, 1, 1], [], []>} : vector<168x576xbf16>, vector<576x64xbf16>, vector<168x64xf32> -> vector<168x64xf32>
    %73 = vector.broadcast %15 : vector<1x64xf32> to vector<168x64xf32>
    %74 = arith.addf %72, %73 : vector<168x64xf32>
    %cst_44 = arith.constant 0.000000e+00 : f32
    %75 = vector.broadcast %cst_44 : f32 to vector<168x64xf32>
    %76 = arith.maximumf %74, %75 : vector<168x64xf32>
    %c1_45 = arith.constant 1 : index
    %c0_46 = arith.constant 0 : index
    %c0_47 = arith.constant 0 : index
    %77 = vector.load %arg5[%c1_45, %c0_46, %c0_47] : memref<4x576x64xbf16, #tpu.memory_space<vmem>>, vector<1x576x64xbf16>
    %78 = vector.shape_cast %77 : vector<1x576x64xbf16> to vector<576x64xbf16>
    %c2_48 = arith.constant 2 : index
    %c0_49 = arith.constant 0 : index
    %79 = vector.load %arg7[%c2_48, %c0_49] : memref<8x128xf32, #tpu.memory_space<vmem>>, vector<1x64xf32>
    %c8_50 = arith.constant 8 : index
    %c0_51 = arith.constant 0 : index
    %80 = vector.load %arg10[%c8_50, %c0_51] : memref<184x64xf32, #tpu.memory_space<vmem>>, vector<168x64xf32>
    tpu.vector_store %arg10[%c8_50, %c0_51], %76 {strides = array<i32>} : memref<184x64xf32, #tpu.memory_space<vmem>>, vector<168x64xf32>,
    %c0_52 = arith.constant 0 : index
    %c0_53 = arith.constant 0 : index
    %81 = vector.load %arg10[%c0_52, %c0_53] : memref<184x64xf32, #tpu.memory_space<vmem>>, vector<168x64xf32>
    %c0_54 = arith.constant 0 : index
    %c0_55 = arith.constant 0 : index
    %82 = vector.load %arg2[%c0_54, %c0_55] : memref<168x9xbf16, #tpu.memory_space<vmem>>, vector<168x1xbf16>
    %83 = arith.extf %82 : vector<168x1xbf16> to vector<168x1xf32>
    %84 = vector.broadcast %83 : vector<168x1xf32> to vector<168x64xf32>
    %85 = arith.mulf %81, %84 : vector<168x64xf32>
    %86 = arith.truncf %85 : vector<168x64xf32> to vector<168x64xbf16>
    %c1_56 = arith.constant 1 : index
    %c0_57 = arith.constant 0 : index
    %87 = vector.load %arg10[%c1_56, %c0_57] : memref<184x64xf32, #tpu.memory_space<vmem>>, vector<168x64xf32>
    %c0_58 = arith.constant 0 : index
    %c1_59 = arith.constant 1 : index
    %88 = vector.load %arg2[%c0_58, %c1_59] : memref<168x9xbf16, #tpu.memory_space<vmem>>, vector<168x1xbf16>
    %89 = arith.extf %88 : vector<168x1xbf16> to vector<168x1xf32>
    %90 = vector.broadcast %89 : vector<168x1xf32> to vector<168x64xf32>
    %91 = arith.mulf %87, %90 : vector<168x64xf32>
    %92 = arith.truncf %91 : vector<168x64xf32> to vector<168x64xbf16>
    %c2_60 = arith.constant 2 : index
    %c0_61 = arith.constant 0 : index
    %93 = vector.load %arg10[%c2_60, %c0_61] : memref<184x64xf32, #tpu.memory_space<vmem>>, vector<168x64xf32>
    %c0_62 = arith.constant 0 : index
    %c2_63 = arith.constant 2 : index
    %94 = vector.load %arg2[%c0_62, %c2_63] : memref<168x9xbf16, #tpu.memory_space<vmem>>, vector<168x1xbf16>
    %95 = arith.extf %94 : vector<168x1xbf16> to vector<168x1xf32>
    %96 = vector.broadcast %95 : vector<168x1xf32> to vector<168x64xf32>
    %97 = arith.mulf %93, %96 : vector<168x64xf32>
    %98 = arith.truncf %97 : vector<168x64xf32> to vector<168x64xbf16>
    %c7_64 = arith.constant 7 : index
    %c0_65 = arith.constant 0 : index
    %99 = vector.load %arg10[%c7_64, %c0_65] : memref<184x64xf32, #tpu.memory_space<vmem>>, vector<168x64xf32>
    %c0_66 = arith.constant 0 : index
    %c3_67 = arith.constant 3 : index
    %100 = vector.load %arg2[%c0_66, %c3_67] : memref<168x9xbf16, #tpu.memory_space<vmem>>, vector<168x1xbf16>
    %101 = arith.extf %100 : vector<168x1xbf16> to vector<168x1xf32>
    %102 = vector.broadcast %101 : vector<168x1xf32> to vector<168x64xf32>
    %103 = arith.mulf %99, %102 : vector<168x64xf32>
    %104 = arith.truncf %103 : vector<168x64xf32> to vector<168x64xbf16>
    %c8_68 = arith.constant 8 : index
    %c0_69 = arith.constant 0 : index
    %105 = vector.load %arg10[%c8_68, %c0_69] : memref<184x64xf32, #tpu.memory_space<vmem>>, vector<168x64xf32>
    %c0_70 = arith.constant 0 : index
    %c4_71 = arith.constant 4 : index
    %106 = vector.load %arg2[%c0_70, %c4_71] : memref<168x9xbf16, #tpu.memory_space<vmem>>, vector<168x1xbf16>
    %107 = arith.extf %106 : vector<168x1xbf16> to vector<168x1xf32>
    %108 = vector.broadcast %107 : vector<168x1xf32> to vector<168x64xf32>
    %109 = arith.mulf %105, %108 : vector<168x64xf32>
    %110 = arith.truncf %109 : vector<168x64xf32> to vector<168x64xbf16>
    %c9_72 = arith.constant 9 : index
    %c0_73 = arith.constant 0 : index
    %111 = vector.load %arg10[%c9_72, %c0_73] : memref<184x64xf32, #tpu.memory_space<vmem>>, vector<168x64xf32>
    %c0_74 = arith.constant 0 : index
    %c5_75 = arith.constant 5 : index
    %112 = vector.load %arg2[%c0_74, %c5_75] : memref<168x9xbf16, #tpu.memory_space<vmem>>, vector<168x1xbf16>
    %113 = arith.extf %112 : vector<168x1xbf16> to vector<168x1xf32>
    %114 = vector.broadcast %113 : vector<168x1xf32> to vector<168x64xf32>
    %115 = arith.mulf %111, %114 : vector<168x64xf32>
    %116 = arith.truncf %115 : vector<168x64xf32> to vector<168x64xbf16>
    %c14_76 = arith.constant 14 : index
    %c0_77 = arith.constant 0 : index
    %117 = vector.load %arg10[%c14_76, %c0_77] : memref<184x64xf32, #tpu.memory_space<vmem>>, vector<168x64xf32>
    %c0_78 = arith.constant 0 : index
    %c6_79 = arith.constant 6 : index
    %118 = vector.load %arg2[%c0_78, %c6_79] : memref<168x9xbf16, #tpu.memory_space<vmem>>, vector<168x1xbf16>
    %119 = arith.extf %118 : vector<168x1xbf16> to vector<168x1xf32>
    %120 = vector.broadcast %119 : vector<168x1xf32> to vector<168x64xf32>
    %121 = arith.mulf %117, %120 : vector<168x64xf32>
    %122 = arith.truncf %121 : vector<168x64xf32> to vector<168x64xbf16>
    %c15_80 = arith.constant 15 : index
    %c0_81 = arith.constant 0 : index
    %123 = vector.load %arg10[%c15_80, %c0_81] : memref<184x64xf32, #tpu.memory_space<vmem>>, vector<168x64xf32>
    %c0_82 = arith.constant 0 : index
    %c7_83 = arith.constant 7 : index
    %124 = vector.load %arg2[%c0_82, %c7_83] : memref<168x9xbf16, #tpu.memory_space<vmem>>, vector<168x1xbf16>
    %125 = arith.extf %124 : vector<168x1xbf16> to vector<168x1xf32>
    %126 = vector.broadcast %125 : vector<168x1xf32> to vector<168x64xf32>
    %127 = arith.mulf %123, %126 : vector<168x64xf32>
    %128 = arith.truncf %127 : vector<168x64xf32> to vector<168x64xbf16>
    %c16_84 = arith.constant 16 : index
    %c0_85 = arith.constant 0 : index
    %129 = vector.load %arg10[%c16_84, %c0_85] : memref<184x64xf32, #tpu.memory_space<vmem>>, vector<168x64xf32>
    %c0_86 = arith.constant 0 : index
    %c8_87 = arith.constant 8 : index
    %130 = vector.load %arg2[%c0_86, %c8_87] : memref<168x9xbf16, #tpu.memory_space<vmem>>, vector<168x1xbf16>
    %131 = arith.extf %130 : vector<168x1xbf16> to vector<168x1xf32>
    %132 = vector.broadcast %131 : vector<168x1xf32> to vector<168x64xf32>
    %133 = arith.mulf %129, %132 : vector<168x64xf32>
    %134 = arith.truncf %133 : vector<168x64xf32> to vector<168x64xbf16>
    %135 = tpu.concatenate %86, %92, %98, %104, %110, %116, %122, %128, %134 in 1 : vector<168x64xbf16>, vector<168x64xbf16>, vector<168x64xbf16>, vector<168x64xbf16>, vector<168x64xbf16>, vector<168x64xbf16>, vector<168x64xbf16>, vector<168x64xbf16>, vector<168x64xbf16> -> vector<168x576xbf16>
    %cst_88 = arith.constant dense<0.000000e+00> : vector<168x64xf32>
    %136 = tpu.matmul %135, %78, %cst_88 {dimension_numbers = #tpu.dot_dimension_numbers<[1], [0], [0], [1], [0, 0, 1, 1], [], []>} : vector<168x576xbf16>, vector<576x64xbf16>, vector<168x64xf32> -> vector<168x64xf32>
    %137 = vector.broadcast %79 : vector<1x64xf32> to vector<168x64xf32>
    %138 = arith.addf %136, %137 : vector<168x64xf32>
    %139 = arith.addf %138, %12 : vector<168x64xf32>
    %cst_89 = arith.constant 0.000000e+00 : f32
    %140 = vector.broadcast %cst_89 : f32 to vector<168x64xf32>
    %141 = arith.maximumf %139, %140 : vector<168x64xf32>
    %c2_90 = arith.constant 2 : index
    %c0_91 = arith.constant 0 : index
    %c0_92 = arith.constant 0 : index
    %142 = vector.load %arg5[%c2_90, %c0_91, %c0_92] : memref<4x576x64xbf16, #tpu.memory_space<vmem>>, vector<1x576x64xbf16>
    %143 = vector.shape_cast %142 : vector<1x576x64xbf16> to vector<576x64xbf16>
    %c3_93 = arith.constant 3 : index
    %c0_94 = arith.constant 0 : index
    %144 = vector.load %arg7[%c3_93, %c0_94] : memref<8x128xf32, #tpu.memory_space<vmem>>, vector<1x64xf32>
    %c8_95 = arith.constant 8 : index
    %c0_96 = arith.constant 0 : index
    %145 = vector.load %arg10[%c8_95, %c0_96] : memref<184x64xf32, #tpu.memory_space<vmem>>, vector<168x64xf32>
    tpu.vector_store %arg10[%c8_95, %c0_96], %141 {strides = array<i32>} : memref<184x64xf32, #tpu.memory_space<vmem>>, vector<168x64xf32>,
    %c0_97 = arith.constant 0 : index
    %c0_98 = arith.constant 0 : index
    %146 = vector.load %arg10[%c0_97, %c0_98] : memref<184x64xf32, #tpu.memory_space<vmem>>, vector<168x64xf32>
    %c0_99 = arith.constant 0 : index
    %c0_100 = arith.constant 0 : index
    %147 = vector.load %arg2[%c0_99, %c0_100] : memref<168x9xbf16, #tpu.memory_space<vmem>>, vector<168x1xbf16>
    %148 = arith.extf %147 : vector<168x1xbf16> to vector<168x1xf32>
    %149 = vector.broadcast %148 : vector<168x1xf32> to vector<168x64xf32>
    %150 = arith.mulf %146, %149 : vector<168x64xf32>
    %151 = arith.truncf %150 : vector<168x64xf32> to vector<168x64xbf16>
    %c1_101 = arith.constant 1 : index
    %c0_102 = arith.constant 0 : index
    %152 = vector.load %arg10[%c1_101, %c0_102] : memref<184x64xf32, #tpu.memory_space<vmem>>, vector<168x64xf32>
    %c0_103 = arith.constant 0 : index
    %c1_104 = arith.constant 1 : index
    %153 = vector.load %arg2[%c0_103, %c1_104] : memref<168x9xbf16, #tpu.memory_space<vmem>>, vector<168x1xbf16>
    %154 = arith.extf %153 : vector<168x1xbf16> to vector<168x1xf32>
    %155 = vector.broadcast %154 : vector<168x1xf32> to vector<168x64xf32>
    %156 = arith.mulf %152, %155 : vector<168x64xf32>
    %157 = arith.truncf %156 : vector<168x64xf32> to vector<168x64xbf16>
    %c2_105 = arith.constant 2 : index
    %c0_106 = arith.constant 0 : index
    %158 = vector.load %arg10[%c2_105, %c0_106] : memref<184x64xf32, #tpu.memory_space<vmem>>, vector<168x64xf32>
    %c0_107 = arith.constant 0 : index
    %c2_108 = arith.constant 2 : index
    %159 = vector.load %arg2[%c0_107, %c2_108] : memref<168x9xbf16, #tpu.memory_space<vmem>>, vector<168x1xbf16>
    %160 = arith.extf %159 : vector<168x1xbf16> to vector<168x1xf32>
    %161 = vector.broadcast %160 : vector<168x1xf32> to vector<168x64xf32>
    %162 = arith.mulf %158, %161 : vector<168x64xf32>
    %163 = arith.truncf %162 : vector<168x64xf32> to vector<168x64xbf16>
    %c7_109 = arith.constant 7 : index
    %c0_110 = arith.constant 0 : index
    %164 = vector.load %arg10[%c7_109, %c0_110] : memref<184x64xf32, #tpu.memory_space<vmem>>, vector<168x64xf32>
    %c0_111 = arith.constant 0 : index
    %c3_112 = arith.constant 3 : index
    %165 = vector.load %arg2[%c0_111, %c3_112] : memref<168x9xbf16, #tpu.memory_space<vmem>>, vector<168x1xbf16>
    %166 = arith.extf %165 : vector<168x1xbf16> to vector<168x1xf32>
    %167 = vector.broadcast %166 : vector<168x1xf32> to vector<168x64xf32>
    %168 = arith.mulf %164, %167 : vector<168x64xf32>
    %169 = arith.truncf %168 : vector<168x64xf32> to vector<168x64xbf16>
    %c8_113 = arith.constant 8 : index
    %c0_114 = arith.constant 0 : index
    %170 = vector.load %arg10[%c8_113, %c0_114] : memref<184x64xf32, #tpu.memory_space<vmem>>, vector<168x64xf32>
    %c0_115 = arith.constant 0 : index
    %c4_116 = arith.constant 4 : index
    %171 = vector.load %arg2[%c0_115, %c4_116] : memref<168x9xbf16, #tpu.memory_space<vmem>>, vector<168x1xbf16>
    %172 = arith.extf %171 : vector<168x1xbf16> to vector<168x1xf32>
    %173 = vector.broadcast %172 : vector<168x1xf32> to vector<168x64xf32>
    %174 = arith.mulf %170, %173 : vector<168x64xf32>
    %175 = arith.truncf %174 : vector<168x64xf32> to vector<168x64xbf16>
    %c9_117 = arith.constant 9 : index
    %c0_118 = arith.constant 0 : index
    %176 = vector.load %arg10[%c9_117, %c0_118] : memref<184x64xf32, #tpu.memory_space<vmem>>, vector<168x64xf32>
    %c0_119 = arith.constant 0 : index
    %c5_120 = arith.constant 5 : index
    %177 = vector.load %arg2[%c0_119, %c5_120] : memref<168x9xbf16, #tpu.memory_space<vmem>>, vector<168x1xbf16>
    %178 = arith.extf %177 : vector<168x1xbf16> to vector<168x1xf32>
    %179 = vector.broadcast %178 : vector<168x1xf32> to vector<168x64xf32>
    %180 = arith.mulf %176, %179 : vector<168x64xf32>
    %181 = arith.truncf %180 : vector<168x64xf32> to vector<168x64xbf16>
    %c14_121 = arith.constant 14 : index
    %c0_122 = arith.constant 0 : index
    %182 = vector.load %arg10[%c14_121, %c0_122] : memref<184x64xf32, #tpu.memory_space<vmem>>, vector<168x64xf32>
    %c0_123 = arith.constant 0 : index
    %c6_124 = arith.constant 6 : index
    %183 = vector.load %arg2[%c0_123, %c6_124] : memref<168x9xbf16, #tpu.memory_space<vmem>>, vector<168x1xbf16>
    %184 = arith.extf %183 : vector<168x1xbf16> to vector<168x1xf32>
    %185 = vector.broadcast %184 : vector<168x1xf32> to vector<168x64xf32>
    %186 = arith.mulf %182, %185 : vector<168x64xf32>
    %187 = arith.truncf %186 : vector<168x64xf32> to vector<168x64xbf16>
    %c15_125 = arith.constant 15 : index
    %c0_126 = arith.constant 0 : index
    %188 = vector.load %arg10[%c15_125, %c0_126] : memref<184x64xf32, #tpu.memory_space<vmem>>, vector<168x64xf32>
    %c0_127 = arith.constant 0 : index
    %c7_128 = arith.constant 7 : index
    %189 = vector.load %arg2[%c0_127, %c7_128] : memref<168x9xbf16, #tpu.memory_space<vmem>>, vector<168x1xbf16>
    %190 = arith.extf %189 : vector<168x1xbf16> to vector<168x1xf32>
    %191 = vector.broadcast %190 : vector<168x1xf32> to vector<168x64xf32>
    %192 = arith.mulf %188, %191 : vector<168x64xf32>
    %193 = arith.truncf %192 : vector<168x64xf32> to vector<168x64xbf16>
    %c16_129 = arith.constant 16 : index
    %c0_130 = arith.constant 0 : index
    %194 = vector.load %arg10[%c16_129, %c0_130] : memref<184x64xf32, #tpu.memory_space<vmem>>, vector<168x64xf32>
    %c0_131 = arith.constant 0 : index
    %c8_132 = arith.constant 8 : index
    %195 = vector.load %arg2[%c0_131, %c8_132] : memref<168x9xbf16, #tpu.memory_space<vmem>>, vector<168x1xbf16>
    %196 = arith.extf %195 : vector<168x1xbf16> to vector<168x1xf32>
    %197 = vector.broadcast %196 : vector<168x1xf32> to vector<168x64xf32>
    %198 = arith.mulf %194, %197 : vector<168x64xf32>
    %199 = arith.truncf %198 : vector<168x64xf32> to vector<168x64xbf16>
    %200 = tpu.concatenate %151, %157, %163, %169, %175, %181, %187, %193, %199 in 1 : vector<168x64xbf16>, vector<168x64xbf16>, vector<168x64xbf16>, vector<168x64xbf16>, vector<168x64xbf16>, vector<168x64xbf16>, vector<168x64xbf16>, vector<168x64xbf16>, vector<168x64xbf16> -> vector<168x576xbf16>
    %cst_133 = arith.constant dense<0.000000e+00> : vector<168x64xf32>
    %201 = tpu.matmul %200, %143, %cst_133 {dimension_numbers = #tpu.dot_dimension_numbers<[1], [0], [0], [1], [0, 0, 1, 1], [], []>} : vector<168x576xbf16>, vector<576x64xbf16>, vector<168x64xf32> -> vector<168x64xf32>
    %202 = vector.broadcast %144 : vector<1x64xf32> to vector<168x64xf32>
    %203 = arith.addf %201, %202 : vector<168x64xf32>
    %cst_134 = arith.constant 0.000000e+00 : f32
    %204 = vector.broadcast %cst_134 : f32 to vector<168x64xf32>
    %205 = arith.maximumf %203, %204 : vector<168x64xf32>
    %c3_135 = arith.constant 3 : index
    %c0_136 = arith.constant 0 : index
    %c0_137 = arith.constant 0 : index
    %206 = vector.load %arg5[%c3_135, %c0_136, %c0_137] : memref<4x576x64xbf16, #tpu.memory_space<vmem>>, vector<1x576x64xbf16>
    %207 = vector.shape_cast %206 : vector<1x576x64xbf16> to vector<576x64xbf16>
    %c4_138 = arith.constant 4 : index
    %c0_139 = arith.constant 0 : index
    %208 = vector.load %arg7[%c4_138, %c0_139] : memref<8x128xf32, #tpu.memory_space<vmem>>, vector<1x64xf32>
    %c8_140 = arith.constant 8 : index
    %c0_141 = arith.constant 0 : index
    %209 = vector.load %arg10[%c8_140, %c0_141] : memref<184x64xf32, #tpu.memory_space<vmem>>, vector<168x64xf32>
    tpu.vector_store %arg10[%c8_140, %c0_141], %205 {strides = array<i32>} : memref<184x64xf32, #tpu.memory_space<vmem>>, vector<168x64xf32>,
    %c0_142 = arith.constant 0 : index
    %c0_143 = arith.constant 0 : index
    %210 = vector.load %arg10[%c0_142, %c0_143] : memref<184x64xf32, #tpu.memory_space<vmem>>, vector<168x64xf32>
    %c0_144 = arith.constant 0 : index
    %c0_145 = arith.constant 0 : index
    %211 = vector.load %arg2[%c0_144, %c0_145] : memref<168x9xbf16, #tpu.memory_space<vmem>>, vector<168x1xbf16>
    %212 = arith.extf %211 : vector<168x1xbf16> to vector<168x1xf32>
    %213 = vector.broadcast %212 : vector<168x1xf32> to vector<168x64xf32>
    %214 = arith.mulf %210, %213 : vector<168x64xf32>
    %215 = arith.truncf %214 : vector<168x64xf32> to vector<168x64xbf16>
    %c1_146 = arith.constant 1 : index
    %c0_147 = arith.constant 0 : index
    %216 = vector.load %arg10[%c1_146, %c0_147] : memref<184x64xf32, #tpu.memory_space<vmem>>, vector<168x64xf32>
    %c0_148 = arith.constant 0 : index
    %c1_149 = arith.constant 1 : index
    %217 = vector.load %arg2[%c0_148, %c1_149] : memref<168x9xbf16, #tpu.memory_space<vmem>>, vector<168x1xbf16>
    %218 = arith.extf %217 : vector<168x1xbf16> to vector<168x1xf32>
    %219 = vector.broadcast %218 : vector<168x1xf32> to vector<168x64xf32>
    %220 = arith.mulf %216, %219 : vector<168x64xf32>
    %221 = arith.truncf %220 : vector<168x64xf32> to vector<168x64xbf16>
    %c2_150 = arith.constant 2 : index
    %c0_151 = arith.constant 0 : index
    %222 = vector.load %arg10[%c2_150, %c0_151] : memref<184x64xf32, #tpu.memory_space<vmem>>, vector<168x64xf32>
    %c0_152 = arith.constant 0 : index
    %c2_153 = arith.constant 2 : index
    %223 = vector.load %arg2[%c0_152, %c2_153] : memref<168x9xbf16, #tpu.memory_space<vmem>>, vector<168x1xbf16>
    %224 = arith.extf %223 : vector<168x1xbf16> to vector<168x1xf32>
    %225 = vector.broadcast %224 : vector<168x1xf32> to vector<168x64xf32>
    %226 = arith.mulf %222, %225 : vector<168x64xf32>
    %227 = arith.truncf %226 : vector<168x64xf32> to vector<168x64xbf16>
    %c7_154 = arith.constant 7 : index
    %c0_155 = arith.constant 0 : index
    %228 = vector.load %arg10[%c7_154, %c0_155] : memref<184x64xf32, #tpu.memory_space<vmem>>, vector<168x64xf32>
    %c0_156 = arith.constant 0 : index
    %c3_157 = arith.constant 3 : index
    %229 = vector.load %arg2[%c0_156, %c3_157] : memref<168x9xbf16, #tpu.memory_space<vmem>>, vector<168x1xbf16>
    %230 = arith.extf %229 : vector<168x1xbf16> to vector<168x1xf32>
    %231 = vector.broadcast %230 : vector<168x1xf32> to vector<168x64xf32>
    %232 = arith.mulf %228, %231 : vector<168x64xf32>
    %233 = arith.truncf %232 : vector<168x64xf32> to vector<168x64xbf16>
    %c8_158 = arith.constant 8 : index
    %c0_159 = arith.constant 0 : index
    %234 = vector.load %arg10[%c8_158, %c0_159] : memref<184x64xf32, #tpu.memory_space<vmem>>, vector<168x64xf32>
    %c0_160 = arith.constant 0 : index
    %c4_161 = arith.constant 4 : index
    %235 = vector.load %arg2[%c0_160, %c4_161] : memref<168x9xbf16, #tpu.memory_space<vmem>>, vector<168x1xbf16>
    %236 = arith.extf %235 : vector<168x1xbf16> to vector<168x1xf32>
    %237 = vector.broadcast %236 : vector<168x1xf32> to vector<168x64xf32>
    %238 = arith.mulf %234, %237 : vector<168x64xf32>
    %239 = arith.truncf %238 : vector<168x64xf32> to vector<168x64xbf16>
    %c9_162 = arith.constant 9 : index
    %c0_163 = arith.constant 0 : index
    %240 = vector.load %arg10[%c9_162, %c0_163] : memref<184x64xf32, #tpu.memory_space<vmem>>, vector<168x64xf32>
    %c0_164 = arith.constant 0 : index
    %c5_165 = arith.constant 5 : index
    %241 = vector.load %arg2[%c0_164, %c5_165] : memref<168x9xbf16, #tpu.memory_space<vmem>>, vector<168x1xbf16>
    %242 = arith.extf %241 : vector<168x1xbf16> to vector<168x1xf32>
    %243 = vector.broadcast %242 : vector<168x1xf32> to vector<168x64xf32>
    %244 = arith.mulf %240, %243 : vector<168x64xf32>
    %245 = arith.truncf %244 : vector<168x64xf32> to vector<168x64xbf16>
    %c14_166 = arith.constant 14 : index
    %c0_167 = arith.constant 0 : index
    %246 = vector.load %arg10[%c14_166, %c0_167] : memref<184x64xf32, #tpu.memory_space<vmem>>, vector<168x64xf32>
    %c0_168 = arith.constant 0 : index
    %c6_169 = arith.constant 6 : index
    %247 = vector.load %arg2[%c0_168, %c6_169] : memref<168x9xbf16, #tpu.memory_space<vmem>>, vector<168x1xbf16>
    %248 = arith.extf %247 : vector<168x1xbf16> to vector<168x1xf32>
    %249 = vector.broadcast %248 : vector<168x1xf32> to vector<168x64xf32>
    %250 = arith.mulf %246, %249 : vector<168x64xf32>
    %251 = arith.truncf %250 : vector<168x64xf32> to vector<168x64xbf16>
    %c15_170 = arith.constant 15 : index
    %c0_171 = arith.constant 0 : index
    %252 = vector.load %arg10[%c15_170, %c0_171] : memref<184x64xf32, #tpu.memory_space<vmem>>, vector<168x64xf32>
    %c0_172 = arith.constant 0 : index
    %c7_173 = arith.constant 7 : index
    %253 = vector.load %arg2[%c0_172, %c7_173] : memref<168x9xbf16, #tpu.memory_space<vmem>>, vector<168x1xbf16>
    %254 = arith.extf %253 : vector<168x1xbf16> to vector<168x1xf32>
    %255 = vector.broadcast %254 : vector<168x1xf32> to vector<168x64xf32>
    %256 = arith.mulf %252, %255 : vector<168x64xf32>
    %257 = arith.truncf %256 : vector<168x64xf32> to vector<168x64xbf16>
    %c16_174 = arith.constant 16 : index
    %c0_175 = arith.constant 0 : index
    %258 = vector.load %arg10[%c16_174, %c0_175] : memref<184x64xf32, #tpu.memory_space<vmem>>, vector<168x64xf32>
    %c0_176 = arith.constant 0 : index
    %c8_177 = arith.constant 8 : index
    %259 = vector.load %arg2[%c0_176, %c8_177] : memref<168x9xbf16, #tpu.memory_space<vmem>>, vector<168x1xbf16>
    %260 = arith.extf %259 : vector<168x1xbf16> to vector<168x1xf32>
    %261 = vector.broadcast %260 : vector<168x1xf32> to vector<168x64xf32>
    %262 = arith.mulf %258, %261 : vector<168x64xf32>
    %263 = arith.truncf %262 : vector<168x64xf32> to vector<168x64xbf16>
    %264 = tpu.concatenate %215, %221, %227, %233, %239, %245, %251, %257, %263 in 1 : vector<168x64xbf16>, vector<168x64xbf16>, vector<168x64xbf16>, vector<168x64xbf16>, vector<168x64xbf16>, vector<168x64xbf16>, vector<168x64xbf16>, vector<168x64xbf16>, vector<168x64xbf16> -> vector<168x576xbf16>
    %cst_178 = arith.constant dense<0.000000e+00> : vector<168x64xf32>
    %265 = tpu.matmul %264, %207, %cst_178 {dimension_numbers = #tpu.dot_dimension_numbers<[1], [0], [0], [1], [0, 0, 1, 1], [], []>} : vector<168x576xbf16>, vector<576x64xbf16>, vector<168x64xf32> -> vector<168x64xf32>
    %266 = vector.broadcast %208 : vector<1x64xf32> to vector<168x64xf32>
    %267 = arith.addf %265, %266 : vector<168x64xf32>
    %268 = arith.addf %267, %141 : vector<168x64xf32>
    %cst_179 = arith.constant 0.000000e+00 : f32
    %269 = vector.broadcast %cst_179 : f32 to vector<168x64xf32>
    %270 = arith.maximumf %268, %269 : vector<168x64xf32>
    %271 = arith.truncf %270 : vector<168x64xf32> to vector<168x64xbf16>
    %c0_180 = arith.constant 0 : index
    %c0_181 = arith.constant 0 : index
    %272 = vector.load %arg6[%c0_180, %c0_181] : memref<64x8xbf16, #tpu.memory_space<vmem>>, vector<64x8xbf16>
    %cst_182 = arith.constant dense<0.000000e+00> : vector<168x8xf32>
    %273 = tpu.matmul %271, %272, %cst_182 {dimension_numbers = #tpu.dot_dimension_numbers<[1], [0], [0], [1], [0, 0, 1, 1], [], []>} : vector<168x64xbf16>, vector<64x8xbf16>, vector<168x8xf32> -> vector<168x8xf32>
    %c5_183 = arith.constant 5 : index
    %c0_184 = arith.constant 0 : index
    %274 = vector.load %arg7[%c5_183, %c0_184] : memref<8x128xf32, #tpu.memory_space<vmem>>, vector<1x8xf32>
    %275 = vector.broadcast %274 : vector<1x8xf32> to vector<168x8xf32>
    %276 = arith.addf %273, %275 : vector<168x8xf32>
    %cst_185 = arith.constant 0.000000e+00 : f32
    %277 = vector.broadcast %cst_185 : f32 to vector<168x8xf32>
    %278 = arith.maximumf %276, %277 : vector<168x8xf32>
    %279 = vector.extract_strided_slice %278 {offsets = [0, 0], sizes = [168, 1], strides = [1, 1]} : vector<168x8xf32> to vector<168x1xf32>
    %280 = vector.extract_strided_slice %278 {offsets = [0, 1], sizes = [168, 1], strides = [1, 1]} : vector<168x8xf32> to vector<168x1xf32>
    %281 = vector.extract_strided_slice %278 {offsets = [0, 2], sizes = [168, 1], strides = [1, 1]} : vector<168x8xf32> to vector<168x1xf32>
    %c0_186 = arith.constant 0 : index
    %c0_187 = arith.constant 0 : index
    %c0_188 = arith.constant 0 : index
    %282 = vector.load %arg8[%c0_186, %c0_187, %c0_188] : memref<3x168x128xbf16, #tpu.memory_space<vmem>>, vector<1x168x128xbf16>
    %283 = vector.shape_cast %282 : vector<1x168x128xbf16> to vector<168x128xbf16>
    %284 = arith.extf %283 : vector<168x128xbf16> to vector<168x128xf32>
    %285 = vector.broadcast %279 : vector<168x1xf32> to vector<168x128xf32>
    %286 = arith.mulf %285, %284 : vector<168x128xf32>
    %c1_189 = arith.constant 1 : index
    %c0_190 = arith.constant 0 : index
    %c0_191 = arith.constant 0 : index
    %287 = vector.load %arg8[%c1_189, %c0_190, %c0_191] : memref<3x168x128xbf16, #tpu.memory_space<vmem>>, vector<1x168x128xbf16>
    %288 = vector.shape_cast %287 : vector<1x168x128xbf16> to vector<168x128xbf16>
    %289 = arith.extf %288 : vector<168x128xbf16> to vector<168x128xf32>
    %290 = vector.broadcast %280 : vector<168x1xf32> to vector<168x128xf32>
    %291 = arith.mulf %290, %289 : vector<168x128xf32>
    %292 = arith.addf %286, %291 : vector<168x128xf32>
    %c2_192 = arith.constant 2 : index
    %c0_193 = arith.constant 0 : index
    %c0_194 = arith.constant 0 : index
    %293 = vector.load %arg8[%c2_192, %c0_193, %c0_194] : memref<3x168x128xbf16, #tpu.memory_space<vmem>>, vector<1x168x128xbf16>
    %294 = vector.shape_cast %293 : vector<1x168x128xbf16> to vector<168x128xbf16>
    %295 = arith.extf %294 : vector<168x128xbf16> to vector<168x128xf32>
    %296 = vector.broadcast %281 : vector<168x1xf32> to vector<168x128xf32>
    %297 = arith.mulf %296, %295 : vector<168x128xf32>
    %298 = arith.addf %292, %297 : vector<168x128xf32>
    %299 = arith.truncf %298 : vector<168x128xf32> to vector<168x128xbf16>
    %c0_195 = arith.constant 0 : index
    %c0_196 = arith.constant 0 : index
    %300 = vector.load %arg3[%c0_195, %c0_196] : memref<4x168xbf16, #tpu.memory_space<vmem>>, vector<4x168xbf16>
    %cst_197 = arith.constant dense<0.000000e+00> : vector<4x128xf32>
    %301 = tpu.matmul %300, %299, %cst_197 {dimension_numbers = #tpu.dot_dimension_numbers<[1], [0], [0], [1], [0, 0, 1, 1], [], []>} : vector<4x168xbf16>, vector<168x128xbf16>, vector<4x128xf32> -> vector<4x128xf32>
    %c6_198 = arith.constant 6 : index
    %c0_199 = arith.constant 0 : index
    %302 = vector.load %arg7[%c6_198, %c0_199] : memref<8x128xf32, #tpu.memory_space<vmem>>, vector<1x128xf32>
    %303 = vector.broadcast %302 : vector<1x128xf32> to vector<4x128xf32>
    %304 = arith.addf %301, %303 : vector<4x128xf32>
    %305 = tpu.iota {dimensions = array<i32: 1>} : vector<4x128xi32>
    %c7_i32 = arith.constant 7 : i32
    %306 = vector.broadcast %c7_i32 : i32 to vector<4x128xi32>
    %307 = arith.cmpi slt, %305, %306 : vector<4x128xi32>
    %cst_200 = arith.constant 0.000000e+00 : f32
    %308 = vector.broadcast %cst_200 : f32 to vector<4x128xf32>
    %309 = arith.maximumf %304, %308 : vector<4x128xf32>
    %c7_201 = arith.constant 7 : index
    %c0_202 = arith.constant 0 : index
    %310 = vector.load %arg7[%c7_201, %c0_202] : memref<8x128xf32, #tpu.memory_space<vmem>>, vector<1x128xf32>
    %311 = vector.broadcast %310 : vector<1x128xf32> to vector<4x128xf32>
    %312 = arith.mulf %309, %311 : vector<4x128xf32>
    %cst_203 = arith.constant dense<0.000000e+00> : vector<4xf32>
    %313 = vector.multi_reduction <add>, %312, %cst_203 [1] : vector<4x128xf32> to vector<4xf32>
    %314 = vector.shape_cast %313 : vector<4xf32> to vector<4x1xf32>
    %c6_204 = arith.constant 6 : index
    %c71 = arith.constant 71 : index
    %315 = vector.load %arg7[%c6_204, %c71] : memref<8x128xf32, #tpu.memory_space<vmem>>, vector<1x1xf32>
    %316 = vector.broadcast %315 : vector<1x1xf32> to vector<4x1xf32>
    %317 = arith.addf %314, %316 : vector<4x1xf32>
    %318 = math.tanh %317 : vector<4x1xf32>
    %cst_205 = arith.constant 0xFF800000 : f32
    %319 = vector.broadcast %cst_205 : f32 to vector<4x128xf32>
    %320 = arith.select %307, %304, %319 : vector<4x128xi1>, vector<4x128xf32>
    %cst_206 = arith.constant dense<0xFF800000> : vector<4xf32>
    %321 = vector.multi_reduction <maximumf>, %320, %cst_206 [1] : vector<4x128xf32> to vector<4xf32>
    %322 = vector.shape_cast %321 : vector<4xf32> to vector<4x1xf32>
    %323 = vector.broadcast %322 : vector<4x1xf32> to vector<4x128xf32>
    %324 = arith.subf %320, %323 : vector<4x128xf32>
    %325 = math.exp %324 : vector<4x128xf32>
    %cst_207 = arith.constant dense<0.000000e+00> : vector<4xf32>
    %326 = vector.multi_reduction <add>, %325, %cst_207 [1] : vector<4x128xf32> to vector<4xf32>
    %327 = vector.shape_cast %326 : vector<4xf32> to vector<4x1xf32>
    %328 = math.log %327 : vector<4x1xf32>
    %329 = vector.broadcast %328 : vector<4x1xf32> to vector<4x128xf32>
    %330 = arith.subf %324, %329 : vector<4x128xf32>
    %c7_i32_208 = arith.constant 7 : i32
    %331 = vector.broadcast %c7_i32_208 : i32 to vector<4x128xi32>
    %332 = arith.cmpi eq, %305, %331 : vector<4x128xi32>
    %cst_209 = arith.constant 0.000000e+00 : f32
    %333 = vector.shape_cast %318 : vector<4x1xf32> to vector<4x1xf32>
    %334 = vector.broadcast %333 : vector<4x1xf32> to vector<4x128xf32>
    %335 = vector.broadcast %cst_209 : f32 to vector<4x128xf32>
    %336 = arith.select %332, %334, %335 : vector<4x128xi1>, vector<4x128xf32>
    %337 = arith.select %307, %330, %336 : vector<4x128xi1>, vector<4x128xf32>
    %c0_210 = arith.constant 0 : index
    %c0_211 = arith.constant 0 : index
    %c0_212 = arith.constant 0 : index
    %338 = vector.load %arg9[%c0_210, %c0_211, %c0_212] : memref<1x4x128xf32, #tpu.memory_space<vmem>>, vector<1x4x128xf32>
    %339 = vector.shape_cast %338 : vector<1x4x128xf32> to vector<4x128xf32>
    %340 = vector.shape_cast %337 : vector<4x128xf32> to vector<1x4x128xf32>
    tpu.vector_store %arg9[%c0_210, %c0_211, %c0_212], %340 {strides = array<i32>} : memref<1x4x128xf32, #tpu.memory_space<vmem>>, vector<1x4x128xf32>,
    return
  }
  func.func @transform_0(%arg0: i32) -> (i32, i32, i32) {
    %c0_i32 = arith.constant 0 : i32
    %c0_i32_0 = arith.constant 0 : i32
    %c0_i32_1 = arith.constant 0 : i32
    return %arg0, %c0_i32, %c0_i32_0 : i32, i32, i32
  }
  func.func @transform_1(%arg0: i32) -> (i32, i32) {
    %c0_i32 = arith.constant 0 : i32
    %c0_i32_0 = arith.constant 0 : i32
    %c0_i32_1 = arith.constant 0 : i32
    return %c0_i32, %c0_i32_0 : i32, i32
  }
  func.func @transform_2(%arg0: i32) -> (i32, i32) {
    %c0_i32 = arith.constant 0 : i32
    %c0_i32_0 = arith.constant 0 : i32
    %c0_i32_1 = arith.constant 0 : i32
    return %c0_i32, %c0_i32_0 : i32, i32
  }
  func.func @transform_3(%arg0: i32) -> (i32, i32) {
    %c0_i32 = arith.constant 0 : i32
    %c0_i32_0 = arith.constant 0 : i32
    %c0_i32_1 = arith.constant 0 : i32
    return %c0_i32, %c0_i32_0 : i32, i32
  }
  func.func @transform_4(%arg0: i32) -> (i32, i32, i32) {
    %c0_i32 = arith.constant 0 : i32
    %c0_i32_0 = arith.constant 0 : i32
    %c0_i32_1 = arith.constant 0 : i32
    %c0_i32_2 = arith.constant 0 : i32
    return %c0_i32, %c0_i32_0, %c0_i32_1 : i32, i32, i32
  }
  func.func @transform_5(%arg0: i32) -> (i32, i32) {
    %c0_i32 = arith.constant 0 : i32
    %c0_i32_0 = arith.constant 0 : i32
    %c0_i32_1 = arith.constant 0 : i32
    return %c0_i32, %c0_i32_0 : i32, i32
  }
  func.func @transform_6(%arg0: i32) -> (i32, i32) {
    %c0_i32 = arith.constant 0 : i32
    %c0_i32_0 = arith.constant 0 : i32
    %c0_i32_1 = arith.constant 0 : i32
    return %c0_i32, %c0_i32_0 : i32, i32
  }
  func.func @transform_7(%arg0: i32) -> (i32, i32, i32) {
    %c0_i32 = arith.constant 0 : i32
    %c0_i32_0 = arith.constant 0 : i32
    %c0_i32_1 = arith.constant 0 : i32
    %c0_i32_2 = arith.constant 0 : i32
    return %c0_i32, %c0_i32_0, %c0_i32_1 : i32, i32, i32
  }
  func.func @transform_8(%arg0: i32) -> (i32, i32, i32) {
    %c0_i32 = arith.constant 0 : i32
    %c0_i32_0 = arith.constant 0 : i32
    %c0_i32_1 = arith.constant 0 : i32
    return %arg0, %c0_i32, %c0_i32_0 : i32, i32, i32
  }
}

</mosaic_0001>

<llo_original>
// kernel: tile.2
$region0: #{tile.2}
  %s0 = inlined_call_operand.vmem [shape: bf16[4,42,7], index: 0, kind: input, shape index: {}]
  %s1 = inlined_call_operand.vmem [shape: bf16[168,7], index: 1, kind: output, shape index: {}]
  $region1: #{tile.2} parent=0
    #allocation0 [shape = 'u8[8192]{0}', space=vmem, size = 0x2000, scoped, tag = 'scoped mem for output reshape']
    #allocation1 [shape = 'u8[28672]{0}', space=vmem, size = 0x7000, scoped, tag = 'scoped mem for input reshape']
    %s3 = smul.u32 2, 2
    %s4 = sshll.u32 1, %s3
    %s5 = ssub.s32 %s4, 1
    %s6 = smul.addr 2, 6
    %s7 = scalar_lea.vmem %s0, %s6
    %s8 = sshrl.u32 %s5, 1
    %s9 = sor.u32 %s5, %s8
    %s10 = sand.u32 %s9, 85
    %s11 = sshrl.u32 %s10, 1
    %s12 = sor.u32 %s10, %s11
    %s13 = sand.u32 51, %s12
    %s14 = sshrl.u32 %s13, 2
    %s15 = sor.u32 %s13, %s14
    %s16 = sand.u32 15, %s15
    %v17 = vld [vmem:[%s7] sm:%s16]
    %v18 = vunpack.c.l.bf16 %v17
    %v19 = vunpack.c.h.bf16 %v17
    %s20 = scalar_lea.vmem [#allocation1], 48
    %21 = vst [vmem:[%s20] sm:%s5] %v18
    %s22 = smul.addr 2, 5
    %s23 = scalar_lea.vmem %s0, %s22
    %s24 = sshrl.u32 %s5, 1
    %s25 = sor.u32 %s5, %s24
    %s26 = sand.u32 %s25, 85
    %s27 = sshrl.u32 %s26, 1
    %s28 = sor.u32 %s26, %s27
    %s29 = sand.u32 51, %s28
    %s30 = sshrl.u32 %s29, 2
    %s31 = sor.u32 %s29, %s30
    %s32 = sand.u32 15, %s31
    %v33 = vld [vmem:[%s23] sm:%s32]
    %v34 = vunpack.c.l.bf16 %v33
    %v35 = vunpack.c.h.bf16 %v33
    %s36 = scalar_lea.vmem [#allocation1], 40
    %37 = vst [vmem:[%s36] sm:%s5] %v34
    %s38 = smul.addr 2, 4
    %s39 = scalar_lea.vmem %s0, %s38
    %s40 = sshrl.u32 %s5, 1
    %s41 = sor.u32 %s5, %s40
    %s42 = sand.u32 %s41, 85
    %s43 = sshrl.u32 %s42, 1
    %s44 = sor.u32 %s42, %s43
    %s45 = sand.u32 51, %s44
    %s46 = sshrl.u32 %s45, 2
    %s47 = sor.u32 %s45, %s46
    %s48 = sand.u32 15, %s47
    %v49 = vld [vmem:[%s39] sm:%s48]
    %v50 = vunpack.c.l.bf16 %v49
    %v51 = vunpack.c.h.bf16 %v49
    %s52 = scalar_lea.vmem [#allocation1], 32
    %53 = vst [vmem:[%s52] sm:%s5] %v50
    %s54 = smul.addr 2, 3
    %s55 = scalar_lea.vmem %s0, %s54
    %s56 = sshrl.u32 %s5, 1
    %s57 = sor.u32 %s5, %s56
    %s58 = sand.u32 %s57, 85
    %s59 = sshrl.u32 %s58, 1
    %s60 = sor.u32 %s58, %s59
    %s61 = sand.u32 51, %s60
    %s62 = sshrl.u32 %s61, 2
    %s63 = sor.u32 %s61, %s62
    %s64 = sand.u32 15, %s63
    %v65 = vld [vmem:[%s55] sm:%s64]
    %v66 = vunpack.c.l.bf16 %v65
    %v67 = vunpack.c.h.bf16 %v65
    %s68 = scalar_lea.vmem [#allocation1], 24
    %69 = vst [vmem:[%s68] sm:%s5] %v66
    %s70 = smul.addr 2, 2
    %s71 = scalar_lea.vmem %s0, %s70
    %s72 = sshrl.u32 %s5, 1
    %s73 = sor.u32 %s5, %s72
    %s74 = sand.u32 %s73, 85
    %s75 = sshrl.u32 %s74, 1
    %s76 = sor.u32 %s74, %s75
    %s77 = sand.u32 51, %s76
    %s78 = sshrl.u32 %s77, 2
    %s79 = sor.u32 %s77, %s78
    %s80 = sand.u32 15, %s79
    %v81 = vld [vmem:[%s71] sm:%s80]
    %v82 = vunpack.c.l.bf16 %v81
    %v83 = vunpack.c.h.bf16 %v81
    %s84 = scalar_lea.vmem [#allocation1], 16
    %85 = vst [vmem:[%s84] sm:%s5] %v82
    %s86 = scalar_lea.vmem %s0, 2
    %s87 = sshrl.u32 %s5, 1
    %s88 = sor.u32 %s5, %s87
    %s89 = sand.u32 %s88, 85
    %s90 = sshrl.u32 %s89, 1
    %s91 = sor.u32 %s89, %s90
    %s92 = sand.u32 51, %s91
    %s93 = sshrl.u32 %s92, 2
    %s94 = sor.u32 %s92, %s93
    %s95 = sand.u32 15, %s94
    %v96 = vld [vmem:[%s86] sm:%s95]
    %v97 = vunpack.c.l.bf16 %v96
    %v98 = vunpack.c.h.bf16 %v96
    %s99 = scalar_lea.vmem [#allocation1], 8
    %100 = vst [vmem:[%s99] sm:%s5] %v97
    %s101 = sshrl.u32 %s5, 1
    %s102 = sor.u32 %s5, %s101
    %s103 = sand.u32 %s102, 85
    %s104 = sshrl.u32 %s103, 1
    %s105 = sor.u32 %s103, %s104
    %s106 = sand.u32 51, %s105
    %s107 = sshrl.u32 %s106, 2
    %s108 = sor.u32 %s106, %s107
    %s109 = sand.u32 15, %s108
    %v110 = vld [vmem:[%s0] sm:%s109]
    %v111 = vunpack.c.l.bf16 %v110
    %v112 = vunpack.c.h.bf16 %v110
    %113 = vst [vmem:[#allocation1] sm:%s5] %v111
    %v114 = vld [vmem:[#allocation1] ss:$8 sm:$0xf]
    %v115 = vld [vmem:[#allocation1] ss:$8 sm:$0x70]
    %vm116 = vcmask 1046532
    %v117 = vsel %vm116, %v115, %v114
    %vm118 = vcmask 343040
    %119 = vst.msk [vmem:[#allocation0] sm:$0x7f] %vm118, %v117
    %s120 = scalar_lea.vmem [#allocation1], 3
    %v121 = vld [vmem:[%s120] ss:$8 sm:$0xf]
    %s122 = scalar_lea.vmem [#allocation1], 3
    %v123 = vld [vmem:[%s122] ss:$8 sm:$0x70]
    %vm124 = vcmask 1046532
    %v125 = vsel %vm124, %v123, %v121
    %s126 = scalar_lea.vmem [#allocation1], 3
    %v127 = vld [vmem:[%s126] ss:$8 sm:$0xf]
    %s128 = scalar_lea.vmem [#allocation1], 3
    %v129 = vld [vmem:[%s128] ss:$8 sm:$0x70]
    %vm130 = vcmask 1046532
    %v131 = vsel %vm130, %v129, %v127
    %vm132 = vcmask 15360
    %v133 = vsel %vm132, %v131, %v125
    %134 = vrot.lane.b32.xlu0 %v133, 126
    %v135 = vpop.permute.xlu0 %134
    %vm136 = vcmask 326656
    %s137 = scalar_lea.vmem [#allocation0], 8
    %138 = vst.msk [vmem:[%s137] sm:$0x7f] %vm136, %v135
    %vm139 = vcmask 1048560
    %140 = vst.msk [vmem:[#allocation0] sm:$0x7f] %vm139, %v135
    %s141 = scalar_lea.vmem [#allocation1], 2
    %v142 = vld [vmem:[%s141] ss:$8 sm:$0xf]
    %s143 = scalar_lea.vmem [#allocation1], 2
    %v144 = vld [vmem:[%s143] ss:$8 sm:$0x70]
    %vm145 = vcmask 1046532
    %v146 = vsel %vm145, %v144, %v142
    %147 = vrot.lane.b32.xlu0 %v146, 84
    %v148 = vpop.permute.xlu0 %147
    %vm149 = vcmask 1031840
    %150 = vst.msk [vmem:[#allocation0] sm:$0x7f] %vm149, %v148
    %s151 = scalar_lea.vmem [#allocation1], 1
    %v152 = vld [vmem:[%s151] ss:$8 sm:$0xf]
    %s153 = scalar_lea.vmem [#allocation1], 1
    %v154 = vld [vmem:[%s153] ss:$8 sm:$0x70]
    %vm155 = vcmask 1046532
    %v156 = vsel %vm155, %v154, %v152
    %157 = vrot.lane.b32.xlu0 %v156, 42
    %v158 = vpop.permute.xlu0 %157
    %vm159 = vcmask 687440
    %160 = vst.msk [vmem:[#allocation0] sm:$0x7f] %vm159, %v158
    %s162 = smul.u32 4, 2
    %s163 = sshll.u32 1, %s162
    %s164 = ssub.s32 %s163, 1
    %s165 = sshrl.u32 %s162, 1
    %v166 = vld [vmem:[#allocation0] sm:%s164]
    %v167 = vpack.c.bf16 0.0, %v166
    %s168 = sshll.u32 1, %s165
    %s169 = ssub.s32 %s168, 1
    %170 = vst [vmem:[%s1] sm:%s169] %v167
    %s171 = scalar_lea.vmem [#allocation0], 8
    %v172 = vld [vmem:[%s171] sm:%s164]
    %v173 = vpack.c.bf16 0.0, %v172
    %s174 = sshll.u32 1, %s165
    %s175 = ssub.s32 %s174, 1
    %s176 = scalar_lea.vmem %s1, 4
    %177 = vst [vmem:[%s176] sm:%s175] %v173

// kernel: tile.0
$region0: #{tile.0}
  %s0 = inlined_call_operand.vmem [shape: bf16[4,42,64], index: 0, kind: input, shape index: {}]
  %s1 = inlined_call_operand.vmem [shape: bf16[168,64], index: 1, kind: output, shape index: {}]
  $region1: #{tile.0} parent=0
    #allocation0 [shape = 'u8[86016]{0}', space=vmem, size = 0x15000, scoped, tag = 'scoped mem for output reshape']
    #allocation1 [shape = 'u8[98304]{0}', space=vmem, size = 0x18000, scoped, tag = 'scoped mem for input reshape']
    %s3 = smul.u32 4, 2
    %s4 = sshll.u32 1, %s3
    %s5 = ssub.s32 %s4, 1
    %s6 = smul.addr 4, 23
    %s7 = scalar_lea.vmem %s0, %s6
    %s8 = sshrl.u32 %s5, 1
    %s9 = sor.u32 %s5, %s8
    %s10 = sand.u32 %s9, 85
    %s11 = sshrl.u32 %s10, 1
    %s12 = sor.u32 %s10, %s11
    %s13 = sand.u32 51, %s12
    %s14 = sshrl.u32 %s13, 2
    %s15 = sor.u32 %s13, %s14
    %s16 = sand.u32 15, %s15
    %v17 = vld [vmem:[%s7] sm:%s16]
    %v18 = vunpack.c.l.bf16 %v17
    %v19 = vunpack.c.h.bf16 %v17
    %s20 = scalar_lea.vmem [#allocation1], 184
    %21 = vst [vmem:[%s20] sm:%s5] %v18
    %s22 = smul.addr 4, 22
    %s23 = scalar_lea.vmem %s0, %s22
    %s24 = sshrl.u32 %s5, 1
    %s25 = sor.u32 %s5, %s24
    %s26 = sand.u32 %s25, 85
    %s27 = sshrl.u32 %s26, 1
    %s28 = sor.u32 %s26, %s27
    %s29 = sand.u32 51, %s28
    %s30 = sshrl.u32 %s29, 2
    %s31 = sor.u32 %s29, %s30
    %s32 = sand.u32 15, %s31
    %v33 = vld [vmem:[%s23] sm:%s32]
    %v34 = vunpack.c.l.bf16 %v33
    %v35 = vunpack.c.h.bf16 %v33
    %s36 = scalar_lea.vmem [#allocation1], 176
    %37 = vst [vmem:[%s36] sm:%s5] %v34
    %s38 = smul.addr 4, 21
    %s39 = scalar_lea.vmem %s0, %s38
    %s40 = sshrl.u32 %s5, 1
    %s41 = sor.u32 %s5, %s40
    %s42 = sand.u32 %s41, 85
    %s43 = sshrl.u32 %s42, 1
    %s44 = sor.u32 %s42, %s43
    %s45 = sand.u32 51, %s44
    %s46 = sshrl.u32 %s45, 2
    %s47 = sor.u32 %s45, %s46
    %s48 = sand.u32 15, %s47
    %v49 = vld [vmem:[%s39] sm:%s48]
    %v50 = vunpack.c.l.bf16 %v49
    %v51 = vunpack.c.h.bf16 %v49
    %s52 = scalar_lea.vmem [#allocation1], 168
    %53 = vst [vmem:[%s52] sm:%s5] %v50
    %s54 = smul.addr 4, 20
    %s55 = scalar_lea.vmem %s0, %s54
    %s56 = sshrl.u32 %s5, 1
    %s57 = sor.u32 %s5, %s56
    %s58 = sand.u32 %s57, 85
    %s59 = sshrl.u32 %s58, 1
    %s60 = sor.u32 %s58, %s59
    %s61 = sand.u32 51, %s60
    %s62 = sshrl.u32 %s61, 2
    %s63 = sor.u32 %s61, %s62
    %s64 = sand.u32 15, %s63
    %v65 = vld [vmem:[%s55] sm:%s64]
    %v66 = vunpack.c.l.bf16 %v65
    %v67 = vunpack.c.h.bf16 %v65
    %s68 = scalar_lea.vmem [#allocation1], 160
    %69 = vst [vmem:[%s68] sm:%s5] %v66
    %s70 = smul.addr 4, 19
    %s71 = scalar_lea.vmem %s0, %s70
    %s72 = sshrl.u32 %s5, 1
    %s73 = sor.u32 %s5, %s72
    %s74 = sand.u32 %s73, 85
    %s75 = sshrl.u32 %s74, 1
    %s76 = sor.u32 %s74, %s75
    %s77 = sand.u32 51, %s76
    %s78 = sshrl.u32 %s77, 2
    %s79 = sor.u32 %s77, %s78
    %s80 = sand.u32 15, %s79
    %v81 = vld [vmem:[%s71] sm:%s80]
    %v82 = vunpack.c.l.bf16 %v81
    %v83 = vunpack.c.h.bf16 %v81
    %s84 = scalar_lea.vmem [#allocation1], 152
    %85 = vst [vmem:[%s84] sm:%s5] %v82
    %s86 = smul.addr 4, 18
    %s87 = scalar_lea.vmem %s0, %s86
    %s88 = sshrl.u32 %s5, 1
    %s89 = sor.u32 %s5, %s88
    %s90 = sand.u32 %s89, 85
    %s91 = sshrl.u32 %s90, 1
    %s92 = sor.u32 %s90, %s91
    %s93 = sand.u32 51, %s92
    %s94 = sshrl.u32 %s93, 2
    %s95 = sor.u32 %s93, %s94
    %s96 = sand.u32 15, %s95
    %v97 = vld [vmem:[%s87] sm:%s96]
    %v98 = vunpack.c.l.bf16 %v97
    %v99 = vunpack.c.h.bf16 %v97
    %s100 = scalar_lea.vmem [#allocation1], 144
    %101 = vst [vmem:[%s100] sm:%s5] %v98
    %s102 = smul.addr 4, 17
    %s103 = scalar_lea.vmem %s0, %s102
    %s104 = sshrl.u32 %s5, 1
    %s105 = sor.u32 %s5, %s104
    %s106 = sand.u32 %s105, 85
    %s107 = sshrl.u32 %s106, 1
    %s108 = sor.u32 %s106, %s107
    %s109 = sand.u32 51, %s108
    %s110 = sshrl.u32 %s109, 2
    %s111 = sor.u32 %s109, %s110
    %s112 = sand.u32 15, %s111
    %v113 = vld [vmem:[%s103] sm:%s112]
    %v114 = vunpack.c.l.bf16 %v113
    %v115 = vunpack.c.h.bf16 %v113
    %s116 = scalar_lea.vmem [#allocation1], 136
    %117 = vst [vmem:[%s116] sm:%s5] %v114
    %s118 = smul.addr 4, 16
    %s119 = scalar_lea.vmem %s0, %s118
    %s120 = sshrl.u32 %s5, 1
    %s121 = sor.u32 %s5, %s120
    %s122 = sand.u32 %s121, 85
    %s123 = sshrl.u32 %s122, 1
    %s124 = sor.u32 %s122, %s123
    %s125 = sand.u32 51, %s124
    %s126 = sshrl.u32 %s125, 2
    %s127 = sor.u32 %s125, %s126
    %s128 = sand.u32 15, %s127
    %v129 = vld [vmem:[%s119] sm:%s128]
    %v130 = vunpack.c.l.bf16 %v129
    %v131 = vunpack.c.h.bf16 %v129
    %s132 = scalar_lea.vmem [#allocation1], 128
    %133 = vst [vmem:[%s132] sm:%s5] %v130
    %s134 = smul.addr 4, 15
    %s135 = scalar_lea.vmem %s0, %s134
    %s136 = sshrl.u32 %s5, 1
    %s137 = sor.u32 %s5, %s136
    %s138 = sand.u32 %s137, 85
    %s139 = sshrl.u32 %s138, 1
    %s140 = sor.u32 %s138, %s139
    %s141 = sand.u32 51, %s140
    %s142 = sshrl.u32 %s141, 2
    %s143 = sor.u32 %s141, %s142
    %s144 = sand.u32 15, %s143
    %v145 = vld [vmem:[%s135] sm:%s144]
    %v146 = vunpack.c.l.bf16 %v145
    %v147 = vunpack.c.h.bf16 %v145
    %s148 = scalar_lea.vmem [#allocation1], 120
    %149 = vst [vmem:[%s148] sm:%s5] %v146
    %s150 = smul.addr 4, 14
    %s151 = scalar_lea.vmem %s0, %s150
    %s152 = sshrl.u32 %s5, 1
    %s153 = sor.u32 %s5, %s152
    %s154 = sand.u32 %s153, 85
    %s155 = sshrl.u32 %s154, 1
    %s156 = sor.u32 %s154, %s155
    %s157 = sand.u32 51, %s156
    %s158 = sshrl.u32 %s157, 2
    %s159 = sor.u32 %s157, %s158
    %s160 = sand.u32 15, %s159
    %v161 = vld [vmem:[%s151] sm:%s160]
    %v162 = vunpack.c.l.bf16 %v161
    %v163 = vunpack.c.h.bf16 %v161
    %s164 = scalar_lea.vmem [#allocation1], 112
    %165 = vst [vmem:[%s164] sm:%s5] %v162
    %s166 = smul.addr 4, 13
    %s167 = scalar_lea.vmem %s0, %s166
    %s168 = sshrl.u32 %s5, 1
    %s169 = sor.u32 %s5, %s168
    %s170 = sand.u32 %s169, 85
    %s171 = sshrl.u32 %s170, 1
    %s172 = sor.u32 %s170, %s171
    %s173 = sand.u32 51, %s172
    %s174 = sshrl.u32 %s173, 2
    %s175 = sor.u32 %s173, %s174
    %s176 = sand.u32 15, %s175
    %v177 = vld [vmem:[%s167] sm:%s176]
    %v178 = vunpack.c.l.bf16 %v177
    %v179 = vunpack.c.h.bf16 %v177
    %s180 = scalar_lea.vmem [#allocation1], 104
    %181 = vst [vmem:[%s180] sm:%s5] %v178
    %s182 = smul.addr 4, 12
    %s183 = scalar_lea.vmem %s0, %s182
    %s184 = sshrl.u32 %s5, 1
    %s185 = sor.u32 %s5, %s184
    %s186 = sand.u32 %s185, 85
    %s187 = sshrl.u32 %s186, 1
    %s188 = sor.u32 %s186, %s187
    %s189 = sand.u32 51, %s188
    %s190 = sshrl.u32 %s189, 2
    %s191 = sor.u32 %s189, %s190
    %s192 = sand.u32 15, %s191
    %v193 = vld [vmem:[%s183] sm:%s192]
    %v194 = vunpack.c.l.bf16 %v193
    %v195 = vunpack.c.h.bf16 %v193
    %s196 = scalar_lea.vmem [#allocation1], 96
    %197 = vst [vmem:[%s196] sm:%s5] %v194
    %s198 = smul.addr 4, 11
    %s199 = scalar_lea.vmem %s0, %s198
    %s200 = sshrl.u32 %s5, 1
    %s201 = sor.u32 %s5, %s200
    %s202 = sand.u32 %s201, 85
    %s203 = sshrl.u32 %s202, 1
    %s204 = sor.u32 %s202, %s203
    %s205 = sand.u32 51, %s204
    %s206 = sshrl.u32 %s205, 2
    %s207 = sor.u32 %s205, %s206
    %s208 = sand.u32 15, %s207
    %v209 = vld [vmem:[%s199] sm:%s208]
    %v210 = vunpack.c.l.bf16 %v209
    %v211 = vunpack.c.h.bf16 %v209
    %s212 = scalar_lea.vmem [#allocation1], 88
    %213 = vst [vmem:[%s212] sm:%s5] %v210
    %s214 = smul.addr 4, 10
    %s215 = scalar_lea.vmem %s0, %s214
    %s216 = sshrl.u32 %s5, 1
    %s217 = sor.u32 %s5, %s216
    %s218 = sand.u32 %s217, 85
    %s219 = sshrl.u32 %s218, 1
    %s220 = sor.u32 %s218, %s219
    %s221 = sand.u32 51, %s220
    %s222 = sshrl.u32 %s221, 2
    %s223 = sor.u32 %s221, %s222
    %s224 = sand.u32 15, %s223
    %v225 = vld [vmem:[%s215] sm:%s224]
    %v226 = vunpack.c.l.bf16 %v225
    %v227 = vunpack.c.h.bf16 %v225
    %s228 = scalar_lea.vmem [#allocation1], 80
    %229 = vst [vmem:[%s228] sm:%s5] %v226
    %s230 = smul.addr 4, 9
    %s231 = scalar_lea.vmem %s0, %s230
    %s232 = sshrl.u32 %s5, 1
    %s233 = sor.u32 %s5, %s232
    %s234 = sand.u32 %s233, 85
    %s235 = sshrl.u32 %s234, 1
    %s236 = sor.u32 %s234, %s235
    %s237 = sand.u32 51, %s236
    %s238 = sshrl.u32 %s237, 2
    %s239 = sor.u32 %s237, %s238
    %s240 = sand.u32 15, %s239
    %v241 = vld [vmem:[%s231] sm:%s240]
    %v242 = vunpack.c.l.bf16 %v241
    %v243 = vunpack.c.h.bf16 %v241
    %s244 = scalar_lea.vmem [#allocation1], 72
    %245 = vst [vmem:[%s244] sm:%s5] %v242
    %s246 = smul.addr 4, 8
    %s247 = scalar_lea.vmem %s0, %s246
    %s248 = sshrl.u32 %s5, 1
    %s249 = sor.u32 %s5, %s248
    %s250 = sand.u32 %s249, 85
    %s251 = sshrl.u32 %s250, 1
    %s252 = sor.u32 %s250, %s251
    %s253 = sand.u32 51, %s252
    %s254 = sshrl.u32 %s253, 2
    %s255 = sor.u32 %s253, %s254
    %s256 = sand.u32 15, %s255
    %v257 = vld [vmem:[%s247] sm:%s256]
    %v258 = vunpack.c.l.bf16 %v257
    %v259 = vunpack.c.h.bf16 %v257
    %s260 = scalar_lea.vmem [#allocation1], 64
    %261 = vst [vmem:[%s260] sm:%s5] %v258
    %s262 = smul.addr 4, 7
    %s263 = scalar_lea.vmem %s0, %s262
    %s264 = sshrl.u32 %s5, 1
    %s265 = sor.u32 %s5, %s264
    %s266 = sand.u32 %s265, 85
    %s267 = sshrl.u32 %s266, 1
    %s268 = sor.u32 %s266, %s267
    %s269 = sand.u32 51, %s268
    %s270 = sshrl.u32 %s269, 2
    %s271 = sor.u32 %s269, %s270
    %s272 = sand.u32 15, %s271
    %v273 = vld [vmem:[%s263] sm:%s272]
    %v274 = vunpack.c.l.bf16 %v273
    %v275 = vunpack.c.h.bf16 %v273
    %s276 = scalar_lea.vmem [#allocation1], 56
    %277 = vst [vmem:[%s276] sm:%s5] %v274
    %s278 = smul.addr 4, 6
    %s279 = scalar_lea.vmem %s0, %s278
    %s280 = sshrl.u32 %s5, 1
    %s281 = sor.u32 %s5, %s280
    %s282 = sand.u32 %s281, 85
    %s283 = sshrl.u32 %s282, 1
    %s284 = sor.u32 %s282, %s283
    %s285 = sand.u32 51, %s284
    %s286 = sshrl.u32 %s285, 2
    %s287 = sor.u32 %s285, %s286
    %s288 = sand.u32 15, %s287
    %v289 = vld [vmem:[%s279] sm:%s288]
    %v290 = vunpack.c.l.bf16 %v289
    %v291 = vunpack.c.h.bf16 %v289
    %s292 = scalar_lea.vmem [#allocation1], 48
    %293 = vst [vmem:[%s292] sm:%s5] %v290
    %s294 = smul.addr 4, 5
    %s295 = scalar_lea.vmem %s0, %s294
    %s296 = sshrl.u32 %s5, 1
    %s297 = sor.u32 %s5, %s296
    %s298 = sand.u32 %s297, 85
    %s299 = sshrl.u32 %s298, 1
    %s300 = sor.u32 %s298, %s299
    %s301 = sand.u32 51, %s300
    %s302 = sshrl.u32 %s301, 2
    %s303 = sor.u32 %s301, %s302
    %s304 = sand.u32 15, %s303
    %v305 = vld [vmem:[%s295] sm:%s304]
    %v306 = vunpack.c.l.bf16 %v305
    %v307 = vunpack.c.h.bf16 %v305
    %s308 = scalar_lea.vmem [#allocation1], 40
    %309 = vst [vmem:[%s308] sm:%s5] %v306
    %s310 = smul.addr 4, 4
    %s311 = scalar_lea.vmem %s0, %s310
    %s312 = sshrl.u32 %s5, 1
    %s313 = sor.u32 %s5, %s312
    %s314 = sand.u32 %s313, 85
    %s315 = sshrl.u32 %s314, 1
    %s316 = sor.u32 %s314, %s315
    %s317 = sand.u32 51, %s316
    %s318 = sshrl.u32 %s317, 2
    %s319 = sor.u32 %s317, %s318
    %s320 = sand.u32 15, %s319
    %v321 = vld [vmem:[%s311] sm:%s320]
    %v322 = vunpack.c.l.bf16 %v321
    %v323 = vunpack.c.h.bf16 %v321
    %s324 = scalar_lea.vmem [#allocation1], 32
    %325 = vst [vmem:[%s324] sm:%s5] %v322
    %s326 = smul.addr 4, 3
    %s327 = scalar_lea.vmem %s0, %s326
    %s328 = sshrl.u32 %s5, 1
    %s329 = sor.u32 %s5, %s328
    %s330 = sand.u32 %s329, 85
    %s331 = sshrl.u32 %s330, 1
    %s332 = sor.u32 %s330, %s331
    %s333 = sand.u32 51, %s332
    %s334 = sshrl.u32 %s333, 2
    %s335 = sor.u32 %s333, %s334
    %s336 = sand.u32 15, %s335
    %v337 = vld [vmem:[%s327] sm:%s336]
    %v338 = vunpack.c.l.bf16 %v337
    %v339 = vunpack.c.h.bf16 %v337
    %s340 = scalar_lea.vmem [#allocation1], 24
    %341 = vst [vmem:[%s340] sm:%s5] %v338
    %s342 = smul.addr 4, 2
    %s343 = scalar_lea.vmem %s0, %s342
    %s344 = sshrl.u32 %s5, 1
    %s345 = sor.u32 %s5, %s344
    %s346 = sand.u32 %s345, 85
    %s347 = sshrl.u32 %s346, 1
    %s348 = sor.u32 %s346, %s347
    %s349 = sand.u32 51, %s348
    %s350 = sshrl.u32 %s349, 2
    %s351 = sor.u32 %s349, %s350
    %s352 = sand.u32 15, %s351
    %v353 = vld [vmem:[%s343] sm:%s352]
    %v354 = vunpack.c.l.bf16 %v353
    %v355 = vunpack.c.h.bf16 %v353
    %s356 = scalar_lea.vmem [#allocation1], 16
    %357 = vst [vmem:[%s356] sm:%s5] %v354
    %s358 = scalar_lea.vmem %s0, 4
    %s359 = sshrl.u32 %s5, 1
    %s360 = sor.u32 %s5, %s359
    %s361 = sand.u32 %s360, 85
    %s362 = sshrl.u32 %s361, 1
    %s363 = sor.u32 %s361, %s362
    %s364 = sand.u32 51, %s363
    %s365 = sshrl.u32 %s364, 2
    %s366 = sor.u32 %s364, %s365
    %s367 = sand.u32 15, %s366
    %v368 = vld [vmem:[%s358] sm:%s367]
    %v369 = vunpack.c.l.bf16 %v368
    %v370 = vunpack.c.h.bf16 %v368
    %s371 = scalar_lea.vmem [#allocation1], 8
    %372 = vst [vmem:[%s371] sm:%s5] %v369
    %s373 = sshrl.u32 %s5, 1
    %s374 = sor.u32 %s5, %s373
    %s375 = sand.u32 %s374, 85
    %s376 = sshrl.u32 %s375, 1
    %s377 = sor.u32 %s375, %s376
    %s378 = sand.u32 51, %s377
    %s379 = sshrl.u32 %s378, 2
    %s380 = sor.u32 %s378, %s379
    %s381 = sand.u32 15, %s380
    %v382 = vld [vmem:[%s0] sm:%s381]
    %v383 = vunpack.c.l.bf16 %v382
    %v384 = vunpack.c.h.bf16 %v382
    %385 = vst [vmem:[#allocation1] sm:%s5] %v383
    %v386 = vld [vmem:[#allocation1] sm:$0xff]
    %vm387 = vcmask 523264
    %388 = vst.msk [vmem:[#allocation0] sm:$0xff] %vm387, %v386
    %s389 = scalar_lea.vmem [#allocation1], 8
    %v390 = vld [vmem:[%s389] sm:$0xff]
    %vm391 = vcmask 523264
    %s392 = scalar_lea.vmem [#allocation0], 8
    %393 = vst.msk [vmem:[%s392] sm:$0xff] %vm391, %v390
    %s394 = scalar_lea.vmem [#allocation1], 16
    %v395 = vld [vmem:[%s394] sm:$0xff]
    %vm396 = vcmask 523264
    %s397 = scalar_lea.vmem [#allocation0], 16
    %398 = vst.msk [vmem:[%s397] sm:$0xff] %vm396, %v395
    %s399 = scalar_lea.vmem [#allocation1], 24
    %v400 = vld [vmem:[%s399] sm:$0xff]
    %vm401 = vcmask 523264
    %s402 = scalar_lea.vmem [#allocation0], 24
    %403 = vst.msk [vmem:[%s402] sm:$0xff] %vm401, %v400
    %s404 = scalar_lea.vmem [#allocation1], 32
    %v405 = vld [vmem:[%s404] sm:$0xff]
    %vm406 = vcmask 523264
    %s407 = scalar_lea.vmem [#allocation0], 32
    %408 = vst.msk [vmem:[%s407] sm:$0xff] %vm406, %v405
    %s409 = scalar_lea.vmem [#allocation1], 40
    %v410 = vld [vmem:[%s409] sm:$0x3]
    %vm411 = vcmask 523264
    %s412 = scalar_lea.vmem [#allocation0], 40
    %413 = vst.msk [vmem:[%s412] sm:$0x3] %vm411, %v410
    %s414 = scalar_lea.vmem [#allocation1], 48
    %v415 = vld [vmem:[%s414] sm:$0xff]
    %vm416 = vcmask 523264
    %s417 = scalar_lea.vmem [#allocation0], 42
    %418 = vst.msk [vmem:[%s417] sm:$0xff] %vm416, %v415
    %s419 = scalar_lea.vmem [#allocation1], 56
    %v420 = vld [vmem:[%s419] sm:$0xff]
    %vm421 = vcmask 523264
    %s422 = scalar_lea.vmem [#allocation0], 50
    %423 = vst.msk [vmem:[%s422] sm:$0xff] %vm421, %v420
    %s424 = scalar_lea.vmem [#allocation1], 64
    %v425 = vld [vmem:[%s424] sm:$0xff]
    %vm426 = vcmask 523264
    %s427 = scalar_lea.vmem [#allocation0], 58
    %428 = vst.msk [vmem:[%s427] sm:$0xff] %vm426, %v425
    %s429 = scalar_lea.vmem [#allocation1], 72
    %v430 = vld [vmem:[%s429] sm:$0xff]
    %vm431 = vcmask 523264
    %s432 = scalar_lea.vmem [#allocation0], 66
    %433 = vst.msk [vmem:[%s432] sm:$0xff] %vm431, %v430
    %s434 = scalar_lea.vmem [#allocation1], 80
    %v435 = vld [vmem:[%s434] sm:$0xff]
    %vm436 = vcmask 523264
    %s437 = scalar_lea.vmem [#allocation0], 74
    %438 = vst.msk [vmem:[%s437] sm:$0xff] %vm436, %v435
    %s439 = scalar_lea.vmem [#allocation1], 88
    %v440 = vld [vmem:[%s439] sm:$0x3]
    %vm441 = vcmask 523264
    %s442 = scalar_lea.vmem [#allocation0], 82
    %443 = vst.msk [vmem:[%s442] sm:$0x3] %vm441, %v440
    %s444 = scalar_lea.vmem [#allocation1], 96
    %v445 = vld [vmem:[%s444] sm:$0xff]
    %vm446 = vcmask 523264
    %s447 = scalar_lea.vmem [#allocation0], 84
    %448 = vst.msk [vmem:[%s447] sm:$0xff] %vm446, %v445
    %s449 = scalar_lea.vmem [#allocation1], 104
    %v450 = vld [vmem:[%s449] sm:$0xff]
    %vm451 = vcmask 523264
    %s452 = scalar_lea.vmem [#allocation0], 92
    %453 = vst.msk [vmem:[%s452] sm:$0xff] %vm451, %v450
    %s454 = scalar_lea.vmem [#allocation1], 112
    %v455 = vld [vmem:[%s454] sm:$0xff]
    %vm456 = vcmask 523264
    %s457 = scalar_lea.vmem [#allocation0], 100
    %458 = vst.msk [vmem:[%s457] sm:$0xff] %vm456, %v455
    %s459 = scalar_lea.vmem [#allocation1], 120
    %v460 = vld [vmem:[%s459] sm:$0xff]
    %vm461 = vcmask 523264
    %s462 = scalar_lea.vmem [#allocation0], 108
    %463 = vst.msk [vmem:[%s462] sm:$0xff] %vm461, %v460
    %s464 = scalar_lea.vmem [#allocation1], 128
    %v465 = vld [vmem:[%s464] sm:$0xff]
    %vm466 = vcmask 523264
    %s467 = scalar_lea.vmem [#allocation0], 116
    %468 = vst.msk [vmem:[%s467] sm:$0xff] %vm466, %v465
    %s469 = scalar_lea.vmem [#allocation1], 136
    %v470 = vld [vmem:[%s469] sm:$0x3]
    %vm471 = vcmask 523264
    %s472 = scalar_lea.vmem [#allocation0], 124
    %473 = vst.msk [vmem:[%s472] sm:$0x3] %vm471, %v470
    %s474 = scalar_lea.vmem [#allocation1], 144
    %v475 = vld [vmem:[%s474] sm:$0xff]
    %vm476 = vcmask 523264
    %s477 = scalar_lea.vmem [#allocation0], 126
    %478 = vst.msk [vmem:[%s477] sm:$0xff] %vm476, %v475
    %s479 = scalar_lea.vmem [#allocation1], 152
    %v480 = vld [vmem:[%s479] sm:$0xff]
    %vm481 = vcmask 523264
    %s482 = scalar_lea.vmem [#allocation0], 134
    %483 = vst.msk [vmem:[%s482] sm:$0xff] %vm481, %v480
    %s484 = scalar_lea.vmem [#allocation1], 160
    %v485 = vld [vmem:[%s484] sm:$0xff]
    %vm486 = vcmask 523264
    %s487 = scalar_lea.vmem [#allocation0], 142
    %488 = vst.msk [vmem:[%s487] sm:$0xff] %vm486, %v485
    %s489 = scalar_lea.vmem [#allocation1], 168
    %v490 = vld [vmem:[%s489] sm:$0xff]
    %vm491 = vcmask 523264
    %s492 = scalar_lea.vmem [#allocation0], 150
    %493 = vst.msk [vmem:[%s492] sm:$0xff] %vm491, %v490
    %s494 = scalar_lea.vmem [#allocation1], 176
    %v495 = vld [vmem:[%s494] sm:$0xff]
    %vm496 = vcmask 523264
    %s497 = scalar_lea.vmem [#allocation0], 158
    %498 = vst.msk [vmem:[%s497] sm:$0xff] %vm496, %v495
    %s499 = scalar_lea.vmem [#allocation1], 184
    %v500 = vld [vmem:[%s499] sm:$0x3]
    %vm501 = vcmask 523264
    %s502 = scalar_lea.vmem [#allocation0], 166
    %503 = vst.msk [vmem:[%s502] sm:$0x3] %vm501, %v500
    %s505 = smul.u32 4, 2
    %s506 = sshll.u32 1, %s505
    %s507 = ssub.s32 %s506, 1
    %s508 = sshrl.u32 %s505, 1
    %v509 = vld [vmem:[#allocation0] sm:%s507]
    %v510 = vpack.c.bf16 0.0, %v509
    %s511 = sshll.u32 1, %s508
    %s512 = ssub.s32 %s511, 1
    %513 = vst [vmem:[%s1] sm:%s512] %v510
    %s514 = scalar_lea.vmem [#allocation0], 8
    %v515 = vld [vmem:[%s514] sm:%s507]
    %v516 = vpack.c.bf16 0.0, %v515
    %s517 = sshll.u32 1, %s508
    %s518 = ssub.s32 %s517, 1
    %s519 = scalar_lea.vmem %s1, 4
    %520 = vst [vmem:[%s519] sm:%s518] %v516
    %s521 = scalar_lea.vmem [#allocation0], 16
    %v522 = vld [vmem:[%s521] sm:%s507]
    %v523 = vpack.c.bf16 0.0, %v522
    %s524 = sshll.u32 1, %s508
    %s525 = ssub.s32 %s524, 1
    %s526 = smul.addr 4, 2
    %s527 = scalar_lea.vmem %s1, %s526
    %528 = vst [vmem:[%s527] sm:%s525] %v523
    %s529 = scalar_lea.vmem [#allocation0], 24
    %v530 = vld [vmem:[%s529] sm:%s507]
    %v531 = vpack.c.bf16 0.0, %v530
    %s532 = sshll.u32 1, %s508
    %s533 = ssub.s32 %s532, 1
    %s534 = smul.addr 4, 3
    %s535 = scalar_lea.vmem %s1, %s534
    %536 = vst [vmem:[%s535] sm:%s533] %v531
    %s537 = scalar_lea.vmem [#allocation0], 32
    %v538 = vld [vmem:[%s537] sm:%s507]
    %v539 = vpack.c.bf16 0.0, %v538
    %s540 = sshll.u32 1, %s508
    %s541 = ssub.s32 %s540, 1
    %s542 = smul.addr 4, 4
    %s543 = scalar_lea.vmem %s1, %s542
    %544 = vst [vmem:[%s543] sm:%s541] %v539
    %s545 = scalar_lea.vmem [#allocation0], 40
    %v546 = vld [vmem:[%s545] sm:%s507]
    %v547 = vpack.c.bf16 0.0, %v546
    %s548 = sshll.u32 1, %s508
    %s549 = ssub.s32 %s548, 1
    %s550 = smul.addr 4, 5
    %s551 = scalar_lea.vmem %s1, %s550
    %552 = vst [vmem:[%s551] sm:%s549] %v547
    %s553 = scalar_lea.vmem [#allocation0], 48
    %v554 = vld [vmem:[%s553] sm:%s507]
    %v555 = vpack.c.bf16 0.0, %v554
    %s556 = sshll.u32 1, %s508
    %s557 = ssub.s32 %s556, 1
    %s558 = smul.addr 4, 6
    %s559 = scalar_lea.vmem %s1, %s558
    %560 = vst [vmem:[%s559] sm:%s557] %v555
    %s561 = scalar_lea.vmem [#allocation0], 56
    %v562 = vld [vmem:[%s561] sm:%s507]
    %v563 = vpack.c.bf16 0.0, %v562
    %s564 = sshll.u32 1, %s508
    %s565 = ssub.s32 %s564, 1
    %s566 = smul.addr 4, 7
    %s567 = scalar_lea.vmem %s1, %s566
    %568 = vst [vmem:[%s567] sm:%s565] %v563
    %s569 = scalar_lea.vmem [#allocation0], 64
    %v570 = vld [vmem:[%s569] sm:%s507]
    %v571 = vpack.c.bf16 0.0, %v570
    %s572 = sshll.u32 1, %s508
    %s573 = ssub.s32 %s572, 1
    %s574 = smul.addr 4, 8
    %s575 = scalar_lea.vmem %s1, %s574
    %576 = vst [vmem:[%s575] sm:%s573] %v571
    %s577 = scalar_lea.vmem [#allocation0], 72
    %v578 = vld [vmem:[%s577] sm:%s507]
    %v579 = vpack.c.bf16 0.0, %v578
    %s580 = sshll.u32 1, %s508
    %s581 = ssub.s32 %s580, 1
    %s582 = smul.addr 4, 9
    %s583 = scalar_lea.vmem %s1, %s582
    %584 = vst [vmem:[%s583] sm:%s581] %v579
    %s585 = scalar_lea.vmem [#allocation0], 80
    %v586 = vld [vmem:[%s585] sm:%s507]
    %v587 = vpack.c.bf16 0.0, %v586
    %s588 = sshll.u32 1, %s508
    %s589 = ssub.s32 %s588, 1
    %s590 = smul.addr 4, 10
    %s591 = scalar_lea.vmem %s1, %s590
    %592 = vst [vmem:[%s591] sm:%s589] %v587
    %s593 = scalar_lea.vmem [#allocation0], 88
    %v594 = vld [vmem:[%s593] sm:%s507]
    %v595 = vpack.c.bf16 0.0, %v594
    %s596 = sshll.u32 1, %s508
    %s597 = ssub.s32 %s596, 1
    %s598 = smul.addr 4, 11
    %s599 = scalar_lea.vmem %s1, %s598
    %600 = vst [vmem:[%s599] sm:%s597] %v595
    %s601 = scalar_lea.vmem [#allocation0], 96
    %v602 = vld [vmem:[%s601] sm:%s507]
    %v603 = vpack.c.bf16 0.0, %v602
    %s604 = sshll.u32 1, %s508
    %s605 = ssub.s32 %s604, 1
    %s606 = smul.addr 4, 12
    %s607 = scalar_lea.vmem %s1, %s606
    %608 = vst [vmem:[%s607] sm:%s605] %v603
    %s609 = scalar_lea.vmem [#allocation0], 104
    %v610 = vld [vmem:[%s609] sm:%s507]
    %v611 = vpack.c.bf16 0.0, %v610
    %s612 = sshll.u32 1, %s508
    %s613 = ssub.s32 %s612, 1
    %s614 = smul.addr 4, 13
    %s615 = scalar_lea.vmem %s1, %s614
    %616 = vst [vmem:[%s615] sm:%s613] %v611
    %s617 = scalar_lea.vmem [#allocation0], 112
    %v618 = vld [vmem:[%s617] sm:%s507]
    %v619 = vpack.c.bf16 0.0, %v618
    %s620 = sshll.u32 1, %s508
    %s621 = ssub.s32 %s620, 1
    %s622 = smul.addr 4, 14
    %s623 = scalar_lea.vmem %s1, %s622
    %624 = vst [vmem:[%s623] sm:%s621] %v619
    %s625 = scalar_lea.vmem [#allocation0], 120
    %v626 = vld [vmem:[%s625] sm:%s507]
    %v627 = vpack.c.bf16 0.0, %v626
    %s628 = sshll.u32 1, %s508
    %s629 = ssub.s32 %s628, 1
    %s630 = smul.addr 4, 15
    %s631 = scalar_lea.vmem %s1, %s630
    %632 = vst [vmem:[%s631] sm:%s629] %v627
    %s633 = scalar_lea.vmem [#allocation0], 128
    %v634 = vld [vmem:[%s633] sm:%s507]
    %v635 = vpack.c.bf16 0.0, %v634
    %s636 = sshll.u32 1, %s508
    %s637 = ssub.s32 %s636, 1
    %s638 = smul.addr 4, 16
    %s639 = scalar_lea.vmem %s1, %s638
    %640 = vst [vmem:[%s639] sm:%s637] %v635
    %s641 = scalar_lea.vmem [#allocation0], 136
    %v642 = vld [vmem:[%s641] sm:%s507]
    %v643 = vpack.c.bf16 0.0, %v642
    %s644 = sshll.u32 1, %s508
    %s645 = ssub.s32 %s644, 1
    %s646 = smul.addr 4, 17
    %s647 = scalar_lea.vmem %s1, %s646
    %648 = vst [vmem:[%s647] sm:%s645] %v643
    %s649 = scalar_lea.vmem [#allocation0], 144
    %v650 = vld [vmem:[%s649] sm:%s507]
    %v651 = vpack.c.bf16 0.0, %v650
    %s652 = sshll.u32 1, %s508
    %s653 = ssub.s32 %s652, 1
    %s654 = smul.addr 4, 18
    %s655 = scalar_lea.vmem %s1, %s654
    %656 = vst [vmem:[%s655] sm:%s653] %v651
    %s657 = scalar_lea.vmem [#allocation0], 152
    %v658 = vld [vmem:[%s657] sm:%s507]
    %v659 = vpack.c.bf16 0.0, %v658
    %s660 = sshll.u32 1, %s508
    %s661 = ssub.s32 %s660, 1
    %s662 = smul.addr 4, 19
    %s663 = scalar_lea.vmem %s1, %s662
    %664 = vst [vmem:[%s663] sm:%s661] %v659
    %s665 = scalar_lea.vmem [#allocation0], 160
    %v666 = vld [vmem:[%s665] sm:%s507]
    %v667 = vpack.c.bf16 0.0, %v666
    %s668 = sshll.u32 1, %s508
    %s669 = ssub.s32 %s668, 1
    %s670 = smul.addr 4, 20
    %s671 = scalar_lea.vmem %s1, %s670
    %672 = vst [vmem:[%s671] sm:%s669] %v667

// kernel: connect4_forward.1
$region0: #{connect4_forward.1}
  #allocation0 [shape = 'u32[]', space=smem, size = 0x4, offset = 0x4, fixed_abs, tag = 'smem constant byte address 0x4 - core index']
  #allocation1 [shape = 'u32[144,128]{1,0:T(1,128)}', space=vmem, size = 0x12000, scoped, tag = 'internal scratch']
  #allocation2 [shape = 'f32[184,64]{1,0:T(8,128)}', space=vmem, size = 0x17000, scoped, tag = 'scratch operand']
  %s0 = inlined_call_operand.vmem [shape: bf16[2,168,32], index: 0, kind: input, shape index: {}]
  %s1 = inlined_call_operand.vmem [shape: bf16[168,9], index: 1, kind: input, shape index: {}]
  %s2 = inlined_call_operand.vmem [shape: bf16[4,168], index: 2, kind: input, shape index: {}]
  %s3 = inlined_call_operand.vmem [shape: bf16[32,64], index: 3, kind: input, shape index: {}]
  %s4 = inlined_call_operand.vmem [shape: bf16[4,576,64], index: 4, kind: input, shape index: {}]
  %s5 = inlined_call_operand.vmem [shape: bf16[64,8], index: 5, kind: input, shape index: {}]
  %s6 = inlined_call_operand.vmem [shape: f32[8,128], index: 6, kind: input, shape index: {}]
  %s7 = inlined_call_operand.vmem [shape: bf16[3,168,128], index: 7, kind: input, shape index: {}]
  %s8 = inlined_call_operand.vmem [shape: f32[2,4,128], index: 8, kind: output, shape index: {}]
  %s9 = sld [smem:[#allocation0]]
  $region65: #{connect4_forward.1} parent=0
    _
  %s11 = ssub.s32 1, %s9
  %s12 = scalar_select 0, %s11, %s9
  loop: start=0, step=1, limit=4
  $region2: #{connect4_forward.1} parent=0 // loop_pre_header
    _
  $region3: #{connect4_forward.1} parent=0 // loop_header
    %s14 = sphi 0, %s18
    %p15 = scmp.ge.s32.totalorder %s14, 4
    %s24 = sphi 0, %s26
    %s27 = sphi 0, %s24
    %s28 = sphi 0, %s27
    %s44 = sphi 0, %s28
    %s48 = sphi 0, %s48
    %s50 = sphi 0, %s48
    %s51 = sphi 0, %s50
    %s65 = sphi 0, %s51
    %s69 = sphi 0, %s69
    %s71 = sphi 0, %s69
    %s72 = sphi 0, %s71
    %s86 = sphi 0, %s72
    %s90 = sphi 0, %s90
    %s92 = sphi 0, %s90
    %s93 = sphi 0, %s92
    %s107 = sphi 0, %s93
    %s111 = sphi 0, %s111
    %s113 = sphi 0, %s111
    %s114 = sphi 0, %s113
    %s128 = sphi 0, %s114
    %s132 = sphi 0, %s132
    %s134 = sphi 0, %s132
    %s135 = sphi 0, %s134
    %s149 = sphi 0, %s135
    %s153 = sphi 0, %s153
    %s155 = sphi 0, %s153
    %s156 = sphi 0, %s155
    %s170 = sphi 0, %s156
    %s174 = sphi 0, %s174
    %s176 = sphi 0, %s174
    %s177 = sphi 0, %s176
    %s191 = sphi 0, %s177
    %s197 = sphi 0, %s199
    %s200 = sphi 0, %s197
    %s201 = sphi 0, %s200
    %s217 = sphi 0, %s201
  $region4: #{connect4_forward.1} parent=0 // loop_header_branch
    %17 = sbr.rel (%p15) target = $region8
  $region5: #{connect4_forward.1} parent=0 // loop_body
    %s19 = ssub.s32 %s14, 1
    %s20 = ssub.s32 %s14, 2
    %s21 = sadd.s32 %s14, 1
    %s22 = ssub.s32 %s14, %s21
    %p23 = scmp.eq.s32.totalorder %s22, 0
    %s25 = sadd.s32 %s24, 1
    %s26 = scalar_select %p23, %s24, %s25
    %p29 = pneg %p23
    %p30 = scmp.eq.s32.totalorder %s14, 1
    %p31 = por %p29, %p30
    %p32 = scmp.ne.s32.totalorder %s24, %s27
    %p33 = scmp.eq.s32.totalorder %s14, 0
    %p34 = por %p32, %p33
    %p35 = scmp.ne.s32.totalorder %s24, %s27
    %p36 = scmp.eq.s32.totalorder %s19, 1
    %p37 = por %p35, %p36
    %p38 = scmp.ne.s32.totalorder %s27, %s28
    %p39 = scmp.eq.s32.totalorder %s19, 0
    %p40 = por %p38, %p39
    %p41 = scmp.ne.s32.totalorder %s27, %s28
    %p42 = scmp.eq.s32.totalorder %s20, 1
    %p43 = por %p41, %p42
    %p45 = scmp.ne.s32.totalorder %s28, %s44
    %p46 = scmp.eq.s32.totalorder %s20, 0
    %p47 = por %p45, %p46
    %s49 = sadd.s32 %s48, 1
    %p52 = scmp.eq.s32.totalorder %s14, 1
    %p53 = scmp.ne.s32.totalorder %s48, %s50
    %p54 = scmp.eq.s32.totalorder %s14, 0
    %p55 = por %p53, %p54
    %p56 = scmp.ne.s32.totalorder %s48, %s50
    %p57 = scmp.eq.s32.totalorder %s19, 1
    %p58 = por %p56, %p57
    %p59 = scmp.ne.s32.totalorder %s50, %s51
    %p60 = scmp.eq.s32.totalorder %s19, 0
    %p61 = por %p59, %p60
    %p62 = scmp.ne.s32.totalorder %s50, %s51
    %p63 = scmp.eq.s32.totalorder %s20, 1
    %p64 = por %p62, %p63
    %p66 = scmp.ne.s32.totalorder %s51, %s65
    %p67 = scmp.eq.s32.totalorder %s20, 0
    %p68 = por %p66, %p67
    %s70 = sadd.s32 %s69, 1
    %p73 = scmp.eq.s32.totalorder %s14, 1
    %p74 = scmp.ne.s32.totalorder %s69, %s71
    %p75 = scmp.eq.s32.totalorder %s14, 0
    %p76 = por %p74, %p75
    %p77 = scmp.ne.s32.totalorder %s69, %s71
    %p78 = scmp.eq.s32.totalorder %s19, 1
    %p79 = por %p77, %p78
    %p80 = scmp.ne.s32.totalorder %s71, %s72
    %p81 = scmp.eq.s32.totalorder %s19, 0
    %p82 = por %p80, %p81
    %p83 = scmp.ne.s32.totalorder %s71, %s72
    %p84 = scmp.eq.s32.totalorder %s20, 1
    %p85 = por %p83, %p84
    %p87 = scmp.ne.s32.totalorder %s72, %s86
    %p88 = scmp.eq.s32.totalorder %s20, 0
    %p89 = por %p87, %p88
    %s91 = sadd.s32 %s90, 1
    %p94 = scmp.eq.s32.totalorder %s14, 1
    %p95 = scmp.ne.s32.totalorder %s90, %s92
    %p96 = scmp.eq.s32.totalorder %s14, 0
    %p97 = por %p95, %p96
    %p98 = scmp.ne.s32.totalorder %s90, %s92
    %p99 = scmp.eq.s32.totalorder %s19, 1
    %p100 = por %p98, %p99
    %p101 = scmp.ne.s32.totalorder %s92, %s93
    %p102 = scmp.eq.s32.totalorder %s19, 0
    %p103 = por %p101, %p102
    %p104 = scmp.ne.s32.totalorder %s92, %s93
    %p105 = scmp.eq.s32.totalorder %s20, 1
    %p106 = por %p104, %p105
    %p108 = scmp.ne.s32.totalorder %s93, %s107
    %p109 = scmp.eq.s32.totalorder %s20, 0
    %p110 = por %p108, %p109
    %s112 = sadd.s32 %s111, 1
    %p115 = scmp.eq.s32.totalorder %s14, 1
    %p116 = scmp.ne.s32.totalorder %s111, %s113
    %p117 = scmp.eq.s32.totalorder %s14, 0
    %p118 = por %p116, %p117
    %p119 = scmp.ne.s32.totalorder %s111, %s113
    %p120 = scmp.eq.s32.totalorder %s19, 1
    %p121 = por %p119, %p120
    %p122 = scmp.ne.s32.totalorder %s113, %s114
    %p123 = scmp.eq.s32.totalorder %s19, 0
    %p124 = por %p122, %p123
    %p125 = scmp.ne.s32.totalorder %s113, %s114
    %p126 = scmp.eq.s32.totalorder %s20, 1
    %p127 = por %p125, %p126
    %p129 = scmp.ne.s32.totalorder %s114, %s128
    %p130 = scmp.eq.s32.totalorder %s20, 0
    %p131 = por %p129, %p130
    %s133 = sadd.s32 %s132, 1
    %p136 = scmp.eq.s32.totalorder %s14, 1
    %p137 = scmp.ne.s32.totalorder %s132, %s134
    %p138 = scmp.eq.s32.totalorder %s14, 0
    %p139 = por %p137, %p138
    %p140 = scmp.ne.s32.totalorder %s132, %s134
    %p141 = scmp.eq.s32.totalorder %s19, 1
    %p142 = por %p140, %p141
    %p143 = scmp.ne.s32.totalorder %s134, %s135
    %p144 = scmp.eq.s32.totalorder %s19, 0
    %p145 = por %p143, %p144
    %p146 = scmp.ne.s32.totalorder %s134, %s135
    %p147 = scmp.eq.s32.totalorder %s20, 1
    %p148 = por %p146, %p147
    %p150 = scmp.ne.s32.totalorder %s135, %s149
    %p151 = scmp.eq.s32.totalorder %s20, 0
    %p152 = por %p150, %p151
    %s154 = sadd.s32 %s153, 1
    %p157 = scmp.eq.s32.totalorder %s14, 1
    %p158 = scmp.ne.s32.totalorder %s153, %s155
    %p159 = scmp.eq.s32.totalorder %s14, 0
    %p160 = por %p158, %p159
    %p161 = scmp.ne.s32.totalorder %s153, %s155
    %p162 = scmp.eq.s32.totalorder %s19, 1
    %p163 = por %p161, %p162
    %p164 = scmp.ne.s32.totalorder %s155, %s156
    %p165 = scmp.eq.s32.totalorder %s19, 0
    %p166 = por %p164, %p165
    %p167 = scmp.ne.s32.totalorder %s155, %s156
    %p168 = scmp.eq.s32.totalorder %s20, 1
    %p169 = por %p167, %p168
    %p171 = scmp.ne.s32.totalorder %s156, %s170
    %p172 = scmp.eq.s32.totalorder %s20, 0
    %p173 = por %p171, %p172
    %s175 = sadd.s32 %s174, 1
    %p178 = scmp.eq.s32.totalorder %s14, 1
    %p179 = scmp.ne.s32.totalorder %s174, %s176
    %p180 = scmp.eq.s32.totalorder %s14, 0
    %p181 = por %p179, %p180
    %p182 = scmp.ne.s32.totalorder %s174, %s176
    %p183 = scmp.eq.s32.totalorder %s19, 1
    %p184 = por %p182, %p183
    %p185 = scmp.ne.s32.totalorder %s176, %s177
    %p186 = scmp.eq.s32.totalorder %s19, 0
    %p187 = por %p185, %p186
    %p188 = scmp.ne.s32.totalorder %s176, %s177
    %p189 = scmp.eq.s32.totalorder %s20, 1
    %p190 = por %p188, %p189
    %p192 = scmp.ne.s32.totalorder %s177, %s191
    %p193 = scmp.eq.s32.totalorder %s20, 0
    %p194 = por %p192, %p193
    %s195 = ssub.s32 %s14, %s21
    %p196 = scmp.eq.s32.totalorder %s195, 0
    %s198 = sadd.s32 %s197, 1
    %s199 = scalar_select %p196, %s197, %s198
    %p202 = pneg %p196
    %p203 = scmp.eq.s32.totalorder %s14, 1
    %p204 = por %p202, %p203
    %p205 = scmp.ne.s32.totalorder %s197, %s200
    %p206 = scmp.eq.s32.totalorder %s14, 0
    %p207 = por %p205, %p206
    %p208 = scmp.ne.s32.totalorder %s197, %s200
    %p209 = scmp.eq.s32.totalorder %s19, 1
    %p210 = por %p208, %p209
    %p211 = scmp.ne.s32.totalorder %s200, %s201
    %p212 = scmp.eq.s32.totalorder %s19, 0
    %p213 = por %p211, %p212
    %p214 = scmp.ne.s32.totalorder %s200, %s201
    %p215 = scmp.eq.s32.totalorder %s20, 1
    %p216 = por %p214, %p215
    %p218 = scmp.ne.s32.totalorder %s201, %s217
    %p219 = scmp.eq.s32.totalorder %s20, 0
    %p220 = por %p218, %p219
    %p221 = scmp.le.s32.totalorder 1, %s14
    %p222 = scmp.lt.s32.totalorder %s14, 3
    %p223 = pnand %p221, %p222
    %p224 = pneg %p223
    // Predicated region
    $region9: #{connect4_forward.1} parent=5 // pred_check
      _
    $region10: #{connect4_forward.1} parent=5 // pred_check_branch
      %226 = sbr.rel (%p223) target = $region12
    $region11: #{connect4_forward.1} parent=5 // pred_region
      %s227 = ssub.s32 %s14, 1
      // Predicated region
      $region13: #{connect4_forward.1} parent=11 // pred_check
        %p228 = pneg %p61
      $region14: #{connect4_forward.1} parent=11 // pred_check_branch
        %230 = sbr.rel (%p228) target = $region16
      $region15: #{connect4_forward.1} parent=11 // pred_region
        _
      $region16: #{connect4_forward.1} parent=11 // pred_fallthru
        _
      // Predicated region
      $region17: #{connect4_forward.1} parent=11 // pred_check
        %p231 = pneg %p82
      $region18: #{connect4_forward.1} parent=11 // pred_check_branch
        %233 = sbr.rel (%p231) target = $region20
      $region19: #{connect4_forward.1} parent=11 // pred_region
        _
      $region20: #{connect4_forward.1} parent=11 // pred_fallthru
        _
      // Predicated region
      $region21: #{connect4_forward.1} parent=11 // pred_check
        %p234 = pneg %p103
      $region22: #{connect4_forward.1} parent=11 // pred_check_branch
        %236 = sbr.rel (%p234) target = $region24
      $region23: #{connect4_forward.1} parent=11 // pred_region
        _
      $region24: #{connect4_forward.1} parent=11 // pred_fallthru
        _
      // Predicated region
      $region25: #{connect4_forward.1} parent=11 // pred_check
        %p237 = pneg %p124
      $region26: #{connect4_forward.1} parent=11 // pred_check_branch
        %239 = sbr.rel (%p237) target = $region28
      $region27: #{connect4_forward.1} parent=11 // pred_region
        _
      $region28: #{connect4_forward.1} parent=11 // pred_fallthru
        _
      // Predicated region
      $region29: #{connect4_forward.1} parent=11 // pred_check
        %p240 = pneg %p145
      $region30: #{connect4_forward.1} parent=11 // pred_check_branch
        %242 = sbr.rel (%p240) target = $region32
      $region31: #{connect4_forward.1} parent=11 // pred_region
        _
      $region32: #{connect4_forward.1} parent=11 // pred_fallthru
        _
      // Predicated region
      $region33: #{connect4_forward.1} parent=11 // pred_check
        %p243 = pneg %p166
      $region34: #{connect4_forward.1} parent=11 // pred_check_branch
        %245 = sbr.rel (%p243) target = $region36
      $region35: #{connect4_forward.1} parent=11 // pred_region
        _
      $region36: #{connect4_forward.1} parent=11 // pred_fallthru
        _
      // Predicated region
      $region37: #{connect4_forward.1} parent=11 // pred_check
        %p246 = pneg %p187
      $region38: #{connect4_forward.1} parent=11 // pred_check_branch
        %248 = sbr.rel (%p246) target = $region40
      $region39: #{connect4_forward.1} parent=11 // pred_region
        _
      $region40: #{connect4_forward.1} parent=11 // pred_fallthru
        _
    $region12: #{connect4_forward.1} parent=5 // pred_fallthru
      _
    %p249 = scmp.lt.s32.totalorder %s14, 2
    // Predicated region
    $region41: #{connect4_forward.1} parent=5 // pred_check
      %p250 = pneg %p249
    $region42: #{connect4_forward.1} parent=5 // pred_check_branch
      %252 = sbr.rel (%p250) target = $region44
    $region43: #{connect4_forward.1} parent=5 // pred_region
      // Predicated region
      $region45: #{connect4_forward.1} parent=43 // pred_check
        %p253 = pneg %p34
      $region46: #{connect4_forward.1} parent=43 // pred_check_branch
        %255 = sbr.rel (%p253) target = $region48
      $region47: #{connect4_forward.1} parent=43 // pred_region
        %p256 = scmp.lt.s32.totalorder %s14, 1
        %s257 = scalar_select %p256, %s14, 1
        %s258 = smul.addr %s257, 21
        %s259 = smul.addr %s258, 4
        %s260 = scalar_lea.vmem %s0, %s259
      $region48: #{connect4_forward.1} parent=43 // pred_fallthru
        _
    $region44: #{connect4_forward.1} parent=5 // pred_fallthru
      _
    %p261 = scmp.le.s32.totalorder 1, %s14
    %p262 = scmp.lt.s32.totalorder %s14, 3
    %p263 = pnand %p261, %p262
    %p264 = pneg %p263
    // Predicated region
    $region49: #{connect4_forward.1} parent=5 // pred_check
      _
    $region50: #{connect4_forward.1} parent=5 // pred_check_branch
      %266 = sbr.rel (%p263) target = $region52
    $region51: #{connect4_forward.1} parent=5 // pred_region
      %s267 = ssub.s32 %s14, 1
      %p268 = scmp.lt.s32.totalorder %s19, 1
      %s269 = scalar_select %p268, %s19, 1
      %s270 = smul.addr %s269, 21
      %s271 = smul.addr %s270, 4
      %s272 = scalar_lea.vmem %s0, %s271
      %p273 = pneg %p40
      %p274 = pneg %p37
      %p275 = pneg %p61
      %p276 = pneg %p58
      %p277 = pneg %p82
      %p278 = pneg %p79
      %p279 = pneg %p103
      %p280 = pneg %p100
      %p281 = pneg %p124
      %p282 = pneg %p121
      %p283 = pneg %p145
      %p284 = pneg %p142
      %p285 = pneg %p166
      %p286 = pneg %p163
      %p287 = pneg %p187
      %p288 = pneg %p184
      %p289 = pneg %p213
      %p290 = pneg %p210
      %p291 = scmp.lt.s32.totalorder %s19, 1
      %s292 = scalar_select %p291, %s19, 1
      %s293 = smul.addr %s292, 4
      %s294 = scalar_lea.vmem %s8, %s293
      %p295 = scmp.lt.s32.totalorder %s19, 1
      %s296 = scalar_select %p295, %s19, 1
      %s297 = smul.addr %s296, 21
      %s298 = smul.addr %s297, 4
      %s299 = scalar_lea.vmem %s0, %s298
      %p300 = scmp.lt.s32.totalorder %s19, 1
      %s301 = scalar_select %p300, %s19, 1
      %s302 = smul.addr %s301, 4
      %s303 = scalar_lea.vmem %s8, %s302
      %vm305 = vcmask 523264
      %306 = vst.msk [vmem:[#allocation2] sm:$0xff] %vm305, 0.0
      %307 = vst.msk [vmem:[#allocation2 + $0xb0] sm:$0xff] %vm305, 0.0
      %v308 = vld [vmem:[%s299] sm:$0xf]
      %v309 = vld [vmem:[%s299 + $0x4] sm:$0xf]
      %v310 = vld [vmem:[%s299 + $0x8] sm:$0xf]
      %v311 = vld [vmem:[%s299 + $0xc] sm:$0xf]
      %v312 = vld [vmem:[%s299 + $0x10] sm:$0xf]
      %v313 = vld [vmem:[%s299 + $0x14] sm:$0xf]
      %v314 = vld [vmem:[%s299 + $0x18] sm:$0xf]
      %v315 = vld [vmem:[%s299 + $0x1c] sm:$0xf]
      %v316 = vld [vmem:[%s299 + $0x20] sm:$0xf]
      %v317 = vld [vmem:[%s299 + $0x24] sm:$0xf]
      %v318 = vld [vmem:[%s299 + $0x28] sm:$0xf]
      %v319 = vld [vmem:[%s299 + $0x2c] sm:$0xf]
      %v320 = vld [vmem:[%s299 + $0x30] sm:$0xf]
      %v321 = vld [vmem:[%s299 + $0x34] sm:$0xf]
      %v322 = vld [vmem:[%s299 + $0x38] sm:$0xf]
      %v323 = vld [vmem:[%s299 + $0x3c] sm:$0xf]
      %v324 = vld [vmem:[%s299 + $0x40] sm:$0xf]
      %v325 = vld [vmem:[%s299 + $0x44] sm:$0xf]
      %v326 = vld [vmem:[%s299 + $0x48] sm:$0xf]
      %v327 = vld [vmem:[%s299 + $0x4c] sm:$0xf]
      %v328 = vld [vmem:[%s299 + $0x50] sm:$0xf]
      %v329 = vld [vmem:[%s3] sm:$0xf]
      %v330 = vld [vmem:[%s3 + $0x4] sm:$0xf]
      %v331 = vld [vmem:[%s3 + $0x8] sm:$0xf]
      %v332 = vld [vmem:[%s3 + $0xc] sm:$0xf]
      %v333 = vld [vmem:[%s6] sm:$0x1]
      %v334 = vlaneseq
      %v335 = vshrl.u32 %v334, 7
      %v336 = vsub.s32 0, %v335
      %v337 = vrot.slane %v333, %v336
      %v359 = vunpack.c.l.b16 %v308
      %v360 = vunpack.c.l.b16 %v309
      %v361 = vunpack.c.l.b16 %v310
      %v362 = vunpack.c.l.b16 %v311
      %v363 = vunpack.c.l.b16 %v312
      %v364 = vunpack.c.l.b16 %v313
      %v365 = vunpack.c.l.b16 %v314
      %v366 = vunpack.c.l.b16 %v315
      %v367 = vunpack.c.l.b16 %v316
      %v368 = vunpack.c.l.b16 %v317
      %v369 = vunpack.c.l.b16 %v318
      %v370 = vunpack.c.l.b16 %v319
      %v371 = vunpack.c.l.b16 %v320
      %v372 = vunpack.c.l.b16 %v321
      %v373 = vunpack.c.l.b16 %v322
      %v374 = vunpack.c.l.b16 %v323
      %v375 = vunpack.c.l.b16 %v324
      %v376 = vunpack.c.l.b16 %v325
      %v377 = vunpack.c.l.b16 %v326
      %v378 = vunpack.c.l.b16 %v327
      %v379 = vunpack.c.l.b16 %v328
      %v380 = vpack.c.b16 %v360, %v359
      %v381 = vpack.c.b16 %v362, %v361
      %v382 = vpack.c.b16 %v364, %v363
      %v383 = vpack.c.b16 %v366, %v365
      %v384 = vpack.c.b16 %v368, %v367
      %v385 = vpack.c.b16 %v370, %v369
      %v386 = vpack.c.b16 %v372, %v371
      %v387 = vpack.c.b16 %v374, %v373
      %v388 = vpack.c.b16 %v376, %v375
      %v389 = vpack.c.b16 %v378, %v377
      %v390 = vpack.c.b16 %v379, %v379
      %v395 = vunpack.c.l.b16 %v329
      %v396 = vunpack.c.l.b16 %v330
      %v397 = vunpack.c.l.b16 %v331
      %v398 = vunpack.c.l.b16 %v332
      %v399 = vpack.c.b16 %v396, %v395
      %v400 = vpack.c.b16 %v398, %v397
      %vm403 = vcmask 261120
      %v405 = vsel %vm403, %v380, 0
      %v408 = vsel %vm403, %v381, 0
      %v411 = vsel %vm403, %v382, 0
      %v414 = vsel %vm403, %v383, 0
      %v417 = vsel %vm403, %v384, 0
      %v420 = vsel %vm403, %v385, 0
      %v423 = vsel %vm403, %v386, 0
      %v426 = vsel %vm403, %v387, 0
      %v429 = vsel %vm403, %v388, 0
      %v432 = vsel %vm403, %v389, 0
      %v435 = vsel %vm403, %v390, 0
      %437 = vmatprep.subr.bf16.mxu0 0
      %438 = vmatpush1.bf16.msra.mxu0 0
      %439 = vmatprep.subr.bf16.mxu0 0
      %440 = vmatpush1.bf16.msra.mxu0 0
      %441 = vmatprep.subr.bf16.mxu0 0
      %442 = vmatpush1.bf16.msra.mxu0 0
      %443 = vmatprep.subr.bf16.mxu0 0
      %444 = vmatpush1.bf16.msra.mxu0 0
      %445 = vmatprep.subr.bf16.mxu0 0
      %446 = vmatpush1.bf16.msra.mxu0 0
      %447 = vmatprep.subr.bf16.mxu0 0
      %448 = vmatpush1.bf16.msra.mxu0 0
      %449 = vmatprep.subr.bf16.mxu0 0
      %450 = vmatpush1.bf16.msra.mxu0 %v400
      %451 = vmatprep.subr.bf16.mxu0 0
      %452 = vmatpush1.bf16.msra.mxu0 %v399
      %453 = vmatprep.subr.bf16.mxu0 0
      %454 = vmatpush2.bf16.msra.mxu0 0
      %455 = vmatprep.subr.bf16.mxu0 0
      %456 = vmatpush2.bf16.msra.mxu0 0
      %457 = vmatprep.subr.bf16.mxu0 0
      %458 = vmatpush2.bf16.msra.mxu0 0
      %459 = vmatprep.subr.bf16.mxu0 0
      %460 = vmatpush2.bf16.msra.mxu0 0
      %461 = vmatprep.subr.bf16.mxu0 0
      %462 = vmatpush2.bf16.msra.mxu0 0
      %463 = vmatprep.subr.bf16.mxu0 0
      %464 = vmatpush2.bf16.msra.mxu0 0
      %465 = vmatprep.subr.bf16.mxu0 0
      %466 = vmatpush2.bf16.msra.mxu0 0
      %467 = vmatprep.subr.bf16.mxu0 0
      %468 = vmatpush2.bf16.msra.mxu0 0
      %469 = vmatprep.mubr.bf16.mxu0 0
      %470 = vmatmul.mubr.bf16.gmra.mxu0 %v405
      %v471 = vpop.f32.mrf.mxu0
      %v472 = vadd.f32 %v337, %v471
      %v473 = vpop.f32.mrf.mxu0
      %v474 = vpop.f32.mrf.mxu0
      %v475 = vadd.f32 %v337, %v474
      %v476 = vpop.f32.mrf.mxu0
      %477 = vmatprep.mubr.bf16.mxu0 0
      %478 = vmatmul.mubr.bf16.gmra.mxu0 %v408
      %v479 = vpop.f32.mrf.mxu0
      %v480 = vadd.f32 %v337, %v479
      %v481 = vpop.f32.mrf.mxu0
      %v482 = vpop.f32.mrf.mxu0
      %v483 = vadd.f32 %v337, %v482
      %v484 = vpop.f32.mrf.mxu0
      %485 = vmatprep.mubr.bf16.mxu0 0
      %486 = vmatmul.mubr.bf16.gmra.mxu0 %v411
      %v487 = vpop.f32.mrf.mxu0
      %v488 = vadd.f32 %v337, %v487
      %v489 = vpop.f32.mrf.mxu0
      %v490 = vpop.f32.mrf.mxu0
      %v491 = vadd.f32 %v337, %v490
      %v492 = vpop.f32.mrf.mxu0
      %493 = vmatprep.mubr.bf16.mxu0 0
      %494 = vmatmul.mubr.bf16.gmra.mxu0 %v414
      %v495 = vpop.f32.mrf.mxu0
      %v496 = vadd.f32 %v337, %v495
      %v497 = vpop.f32.mrf.mxu0
      %v498 = vpop.f32.mrf.mxu0
      %v499 = vadd.f32 %v337, %v498
      %v500 = vpop.f32.mrf.mxu0
      %501 = vmatprep.mubr.bf16.mxu0 0
      %502 = vmatmul.mubr.bf16.gmra.mxu0 %v417
      %v503 = vpop.f32.mrf.mxu0
      %v504 = vadd.f32 %v337, %v503
      %v505 = vpop.f32.mrf.mxu0
      %v506 = vpop.f32.mrf.mxu0
      %v507 = vadd.f32 %v337, %v506
      %v508 = vpop.f32.mrf.mxu0
      %509 = vmatprep.mubr.bf16.mxu0 0
      %510 = vmatmul.mubr.bf16.gmra.mxu0 %v420
      %v511 = vpop.f32.mrf.mxu0
      %v512 = vadd.f32 %v337, %v511
      %v513 = vpop.f32.mrf.mxu0
      %v514 = vpop.f32.mrf.mxu0
      %v515 = vadd.f32 %v337, %v514
      %v516 = vpop.f32.mrf.mxu0
      %517 = vmatprep.mubr.bf16.mxu0 0
      %518 = vmatmul.mubr.bf16.gmra.mxu0 %v423
      %v519 = vpop.f32.mrf.mxu0
      %v520 = vadd.f32 %v337, %v519
      %v521 = vpop.f32.mrf.mxu0
      %v522 = vpop.f32.mrf.mxu0
      %v523 = vadd.f32 %v337, %v522
      %v524 = vpop.f32.mrf.mxu0
      %525 = vmatprep.mubr.bf16.mxu0 0
      %526 = vmatmul.mubr.bf16.gmra.mxu0 %v426
      %v527 = vpop.f32.mrf.mxu0
      %v528 = vadd.f32 %v337, %v527
      %v529 = vpop.f32.mrf.mxu0
      %v530 = vpop.f32.mrf.mxu0
      %v531 = vadd.f32 %v337, %v530
      %v532 = vpop.f32.mrf.mxu0
      %533 = vmatprep.mubr.bf16.mxu0 0
      %534 = vmatmul.mubr.bf16.gmra.mxu0 %v429
      %v535 = vpop.f32.mrf.mxu0
      %v536 = vadd.f32 %v337, %v535
      %v537 = vpop.f32.mrf.mxu0
      %v538 = vpop.f32.mrf.mxu0
      %v539 = vadd.f32 %v337, %v538
      %v540 = vpop.f32.mrf.mxu0
      %541 = vmatprep.mubr.bf16.mxu0 0
      %542 = vmatmul.mubr.bf16.gmra.mxu0 %v432
      %v543 = vpop.f32.mrf.mxu0
      %v544 = vadd.f32 %v337, %v543
      %v545 = vpop.f32.mrf.mxu0
      %v546 = vpop.f32.mrf.mxu0
      %v547 = vadd.f32 %v337, %v546
      %v548 = vpop.f32.mrf.mxu0
      %549 = vmatprep.mubr.bf16.mxu0 0
      %550 = vmatmul.mubr.bf16.gmra.mxu0 %v435
      %v551 = vpop.f32.mrf.mxu0
      %v552 = vadd.f32 %v337, %v551
      %v553 = vpop.f32.mrf.mxu0
      %v554 = vpop.f32.mrf.mxu0
      %v555 = vpop.f32.mrf.mxu0
      %556 = vdwg.mxu0
      %v557 = vmax.f32 %v472, 0.0
      %v558 = vmax.f32 %v475, 0.0
      %v559 = vmax.f32 %v480, 0.0
      %v560 = vmax.f32 %v483, 0.0
      %v561 = vmax.f32 %v488, 0.0
      %v562 = vmax.f32 %v491, 0.0
      %v563 = vmax.f32 %v496, 0.0
      %v564 = vmax.f32 %v499, 0.0
      %v565 = vmax.f32 %v504, 0.0
      %v566 = vmax.f32 %v507, 0.0
      %v567 = vmax.f32 %v512, 0.0
      %v568 = vmax.f32 %v515, 0.0
      %v569 = vmax.f32 %v520, 0.0
      %v570 = vmax.f32 %v523, 0.0
      %v571 = vmax.f32 %v528, 0.0
      %v572 = vmax.f32 %v531, 0.0
      %v573 = vmax.f32 %v536, 0.0
      %v574 = vmax.f32 %v539, 0.0
      %v575 = vmax.f32 %v544, 0.0
      %v576 = vmax.f32 %v547, 0.0
      %v577 = vmax.f32 %v552, 0.0
      %v578 = vld [vmem:[%s4] sm:$0xf]
      %v579 = vld [vmem:[%s4 + $0x4] sm:$0xf]
      %v580 = vld [vmem:[%s4 + $0x8] sm:$0xf]
      %v581 = vld [vmem:[%s4 + $0xc] sm:$0xf]
      %v582 = vld [vmem:[%s4 + $0x10] sm:$0xf]
      %v583 = vld [vmem:[%s4 + $0x14] sm:$0xf]
      %v584 = vld [vmem:[%s4 + $0x18] sm:$0xf]
      %v585 = vld [vmem:[%s4 + $0x1c] sm:$0xf]
      %v586 = vld [vmem:[%s4 + $0x20] sm:$0xf]
      %v587 = vld [vmem:[%s4 + $0x24] sm:$0xf]
      %v588 = vld [vmem:[%s4 + $0x28] sm:$0xf]
      %v589 = vld [vmem:[%s4 + $0x2c] sm:$0xf]
      %v590 = vld [vmem:[%s4 + $0x30] sm:$0xf]
      %v591 = vld [vmem:[%s4 + $0x34] sm:$0xf]
      %v592 = vld [vmem:[%s4 + $0x38] sm:$0xf]
      %v593 = vld [vmem:[%s4 + $0x3c] sm:$0xf]
      %v594 = vld [vmem:[%s4 + $0x40] sm:$0xf]
      %v595 = vld [vmem:[%s4 + $0x44] sm:$0xf]
      %v596 = vld [vmem:[%s4 + $0x48] sm:$0xf]
      %v597 = vld [vmem:[%s4 + $0x4c] sm:$0xf]
      %v598 = vld [vmem:[%s4 + $0x50] sm:$0xf]
      %v599 = vld [vmem:[%s4 + $0x54] sm:$0xf]
      %v600 = vld [vmem:[%s4 + $0x58] sm:$0xf]
      %v601 = vld [vmem:[%s4 + $0x5c] sm:$0xf]
      %v602 = vld [vmem:[%s4 + $0x60] sm:$0xf]
      %v603 = vld [vmem:[%s4 + $0x64] sm:$0xf]
      %v604 = vld [vmem:[%s4 + $0x68] sm:$0xf]
      %v605 = vld [vmem:[%s4 + $0x6c] sm:$0xf]
      %v606 = vld [vmem:[%s4 + $0x70] sm:$0xf]
      %v607 = vld [vmem:[%s4 + $0x74] sm:$0xf]
      %v608 = vld [vmem:[%s4 + $0x78] sm:$0xf]
      %v609 = vld [vmem:[%s4 + $0x7c] sm:$0xf]
      %v610 = vld [vmem:[%s4 + $0x80] sm:$0xf]
      %v611 = vld [vmem:[%s4 + $0x84] sm:$0xf]
      %v612 = vld [vmem:[%s4 + $0x88] sm:$0xf]
      %v613 = vld [vmem:[%s4 + $0x8c] sm:$0xf]
      %v614 = vld [vmem:[%s4 + $0x90] sm:$0xf]
      %v615 = vld [vmem:[%s4 + $0x94] sm:$0xf]
      %v616 = vld [vmem:[%s4 + $0x98] sm:$0xf]
      %v617 = vld [vmem:[%s4 + $0x9c] sm:$0xf]
      %v618 = vld [vmem:[%s4 + $0xa0] sm:$0xf]
      %v619 = vld [vmem:[%s4 + $0xa4] sm:$0xf]
      %v620 = vld [vmem:[%s4 + $0xa8] sm:$0xf]
      %v621 = vld [vmem:[%s4 + $0xac] sm:$0xf]
      %v622 = vld [vmem:[%s4 + $0xb0] sm:$0xf]
      %v623 = vld [vmem:[%s4 + $0xb4] sm:$0xf]
      %v624 = vld [vmem:[%s4 + $0xb8] sm:$0xf]
      %v625 = vld [vmem:[%s4 + $0xbc] sm:$0xf]
      %v626 = vld [vmem:[%s4 + $0xc0] sm:$0xf]
      %v627 = vld [vmem:[%s4 + $0xc4] sm:$0xf]
      %v628 = vld [vmem:[%s4 + $0xc8] sm:$0xf]
      %v629 = vld [vmem:[%s4 + $0xcc] sm:$0xf]
      %v630 = vld [vmem:[%s4 + $0xd0] sm:$0xf]
      %v631 = vld [vmem:[%s4 + $0xd4] sm:$0xf]
      %v632 = vld [vmem:[%s4 + $0xd8] sm:$0xf]
      %v633 = vld [vmem:[%s4 + $0xdc] sm:$0xf]
      %v634 = vld [vmem:[%s4 + $0xe0] sm:$0xf]
      %v635 = vld [vmem:[%s4 + $0xe4] sm:$0xf]
      %v636 = vld [vmem:[%s4 + $0xe8] sm:$0xf]
      %v637 = vld [vmem:[%s4 + $0xec] sm:$0xf]
      %v638 = vld [vmem:[%s4 + $0xf0] sm:$0xf]
      %v639 = vld [vmem:[%s4 + $0xf4] sm:$0xf]
      %v640 = vld [vmem:[%s4 + $0xf8] sm:$0xf]
      %v641 = vld [vmem:[%s4 + $0xfc] sm:$0xf]
      %v642 = vld [vmem:[%s4 + $0x100] sm:$0xf]
      %v643 = vld [vmem:[%s4 + $0x104] sm:$0xf]
      %v644 = vld [vmem:[%s4 + $0x108] sm:$0xf]
      %v645 = vld [vmem:[%s4 + $0x10c] sm:$0xf]
      %v646 = vld [vmem:[%s4 + $0x110] sm:$0xf]
      %v647 = vld [vmem:[%s4 + $0x114] sm:$0xf]
      %v648 = vld [vmem:[%s4 + $0x118] sm:$0xf]
      %v649 = vld [vmem:[%s4 + $0x11c] sm:$0xf]
      %v650 = vld [vmem:[%s6 + $0x1] sm:$0x1]
      %651 = vst.msk [vmem:[#allocation2 + $0x8] sm:$0xff] %vm305, %v557
      %652 = vst.msk [vmem:[#allocation2 + $0x10] sm:$0xff] %vm305, %v558
      %653 = vst.msk [vmem:[#allocation2 + $0x18] sm:$0xff] %vm305, %v559
      %654 = vst.msk [vmem:[#allocation2 + $0x20] sm:$0xff] %vm305, %v560
      %655 = vst.msk [vmem:[#allocation2 + $0x28] sm:$0xff] %vm305, %v561
      %656 = vst.msk [vmem:[#allocation2 + $0x30] sm:$0xff] %vm305, %v562
      %657 = vst.msk [vmem:[#allocation2 + $0x38] sm:$0xff] %vm305, %v563
      %658 = vst.msk [vmem:[#allocation2 + $0x40] sm:$0xff] %vm305, %v564
      %659 = vst.msk [vmem:[#allocation2 + $0x48] sm:$0xff] %vm305, %v565
      %660 = vst.msk [vmem:[#allocation2 + $0x50] sm:$0xff] %vm305, %v566
      %661 = vst.msk [vmem:[#allocation2 + $0x58] sm:$0xff] %vm305, %v567
      %662 = vst.msk [vmem:[#allocation2 + $0x60] sm:$0xff] %vm305, %v568
      %663 = vst.msk [vmem:[#allocation2 + $0x68] sm:$0xff] %vm305, %v569
      %664 = vst.msk [vmem:[#allocation2 + $0x70] sm:$0xff] %vm305, %v570
      %665 = vst.msk [vmem:[#allocation2 + $0x78] sm:$0xff] %vm305, %v571
      %666 = vst.msk [vmem:[#allocation2 + $0x80] sm:$0xff] %vm305, %v572
      %667 = vst.msk [vmem:[#allocation2 + $0x88] sm:$0xff] %vm305, %v573
      %668 = vst.msk [vmem:[#allocation2 + $0x90] sm:$0xff] %vm305, %v574
      %669 = vst.msk [vmem:[#allocation2 + $0x98] sm:$0xff] %vm305, %v575
      %670 = vst.msk [vmem:[#allocation2 + $0xa0] sm:$0xff] %vm305, %v576
      %671 = vst.msk [vmem:[#allocation2 + $0xa8] sm:$0xff] %vm305, %v577
      %v672 = vld [vmem:[#allocation2] sm:$0xff]
      %v673 = vld [vmem:[#allocation2 + $0x8] sm:$0xff]
      %v674 = vld [vmem:[#allocation2 + $0x10] sm:$0xff]
      %v675 = vld [vmem:[#allocation2 + $0x18] sm:$0xff]
      %v676 = vld [vmem:[#allocation2 + $0x20] sm:$0xff]
      %v677 = vld [vmem:[#allocation2 + $0x28] sm:$0xff]
      %v678 = vld [vmem:[#allocation2 + $0x30] sm:$0xff]
      %v679 = vld [vmem:[#allocation2 + $0x38] sm:$0xff]
      %v680 = vld [vmem:[#allocation2 + $0x40] sm:$0xff]
      %v681 = vld [vmem:[#allocation2 + $0x48] sm:$0xff]
      %v682 = vld [vmem:[#allocation2 + $0x50] sm:$0xff]
      %v683 = vld [vmem:[#allocation2 + $0x58] sm:$0xff]
      %v684 = vld [vmem:[#allocation2 + $0x60] sm:$0xff]
      %v685 = vld [vmem:[#allocation2 + $0x68] sm:$0xff]
      %v686 = vld [vmem:[#allocation2 + $0x70] sm:$0xff]
      %v687 = vld [vmem:[#allocation2 + $0x78] sm:$0xff]
      %v688 = vld [vmem:[#allocation2 + $0x80] sm:$0xff]
      %v689 = vld [vmem:[#allocation2 + $0x88] sm:$0xff]
      %v690 = vld [vmem:[#allocation2 + $0x90] sm:$0xff]
      %v691 = vld [vmem:[#allocation2 + $0x98] sm:$0xff]
      %v692 = vld [vmem:[#allocation2 + $0xa0] sm:$0xff]
      %v693 = vld [vmem:[%s1] sm:$0xf]
      %v694 = vld [vmem:[%s1 + $0x4] sm:$0xf]
      %v695 = vld [vmem:[%s1 + $0x8] sm:$0xf]
      %v696 = vld [vmem:[%s1 + $0xc] sm:$0xf]
      %v697 = vld [vmem:[%s1 + $0x10] sm:$0xf]
      %v698 = vld [vmem:[%s1 + $0x14] sm:$0xf]
      %v699 = vld [vmem:[%s1 + $0x18] sm:$0xf]
      %v700 = vld [vmem:[%s1 + $0x1c] sm:$0xf]
      %v701 = vld [vmem:[%s1 + $0x20] sm:$0xf]
      %v702 = vld [vmem:[%s1 + $0x24] sm:$0xf]
      %v703 = vld [vmem:[%s1 + $0x28] sm:$0xf]
      %v704 = vld [vmem:[%s1 + $0x2c] sm:$0xf]
      %v705 = vld [vmem:[%s1 + $0x30] sm:$0xf]
      %v706 = vld [vmem:[%s1 + $0x34] sm:$0xf]
      %v707 = vld [vmem:[%s1 + $0x38] sm:$0xf]
      %v708 = vld [vmem:[%s1 + $0x3c] sm:$0xf]
      %v709 = vld [vmem:[%s1 + $0x40] sm:$0xf]
      %v710 = vld [vmem:[%s1 + $0x44] sm:$0xf]
      %v711 = vld [vmem:[%s1 + $0x48] sm:$0xf]
      %v712 = vld [vmem:[%s1 + $0x4c] sm:$0xf]
      %v713 = vld [vmem:[%s1 + $0x50] sm:$0xf]
      %v714 = vunpack.c.l.bf16 %v693
      %v715 = vunpack.c.l.bf16 %v694
      %v716 = vunpack.c.l.bf16 %v695
      %v717 = vunpack.c.l.bf16 %v696
      %v718 = vunpack.c.l.bf16 %v697
      %v719 = vunpack.c.l.bf16 %v698
      %v720 = vunpack.c.l.bf16 %v699
      %v721 = vunpack.c.l.bf16 %v700
      %v722 = vunpack.c.l.bf16 %v701
      %v723 = vunpack.c.l.bf16 %v702
      %v724 = vunpack.c.l.bf16 %v703
      %v725 = vunpack.c.l.bf16 %v704
      %v726 = vunpack.c.l.bf16 %v705
      %v727 = vunpack.c.l.bf16 %v706
      %v728 = vunpack.c.l.bf16 %v707
      %v729 = vunpack.c.l.bf16 %v708
      %v730 = vunpack.c.l.bf16 %v709
      %v731 = vunpack.c.l.bf16 %v710
      %v732 = vunpack.c.l.bf16 %v711
      %v733 = vunpack.c.l.bf16 %v712
      %v734 = vunpack.c.l.bf16 %v713
      %736 = vset.pattern.permute.xlu0 0
      %737 = vperm.xlu0 %736, %v714
      %v738 = vpop.permute.xlu0 %737
      %741 = vset.pattern.permute.xlu0 0
      %742 = vperm.xlu0 %741, %v715
      %v743 = vpop.permute.xlu0 %742
      %746 = vset.pattern.permute.xlu0 0
      %747 = vperm.xlu0 %746, %v716
      %v748 = vpop.permute.xlu0 %747
      %751 = vset.pattern.permute.xlu0 0
      %752 = vperm.xlu0 %751, %v717
      %v753 = vpop.permute.xlu0 %752
      %756 = vset.pattern.permute.xlu0 0
      %757 = vperm.xlu0 %756, %v718
      %v758 = vpop.permute.xlu0 %757
      %761 = vset.pattern.permute.xlu0 0
      %762 = vperm.xlu0 %761, %v719
      %v763 = vpop.permute.xlu0 %762
      %766 = vset.pattern.permute.xlu0 0
      %767 = vperm.xlu0 %766, %v720
      %v768 = vpop.permute.xlu0 %767
      %771 = vset.pattern.permute.xlu0 0
      %772 = vperm.xlu0 %771, %v721
      %v773 = vpop.permute.xlu0 %772
      %776 = vset.pattern.permute.xlu0 0
      %777 = vperm.xlu0 %776, %v722
      %v778 = vpop.permute.xlu0 %777
      %781 = vset.pattern.permute.xlu0 0
      %782 = vperm.xlu0 %781, %v723
      %v783 = vpop.permute.xlu0 %782
      %786 = vset.pattern.permute.xlu0 0
      %787 = vperm.xlu0 %786, %v724
      %v788 = vpop.permute.xlu0 %787
      %791 = vset.pattern.permute.xlu0 0
      %792 = vperm.xlu0 %791, %v725
      %v793 = vpop.permute.xlu0 %792
      %796 = vset.pattern.permute.xlu0 0
      %797 = vperm.xlu0 %796, %v726
      %v798 = vpop.permute.xlu0 %797
      %801 = vset.pattern.permute.xlu0 0
      %802 = vperm.xlu0 %801, %v727
      %v803 = vpop.permute.xlu0 %802
      %806 = vset.pattern.permute.xlu0 0
      %807 = vperm.xlu0 %806, %v728
      %v808 = vpop.permute.xlu0 %807
      %811 = vset.pattern.permute.xlu0 0
      %812 = vperm.xlu0 %811, %v729
      %v813 = vpop.permute.xlu0 %812
      %816 = vset.pattern.permute.xlu0 0
      %817 = vperm.xlu0 %816, %v730
      %v818 = vpop.permute.xlu0 %817
      %821 = vset.pattern.permute.xlu0 0
      %822 = vperm.xlu0 %821, %v731
      %v823 = vpop.permute.xlu0 %822
      %826 = vset.pattern.permute.xlu0 0
      %827 = vperm.xlu0 %826, %v732
      %v828 = vpop.permute.xlu0 %827
      %831 = vset.pattern.permute.xlu0 0
      %832 = vperm.xlu0 %831, %v733
      %v833 = vpop.permute.xlu0 %832
      %836 = vset.pattern.permute.xlu0 0
      %837 = vperm.xlu0 %836, %v734
      %v838 = vpop.permute.xlu0 %837
      %v840 = vmul.f32 %v672, %v738
      %v841 = vmul.f32 %v673, %v743
      %v842 = vmul.f32 %v674, %v748
      %v843 = vmul.f32 %v675, %v753
      %v844 = vmul.f32 %v676, %v758
      %v845 = vmul.f32 %v677, %v763
      %v846 = vmul.f32 %v678, %v768
      %v847 = vmul.f32 %v679, %v773
      %v848 = vmul.f32 %v680, %v778
      %v849 = vmul.f32 %v681, %v783
      %v850 = vmul.f32 %v682, %v788
      %v851 = vmul.f32 %v683, %v793
      %v852 = vmul.f32 %v684, %v798
      %v853 = vmul.f32 %v685, %v803
      %v854 = vmul.f32 %v686, %v808
      %v855 = vmul.f32 %v687, %v813
      %v856 = vmul.f32 %v688, %v818
      %v857 = vmul.f32 %v689, %v823
      %v858 = vmul.f32 %v690, %v828
      %v859 = vmul.f32 %v691, %v833
      %v860 = vmul.f32 %v692, %v838
      %v861 = vpack.c.bf16 %v841, %v840
      %v862 = vpack.c.bf16 %v843, %v842
      %v863 = vpack.c.bf16 %v845, %v844
      %v864 = vpack.c.bf16 %v847, %v846
      %v865 = vpack.c.bf16 %v849, %v848
      %v866 = vpack.c.bf16 %v851, %v850
      %v867 = vpack.c.bf16 %v853, %v852
      %v868 = vpack.c.bf16 %v855, %v854
      %v869 = vpack.c.bf16 %v857, %v856
      %v870 = vpack.c.bf16 %v859, %v858
      %v871 = vpack.c.bf16 %v860, %v860
      %v872 = vld [vmem:[#allocation2 + $0x1] sm:$0xff]
      %v873 = vld [vmem:[#allocation2 + $0x9] sm:$0xff]
      %v874 = vld [vmem:[#allocation2 + $0x11] sm:$0xff]
      %v875 = vld [vmem:[#allocation2 + $0x19] sm:$0xff]
      %v876 = vld [vmem:[#allocation2 + $0x21] sm:$0xff]
      %v877 = vld [vmem:[#allocation2 + $0x29] sm:$0xff]
      %v878 = vld [vmem:[#allocation2 + $0x31] sm:$0xff]
      %v879 = vld [vmem:[#allocation2 + $0x39] sm:$0xff]
      %v880 = vld [vmem:[#allocation2 + $0x41] sm:$0xff]
      %v881 = vld [vmem:[#allocation2 + $0x49] sm:$0xff]
      %v882 = vld [vmem:[#allocation2 + $0x51] sm:$0xff]
      %v883 = vld [vmem:[#allocation2 + $0x59] sm:$0xff]
      %v884 = vld [vmem:[#allocation2 + $0x61] sm:$0xff]
      %v885 = vld [vmem:[#allocation2 + $0x69] sm:$0xff]
      %v886 = vld [vmem:[#allocation2 + $0x71] sm:$0xff]
      %v887 = vld [vmem:[#allocation2 + $0x79] sm:$0xff]
      %v888 = vld [vmem:[#allocation2 + $0x81] sm:$0xff]
      %v889 = vld [vmem:[#allocation2 + $0x89] sm:$0xff]
      %v890 = vld [vmem:[#allocation2 + $0x91] sm:$0xff]
      %v891 = vld [vmem:[#allocation2 + $0x99] sm:$0xff]
      %v892 = vld [vmem:[#allocation2 + $0xa1] sm:$0xff]
      %893 = vset.pattern.permute.xlu0 1
      %894 = vperm.xlu0 %893, %v714
      %v895 = vpop.permute.xlu0 %894
      %897 = vset.pattern.permute.xlu0 1
      %898 = vperm.xlu0 %897, %v715
      %v899 = vpop.permute.xlu0 %898
      %901 = vset.pattern.permute.xlu0 1
      %902 = vperm.xlu0 %901, %v716
      %v903 = vpop.permute.xlu0 %902
      %905 = vset.pattern.permute.xlu0 1
      %906 = vperm.xlu0 %905, %v717
      %v907 = vpop.permute.xlu0 %906
      %909 = vset.pattern.permute.xlu0 1
      %910 = vperm.xlu0 %909, %v718
      %v911 = vpop.permute.xlu0 %910
      %913 = vset.pattern.permute.xlu0 1
      %914 = vperm.xlu0 %913, %v719
      %v915 = vpop.permute.xlu0 %914
      %917 = vset.pattern.permute.xlu0 1
      %918 = vperm.xlu0 %917, %v720
      %v919 = vpop.permute.xlu0 %918
      %921 = vset.pattern.permute.xlu0 1
      %922 = vperm.xlu0 %921, %v721
      %v923 = vpop.permute.xlu0 %922
      %925 = vset.pattern.permute.xlu0 1
      %926 = vperm.xlu0 %925, %v722
      %v927 = vpop.permute.xlu0 %926
      %929 = vset.pattern.permute.xlu0 1
      %930 = vperm.xlu0 %929, %v723
      %v931 = vpop.permute.xlu0 %930
      %933 = vset.pattern.permute.xlu0 1
      %934 = vperm.xlu0 %933, %v724
      %v935 = vpop.permute.xlu0 %934
      %937 = vset.pattern.permute.xlu0 1
      %938 = vperm.xlu0 %937, %v725
      %v939 = vpop.permute.xlu0 %938
      %941 = vset.pattern.permute.xlu0 1
      %942 = vperm.xlu0 %941, %v726
      %v943 = vpop.permute.xlu0 %942
      %945 = vset.pattern.permute.xlu0 1
      %946 = vperm.xlu0 %945, %v727
      %v947 = vpop.permute.xlu0 %946
      %949 = vset.pattern.permute.xlu0 1
      %950 = vperm.xlu0 %949, %v728
      %v951 = vpop.permute.xlu0 %950
      %953 = vset.pattern.permute.xlu0 1
      %954 = vperm.xlu0 %953, %v729
      %v955 = vpop.permute.xlu0 %954
      %957 = vset.pattern.permute.xlu0 1
      %958 = vperm.xlu0 %957, %v730
      %v959 = vpop.permute.xlu0 %958
      %961 = vset.pattern.permute.xlu0 1
      %962 = vperm.xlu0 %961, %v731
      %v963 = vpop.permute.xlu0 %962
      %965 = vset.pattern.permute.xlu0 1
      %966 = vperm.xlu0 %965, %v732
      %v967 = vpop.permute.xlu0 %966
      %969 = vset.pattern.permute.xlu0 1
      %970 = vperm.xlu0 %969, %v733
      %v971 = vpop.permute.xlu0 %970
      %973 = vset.pattern.permute.xlu0 1
      %974 = vperm.xlu0 %973, %v734
      %v975 = vpop.permute.xlu0 %974
      %v977 = vmul.f32 %v872, %v895
      %v978 = vmul.f32 %v873, %v899
      %v979 = vmul.f32 %v874, %v903
      %v980 = vmul.f32 %v875, %v907
      %v981 = vmul.f32 %v876, %v911
      %v982 = vmul.f32 %v877, %v915
      %v983 = vmul.f32 %v878, %v919
      %v984 = vmul.f32 %v879, %v923
      %v985 = vmul.f32 %v880, %v927
      %v986 = vmul.f32 %v881, %v931
      %v987 = vmul.f32 %v882, %v935
      %v988 = vmul.f32 %v883, %v939
      %v989 = vmul.f32 %v884, %v943
      %v990 = vmul.f32 %v885, %v947
      %v991 = vmul.f32 %v886, %v951
      %v992 = vmul.f32 %v887, %v955
      %v993 = vmul.f32 %v888, %v959
      %v994 = vmul.f32 %v889, %v963
      %v995 = vmul.f32 %v890, %v967
      %v996 = vmul.f32 %v891, %v971
      %v997 = vmul.f32 %v892, %v975
      %v998 = vpack.c.bf16 %v978, %v977
      %v999 = vpack.c.bf16 %v980, %v979
      %v1000 = vpack.c.bf16 %v982, %v981
      %v1001 = vpack.c.bf16 %v984, %v983
      %v1002 = vpack.c.bf16 %v986, %v985
      %v1003 = vpack.c.bf16 %v988, %v987
      %v1004 = vpack.c.bf16 %v990, %v989
      %v1005 = vpack.c.bf16 %v992, %v991
      %v1006 = vpack.c.bf16 %v994, %v993
      %v1007 = vpack.c.bf16 %v996, %v995
      %v1008 = vpack.c.bf16 %v997, %v997
      %v1009 = vld [vmem:[#allocation2 + $0x2] sm:$0xff]
      %v1010 = vld [vmem:[#allocation2 + $0xa] sm:$0xff]
      %v1011 = vld [vmem:[#allocation2 + $0x12] sm:$0xff]
      %v1012 = vld [vmem:[#allocation2 + $0x1a] sm:$0xff]
      %v1013 = vld [vmem:[#allocation2 + $0x22] sm:$0xff]
      %v1014 = vld [vmem:[#allocation2 + $0x2a] sm:$0xff]
      %v1015 = vld [vmem:[#allocation2 + $0x32] sm:$0xff]
      %v1016 = vld [vmem:[#allocation2 + $0x3a] sm:$0xff]
      %v1017 = vld [vmem:[#allocation2 + $0x42] sm:$0xff]
      %v1018 = vld [vmem:[#allocation2 + $0x4a] sm:$0xff]
      %v1019 = vld [vmem:[#allocation2 + $0x52] sm:$0xff]
      %v1020 = vld [vmem:[#allocation2 + $0x5a] sm:$0xff]
      %v1021 = vld [vmem:[#allocation2 + $0x62] sm:$0xff]
      %v1022 = vld [vmem:[#allocation2 + $0x6a] sm:$0xff]
      %v1023 = vld [vmem:[#allocation2 + $0x72] sm:$0xff]
      %v1024 = vld [vmem:[#allocation2 + $0x7a] sm:$0xff]
      %v1025 = vld [vmem:[#allocation2 + $0x82] sm:$0xff]
      %v1026 = vld [vmem:[#allocation2 + $0x8a] sm:$0xff]
      %v1027 = vld [vmem:[#allocation2 + $0x92] sm:$0xff]
      %v1028 = vld [vmem:[#allocation2 + $0x9a] sm:$0xff]
      %v1029 = vld [vmem:[#allocation2 + $0xa2] sm:$0xff]
      %1030 = vset.pattern.permute.xlu0 2
      %1031 = vperm.xlu0 %1030, %v714
      %v1032 = vpop.permute.xlu0 %1031
      %1034 = vset.pattern.permute.xlu0 2
      %1035 = vperm.xlu0 %1034, %v715
      %v1036 = vpop.permute.xlu0 %1035
      %1038 = vset.pattern.permute.xlu0 2
      %1039 = vperm.xlu0 %1038, %v716
      %v1040 = vpop.permute.xlu0 %1039
      %1042 = vset.pattern.permute.xlu0 2
      %1043 = vperm.xlu0 %1042, %v717
      %v1044 = vpop.permute.xlu0 %1043
      %1046 = vset.pattern.permute.xlu0 2
      %1047 = vperm.xlu0 %1046, %v718
      %v1048 = vpop.permute.xlu0 %1047
      %1050 = vset.pattern.permute.xlu0 2
      %1051 = vperm.xlu0 %1050, %v719
      %v1052 = vpop.permute.xlu0 %1051
      %1054 = vset.pattern.permute.xlu0 2
      %1055 = vperm.xlu0 %1054, %v720
      %v1056 = vpop.permute.xlu0 %1055
      %1058 = vset.pattern.permute.xlu0 2
      %1059 = vperm.xlu0 %1058, %v721
      %v1060 = vpop.permute.xlu0 %1059
      %1062 = vset.pattern.permute.xlu0 2
      %1063 = vperm.xlu0 %1062, %v722
      %v1064 = vpop.permute.xlu0 %1063
      %1066 = vset.pattern.permute.xlu0 2
      %1067 = vperm.xlu0 %1066, %v723
      %v1068 = vpop.permute.xlu0 %1067
      %1070 = vset.pattern.permute.xlu0 2
      %1071 = vperm.xlu0 %1070, %v724
      %v1072 = vpop.permute.xlu0 %1071
      %1074 = vset.pattern.permute.xlu0 2
      %1075 = vperm.xlu0 %1074, %v725
      %v1076 = vpop.permute.xlu0 %1075
      %1078 = vset.pattern.permute.xlu0 2
      %1079 = vperm.xlu0 %1078, %v726
      %v1080 = vpop.permute.xlu0 %1079
      %1082 = vset.pattern.permute.xlu0 2
      %1083 = vperm.xlu0 %1082, %v727
      %v1084 = vpop.permute.xlu0 %1083
      %1086 = vset.pattern.permute.xlu0 2
      %1087 = vperm.xlu0 %1086, %v728
      %v1088 = vpop.permute.xlu0 %1087
      %1090 = vset.pattern.permute.xlu0 2
      %1091 = vperm.xlu0 %1090, %v729
      %v1092 = vpop.permute.xlu0 %1091
      %1094 = vset.pattern.permute.xlu0 2
      %1095 = vperm.xlu0 %1094, %v730
      %v1096 = vpop.permute.xlu0 %1095
      %1098 = vset.pattern.permute.xlu0 2
      %1099 = vperm.xlu0 %1098, %v731
      %v1100 = vpop.permute.xlu0 %1099
      %1102 = vset.pattern.permute.xlu0 2
      %1103 = vperm.xlu0 %1102, %v732
      %v1104 = vpop.permute.xlu0 %1103
      %1106 = vset.pattern.permute.xlu0 2
      %1107 = vperm.xlu0 %1106, %v733
      %v1108 = vpop.permute.xlu0 %1107
      %1110 = vset.pattern.permute.xlu0 2
      %1111 = vperm.xlu0 %1110, %v734
      %v1112 = vpop.permute.xlu0 %1111
      %v1114 = vmul.f32 %v1009, %v1032
      %v1115 = vmul.f32 %v1010, %v1036
      %v1116 = vmul.f32 %v1011, %v1040
      %v1117 = vmul.f32 %v1012, %v1044
      %v1118 = vmul.f32 %v1013, %v1048
      %v1119 = vmul.f32 %v1014, %v1052
      %v1120 = vmul.f32 %v1015, %v1056
      %v1121 = vmul.f32 %v1016, %v1060
      %v1122 = vmul.f32 %v1017, %v1064
      %v1123 = vmul.f32 %v1018, %v1068
      %v1124 = vmul.f32 %v1019, %v1072
      %v1125 = vmul.f32 %v1020, %v1076
      %v1126 = vmul.f32 %v1021, %v1080
      %v1127 = vmul.f32 %v1022, %v1084
      %v1128 = vmul.f32 %v1023, %v1088
      %v1129 = vmul.f32 %v1024, %v1092
      %v1130 = vmul.f32 %v1025, %v1096
      %v1131 = vmul.f32 %v1026, %v1100
      %v1132 = vmul.f32 %v1027, %v1104
      %v1133 = vmul.f32 %v1028, %v1108
      %v1134 = vmul.f32 %v1029, %v1112
      %v1135 = vpack.c.bf16 %v1115, %v1114
      %v1136 = vpack.c.bf16 %v1117, %v1116
      %v1137 = vpack.c.bf16 %v1119, %v1118
      %v1138 = vpack.c.bf16 %v1121, %v1120
      %v1139 = vpack.c.bf16 %v1123, %v1122
      %v1140 = vpack.c.bf16 %v1125, %v1124
      %v1141 = vpack.c.bf16 %v1127, %v1126
      %v1142 = vpack.c.bf16 %v1129, %v1128
      %v1143 = vpack.c.bf16 %v1131, %v1130
      %v1144 = vpack.c.bf16 %v1133, %v1132
      %v1145 = vpack.c.bf16 %v1134, %v1134
      %v1146 = vld [vmem:[#allocation2 + $0x7] sm:$0xff]
      %v1147 = vld [vmem:[#allocation2 + $0xf] sm:$0xff]
      %v1148 = vld [vmem:[#allocation2 + $0x17] sm:$0xff]
      %v1149 = vld [vmem:[#allocation2 + $0x1f] sm:$0xff]
      %v1150 = vld [vmem:[#allocation2 + $0x27] sm:$0xff]
      %v1151 = vld [vmem:[#allocation2 + $0x2f] sm:$0xff]
      %v1152 = vld [vmem:[#allocation2 + $0x37] sm:$0xff]
      %v1153 = vld [vmem:[#allocation2 + $0x3f] sm:$0xff]
      %v1154 = vld [vmem:[#allocation2 + $0x47] sm:$0xff]
      %v1155 = vld [vmem:[#allocation2 + $0x4f] sm:$0xff]
      %v1156 = vld [vmem:[#allocation2 + $0x57] sm:$0xff]
      %v1157 = vld [vmem:[#allocation2 + $0x5f] sm:$0xff]
      %v1158 = vld [vmem:[#allocation2 + $0x67] sm:$0xff]
      %v1159 = vld [vmem:[#allocation2 + $0x6f] sm:$0xff]
      %v1160 = vld [vmem:[#allocation2 + $0x77] sm:$0xff]
      %v1161 = vld [vmem:[#allocation2 + $0x7f] sm:$0xff]
      %v1162 = vld [vmem:[#allocation2 + $0x87] sm:$0xff]
      %v1163 = vld [vmem:[#allocation2 + $0x8f] sm:$0xff]
      %v1164 = vld [vmem:[#allocation2 + $0x97] sm:$0xff]
      %v1165 = vld [vmem:[#allocation2 + $0x9f] sm:$0xff]
      %v1166 = vld [vmem:[#allocation2 + $0xa7] sm:$0xff]
      %1167 = vset.pattern.permute.xlu0 3
      %1168 = vperm.xlu0 %1167, %v714
      %v1169 = vpop.permute.xlu0 %1168
      %1171 = vset.pattern.permute.xlu0 3
      %1172 = vperm.xlu0 %1171, %v715
      %v1173 = vpop.permute.xlu0 %1172
      %1175 = vset.pattern.permute.xlu0 3
      %1176 = vperm.xlu0 %1175, %v716
      %v1177 = vpop.permute.xlu0 %1176
      %1179 = vset.pattern.permute.xlu0 3
      %1180 = vperm.xlu0 %1179, %v717
      %v1181 = vpop.permute.xlu0 %1180
      %1183 = vset.pattern.permute.xlu0 3
      %1184 = vperm.xlu0 %1183, %v718
      %v1185 = vpop.permute.xlu0 %1184
      %1187 = vset.pattern.permute.xlu0 3
      %1188 = vperm.xlu0 %1187, %v719
      %v1189 = vpop.permute.xlu0 %1188
      %1191 = vset.pattern.permute.xlu0 3
      %1192 = vperm.xlu0 %1191, %v720
      %v1193 = vpop.permute.xlu0 %1192
      %1195 = vset.pattern.permute.xlu0 3
      %1196 = vperm.xlu0 %1195, %v721
      %v1197 = vpop.permute.xlu0 %1196
      %1199 = vset.pattern.permute.xlu0 3
      %1200 = vperm.xlu0 %1199, %v722
      %v1201 = vpop.permute.xlu0 %1200
      %1203 = vset.pattern.permute.xlu0 3
      %1204 = vperm.xlu0 %1203, %v723
      %v1205 = vpop.permute.xlu0 %1204
      %1207 = vset.pattern.permute.xlu0 3
      %1208 = vperm.xlu0 %1207, %v724
      %v1209 = vpop.permute.xlu0 %1208
      %1211 = vset.pattern.permute.xlu0 3
      %1212 = vperm.xlu0 %1211, %v725
      %v1213 = vpop.permute.xlu0 %1212
      %1215 = vset.pattern.permute.xlu0 3
      %1216 = vperm.xlu0 %1215, %v726
      %v1217 = vpop.permute.xlu0 %1216
      %1219 = vset.pattern.permute.xlu0 3
      %1220 = vperm.xlu0 %1219, %v727
      %v1221 = vpop.permute.xlu0 %1220
      %1223 = vset.pattern.permute.xlu0 3
      %1224 = vperm.xlu0 %1223, %v728
      %v1225 = vpop.permute.xlu0 %1224
      %1227 = vset.pattern.permute.xlu0 3
      %1228 = vperm.xlu0 %1227, %v729
      %v1229 = vpop.permute.xlu0 %1228
      %1231 = vset.pattern.permute.xlu0 3
      %1232 = vperm.xlu0 %1231, %v730
      %v1233 = vpop.permute.xlu0 %1232
      %1235 = vset.pattern.permute.xlu0 3
      %1236 = vperm.xlu0 %1235, %v731
      %v1237 = vpop.permute.xlu0 %1236
      %1239 = vset.pattern.permute.xlu0 3
      %1240 = vperm.xlu0 %1239, %v732
      %v1241 = vpop.permute.xlu0 %1240
      %1243 = vset.pattern.permute.xlu0 3
      %1244 = vperm.xlu0 %1243, %v733
      %v1245 = vpop.permute.xlu0 %1244
      %1247 = vset.pattern.permute.xlu0 3
      %1248 = vperm.xlu0 %1247, %v734
      %v1249 = vpop.permute.xlu0 %1248
      %v1251 = vmul.f32 %v1146, %v1169
      %v1252 = vmul.f32 %v1147, %v1173
      %v1253 = vmul.f32 %v1148, %v1177
      %v1254 = vmul.f32 %v1149, %v1181
      %v1255 = vmul.f32 %v1150, %v1185
      %v1256 = vmul.f32 %v1151, %v1189
      %v1257 = vmul.f32 %v1152, %v1193
      %v1258 = vmul.f32 %v1153, %v1197
      %v1259 = vmul.f32 %v1154, %v1201
      %v1260 = vmul.f32 %v1155, %v1205
      %v1261 = vmul.f32 %v1156, %v1209
      %v1262 = vmul.f32 %v1157, %v1213
      %v1263 = vmul.f32 %v1158, %v1217
      %v1264 = vmul.f32 %v1159, %v1221
      %v1265 = vmul.f32 %v1160, %v1225
      %v1266 = vmul.f32 %v1161, %v1229
      %v1267 = vmul.f32 %v1162, %v1233
      %v1268 = vmul.f32 %v1163, %v1237
      %v1269 = vmul.f32 %v1164, %v1241
      %v1270 = vmul.f32 %v1165, %v1245
      %v1271 = vmul.f32 %v1166, %v1249
      %v1272 = vpack.c.bf16 %v1252, %v1251
      %v1273 = vpack.c.bf16 %v1254, %v1253
      %v1274 = vpack.c.bf16 %v1256, %v1255
      %v1275 = vpack.c.bf16 %v1258, %v1257
      %v1276 = vpack.c.bf16 %v1260, %v1259
      %v1277 = vpack.c.bf16 %v1262, %v1261
      %v1278 = vpack.c.bf16 %v1264, %v1263
      %v1279 = vpack.c.bf16 %v1266, %v1265
      %v1280 = vpack.c.bf16 %v1268, %v1267
      %v1281 = vpack.c.bf16 %v1270, %v1269
      %v1282 = vpack.c.bf16 %v1271, %v1271
      %v1283 = vld [vmem:[#allocation2 + $0x8] sm:$0xff]
      %v1284 = vld [vmem:[#allocation2 + $0x10] sm:$0xff]
      %v1285 = vld [vmem:[#allocation2 + $0x18] sm:$0xff]
      %v1286 = vld [vmem:[#allocation2 + $0x20] sm:$0xff]
      %v1287 = vld [vmem:[#allocation2 + $0x28] sm:$0xff]
      %v1288 = vld [vmem:[#allocation2 + $0x30] sm:$0xff]
      %v1289 = vld [vmem:[#allocation2 + $0x38] sm:$0xff]
      %v1290 = vld [vmem:[#allocation2 + $0x40] sm:$0xff]
      %v1291 = vld [vmem:[#allocation2 + $0x48] sm:$0xff]
      %v1292 = vld [vmem:[#allocation2 + $0x50] sm:$0xff]
      %v1293 = vld [vmem:[#allocation2 + $0x58] sm:$0xff]
      %v1294 = vld [vmem:[#allocation2 + $0x60] sm:$0xff]
      %v1295 = vld [vmem:[#allocation2 + $0x68] sm:$0xff]
      %v1296 = vld [vmem:[#allocation2 + $0x70] sm:$0xff]
      %v1297 = vld [vmem:[#allocation2 + $0x78] sm:$0xff]
      %v1298 = vld [vmem:[#allocation2 + $0x80] sm:$0xff]
      %v1299 = vld [vmem:[#allocation2 + $0x88] sm:$0xff]
      %v1300 = vld [vmem:[#allocation2 + $0x90] sm:$0xff]
      %v1301 = vld [vmem:[#allocation2 + $0x98] sm:$0xff]
      %v1302 = vld [vmem:[#allocation2 + $0xa0] sm:$0xff]
      %v1303 = vld [vmem:[#allocation2 + $0xa8] sm:$0xff]
      %1304 = vset.pattern.permute.xlu0 4
      %1305 = vperm.xlu0 %1304, %v714
      %v1306 = vpop.permute.xlu0 %1305
      %1308 = vset.pattern.permute.xlu0 4
      %1309 = vperm.xlu0 %1308, %v715
      %v1310 = vpop.permute.xlu0 %1309
      %1312 = vset.pattern.permute.xlu0 4
      %1313 = vperm.xlu0 %1312, %v716
      %v1314 = vpop.permute.xlu0 %1313
      %1316 = vset.pattern.permute.xlu0 4
      %1317 = vperm.xlu0 %1316, %v717
      %v1318 = vpop.permute.xlu0 %1317
      %1320 = vset.pattern.permute.xlu0 4
      %1321 = vperm.xlu0 %1320, %v718
      %v1322 = vpop.permute.xlu0 %1321
      %1324 = vset.pattern.permute.xlu0 4
      %1325 = vperm.xlu0 %1324, %v719
      %v1326 = vpop.permute.xlu0 %1325
      %1328 = vset.pattern.permute.xlu0 4
      %1329 = vperm.xlu0 %1328, %v720
      %v1330 = vpop.permute.xlu0 %1329
      %1332 = vset.pattern.permute.xlu0 4
      %1333 = vperm.xlu0 %1332, %v721
      %v1334 = vpop.permute.xlu0 %1333
      %1336 = vset.pattern.permute.xlu0 4
      %1337 = vperm.xlu0 %1336, %v722
      %v1338 = vpop.permute.xlu0 %1337
      %1340 = vset.pattern.permute.xlu0 4
      %1341 = vperm.xlu0 %1340, %v723
      %v1342 = vpop.permute.xlu0 %1341
      %1344 = vset.pattern.permute.xlu0 4
      %1345 = vperm.xlu0 %1344, %v724
      %v1346 = vpop.permute.xlu0 %1345
      %1348 = vset.pattern.permute.xlu0 4
      %1349 = vperm.xlu0 %1348, %v725
      %v1350 = vpop.permute.xlu0 %1349
      %1352 = vset.pattern.permute.xlu0 4
      %1353 = vperm.xlu0 %1352, %v726
      %v1354 = vpop.permute.xlu0 %1353
      %1356 = vset.pattern.permute.xlu0 4
      %1357 = vperm.xlu0 %1356, %v727
      %v1358 = vpop.permute.xlu0 %1357
      %1360 = vset.pattern.permute.xlu0 4
      %1361 = vperm.xlu0 %1360, %v728
      %v1362 = vpop.permute.xlu0 %1361
      %1364 = vset.pattern.permute.xlu0 4
      %1365 = vperm.xlu0 %1364, %v729
      %v1366 = vpop.permute.xlu0 %1365
      %1368 = vset.pattern.permute.xlu0 4
      %1369 = vperm.xlu0 %1368, %v730
      %v1370 = vpop.permute.xlu0 %1369
      %1372 = vset.pattern.permute.xlu0 4
      %1373 = vperm.xlu0 %1372, %v731
      %v1374 = vpop.permute.xlu0 %1373
      %1376 = vset.pattern.permute.xlu0 4
      %1377 = vperm.xlu0 %1376, %v732
      %v1378 = vpop.permute.xlu0 %1377
      %1380 = vset.pattern.permute.xlu0 4
      %1381 = vperm.xlu0 %1380, %v733
      %v1382 = vpop.permute.xlu0 %1381
      %1384 = vset.pattern.permute.xlu0 4
      %1385 = vperm.xlu0 %1384, %v734
      %v1386 = vpop.permute.xlu0 %1385
      %v1388 = vmul.f32 %v1283, %v1306
      %v1389 = vmul.f32 %v1284, %v1310
      %v1390 = vmul.f32 %v1285, %v1314
      %v1391 = vmul.f32 %v1286, %v1318
      %v1392 = vmul.f32 %v1287, %v1322
      %v1393 = vmul.f32 %v1288, %v1326
      %v1394 = vmul.f32 %v1289, %v1330
      %v1395 = vmul.f32 %v1290, %v1334
      %v1396 = vmul.f32 %v1291, %v1338
      %v1397 = vmul.f32 %v1292, %v1342
      %v1398 = vmul.f32 %v1293, %v1346
      %v1399 = vmul.f32 %v1294, %v1350
      %v1400 = vmul.f32 %v1295, %v1354
      %v1401 = vmul.f32 %v1296, %v1358
      %v1402 = vmul.f32 %v1297, %v1362
      %v1403 = vmul.f32 %v1298, %v1366
      %v1404 = vmul.f32 %v1299, %v1370
      %v1405 = vmul.f32 %v1300, %v1374
      %v1406 = vmul.f32 %v1301, %v1378
      %v1407 = vmul.f32 %v1302, %v1382
      %v1408 = vmul.f32 %v1303, %v1386
      %v1409 = vpack.c.bf16 %v1389, %v1388
      %v1410 = vpack.c.bf16 %v1391, %v1390
      %v1411 = vpack.c.bf16 %v1393, %v1392
      %v1412 = vpack.c.bf16 %v1395, %v1394
      %v1413 = vpack.c.bf16 %v1397, %v1396
      %v1414 = vpack.c.bf16 %v1399, %v1398
      %v1415 = vpack.c.bf16 %v1401, %v1400
      %v1416 = vpack.c.bf16 %v1403, %v1402
      %v1417 = vpack.c.bf16 %v1405, %v1404
      %v1418 = vpack.c.bf16 %v1407, %v1406
      %v1419 = vpack.c.bf16 %v1408, %v1408
      %v1420 = vld [vmem:[#allocation2 + $0x9] sm:$0xff]
      %v1421 = vld [vmem:[#allocation2 + $0x11] sm:$0xff]
      %v1422 = vld [vmem:[#allocation2 + $0x19] sm:$0xff]
      %v1423 = vld [vmem:[#allocation2 + $0x21] sm:$0xff]
      %v1424 = vld [vmem:[#allocation2 + $0x29] sm:$0xff]
      %v1425 = vld [vmem:[#allocation2 + $0x31] sm:$0xff]
      %v1426 = vld [vmem:[#allocation2 + $0x39] sm:$0xff]
      %v1427 = vld [vmem:[#allocation2 + $0x41] sm:$0xff]
      %v1428 = vld [vmem:[#allocation2 + $0x49] sm:$0xff]
      %v1429 = vld [vmem:[#allocation2 + $0x51] sm:$0xff]
      %v1430 = vld [vmem:[#allocation2 + $0x59] sm:$0xff]
      %v1431 = vld [vmem:[#allocation2 + $0x61] sm:$0xff]
      %v1432 = vld [vmem:[#allocation2 + $0x69] sm:$0xff]
      %v1433 = vld [vmem:[#allocation2 + $0x71] sm:$0xff]
      %v1434 = vld [vmem:[#allocation2 + $0x79] sm:$0xff]
      %v1435 = vld [vmem:[#allocation2 + $0x81] sm:$0xff]
      %v1436 = vld [vmem:[#allocation2 + $0x89] sm:$0xff]
      %v1437 = vld [vmem:[#allocation2 + $0x91] sm:$0xff]
      %v1438 = vld [vmem:[#allocation2 + $0x99] sm:$0xff]
      %v1439 = vld [vmem:[#allocation2 + $0xa1] sm:$0xff]
      %v1440 = vld [vmem:[#allocation2 + $0xa9] sm:$0xff]
      %1441 = vset.pattern.permute.xlu0 5
      %1442 = vperm.xlu0 %1441, %v714
      %v1443 = vpop.permute.xlu0 %1442
      %1445 = vset.pattern.permute.xlu0 5
      %1446 = vperm.xlu0 %1445, %v715
      %v1447 = vpop.permute.xlu0 %1446
      %1449 = vset.pattern.permute.xlu0 5
      %1450 = vperm.xlu0 %1449, %v716
      %v1451 = vpop.permute.xlu0 %1450
      %1453 = vset.pattern.permute.xlu0 5
      %1454 = vperm.xlu0 %1453, %v717
      %v1455 = vpop.permute.xlu0 %1454
      %1457 = vset.pattern.permute.xlu0 5
      %1458 = vperm.xlu0 %1457, %v718
      %v1459 = vpop.permute.xlu0 %1458
      %1461 = vset.pattern.permute.xlu0 5
      %1462 = vperm.xlu0 %1461, %v719
      %v1463 = vpop.permute.xlu0 %1462
      %1465 = vset.pattern.permute.xlu0 5
      %1466 = vperm.xlu0 %1465, %v720
      %v1467 = vpop.permute.xlu0 %1466
      %1469 = vset.pattern.permute.xlu0 5
      %1470 = vperm.xlu0 %1469, %v721
      %v1471 = vpop.permute.xlu0 %1470
      %1473 = vset.pattern.permute.xlu0 5
      %1474 = vperm.xlu0 %1473, %v722
      %v1475 = vpop.permute.xlu0 %1474
      %1477 = vset.pattern.permute.xlu0 5
      %1478 = vperm.xlu0 %1477, %v723
      %v1479 = vpop.permute.xlu0 %1478
      %1481 = vset.pattern.permute.xlu0 5
      %1482 = vperm.xlu0 %1481, %v724
      %v1483 = vpop.permute.xlu0 %1482
      %1485 = vset.pattern.permute.xlu0 5
      %1486 = vperm.xlu0 %1485, %v725
      %v1487 = vpop.permute.xlu0 %1486
      %1489 = vset.pattern.permute.xlu0 5
      %1490 = vperm.xlu0 %1489, %v726
      %v1491 = vpop.permute.xlu0 %1490
      %1493 = vset.pattern.permute.xlu0 5
      %1494 = vperm.xlu0 %1493, %v727
      %v1495 = vpop.permute.xlu0 %1494
      %1497 = vset.pattern.permute.xlu0 5
      %1498 = vperm.xlu0 %1497, %v728
      %v1499 = vpop.permute.xlu0 %1498
      %1501 = vset.pattern.permute.xlu0 5
      %1502 = vperm.xlu0 %1501, %v729
      %v1503 = vpop.permute.xlu0 %1502
      %1505 = vset.pattern.permute.xlu0 5
      %1506 = vperm.xlu0 %1505, %v730
      %v1507 = vpop.permute.xlu0 %1506
      %1509 = vset.pattern.permute.xlu0 5
      %1510 = vperm.xlu0 %1509, %v731
      %v1511 = vpop.permute.xlu0 %1510
      %1513 = vset.pattern.permute.xlu0 5
      %1514 = vperm.xlu0 %1513, %v732
      %v1515 = vpop.permute.xlu0 %1514
      %1517 = vset.pattern.permute.xlu0 5
      %1518 = vperm.xlu0 %1517, %v733
      %v1519 = vpop.permute.xlu0 %1518
      %1521 = vset.pattern.permute.xlu0 5
      %1522 = vperm.xlu0 %1521, %v734
      %v1523 = vpop.permute.xlu0 %1522
      %v1525 = vmul.f32 %v1420, %v1443
      %v1526 = vmul.f32 %v1421, %v1447
      %v1527 = vmul.f32 %v1422, %v1451
      %v1528 = vmul.f32 %v1423, %v1455
      %v1529 = vmul.f32 %v1424, %v1459
      %v1530 = vmul.f32 %v1425, %v1463
      %v1531 = vmul.f32 %v1426, %v1467
      %v1532 = vmul.f32 %v1427, %v1471
      %v1533 = vmul.f32 %v1428, %v1475
      %v1534 = vmul.f32 %v1429, %v1479
      %v1535 = vmul.f32 %v1430, %v1483
      %v1536 = vmul.f32 %v1431, %v1487
      %v1537 = vmul.f32 %v1432, %v1491
      %v1538 = vmul.f32 %v1433, %v1495
      %v1539 = vmul.f32 %v1434, %v1499
      %v1540 = vmul.f32 %v1435, %v1503
      %v1541 = vmul.f32 %v1436, %v1507
      %v1542 = vmul.f32 %v1437, %v1511
      %v1543 = vmul.f32 %v1438, %v1515
      %v1544 = vmul.f32 %v1439, %v1519
      %v1545 = vmul.f32 %v1440, %v1523
      %v1546 = vpack.c.bf16 %v1526, %v1525
      %v1547 = vpack.c.bf16 %v1528, %v1527
      %v1548 = vpack.c.bf16 %v1530, %v1529
      %v1549 = vpack.c.bf16 %v1532, %v1531
      %v1550 = vpack.c.bf16 %v1534, %v1533
      %v1551 = vpack.c.bf16 %v1536, %v1535
      %v1552 = vpack.c.bf16 %v1538, %v1537
      %v1553 = vpack.c.bf16 %v1540, %v1539
      %v1554 = vpack.c.bf16 %v1542, %v1541
      %v1555 = vpack.c.bf16 %v1544, %v1543
      %v1556 = vpack.c.bf16 %v1545, %v1545
      %v1557 = vld [vmem:[#allocation2 + $0xe] sm:$0xff]
      %v1558 = vld [vmem:[#allocation2 + $0x16] sm:$0xff]
      %v1559 = vld [vmem:[#allocation2 + $0x1e] sm:$0xff]
      %v1560 = vld [vmem:[#allocation2 + $0x26] sm:$0xff]
      %v1561 = vld [vmem:[#allocation2 + $0x2e] sm:$0xff]
      %v1562 = vld [vmem:[#allocation2 + $0x36] sm:$0xff]
      %v1563 = vld [vmem:[#allocation2 + $0x3e] sm:$0xff]
      %v1564 = vld [vmem:[#allocation2 + $0x46] sm:$0xff]
      %v1565 = vld [vmem:[#allocation2 + $0x4e] sm:$0xff]
      %v1566 = vld [vmem:[#allocation2 + $0x56] sm:$0xff]
      %v1567 = vld [vmem:[#allocation2 + $0x5e] sm:$0xff]
      %v1568 = vld [vmem:[#allocation2 + $0x66] sm:$0xff]
      %v1569 = vld [vmem:[#allocation2 + $0x6e] sm:$0xff]
      %v1570 = vld [vmem:[#allocation2 + $0x76] sm:$0xff]
      %v1571 = vld [vmem:[#allocation2 + $0x7e] sm:$0xff]
      %v1572 = vld [vmem:[#allocation2 + $0x86] sm:$0xff]
      %v1573 = vld [vmem:[#allocation2 + $0x8e] sm:$0xff]
      %v1574 = vld [vmem:[#allocation2 + $0x96] sm:$0xff]
      %v1575 = vld [vmem:[#allocation2 + $0x9e] sm:$0xff]
      %v1576 = vld [vmem:[#allocation2 + $0xa6] sm:$0xff]
      %v1577 = vld [vmem:[#allocation2 + $0xae] sm:$0xff]
      %1578 = vset.pattern.permute.xlu0 6
      %1579 = vperm.xlu0 %1578, %v714
      %v1580 = vpop.permute.xlu0 %1579
      %1582 = vset.pattern.permute.xlu0 6
      %1583 = vperm.xlu0 %1582, %v715
      %v1584 = vpop.permute.xlu0 %1583
      %1586 = vset.pattern.permute.xlu0 6
      %1587 = vperm.xlu0 %1586, %v716
      %v1588 = vpop.permute.xlu0 %1587
      %1590 = vset.pattern.permute.xlu0 6
      %1591 = vperm.xlu0 %1590, %v717
      %v1592 = vpop.permute.xlu0 %1591
      %1594 = vset.pattern.permute.xlu0 6
      %1595 = vperm.xlu0 %1594, %v718
      %v1596 = vpop.permute.xlu0 %1595
      %1598 = vset.pattern.permute.xlu0 6
      %1599 = vperm.xlu0 %1598, %v719
      %v1600 = vpop.permute.xlu0 %1599
      %1602 = vset.pattern.permute.xlu0 6
      %1603 = vperm.xlu0 %1602, %v720
      %v1604 = vpop.permute.xlu0 %1603
      %1606 = vset.pattern.permute.xlu0 6
      %1607 = vperm.xlu0 %1606, %v721
      %v1608 = vpop.permute.xlu0 %1607
      %1610 = vset.pattern.permute.xlu0 6
      %1611 = vperm.xlu0 %1610, %v722
      %v1612 = vpop.permute.xlu0 %1611
      %1614 = vset.pattern.permute.xlu0 6
      %1615 = vperm.xlu0 %1614, %v723
      %v1616 = vpop.permute.xlu0 %1615
      %1618 = vset.pattern.permute.xlu0 6
      %1619 = vperm.xlu0 %1618, %v724
      %v1620 = vpop.permute.xlu0 %1619
      %1622 = vset.pattern.permute.xlu0 6
      %1623 = vperm.xlu0 %1622, %v725
      %v1624 = vpop.permute.xlu0 %1623
      %1626 = vset.pattern.permute.xlu0 6
      %1627 = vperm.xlu0 %1626, %v726
      %v1628 = vpop.permute.xlu0 %1627
      %1630 = vset.pattern.permute.xlu0 6
      %1631 = vperm.xlu0 %1630, %v727
      %v1632 = vpop.permute.xlu0 %1631
      %1634 = vset.pattern.permute.xlu0 6
      %1635 = vperm.xlu0 %1634, %v728
      %v1636 = vpop.permute.xlu0 %1635
      %1638 = vset.pattern.permute.xlu0 6
      %1639 = vperm.xlu0 %1638, %v729
      %v1640 = vpop.permute.xlu0 %1639
      %1642 = vset.pattern.permute.xlu0 6
      %1643 = vperm.xlu0 %1642, %v730
      %v1644 = vpop.permute.xlu0 %1643
      %1646 = vset.pattern.permute.xlu0 6
      %1647 = vperm.xlu0 %1646, %v731
      %v1648 = vpop.permute.xlu0 %1647
      %1650 = vset.pattern.permute.xlu0 6
      %1651 = vperm.xlu0 %1650, %v732
      %v1652 = vpop.permute.xlu0 %1651
      %1654 = vset.pattern.permute.xlu0 6
      %1655 = vperm.xlu0 %1654, %v733
      %v1656 = vpop.permute.xlu0 %1655
      %1658 = vset.pattern.permute.xlu0 6
      %1659 = vperm.xlu0 %1658, %v734
      %v1660 = vpop.permute.xlu0 %1659
      %v1662 = vmul.f32 %v1557, %v1580
      %v1663 = vmul.f32 %v1558, %v1584
      %v1664 = vmul.f32 %v1559, %v1588
      %v1665 = vmul.f32 %v1560, %v1592
      %v1666 = vmul.f32 %v1561, %v1596
      %v1667 = vmul.f32 %v1562, %v1600
      %v1668 = vmul.f32 %v1563, %v1604
      %v1669 = vmul.f32 %v1564, %v1608
      %v1670 = vmul.f32 %v1565, %v1612
      %v1671 = vmul.f32 %v1566, %v1616
      %v1672 = vmul.f32 %v1567, %v1620
      %v1673 = vmul.f32 %v1568, %v1624
      %v1674 = vmul.f32 %v1569, %v1628
      %v1675 = vmul.f32 %v1570, %v1632
      %v1676 = vmul.f32 %v1571, %v1636
      %v1677 = vmul.f32 %v1572, %v1640
      %v1678 = vmul.f32 %v1573, %v1644
      %v1679 = vmul.f32 %v1574, %v1648
      %v1680 = vmul.f32 %v1575, %v1652
      %v1681 = vmul.f32 %v1576, %v1656
      %v1682 = vmul.f32 %v1577, %v1660
      %v1683 = vpack.c.bf16 %v1663, %v1662
      %v1684 = vpack.c.bf16 %v1665, %v1664
      %v1685 = vpack.c.bf16 %v1667, %v1666
      %v1686 = vpack.c.bf16 %v1669, %v1668
      %v1687 = vpack.c.bf16 %v1671, %v1670
      %v1688 = vpack.c.bf16 %v1673, %v1672
      %v1689 = vpack.c.bf16 %v1675, %v1674
      %v1690 = vpack.c.bf16 %v1677, %v1676
      %v1691 = vpack.c.bf16 %v1679, %v1678
      %v1692 = vpack.c.bf16 %v1681, %v1680
      %v1693 = vpack.c.bf16 %v1682, %v1682
      %v1694 = vld [vmem:[#allocation2 + $0xf] sm:$0xff]
      %v1695 = vld [vmem:[#allocation2 + $0x17] sm:$0xff]
      %v1696 = vld [vmem:[#allocation2 + $0x1f] sm:$0xff]
      %v1697 = vld [vmem:[#allocation2 + $0x27] sm:$0xff]
      %v1698 = vld [vmem:[#allocation2 + $0x2f] sm:$0xff]
      %v1699 = vld [vmem:[#allocation2 + $0x37] sm:$0xff]
      %v1700 = vld [vmem:[#allocation2 + $0x3f] sm:$0xff]
      %v1701 = vld [vmem:[#allocation2 + $0x47] sm:$0xff]
      %v1702 = vld [vmem:[#allocation2 + $0x4f] sm:$0xff]
      %v1703 = vld [vmem:[#allocation2 + $0x57] sm:$0xff]
      %v1704 = vld [vmem:[#allocation2 + $0x5f] sm:$0xff]
      %v1705 = vld [vmem:[#allocation2 + $0x67] sm:$0xff]
      %v1706 = vld [vmem:[#allocation2 + $0x6f] sm:$0xff]
      %v1707 = vld [vmem:[#allocation2 + $0x77] sm:$0xff]
      %v1708 = vld [vmem:[#allocation2 + $0x7f] sm:$0xff]
      %v1709 = vld [vmem:[#allocation2 + $0x87] sm:$0xff]
      %v1710 = vld [vmem:[#allocation2 + $0x8f] sm:$0xff]
      %v1711 = vld [vmem:[#allocation2 + $0x97] sm:$0xff]
      %v1712 = vld [vmem:[#allocation2 + $0x9f] sm:$0xff]
      %v1713 = vld [vmem:[#allocation2 + $0xa7] sm:$0xff]
      %v1714 = vld [vmem:[#allocation2 + $0xaf] sm:$0xff]
      %1715 = vset.pattern.permute.xlu0 7
      %1716 = vperm.xlu0 %1715, %v714
      %v1717 = vpop.permute.xlu0 %1716
      %1719 = vset.pattern.permute.xlu0 7
      %1720 = vperm.xlu0 %1719, %v715
      %v1721 = vpop.permute.xlu0 %1720
      %1723 = vset.pattern.permute.xlu0 7
      %1724 = vperm.xlu0 %1723, %v716
      %v1725 = vpop.permute.xlu0 %1724
      %1727 = vset.pattern.permute.xlu0 7
      %1728 = vperm.xlu0 %1727, %v717
      %v1729 = vpop.permute.xlu0 %1728
      %1731 = vset.pattern.permute.xlu0 7
      %1732 = vperm.xlu0 %1731, %v718
      %v1733 = vpop.permute.xlu0 %1732
      %1735 = vset.pattern.permute.xlu0 7
      %1736 = vperm.xlu0 %1735, %v719
      %v1737 = vpop.permute.xlu0 %1736
      %1739 = vset.pattern.permute.xlu0 7
      %1740 = vperm.xlu0 %1739, %v720
      %v1741 = vpop.permute.xlu0 %1740
      %1743 = vset.pattern.permute.xlu0 7
      %1744 = vperm.xlu0 %1743, %v721
      %v1745 = vpop.permute.xlu0 %1744
      %1747 = vset.pattern.permute.xlu0 7
      %1748 = vperm.xlu0 %1747, %v722
      %v1749 = vpop.permute.xlu0 %1748
      %1751 = vset.pattern.permute.xlu0 7
      %1752 = vperm.xlu0 %1751, %v723
      %v1753 = vpop.permute.xlu0 %1752
      %1755 = vset.pattern.permute.xlu0 7
      %1756 = vperm.xlu0 %1755, %v724
      %v1757 = vpop.permute.xlu0 %1756
      %1759 = vset.pattern.permute.xlu0 7
      %1760 = vperm.xlu0 %1759, %v725
      %v1761 = vpop.permute.xlu0 %1760
      %1763 = vset.pattern.permute.xlu0 7
      %1764 = vperm.xlu0 %1763, %v726
      %v1765 = vpop.permute.xlu0 %1764
      %1767 = vset.pattern.permute.xlu0 7
      %1768 = vperm.xlu0 %1767, %v727
      %v1769 = vpop.permute.xlu0 %1768
      %1771 = vset.pattern.permute.xlu0 7
      %1772 = vperm.xlu0 %1771, %v728
      %v1773 = vpop.permute.xlu0 %1772
      %1775 = vset.pattern.permute.xlu0 7
      %1776 = vperm.xlu0 %1775, %v729
      %v1777 = vpop.permute.xlu0 %1776
      %1779 = vset.pattern.permute.xlu0 7
      %1780 = vperm.xlu0 %1779, %v730
      %v1781 = vpop.permute.xlu0 %1780
      %1783 = vset.pattern.permute.xlu0 7
      %1784 = vperm.xlu0 %1783, %v731
      %v1785 = vpop.permute.xlu0 %1784
      %1787 = vset.pattern.permute.xlu0 7
      %1788 = vperm.xlu0 %1787, %v732
      %v1789 = vpop.permute.xlu0 %1788
      %1791 = vset.pattern.permute.xlu0 7
      %1792 = vperm.xlu0 %1791, %v733
      %v1793 = vpop.permute.xlu0 %1792
      %1795 = vset.pattern.permute.xlu0 7
      %1796 = vperm.xlu0 %1795, %v734
      %v1797 = vpop.permute.xlu0 %1796
      %v1799 = vmul.f32 %v1694, %v1717
      %v1800 = vmul.f32 %v1695, %v1721
      %v1801 = vmul.f32 %v1696, %v1725
      %v1802 = vmul.f32 %v1697, %v1729
      %v1803 = vmul.f32 %v1698, %v1733
      %v1804 = vmul.f32 %v1699, %v1737
      %v1805 = vmul.f32 %v1700, %v1741
      %v1806 = vmul.f32 %v1701, %v1745
      %v1807 = vmul.f32 %v1702, %v1749
      %v1808 = vmul.f32 %v1703, %v1753
      %v1809 = vmul.f32 %v1704, %v1757
      %v1810 = vmul.f32 %v1705, %v1761
      %v1811 = vmul.f32 %v1706, %v1765
      %v1812 = vmul.f32 %v1707, %v1769
      %v1813 = vmul.f32 %v1708, %v1773
      %v1814 = vmul.f32 %v1709, %v1777
      %v1815 = vmul.f32 %v1710, %v1781
      %v1816 = vmul.f32 %v1711, %v1785
      %v1817 = vmul.f32 %v1712, %v1789
      %v1818 = vmul.f32 %v1713, %v1793
      %v1819 = vmul.f32 %v1714, %v1797
      %v1820 = vpack.c.bf16 %v1800, %v1799
      %v1821 = vpack.c.bf16 %v1802, %v1801
      %v1822 = vpack.c.bf16 %v1804, %v1803
      %v1823 = vpack.c.bf16 %v1806, %v1805
      %v1824 = vpack.c.bf16 %v1808, %v1807
      %v1825 = vpack.c.bf16 %v1810, %v1809
      %v1826 = vpack.c.bf16 %v1812, %v1811
      %v1827 = vpack.c.bf16 %v1814, %v1813
      %v1828 = vpack.c.bf16 %v1816, %v1815
      %v1829 = vpack.c.bf16 %v1818, %v1817
      %v1830 = vpack.c.bf16 %v1819, %v1819
      %v1831 = vld [vmem:[#allocation2 + $0x10] sm:$0xff]
      %v1832 = vld [vmem:[#allocation2 + $0x18] sm:$0xff]
      %v1833 = vld [vmem:[#allocation2 + $0x20] sm:$0xff]
      %v1834 = vld [vmem:[#allocation2 + $0x28] sm:$0xff]
      %v1835 = vld [vmem:[#allocation2 + $0x30] sm:$0xff]
      %v1836 = vld [vmem:[#allocation2 + $0x38] sm:$0xff]
      %v1837 = vld [vmem:[#allocation2 + $0x40] sm:$0xff]
      %v1838 = vld [vmem:[#allocation2 + $0x48] sm:$0xff]
      %v1839 = vld [vmem:[#allocation2 + $0x50] sm:$0xff]
      %v1840 = vld [vmem:[#allocation2 + $0x58] sm:$0xff]
      %v1841 = vld [vmem:[#allocation2 + $0x60] sm:$0xff]
      %v1842 = vld [vmem:[#allocation2 + $0x68] sm:$0xff]
      %v1843 = vld [vmem:[#allocation2 + $0x70] sm:$0xff]
      %v1844 = vld [vmem:[#allocation2 + $0x78] sm:$0xff]
      %v1845 = vld [vmem:[#allocation2 + $0x80] sm:$0xff]
      %v1846 = vld [vmem:[#allocation2 + $0x88] sm:$0xff]
      %v1847 = vld [vmem:[#allocation2 + $0x90] sm:$0xff]
      %v1848 = vld [vmem:[#allocation2 + $0x98] sm:$0xff]
      %v1849 = vld [vmem:[#allocation2 + $0xa0] sm:$0xff]
      %v1850 = vld [vmem:[#allocation2 + $0xa8] sm:$0xff]
      %v1851 = vld [vmem:[#allocation2 + $0xb0] sm:$0xff]
      %1852 = vset.pattern.permute.xlu0 8
      %1853 = vperm.xlu0 %1852, %v714
      %v1854 = vpop.permute.xlu0 %1853
      %1856 = vset.pattern.permute.xlu0 8
      %1857 = vperm.xlu0 %1856, %v715
      %v1858 = vpop.permute.xlu0 %1857
      %1860 = vset.pattern.permute.xlu0 8
      %1861 = vperm.xlu0 %1860, %v716
      %v1862 = vpop.permute.xlu0 %1861
      %1864 = vset.pattern.permute.xlu0 8
      %1865 = vperm.xlu0 %1864, %v717
      %v1866 = vpop.permute.xlu0 %1865
      %1868 = vset.pattern.permute.xlu0 8
      %1869 = vperm.xlu0 %1868, %v718
      %v1870 = vpop.permute.xlu0 %1869
      %1872 = vset.pattern.permute.xlu0 8
      %1873 = vperm.xlu0 %1872, %v719
      %v1874 = vpop.permute.xlu0 %1873
      %1876 = vset.pattern.permute.xlu0 8
      %1877 = vperm.xlu0 %1876, %v720
      %v1878 = vpop.permute.xlu0 %1877
      %1880 = vset.pattern.permute.xlu0 8
      %1881 = vperm.xlu0 %1880, %v721
      %v1882 = vpop.permute.xlu0 %1881
      %1884 = vset.pattern.permute.xlu0 8
      %1885 = vperm.xlu0 %1884, %v722
      %v1886 = vpop.permute.xlu0 %1885
      %1888 = vset.pattern.permute.xlu0 8
      %1889 = vperm.xlu0 %1888, %v723
      %v1890 = vpop.permute.xlu0 %1889
      %1892 = vset.pattern.permute.xlu0 8
      %1893 = vperm.xlu0 %1892, %v724
      %v1894 = vpop.permute.xlu0 %1893
      %1896 = vset.pattern.permute.xlu0 8
      %1897 = vperm.xlu0 %1896, %v725
      %v1898 = vpop.permute.xlu0 %1897
      %1900 = vset.pattern.permute.xlu0 8
      %1901 = vperm.xlu0 %1900, %v726
      %v1902 = vpop.permute.xlu0 %1901
      %1904 = vset.pattern.permute.xlu0 8
      %1905 = vperm.xlu0 %1904, %v727
      %v1906 = vpop.permute.xlu0 %1905
      %1908 = vset.pattern.permute.xlu0 8
      %1909 = vperm.xlu0 %1908, %v728
      %v1910 = vpop.permute.xlu0 %1909
      %1912 = vset.pattern.permute.xlu0 8
      %1913 = vperm.xlu0 %1912, %v729
      %v1914 = vpop.permute.xlu0 %1913
      %1916 = vset.pattern.permute.xlu0 8
      %1917 = vperm.xlu0 %1916, %v730
      %v1918 = vpop.permute.xlu0 %1917
      %1920 = vset.pattern.permute.xlu0 8
      %1921 = vperm.xlu0 %1920, %v731
      %v1922 = vpop.permute.xlu0 %1921
      %1924 = vset.pattern.permute.xlu0 8
      %1925 = vperm.xlu0 %1924, %v732
      %v1926 = vpop.permute.xlu0 %1925
      %1928 = vset.pattern.permute.xlu0 8
      %1929 = vperm.xlu0 %1928, %v733
      %v1930 = vpop.permute.xlu0 %1929
      %1932 = vset.pattern.permute.xlu0 8
      %1933 = vperm.xlu0 %1932, %v734
      %v1934 = vpop.permute.xlu0 %1933
      %v1936 = vmul.f32 %v1831, %v1854
      %v1937 = vmul.f32 %v1832, %v1858
      %v1938 = vmul.f32 %v1833, %v1862
      %v1939 = vmul.f32 %v1834, %v1866
      %v1940 = vmul.f32 %v1835, %v1870
      %v1941 = vmul.f32 %v1836, %v1874
      %v1942 = vmul.f32 %v1837, %v1878
      %v1943 = vmul.f32 %v1838, %v1882
      %v1944 = vmul.f32 %v1839, %v1886
      %v1945 = vmul.f32 %v1840, %v1890
      %v1946 = vmul.f32 %v1841, %v1894
      %v1947 = vmul.f32 %v1842, %v1898
      %v1948 = vmul.f32 %v1843, %v1902
      %v1949 = vmul.f32 %v1844, %v1906
      %v1950 = vmul.f32 %v1845, %v1910
      %v1951 = vmul.f32 %v1846, %v1914
      %v1952 = vmul.f32 %v1847, %v1918
      %v1953 = vmul.f32 %v1848, %v1922
      %v1954 = vmul.f32 %v1849, %v1926
      %v1955 = vmul.f32 %v1850, %v1930
      %v1956 = vmul.f32 %v1851, %v1934
      %v1957 = vpack.c.bf16 %v1937, %v1936
      %v1958 = vpack.c.bf16 %v1939, %v1938
      %v1959 = vpack.c.bf16 %v1941, %v1940
      %v1960 = vpack.c.bf16 %v1943, %v1942
      %v1961 = vpack.c.bf16 %v1945, %v1944
      %v1962 = vpack.c.bf16 %v1947, %v1946
      %v1963 = vpack.c.bf16 %v1949, %v1948
      %v1964 = vpack.c.bf16 %v1951, %v1950
      %v1965 = vpack.c.bf16 %v1953, %v1952
      %v1966 = vpack.c.bf16 %v1955, %v1954
      %v1967 = vpack.c.bf16 %v1956, %v1956
      %1979 = vrot.lane.b32.xlu0 %v998, 64
      %v1980 = vpop.permute.xlu0 %1979
      %1981 = vrot.lane.b32.xlu0 %v999, 64
      %v1982 = vpop.permute.xlu0 %1981
      %1983 = vrot.lane.b32.xlu0 %v1000, 64
      %v1984 = vpop.permute.xlu0 %1983
      %1985 = vrot.lane.b32.xlu0 %v1001, 64
      %v1986 = vpop.permute.xlu0 %1985
      %1987 = vrot.lane.b32.xlu0 %v1002, 64
      %v1988 = vpop.permute.xlu0 %1987
      %1989 = vrot.lane.b32.xlu0 %v1003, 64
      %v1990 = vpop.permute.xlu0 %1989
      %1991 = vrot.lane.b32.xlu0 %v1004, 64
      %v1992 = vpop.permute.xlu0 %1991
      %1993 = vrot.lane.b32.xlu0 %v1005, 64
      %v1994 = vpop.permute.xlu0 %1993
      %1995 = vrot.lane.b32.xlu0 %v1006, 64
      %v1996 = vpop.permute.xlu0 %1995
      %1997 = vrot.lane.b32.xlu0 %v1007, 64
      %v1998 = vpop.permute.xlu0 %1997
      %1999 = vrot.lane.b32.xlu0 %v1008, 64
      %v2000 = vpop.permute.xlu0 %1999
      %2012 = vrot.lane.b32.xlu0 %v1272, 64
      %v2013 = vpop.permute.xlu0 %2012
      %2014 = vrot.lane.b32.xlu0 %v1273, 64
      %v2015 = vpop.permute.xlu0 %2014
      %2016 = vrot.lane.b32.xlu0 %v1274, 64
      %v2017 = vpop.permute.xlu0 %2016
      %2018 = vrot.lane.b32.xlu0 %v1275, 64
      %v2019 = vpop.permute.xlu0 %2018
      %2020 = vrot.lane.b32.xlu0 %v1276, 64
      %v2021 = vpop.permute.xlu0 %2020
      %2022 = vrot.lane.b32.xlu0 %v1277, 64
      %v2023 = vpop.permute.xlu0 %2022
      %2024 = vrot.lane.b32.xlu0 %v1278, 64
      %v2025 = vpop.permute.xlu0 %2024
      %2026 = vrot.lane.b32.xlu0 %v1279, 64
      %v2027 = vpop.permute.xlu0 %2026
      %2028 = vrot.lane.b32.xlu0 %v1280, 64
      %v2029 = vpop.permute.xlu0 %2028
      %2030 = vrot.lane.b32.xlu0 %v1281, 64
      %v2031 = vpop.permute.xlu0 %2030
      %2032 = vrot.lane.b32.xlu0 %v1282, 64
      %v2033 = vpop.permute.xlu0 %2032
      %2045 = vrot.lane.b32.xlu0 %v1546, 64
      %v2046 = vpop.permute.xlu0 %2045
      %2047 = vrot.lane.b32.xlu0 %v1547, 64
      %v2048 = vpop.permute.xlu0 %2047
      %2049 = vrot.lane.b32.xlu0 %v1548, 64
      %v2050 = vpop.permute.xlu0 %2049
      %2051 = vrot.lane.b32.xlu0 %v1549, 64
      %v2052 = vpop.permute.xlu0 %2051
      %2053 = vrot.lane.b32.xlu0 %v1550, 64
      %v2054 = vpop.permute.xlu0 %2053
      %2055 = vrot.lane.b32.xlu0 %v1551, 64
      %v2056 = vpop.permute.xlu0 %2055
      %2057 = vrot.lane.b32.xlu0 %v1552, 64
      %v2058 = vpop.permute.xlu0 %2057
      %2059 = vrot.lane.b32.xlu0 %v1553, 64
      %v2060 = vpop.permute.xlu0 %2059
      %2061 = vrot.lane.b32.xlu0 %v1554, 64
      %v2062 = vpop.permute.xlu0 %2061
      %2063 = vrot.lane.b32.xlu0 %v1555, 64
      %v2064 = vpop.permute.xlu0 %2063
      %2065 = vrot.lane.b32.xlu0 %v1556, 64
      %v2066 = vpop.permute.xlu0 %2065
      %2078 = vrot.lane.b32.xlu0 %v1820, 64
      %v2079 = vpop.permute.xlu0 %2078
      %2080 = vrot.lane.b32.xlu0 %v1821, 64
      %v2081 = vpop.permute.xlu0 %2080
      %2082 = vrot.lane.b32.xlu0 %v1822, 64
      %v2083 = vpop.permute.xlu0 %2082
      %2084 = vrot.lane.b32.xlu0 %v1823, 64
      %v2085 = vpop.permute.xlu0 %2084
      %2086 = vrot.lane.b32.xlu0 %v1824, 64
      %v2087 = vpop.permute.xlu0 %2086
      %2088 = vrot.lane.b32.xlu0 %v1825, 64
      %v2089 = vpop.permute.xlu0 %2088
      %2090 = vrot.lane.b32.xlu0 %v1826, 64
      %v2091 = vpop.permute.xlu0 %2090
      %2092 = vrot.lane.b32.xlu0 %v1827, 64
      %v2093 = vpop.permute.xlu0 %2092
      %2094 = vrot.lane.b32.xlu0 %v1828, 64
      %v2095 = vpop.permute.xlu0 %2094
      %2096 = vrot.lane.b32.xlu0 %v1829, 64
      %v2097 = vpop.permute.xlu0 %2096
      %2098 = vrot.lane.b32.xlu0 %v1830, 64
      %v2099 = vpop.permute.xlu0 %2098
      %v2102 = vsel %vm305, %v861, %v1980
      %v2106 = vsel %vm305, %v862, %v1982
      %v2110 = vsel %vm305, %v863, %v1984
      %v2114 = vsel %vm305, %v864, %v1986
      %v2118 = vsel %vm305, %v865, %v1988
      %v2122 = vsel %vm305, %v866, %v1990
      %v2126 = vsel %vm305, %v867, %v1992
      %v2130 = vsel %vm305, %v868, %v1994
      %v2134 = vsel %vm305, %v869, %v1996
      %v2138 = vsel %vm305, %v870, %v1998
      %v2142 = vsel %vm305, %v871, %v2000
      %v2146 = vsel %vm305, %v1135, %v2013
      %v2150 = vsel %vm305, %v1136, %v2015
      %v2154 = vsel %vm305, %v1137, %v2017
      %v2158 = vsel %vm305, %v1138, %v2019
      %v2162 = vsel %vm305, %v1139, %v2021
      %v2166 = vsel %vm305, %v1140, %v2023
      %v2170 = vsel %vm305, %v1141, %v2025
      %v2174 = vsel %vm305, %v1142, %v2027
      %v2178 = vsel %vm305, %v1143, %v2029
      %v2182 = vsel %vm305, %v1144, %v2031
      %v2186 = vsel %vm305, %v1145, %v2033
      %v2190 = vsel %vm305, %v1409, %v2046
      %v2194 = vsel %vm305, %v1410, %v2048
      %v2198 = vsel %vm305, %v1411, %v2050
      %v2202 = vsel %vm305, %v1412, %v2052
      %v2206 = vsel %vm305, %v1413, %v2054
      %v2210 = vsel %vm305, %v1414, %v2056
      %v2214 = vsel %vm305, %v1415, %v2058
      %v2218 = vsel %vm305, %v1416, %v2060
      %v2222 = vsel %vm305, %v1417, %v2062
      %v2226 = vsel %vm305, %v1418, %v2064
      %v2230 = vsel %vm305, %v1419, %v2066
      %v2234 = vsel %vm305, %v1683, %v2079
      %v2238 = vsel %vm305, %v1684, %v2081
      %v2242 = vsel %vm305, %v1685, %v2083
      %v2246 = vsel %vm305, %v1686, %v2085
      %v2250 = vsel %vm305, %v1687, %v2087
      %v2254 = vsel %vm305, %v1688, %v2089
      %v2258 = vsel %vm305, %v1689, %v2091
      %v2262 = vsel %vm305, %v1690, %v2093
      %v2266 = vsel %vm305, %v1691, %v2095
      %v2270 = vsel %vm305, %v1692, %v2097
      %v2274 = vsel %vm305, %v1693, %v2099
      %v2276 = vlaneseq
      %v2277 = vshrl.u32 %v2276, 7
      %v2278 = vsub.s32 0, %v2277
      %v2279 = vrot.slane %v650, %v2278
      %v2352 = vunpack.c.l.b16 %v578
      %v2353 = vunpack.c.l.b16 %v579
      %v2354 = vunpack.c.l.b16 %v580
      %v2355 = vunpack.c.l.b16 %v581
      %v2356 = vunpack.c.l.b16 %v582
      %v2357 = vunpack.c.l.b16 %v583
      %v2358 = vunpack.c.l.b16 %v584
      %v2359 = vunpack.c.l.b16 %v585
      %v2360 = vunpack.c.l.b16 %v586
      %v2361 = vunpack.c.l.b16 %v587
      %v2362 = vunpack.c.l.b16 %v588
      %v2363 = vunpack.c.l.b16 %v589
      %v2364 = vunpack.c.l.b16 %v590
      %v2365 = vunpack.c.l.b16 %v591
      %v2366 = vunpack.c.l.b16 %v592
      %v2367 = vunpack.c.l.b16 %v593
      %v2368 = vunpack.c.l.b16 %v594
      %v2369 = vunpack.c.l.b16 %v595
      %v2370 = vunpack.c.l.b16 %v596
      %v2371 = vunpack.c.l.b16 %v597
      %v2372 = vunpack.c.l.b16 %v598
      %v2373 = vunpack.c.l.b16 %v599
      %v2374 = vunpack.c.l.b16 %v600
      %v2375 = vunpack.c.l.b16 %v601
      %v2376 = vunpack.c.l.b16 %v602
      %v2377 = vunpack.c.l.b16 %v603
      %v2378 = vunpack.c.l.b16 %v604
      %v2379 = vunpack.c.l.b16 %v605
      %v2380 = vunpack.c.l.b16 %v606
      %v2381 = vunpack.c.l.b16 %v607
      %v2382 = vunpack.c.l.b16 %v608
      %v2383 = vunpack.c.l.b16 %v609
      %v2384 = vunpack.c.l.b16 %v610
      %v2385 = vunpack.c.l.b16 %v611
      %v2386 = vunpack.c.l.b16 %v612
      %v2387 = vunpack.c.l.b16 %v613
      %v2388 = vunpack.c.l.b16 %v614
      %v2389 = vunpack.c.l.b16 %v615
      %v2390 = vunpack.c.l.b16 %v616
      %v2391 = vunpack.c.l.b16 %v617
      %v2392 = vunpack.c.l.b16 %v618
      %v2393 = vunpack.c.l.b16 %v619
      %v2394 = vunpack.c.l.b16 %v620
      %v2395 = vunpack.c.l.b16 %v621
      %v2396 = vunpack.c.l.b16 %v622
      %v2397 = vunpack.c.l.b16 %v623
      %v2398 = vunpack.c.l.b16 %v624
      %v2399 = vunpack.c.l.b16 %v625
      %v2400 = vunpack.c.l.b16 %v626
      %v2401 = vunpack.c.l.b16 %v627
      %v2402 = vunpack.c.l.b16 %v628
      %v2403 = vunpack.c.l.b16 %v629
      %v2404 = vunpack.c.l.b16 %v630
      %v2405 = vunpack.c.l.b16 %v631
      %v2406 = vunpack.c.l.b16 %v632
      %v2407 = vunpack.c.l.b16 %v633
      %v2408 = vunpack.c.l.b16 %v634
      %v2409 = vunpack.c.l.b16 %v635
      %v2410 = vunpack.c.l.b16 %v636
      %v2411 = vunpack.c.l.b16 %v637
      %v2412 = vunpack.c.l.b16 %v638
      %v2413 = vunpack.c.l.b16 %v639
      %v2414 = vunpack.c.l.b16 %v640
      %v2415 = vunpack.c.l.b16 %v641
      %v2416 = vunpack.c.l.b16 %v642
      %v2417 = vunpack.c.l.b16 %v643
      %v2418 = vunpack.c.l.b16 %v644
      %v2419 = vunpack.c.l.b16 %v645
      %v2420 = vunpack.c.l.b16 %v646
      %v2421 = vunpack.c.l.b16 %v647
      %v2422 = vunpack.c.l.b16 %v648
      %v2423 = vunpack.c.l.b16 %v649
      %v2424 = vpack.c.b16 %v2353, %v2352
      %v2425 = vpack.c.b16 %v2355, %v2354
      %v2426 = vpack.c.b16 %v2357, %v2356
      %v2427 = vpack.c.b16 %v2359, %v2358
      %v2428 = vpack.c.b16 %v2361, %v2360
      %v2429 = vpack.c.b16 %v2363, %v2362
      %v2430 = vpack.c.b16 %v2365, %v2364
      %v2431 = vpack.c.b16 %v2367, %v2366
      %v2432 = vpack.c.b16 %v2369, %v2368
      %v2433 = vpack.c.b16 %v2371, %v2370
      %v2434 = vpack.c.b16 %v2373, %v2372
      %v2435 = vpack.c.b16 %v2375, %v2374
      %v2436 = vpack.c.b16 %v2377, %v2376
      %v2437 = vpack.c.b16 %v2379, %v2378
      %v2438 = vpack.c.b16 %v2381, %v2380
      %v2439 = vpack.c.b16 %v2383, %v2382
      %v2440 = vpack.c.b16 %v2385, %v2384
      %v2441 = vpack.c.b16 %v2387, %v2386
      %v2442 = vpack.c.b16 %v2389, %v2388
      %v2443 = vpack.c.b16 %v2391, %v2390
      %v2444 = vpack.c.b16 %v2393, %v2392
      %v2445 = vpack.c.b16 %v2395, %v2394
      %v2446 = vpack.c.b16 %v2397, %v2396
      %v2447 = vpack.c.b16 %v2399, %v2398
      %v2448 = vpack.c.b16 %v2401, %v2400
      %v2449 = vpack.c.b16 %v2403, %v2402
      %v2450 = vpack.c.b16 %v2405, %v2404
      %v2451 = vpack.c.b16 %v2407, %v2406
      %v2452 = vpack.c.b16 %v2409, %v2408
      %v2453 = vpack.c.b16 %v2411, %v2410
      %v2454 = vpack.c.b16 %v2413, %v2412
      %v2455 = vpack.c.b16 %v2415, %v2414
      %v2456 = vpack.c.b16 %v2417, %v2416
      %v2457 = vpack.c.b16 %v2419, %v2418
      %v2458 = vpack.c.b16 %v2421, %v2420
      %v2459 = vpack.c.b16 %v2423, %v2422
      %v2497 = vsel %vm305, %v1957, 0
      %v2500 = vsel %vm305, %v1958, 0
      %v2503 = vsel %vm305, %v1959, 0
      %v2506 = vsel %vm305, %v1960, 0
      %v2509 = vsel %vm305, %v1961, 0
      %v2512 = vsel %vm305, %v1962, 0
      %v2515 = vsel %vm305, %v1963, 0
      %v2518 = vsel %vm305, %v1964, 0
      %v2521 = vsel %vm305, %v1965, 0
      %v2524 = vsel %vm305, %v1966, 0
      %v2527 = vsel %vm305, %v1967, 0
      %2529 = vmatprep.subr.bf16.mxu0 0
      %2530 = vmatpush1.bf16.msra.mxu0 %v2431
      %2531 = vmatprep.subr.bf16.mxu0 0
      %2532 = vmatpush1.bf16.msra.mxu0 %v2430
      %2533 = vmatprep.subr.bf16.mxu0 0
      %2534 = vmatpush1.bf16.msra.mxu0 %v2429
      %2535 = vmatprep.subr.bf16.mxu0 0
      %2536 = vmatpush1.bf16.msra.mxu0 %v2428
      %2537 = vmatprep.subr.bf16.mxu0 0
      %2538 = vmatpush1.bf16.msra.mxu0 %v2427
      %2539 = vmatprep.subr.bf16.mxu0 0
      %2540 = vmatpush1.bf16.msra.mxu0 %v2426
      %2541 = vmatprep.subr.bf16.mxu0 0
      %2542 = vmatpush1.bf16.msra.mxu0 %v2425
      %2543 = vmatprep.subr.bf16.mxu0 0
      %2544 = vmatpush1.bf16.msra.mxu0 %v2424
      %2545 = vmatprep.subr.bf16.mxu0 0
      %2546 = vmatpush2.bf16.msra.mxu0 %v2439
      %2547 = vmatprep.subr.bf16.mxu0 0
      %2548 = vmatpush2.bf16.msra.mxu0 %v2438
      %2549 = vmatprep.subr.bf16.mxu0 0
      %2550 = vmatpush2.bf16.msra.mxu0 %v2437
      %2551 = vmatprep.subr.bf16.mxu0 0
      %2552 = vmatpush2.bf16.msra.mxu0 %v2436
      %2553 = vmatprep.subr.bf16.mxu0 0
      %2554 = vmatpush2.bf16.msra.mxu0 %v2435
      %2555 = vmatprep.subr.bf16.mxu0 0
      %2556 = vmatpush2.bf16.msra.mxu0 %v2434
      %2557 = vmatprep.subr.bf16.mxu0 0
      %2558 = vmatpush2.bf16.msra.mxu0 %v2433
      %2559 = vmatprep.subr.bf16.mxu0 0
      %2560 = vmatpush2.bf16.msra.mxu0 %v2432
      %2561 = vmatprep.mubr.bf16.mxu0 %v2146
      %2562 = vmatmul.mubr.bf16.gmra.mxu0 %v2102
      %v2563 = vpop.f32.mrf.mxu0
      %v2564 = vadd.f32 %v2279, %v2563
      %v2565 = vpop.f32.mrf.mxu0
      %v2566 = vpop.f32.mrf.mxu0
      %v2567 = vadd.f32 %v2279, %v2566
      %v2568 = vpop.f32.mrf.mxu0
      %2569 = vmatprep.mubr.bf16.mxu0 %v2150
      %2570 = vmatmul.mubr.bf16.gmra.mxu0 %v2106
      %v2571 = vpop.f32.mrf.mxu0
      %v2572 = vadd.f32 %v2279, %v2571
      %v2573 = vpop.f32.mrf.mxu0
      %v2574 = vpop.f32.mrf.mxu0
      %v2575 = vadd.f32 %v2279, %v2574
      %v2576 = vpop.f32.mrf.mxu0
      %2577 = vmatprep.mubr.bf16.mxu0 %v2154
      %2578 = vmatmul.mubr.bf16.gmra.mxu0 %v2110
      %v2579 = vpop.f32.mrf.mxu0
      %v2580 = vadd.f32 %v2279, %v2579
      %v2581 = vpop.f32.mrf.mxu0
      %v2582 = vpop.f32.mrf.mxu0
      %v2583 = vadd.f32 %v2279, %v2582
      %v2584 = vpop.f32.mrf.mxu0
      %2585 = vmatprep.mubr.bf16.mxu0 %v2158
      %2586 = vmatmul.mubr.bf16.gmra.mxu0 %v2114
      %v2587 = vpop.f32.mrf.mxu0
      %v2588 = vadd.f32 %v2279, %v2587
      %v2589 = vpop.f32.mrf.mxu0
      %v2590 = vpop.f32.mrf.mxu0
      %v2591 = vadd.f32 %v2279, %v2590
      %v2592 = vpop.f32.mrf.mxu0
      %2593 = vmatprep.mubr.bf16.mxu0 %v2162
      %2594 = vmatmul.mubr.bf16.gmra.mxu0 %v2118
      %v2595 = vpop.f32.mrf.mxu0
      %v2596 = vadd.f32 %v2279, %v2595
      %v2597 = vpop.f32.mrf.mxu0
      %v2598 = vpop.f32.mrf.mxu0
      %v2599 = vadd.f32 %v2279, %v2598
      %v2600 = vpop.f32.mrf.mxu0
      %2601 = vmatprep.mubr.bf16.mxu0 %v2166
      %2602 = vmatmul.mubr.bf16.gmra.mxu0 %v2122
      %v2603 = vpop.f32.mrf.mxu0
      %v2604 = vadd.f32 %v2279, %v2603
      %v2605 = vpop.f32.mrf.mxu0
      %v2606 = vpop.f32.mrf.mxu0
      %v2607 = vadd.f32 %v2279, %v2606
      %v2608 = vpop.f32.mrf.mxu0
      %2609 = vmatprep.mubr.bf16.mxu0 %v2170
      %2610 = vmatmul.mubr.bf16.gmra.mxu0 %v2126
      %v2611 = vpop.f32.mrf.mxu0
      %v2612 = vadd.f32 %v2279, %v2611
      %v2613 = vpop.f32.mrf.mxu0
      %v2614 = vpop.f32.mrf.mxu0
      %v2615 = vadd.f32 %v2279, %v2614
      %v2616 = vpop.f32.mrf.mxu0
      %2617 = vmatprep.mubr.bf16.mxu0 %v2174
      %2618 = vmatmul.mubr.bf16.gmra.mxu0 %v2130
      %v2619 = vpop.f32.mrf.mxu0
      %v2620 = vadd.f32 %v2279, %v2619
      %v2621 = vpop.f32.mrf.mxu0
      %v2622 = vpop.f32.mrf.mxu0
      %v2623 = vadd.f32 %v2279, %v2622
      %v2624 = vpop.f32.mrf.mxu0
      %2625 = vmatprep.mubr.bf16.mxu0 %v2178
      %2626 = vmatmul.mubr.bf16.gmra.mxu0 %v2134
      %v2627 = vpop.f32.mrf.mxu0
      %v2628 = vadd.f32 %v2279, %v2627
      %v2629 = vpop.f32.mrf.mxu0
      %v2630 = vpop.f32.mrf.mxu0
      %v2631 = vadd.f32 %v2279, %v2630
      %v2632 = vpop.f32.mrf.mxu0
      %2633 = vmatprep.mubr.bf16.mxu0 %v2182
      %2634 = vmatmul.mubr.bf16.gmra.mxu0 %v2138
      %v2635 = vpop.f32.mrf.mxu0
      %v2636 = vadd.f32 %v2279, %v2635
      %v2637 = vpop.f32.mrf.mxu0
      %v2638 = vpop.f32.mrf.mxu0
      %v2639 = vadd.f32 %v2279, %v2638
      %v2640 = vpop.f32.mrf.mxu0
      %2641 = vmatprep.mubr.bf16.mxu0 %v2186
      %2642 = vmatmul.mubr.bf16.gmra.mxu0 %v2142
      %v2643 = vpop.f32.mrf.mxu0
      %v2644 = vadd.f32 %v2279, %v2643
      %v2645 = vpop.f32.mrf.mxu0
      %v2646 = vpop.f32.mrf.mxu0
      %v2647 = vpop.f32.mrf.mxu0
      %2648 = vdwg.mxu0
      %2649 = vmatprep.subr.bf16.mxu0 0
      %2650 = vmatpush1.bf16.msra.mxu0 %v2447
      %2651 = vmatprep.subr.bf16.mxu0 0
      %2652 = vmatpush1.bf16.msra.mxu0 %v2446
      %2653 = vmatprep.subr.bf16.mxu0 0
      %2654 = vmatpush1.bf16.msra.mxu0 %v2445
      %2655 = vmatprep.subr.bf16.mxu0 0
      %2656 = vmatpush1.bf16.msra.mxu0 %v2444
      %2657 = vmatprep.subr.bf16.mxu0 0
      %2658 = vmatpush1.bf16.msra.mxu0 %v2443
      %2659 = vmatprep.subr.bf16.mxu0 0
      %2660 = vmatpush1.bf16.msra.mxu0 %v2442
      %2661 = vmatprep.subr.bf16.mxu0 0
      %2662 = vmatpush1.bf16.msra.mxu0 %v2441
      %2663 = vmatprep.subr.bf16.mxu0 0
      %2664 = vmatpush1.bf16.msra.mxu0 %v2440
      %2665 = vmatprep.subr.bf16.mxu0 0
      %2666 = vmatpush2.bf16.msra.mxu0 %v2455
      %2667 = vmatprep.subr.bf16.mxu0 0
      %2668 = vmatpush2.bf16.msra.mxu0 %v2454
      %2669 = vmatprep.subr.bf16.mxu0 0
      %2670 = vmatpush2.bf16.msra.mxu0 %v2453
      %2671 = vmatprep.subr.bf16.mxu0 0
      %2672 = vmatpush2.bf16.msra.mxu0 %v2452
      %2673 = vmatprep.subr.bf16.mxu0 0
      %2674 = vmatpush2.bf16.msra.mxu0 %v2451
      %2675 = vmatprep.subr.bf16.mxu0 0
      %2676 = vmatpush2.bf16.msra.mxu0 %v2450
      %2677 = vmatprep.subr.bf16.mxu0 0
      %2678 = vmatpush2.bf16.msra.mxu0 %v2449
      %2679 = vmatprep.subr.bf16.mxu0 0
      %2680 = vmatpush2.bf16.msra.mxu0 %v2448
      %2681 = vmatprep.mubr.bf16.mxu0 %v2234
      %2682 = vmatmul.mubr.bf16.gmra.mxu0 %v2190
      %v2683 = vpop.f32.mrf.mxu0
      %v2684 = vadd.f32 %v2564, %v2683
      %v2685 = vpop.f32.mrf.mxu0
      %v2686 = vpop.f32.mrf.mxu0
      %v2687 = vadd.f32 %v2567, %v2686
      %v2688 = vpop.f32.mrf.mxu0
      %2689 = vmatprep.mubr.bf16.mxu0 %v2238
      %2690 = vmatmul.mubr.bf16.gmra.mxu0 %v2194
      %v2691 = vpop.f32.mrf.mxu0
      %v2692 = vadd.f32 %v2572, %v2691
      %v2693 = vpop.f32.mrf.mxu0
      %v2694 = vpop.f32.mrf.mxu0
      %v2695 = vadd.f32 %v2575, %v2694
      %v2696 = vpop.f32.mrf.mxu0
      %2697 = vmatprep.mubr.bf16.mxu0 %v2242
      %2698 = vmatmul.mubr.bf16.gmra.mxu0 %v2198
      %v2699 = vpop.f32.mrf.mxu0
      %v2700 = vadd.f32 %v2580, %v2699
      %v2701 = vpop.f32.mrf.mxu0
      %v2702 = vpop.f32.mrf.mxu0
      %v2703 = vadd.f32 %v2583, %v2702
      %v2704 = vpop.f32.mrf.mxu0
      %2705 = vmatprep.mubr.bf16.mxu0 %v2246
      %2706 = vmatmul.mubr.bf16.gmra.mxu0 %v2202
      %v2707 = vpop.f32.mrf.mxu0
      %v2708 = vadd.f32 %v2588, %v2707
      %v2709 = vpop.f32.mrf.mxu0
      %v2710 = vpop.f32.mrf.mxu0
      %v2711 = vadd.f32 %v2591, %v2710
      %v2712 = vpop.f32.mrf.mxu0
      %2713 = vmatprep.mubr.bf16.mxu0 %v2250
      %2714 = vmatmul.mubr.bf16.gmra.mxu0 %v2206
      %v2715 = vpop.f32.mrf.mxu0
      %v2716 = vadd.f32 %v2596, %v2715
      %v2717 = vpop.f32.mrf.mxu0
      %v2718 = vpop.f32.mrf.mxu0
      %v2719 = vadd.f32 %v2599, %v2718
      %v2720 = vpop.f32.mrf.mxu0
      %2721 = vmatprep.mubr.bf16.mxu0 %v2254
      %2722 = vmatmul.mubr.bf16.gmra.mxu0 %v2210
      %v2723 = vpop.f32.mrf.mxu0
      %v2724 = vadd.f32 %v2604, %v2723
      %v2725 = vpop.f32.mrf.mxu0
      %v2726 = vpop.f32.mrf.mxu0
      %v2727 = vadd.f32 %v2607, %v2726
      %v2728 = vpop.f32.mrf.mxu0
      %2729 = vmatprep.mubr.bf16.mxu0 %v2258
      %2730 = vmatmul.mubr.bf16.gmra.mxu0 %v2214
      %v2731 = vpop.f32.mrf.mxu0
      %v2732 = vadd.f32 %v2612, %v2731
      %v2733 = vpop.f32.mrf.mxu0
      %v2734 = vpop.f32.mrf.mxu0
      %v2735 = vadd.f32 %v2615, %v2734
      %v2736 = vpop.f32.mrf.mxu0
      %2737 = vmatprep.mubr.bf16.mxu0 %v2262
      %2738 = vmatmul.mubr.bf16.gmra.mxu0 %v2218
      %v2739 = vpop.f32.mrf.mxu0
      %v2740 = vadd.f32 %v2620, %v2739
      %v2741 = vpop.f32.mrf.mxu0
      %v2742 = vpop.f32.mrf.mxu0
      %v2743 = vadd.f32 %v2623, %v2742
      %v2744 = vpop.f32.mrf.mxu0
      %2745 = vmatprep.mubr.bf16.mxu0 %v2266
      %2746 = vmatmul.mubr.bf16.gmra.mxu0 %v2222
      %v2747 = vpop.f32.mrf.mxu0
      %v2748 = vadd.f32 %v2628, %v2747
      %v2749 = vpop.f32.mrf.mxu0
      %v2750 = vpop.f32.mrf.mxu0
      %v2751 = vadd.f32 %v2631, %v2750
      %v2752 = vpop.f32.mrf.mxu0
      %2753 = vmatprep.mubr.bf16.mxu0 %v2270
      %2754 = vmatmul.mubr.bf16.gmra.mxu0 %v2226
      %v2755 = vpop.f32.mrf.mxu0
      %v2756 = vadd.f32 %v2636, %v2755
      %v2757 = vpop.f32.mrf.mxu0
      %v2758 = vpop.f32.mrf.mxu0
      %v2759 = vadd.f32 %v2639, %v2758
      %v2760 = vpop.f32.mrf.mxu0
      %2761 = vmatprep.mubr.bf16.mxu0 %v2274
      %2762 = vmatmul.mubr.bf16.gmra.mxu0 %v2230
      %v2763 = vpop.f32.mrf.mxu0
      %v2764 = vadd.f32 %v2644, %v2763
      %v2765 = vpop.f32.mrf.mxu0
      %v2766 = vpop.f32.mrf.mxu0
      %v2767 = vpop.f32.mrf.mxu0
      %2768 = vdwg.mxu0
      %2769 = vmatprep.subr.bf16.mxu0 0
      %2770 = vmatpush1.bf16.msra.mxu0 0
      %2771 = vmatprep.subr.bf16.mxu0 0
      %2772 = vmatpush1.bf16.msra.mxu0 0
      %2773 = vmatprep.subr.bf16.mxu0 0
      %2774 = vmatpush1.bf16.msra.mxu0 0
      %2775 = vmatprep.subr.bf16.mxu0 0
      %2776 = vmatpush1.bf16.msra.mxu0 0
      %2777 = vmatprep.subr.bf16.mxu0 0
      %2778 = vmatpush1.bf16.msra.mxu0 %v2459
      %2779 = vmatprep.subr.bf16.mxu0 0
      %2780 = vmatpush1.bf16.msra.mxu0 %v2458
      %2781 = vmatprep.subr.bf16.mxu0 0
      %2782 = vmatpush1.bf16.msra.mxu0 %v2457
      %2783 = vmatprep.subr.bf16.mxu0 0
      %2784 = vmatpush1.bf16.msra.mxu0 %v2456
      %2785 = vmatprep.subr.bf16.mxu0 0
      %2786 = vmatpush2.bf16.msra.mxu0 0
      %2787 = vmatprep.subr.bf16.mxu0 0
      %2788 = vmatpush2.bf16.msra.mxu0 0
      %2789 = vmatprep.subr.bf16.mxu0 0
      %2790 = vmatpush2.bf16.msra.mxu0 0
      %2791 = vmatprep.subr.bf16.mxu0 0
      %2792 = vmatpush2.bf16.msra.mxu0 0
      %2793 = vmatprep.subr.bf16.mxu0 0
      %2794 = vmatpush2.bf16.msra.mxu0 0
      %2795 = vmatprep.subr.bf16.mxu0 0
      %2796 = vmatpush2.bf16.msra.mxu0 0
      %2797 = vmatprep.subr.bf16.mxu0 0
      %2798 = vmatpush2.bf16.msra.mxu0 0
      %2799 = vmatprep.subr.bf16.mxu0 0
      %2800 = vmatpush2.bf16.msra.mxu0 0
      %2801 = vmatprep.mubr.bf16.mxu0 0
      %2802 = vmatmul.mubr.bf16.gmra.mxu0 %v2497
      %v2803 = vpop.f32.mrf.mxu0
      %v2804 = vadd.f32 %v2684, %v2803
      %v2805 = vpop.f32.mrf.mxu0
      %v2806 = vpop.f32.mrf.mxu0
      %v2807 = vadd.f32 %v2687, %v2806
      %v2808 = vpop.f32.mrf.mxu0
      %2809 = vmatprep.mubr.bf16.mxu0 0
      %2810 = vmatmul.mubr.bf16.gmra.mxu0 %v2500
      %v2811 = vpop.f32.mrf.mxu0
      %v2812 = vadd.f32 %v2692, %v2811
      %v2813 = vpop.f32.mrf.mxu0
      %v2814 = vpop.f32.mrf.mxu0
      %v2815 = vadd.f32 %v2695, %v2814
      %v2816 = vpop.f32.mrf.mxu0
      %2817 = vmatprep.mubr.bf16.mxu0 0
      %2818 = vmatmul.mubr.bf16.gmra.mxu0 %v2503
      %v2819 = vpop.f32.mrf.mxu0
      %v2820 = vadd.f32 %v2700, %v2819
      %v2821 = vpop.f32.mrf.mxu0
      %v2822 = vpop.f32.mrf.mxu0
      %v2823 = vadd.f32 %v2703, %v2822
      %v2824 = vpop.f32.mrf.mxu0
      %2825 = vmatprep.mubr.bf16.mxu0 0
      %2826 = vmatmul.mubr.bf16.gmra.mxu0 %v2506
      %v2827 = vpop.f32.mrf.mxu0
      %v2828 = vadd.f32 %v2708, %v2827
      %v2829 = vpop.f32.mrf.mxu0
      %v2830 = vpop.f32.mrf.mxu0
      %v2831 = vadd.f32 %v2711, %v2830
      %v2832 = vpop.f32.mrf.mxu0
      %2833 = vmatprep.mubr.bf16.mxu0 0
      %2834 = vmatmul.mubr.bf16.gmra.mxu0 %v2509
      %v2835 = vpop.f32.mrf.mxu0
      %v2836 = vadd.f32 %v2716, %v2835
      %v2837 = vpop.f32.mrf.mxu0
      %v2838 = vpop.f32.mrf.mxu0
      %v2839 = vadd.f32 %v2719, %v2838
      %v2840 = vpop.f32.mrf.mxu0
      %2841 = vmatprep.mubr.bf16.mxu0 0
      %2842 = vmatmul.mubr.bf16.gmra.mxu0 %v2512
      %v2843 = vpop.f32.mrf.mxu0
      %v2844 = vadd.f32 %v2724, %v2843
      %v2845 = vpop.f32.mrf.mxu0
      %v2846 = vpop.f32.mrf.mxu0
      %v2847 = vadd.f32 %v2727, %v2846
      %v2848 = vpop.f32.mrf.mxu0
      %2849 = vmatprep.mubr.bf16.mxu0 0
      %2850 = vmatmul.mubr.bf16.gmra.mxu0 %v2515
      %v2851 = vpop.f32.mrf.mxu0
      %v2852 = vadd.f32 %v2732, %v2851
      %v2853 = vpop.f32.mrf.mxu0
      %v2854 = vpop.f32.mrf.mxu0
      %v2855 = vadd.f32 %v2735, %v2854
      %v2856 = vpop.f32.mrf.mxu0
      %2857 = vmatprep.mubr.bf16.mxu0 0
      %2858 = vmatmul.mubr.bf16.gmra.mxu0 %v2518
      %v2859 = vpop.f32.mrf.mxu0
      %v2860 = vadd.f32 %v2740, %v2859
      %v2861 = vpop.f32.mrf.mxu0
      %v2862 = vpop.f32.mrf.mxu0
      %v2863 = vadd.f32 %v2743, %v2862
      %v2864 = vpop.f32.mrf.mxu0
      %2865 = vmatprep.mubr.bf16.mxu0 0
      %2866 = vmatmul.mubr.bf16.gmra.mxu0 %v2521
      %v2867 = vpop.f32.mrf.mxu0
      %v2868 = vadd.f32 %v2748, %v2867
      %v2869 = vpop.f32.mrf.mxu0
      %v2870 = vpop.f32.mrf.mxu0
      %v2871 = vadd.f32 %v2751, %v2870
      %v2872 = vpop.f32.mrf.mxu0
      %2873 = vmatprep.mubr.bf16.mxu0 0
      %2874 = vmatmul.mubr.bf16.gmra.mxu0 %v2524
      %v2875 = vpop.f32.mrf.mxu0
      %v2876 = vadd.f32 %v2756, %v2875
      %v2877 = vpop.f32.mrf.mxu0
      %v2878 = vpop.f32.mrf.mxu0
      %v2879 = vadd.f32 %v2759, %v2878
      %v2880 = vpop.f32.mrf.mxu0
      %2881 = vmatprep.mubr.bf16.mxu0 0
      %2882 = vmatmul.mubr.bf16.gmra.mxu0 %v2527
      %v2883 = vpop.f32.mrf.mxu0
      %v2884 = vadd.f32 %v2764, %v2883
      %v2885 = vpop.f32.mrf.mxu0
      %v2886 = vpop.f32.mrf.mxu0
      %v2887 = vpop.f32.mrf.mxu0
      %2888 = vdwg.mxu0
      %v2889 = vmax.f32 %v2804, 0.0
      %v2890 = vmax.f32 %v2807, 0.0
      %v2891 = vmax.f32 %v2812, 0.0
      %v2892 = vmax.f32 %v2815, 0.0
      %v2893 = vmax.f32 %v2820, 0.0
      %v2894 = vmax.f32 %v2823, 0.0
      %v2895 = vmax.f32 %v2828, 0.0
      %v2896 = vmax.f32 %v2831, 0.0
      %v2897 = vmax.f32 %v2836, 0.0
      %v2898 = vmax.f32 %v2839, 0.0
      %v2899 = vmax.f32 %v2844, 0.0
      %v2900 = vmax.f32 %v2847, 0.0
      %v2901 = vmax.f32 %v2852, 0.0
      %v2902 = vmax.f32 %v2855, 0.0
      %v2903 = vmax.f32 %v2860, 0.0
      %v2904 = vmax.f32 %v2863, 0.0
      %v2905 = vmax.f32 %v2868, 0.0
      %v2906 = vmax.f32 %v2871, 0.0
      %v2907 = vmax.f32 %v2876, 0.0
      %v2908 = vmax.f32 %v2879, 0.0
      %v2909 = vmax.f32 %v2884, 0.0
      %s2910 = scalar_lea.vmem %s4, 288
      %v2911 = vld [vmem:[%s2910] sm:$0xf]
      %v2912 = vld [vmem:[%s2910 + $0x4] sm:$0xf]
      %v2913 = vld [vmem:[%s2910 + $0x8] sm:$0xf]
      %v2914 = vld [vmem:[%s2910 + $0xc] sm:$0xf]
      %v2915 = vld [vmem:[%s2910 + $0x10] sm:$0xf]
      %v2916 = vld [vmem:[%s2910 + $0x14] sm:$0xf]
      %v2917 = vld [vmem:[%s2910 + $0x18] sm:$0xf]
      %v2918 = vld [vmem:[%s2910 + $0x1c] sm:$0xf]
      %v2919 = vld [vmem:[%s2910 + $0x20] sm:$0xf]
      %v2920 = vld [vmem:[%s2910 + $0x24] sm:$0xf]
      %v2921 = vld [vmem:[%s2910 + $0x28] sm:$0xf]
      %v2922 = vld [vmem:[%s2910 + $0x2c] sm:$0xf]
      %v2923 = vld [vmem:[%s2910 + $0x30] sm:$0xf]
      %v2924 = vld [vmem:[%s2910 + $0x34] sm:$0xf]
      %v2925 = vld [vmem:[%s2910 + $0x38] sm:$0xf]
      %v2926 = vld [vmem:[%s2910 + $0x3c] sm:$0xf]
      %v2927 = vld [vmem:[%s2910 + $0x40] sm:$0xf]
      %v2928 = vld [vmem:[%s2910 + $0x44] sm:$0xf]
      %v2929 = vld [vmem:[%s2910 + $0x48] sm:$0xf]
      %v2930 = vld [vmem:[%s2910 + $0x4c] sm:$0xf]
      %v2931 = vld [vmem:[%s2910 + $0x50] sm:$0xf]
      %v2932 = vld [vmem:[%s2910 + $0x54] sm:$0xf]
      %v2933 = vld [vmem:[%s2910 + $0x58] sm:$0xf]
      %v2934 = vld [vmem:[%s2910 + $0x5c] sm:$0xf]
      %v2935 = vld [vmem:[%s2910 + $0x60] sm:$0xf]
      %v2936 = vld [vmem:[%s2910 + $0x64] sm:$0xf]
      %v2937 = vld [vmem:[%s2910 + $0x68] sm:$0xf]
      %v2938 = vld [vmem:[%s2910 + $0x6c] sm:$0xf]
      %v2939 = vld [vmem:[%s2910 + $0x70] sm:$0xf]
      %v2940 = vld [vmem:[%s2910 + $0x74] sm:$0xf]
      %v2941 = vld [vmem:[%s2910 + $0x78] sm:$0xf]
      %v2942 = vld [vmem:[%s2910 + $0x7c] sm:$0xf]
      %v2943 = vld [vmem:[%s2910 + $0x80] sm:$0xf]
      %v2944 = vld [vmem:[%s2910 + $0x84] sm:$0xf]
      %v2945 = vld [vmem:[%s2910 + $0x88] sm:$0xf]
      %v2946 = vld [vmem:[%s2910 + $0x8c] sm:$0xf]
      %v2947 = vld [vmem:[%s2910 + $0x90] sm:$0xf]
      %v2948 = vld [vmem:[%s2910 + $0x94] sm:$0xf]
      %v2949 = vld [vmem:[%s2910 + $0x98] sm:$0xf]
      %v2950 = vld [vmem:[%s2910 + $0x9c] sm:$0xf]
      %v2951 = vld [vmem:[%s2910 + $0xa0] sm:$0xf]
      %v2952 = vld [vmem:[%s2910 + $0xa4] sm:$0xf]
      %v2953 = vld [vmem:[%s2910 + $0xa8] sm:$0xf]
      %v2954 = vld [vmem:[%s2910 + $0xac] sm:$0xf]
      %v2955 = vld [vmem:[%s2910 + $0xb0] sm:$0xf]
      %v2956 = vld [vmem:[%s2910 + $0xb4] sm:$0xf]
      %v2957 = vld [vmem:[%s2910 + $0xb8] sm:$0xf]
      %v2958 = vld [vmem:[%s2910 + $0xbc] sm:$0xf]
      %v2959 = vld [vmem:[%s2910 + $0xc0] sm:$0xf]
      %v2960 = vld [vmem:[%s2910 + $0xc4] sm:$0xf]
      %v2961 = vld [vmem:[%s2910 + $0xc8] sm:$0xf]
      %v2962 = vld [vmem:[%s2910 + $0xcc] sm:$0xf]
      %v2963 = vld [vmem:[%s2910 + $0xd0] sm:$0xf]
      %v2964 = vld [vmem:[%s2910 + $0xd4] sm:$0xf]
      %v2965 = vld [vmem:[%s2910 + $0xd8] sm:$0xf]
      %v2966 = vld [vmem:[%s2910 + $0xdc] sm:$0xf]
      %v2967 = vld [vmem:[%s2910 + $0xe0] sm:$0xf]
      %v2968 = vld [vmem:[%s2910 + $0xe4] sm:$0xf]
      %v2969 = vld [vmem:[%s2910 + $0xe8] sm:$0xf]
      %v2970 = vld [vmem:[%s2910 + $0xec] sm:$0xf]
      %v2971 = vld [vmem:[%s2910 + $0xf0] sm:$0xf]
      %v2972 = vld [vmem:[%s2910 + $0xf4] sm:$0xf]
      %v2973 = vld [vmem:[%s2910 + $0xf8] sm:$0xf]
      %v2974 = vld [vmem:[%s2910 + $0xfc] sm:$0xf]
      %v2975 = vld [vmem:[%s2910 + $0x100] sm:$0xf]
      %v2976 = vld [vmem:[%s2910 + $0x104] sm:$0xf]
      %v2977 = vld [vmem:[%s2910 + $0x108] sm:$0xf]
      %v2978 = vld [vmem:[%s2910 + $0x10c] sm:$0xf]
      %v2979 = vld [vmem:[%s2910 + $0x110] sm:$0xf]
      %v2980 = vld [vmem:[%s2910 + $0x114] sm:$0xf]
      %v2981 = vld [vmem:[%s2910 + $0x118] sm:$0xf]
      %v2982 = vld [vmem:[%s2910 + $0x11c] sm:$0xf]
      %v2983 = vld [vmem:[%s6 + $0x2] sm:$0x1]
      %2984 = vst.msk [vmem:[#allocation2 + $0x8] sm:$0xff] %vm305, %v2889
      %2985 = vst.msk [vmem:[#allocation2 + $0x10] sm:$0xff] %vm305, %v2890
      %2986 = vst.msk [vmem:[#allocation2 + $0x18] sm:$0xff] %vm305, %v2891
      %2987 = vst.msk [vmem:[#allocation2 + $0x20] sm:$0xff] %vm305, %v2892
      %2988 = vst.msk [vmem:[#allocation2 + $0x28] sm:$0xff] %vm305, %v2893
      %2989 = vst.msk [vmem:[#allocation2 + $0x30] sm:$0xff] %vm305, %v2894
      %2990 = vst.msk [vmem:[#allocation2 + $0x38] sm:$0xff] %vm305, %v2895
      %2991 = vst.msk [vmem:[#allocation2 + $0x40] sm:$0xff] %vm305, %v2896
      %2992 = vst.msk [vmem:[#allocation2 + $0x48] sm:$0xff] %vm305, %v2897
      %2993 = vst.msk [vmem:[#allocation2 + $0x50] sm:$0xff] %vm305, %v2898
      %2994 = vst.msk [vmem:[#allocation2 + $0x58] sm:$0xff] %vm305, %v2899
      %2995 = vst.msk [vmem:[#allocation2 + $0x60] sm:$0xff] %vm305, %v2900
      %2996 = vst.msk [vmem:[#allocation2 + $0x68] sm:$0xff] %vm305, %v2901
      %2997 = vst.msk [vmem:[#allocation2 + $0x70] sm:$0xff] %vm305, %v2902
      %2998 = vst.msk [vmem:[#allocation2 + $0x78] sm:$0xff] %vm305, %v2903
      %2999 = vst.msk [vmem:[#allocation2 + $0x80] sm:$0xff] %vm305, %v2904
      %3000 = vst.msk [vmem:[#allocation2 + $0x88] sm:$0xff] %vm305, %v2905
      %3001 = vst.msk [vmem:[#allocation2 + $0x90] sm:$0xff] %vm305, %v2906
      %3002 = vst.msk [vmem:[#allocation2 + $0x98] sm:$0xff] %vm305, %v2907
      %3003 = vst.msk [vmem:[#allocation2 + $0xa0] sm:$0xff] %vm305, %v2908
      %3004 = vst.msk [vmem:[#allocation2 + $0xa8] sm:$0xff] %vm305, %v2909
      %v3005 = vld [vmem:[#allocation2] sm:$0xff]
      %v3006 = vld [vmem:[#allocation2 + $0x8] sm:$0xff]
      %v3007 = vld [vmem:[#allocation2 + $0x10] sm:$0xff]
      %v3008 = vld [vmem:[#allocation2 + $0x18] sm:$0xff]
      %v3009 = vld [vmem:[#allocation2 + $0x20] sm:$0xff]
      %v3010 = vld [vmem:[#allocation2 + $0x28] sm:$0xff]
      %v3011 = vld [vmem:[#allocation2 + $0x30] sm:$0xff]
      %v3012 = vld [vmem:[#allocation2 + $0x38] sm:$0xff]
      %v3013 = vld [vmem:[#allocation2 + $0x40] sm:$0xff]
      %v3014 = vld [vmem:[#allocation2 + $0x48] sm:$0xff]
      %v3015 = vld [vmem:[#allocation2 + $0x50] sm:$0xff]
      %v3016 = vld [vmem:[#allocation2 + $0x58] sm:$0xff]
      %v3017 = vld [vmem:[#allocation2 + $0x60] sm:$0xff]
      %v3018 = vld [vmem:[#allocation2 + $0x68] sm:$0xff]
      %v3019 = vld [vmem:[#allocation2 + $0x70] sm:$0xff]
      %v3020 = vld [vmem:[#allocation2 + $0x78] sm:$0xff]
      %v3021 = vld [vmem:[#allocation2 + $0x80] sm:$0xff]
      %v3022 = vld [vmem:[#allocation2 + $0x88] sm:$0xff]
      %v3023 = vld [vmem:[#allocation2 + $0x90] sm:$0xff]
      %v3024 = vld [vmem:[#allocation2 + $0x98] sm:$0xff]
      %v3025 = vld [vmem:[#allocation2 + $0xa0] sm:$0xff]
      %v3026 = vld [vmem:[%s1] sm:$0xf]
      %v3027 = vld [vmem:[%s1 + $0x4] sm:$0xf]
      %v3028 = vld [vmem:[%s1 + $0x8] sm:$0xf]
      %v3029 = vld [vmem:[%s1 + $0xc] sm:$0xf]
      %v3030 = vld [vmem:[%s1 + $0x10] sm:$0xf]
      %v3031 = vld [vmem:[%s1 + $0x14] sm:$0xf]
      %v3032 = vld [vmem:[%s1 + $0x18] sm:$0xf]
      %v3033 = vld [vmem:[%s1 + $0x1c] sm:$0xf]
      %v3034 = vld [vmem:[%s1 + $0x20] sm:$0xf]
      %v3035 = vld [vmem:[%s1 + $0x24] sm:$0xf]
      %v3036 = vld [vmem:[%s1 + $0x28] sm:$0xf]
      %v3037 = vld [vmem:[%s1 + $0x2c] sm:$0xf]
      %v3038 = vld [vmem:[%s1 + $0x30] sm:$0xf]
      %v3039 = vld [vmem:[%s1 + $0x34] sm:$0xf]
      %v3040 = vld [vmem:[%s1 + $0x38] sm:$0xf]
      %v3041 = vld [vmem:[%s1 + $0x3c] sm:$0xf]
      %v3042 = vld [vmem:[%s1 + $0x40] sm:$0xf]
      %v3043 = vld [vmem:[%s1 + $0x44] sm:$0xf]
      %v3044 = vld [vmem:[%s1 + $0x48] sm:$0xf]
      %v3045 = vld [vmem:[%s1 + $0x4c] sm:$0xf]
      %v3046 = vld [vmem:[%s1 + $0x50] sm:$0xf]
      %v3047 = vunpack.c.l.bf16 %v3026
      %v3048 = vunpack.c.l.bf16 %v3027
      %v3049 = vunpack.c.l.bf16 %v3028
      %v3050 = vunpack.c.l.bf16 %v3029
      %v3051 = vunpack.c.l.bf16 %v3030
      %v3052 = vunpack.c.l.bf16 %v3031
      %v3053 = vunpack.c.l.bf16 %v3032
      %v3054 = vunpack.c.l.bf16 %v3033
      %v3055 = vunpack.c.l.bf16 %v3034
      %v3056 = vunpack.c.l.bf16 %v3035
      %v3057 = vunpack.c.l.bf16 %v3036
      %v3058 = vunpack.c.l.bf16 %v3037
      %v3059 = vunpack.c.l.bf16 %v3038
      %v3060 = vunpack.c.l.bf16 %v3039
      %v3061 = vunpack.c.l.bf16 %v3040
      %v3062 = vunpack.c.l.bf16 %v3041
      %v3063 = vunpack.c.l.bf16 %v3042
      %v3064 = vunpack.c.l.bf16 %v3043
      %v3065 = vunpack.c.l.bf16 %v3044
      %v3066 = vunpack.c.l.bf16 %v3045
      %v3067 = vunpack.c.l.bf16 %v3046
      %3069 = vset.pattern.permute.xlu0 0
      %3070 = vperm.xlu0 %3069, %v3047
      %v3071 = vpop.permute.xlu0 %3070
      %3074 = vset.pattern.permute.xlu0 0
      %3075 = vperm.xlu0 %3074, %v3048
      %v3076 = vpop.permute.xlu0 %3075
      %3079 = vset.pattern.permute.xlu0 0
      %3080 = vperm.xlu0 %3079, %v3049
      %v3081 = vpop.permute.xlu0 %3080
      %3084 = vset.pattern.permute.xlu0 0
      %3085 = vperm.xlu0 %3084, %v3050
      %v3086 = vpop.permute.xlu0 %3085
      %3089 = vset.pattern.permute.xlu0 0
      %3090 = vperm.xlu0 %3089, %v3051
      %v3091 = vpop.permute.xlu0 %3090
      %3094 = vset.pattern.permute.xlu0 0
      %3095 = vperm.xlu0 %3094, %v3052
      %v3096 = vpop.permute.xlu0 %3095
      %3099 = vset.pattern.permute.xlu0 0
      %3100 = vperm.xlu0 %3099, %v3053
      %v3101 = vpop.permute.xlu0 %3100
      %3104 = vset.pattern.permute.xlu0 0
      %3105 = vperm.xlu0 %3104, %v3054
      %v3106 = vpop.permute.xlu0 %3105
      %3109 = vset.pattern.permute.xlu0 0
      %3110 = vperm.xlu0 %3109, %v3055
      %v3111 = vpop.permute.xlu0 %3110
      %3114 = vset.pattern.permute.xlu0 0
      %3115 = vperm.xlu0 %3114, %v3056
      %v3116 = vpop.permute.xlu0 %3115
      %3119 = vset.pattern.permute.xlu0 0
      %3120 = vperm.xlu0 %3119, %v3057
      %v3121 = vpop.permute.xlu0 %3120
      %3124 = vset.pattern.permute.xlu0 0
      %3125 = vperm.xlu0 %3124, %v3058
      %v3126 = vpop.permute.xlu0 %3125
      %3129 = vset.pattern.permute.xlu0 0
      %3130 = vperm.xlu0 %3129, %v3059
      %v3131 = vpop.permute.xlu0 %3130
      %3134 = vset.pattern.permute.xlu0 0
      %3135 = vperm.xlu0 %3134, %v3060
      %v3136 = vpop.permute.xlu0 %3135
      %3139 = vset.pattern.permute.xlu0 0
      %3140 = vperm.xlu0 %3139, %v3061
      %v3141 = vpop.permute.xlu0 %3140
      %3144 = vset.pattern.permute.xlu0 0
      %3145 = vperm.xlu0 %3144, %v3062
      %v3146 = vpop.permute.xlu0 %3145
      %3149 = vset.pattern.permute.xlu0 0
      %3150 = vperm.xlu0 %3149, %v3063
      %v3151 = vpop.permute.xlu0 %3150
      %3154 = vset.pattern.permute.xlu0 0
      %3155 = vperm.xlu0 %3154, %v3064
      %v3156 = vpop.permute.xlu0 %3155
      %3159 = vset.pattern.permute.xlu0 0
      %3160 = vperm.xlu0 %3159, %v3065
      %v3161 = vpop.permute.xlu0 %3160
      %3164 = vset.pattern.permute.xlu0 0
      %3165 = vperm.xlu0 %3164, %v3066
      %v3166 = vpop.permute.xlu0 %3165
      %3169 = vset.pattern.permute.xlu0 0
      %3170 = vperm.xlu0 %3169, %v3067
      %v3171 = vpop.permute.xlu0 %3170
      %v3173 = vmul.f32 %v3005, %v3071
      %v3174 = vmul.f32 %v3006, %v3076
      %v3175 = vmul.f32 %v3007, %v3081
      %v3176 = vmul.f32 %v3008, %v3086
      %v3177 = vmul.f32 %v3009, %v3091
      %v3178 = vmul.f32 %v3010, %v3096
      %v3179 = vmul.f32 %v3011, %v3101
      %v3180 = vmul.f32 %v3012, %v3106
      %v3181 = vmul.f32 %v3013, %v3111
      %v3182 = vmul.f32 %v3014, %v3116
      %v3183 = vmul.f32 %v3015, %v3121
      %v3184 = vmul.f32 %v3016, %v3126
      %v3185 = vmul.f32 %v3017, %v3131
      %v3186 = vmul.f32 %v3018, %v3136
      %v3187 = vmul.f32 %v3019, %v3141
      %v3188 = vmul.f32 %v3020, %v3146
      %v3189 = vmul.f32 %v3021, %v3151
      %v3190 = vmul.f32 %v3022, %v3156
      %v3191 = vmul.f32 %v3023, %v3161
      %v3192 = vmul.f32 %v3024, %v3166
      %v3193 = vmul.f32 %v3025, %v3171
      %v3194 = vpack.c.bf16 %v3174, %v3173
      %v3195 = vpack.c.bf16 %v3176, %v3175
      %v3196 = vpack.c.bf16 %v3178, %v3177
      %v3197 = vpack.c.bf16 %v3180, %v3179
      %v3198 = vpack.c.bf16 %v3182, %v3181
      %v3199 = vpack.c.bf16 %v3184, %v3183
      %v3200 = vpack.c.bf16 %v3186, %v3185
      %v3201 = vpack.c.bf16 %v3188, %v3187
      %v3202 = vpack.c.bf16 %v3190, %v3189
      %v3203 = vpack.c.bf16 %v3192, %v3191
      %v3204 = vpack.c.bf16 %v3193, %v3193
      %v3205 = vld [vmem:[#allocation2 + $0x1] sm:$0xff]
      %v3206 = vld [vmem:[#allocation2 + $0x9] sm:$0xff]
      %v3207 = vld [vmem:[#allocation2 + $0x11] sm:$0xff]
      %v3208 = vld [vmem:[#allocation2 + $0x19] sm:$0xff]
      %v3209 = vld [vmem:[#allocation2 + $0x21] sm:$0xff]
      %v3210 = vld [vmem:[#allocation2 + $0x29] sm:$0xff]
      %v3211 = vld [vmem:[#allocation2 + $0x31] sm:$0xff]
      %v3212 = vld [vmem:[#allocation2 + $0x39] sm:$0xff]
      %v3213 = vld [vmem:[#allocation2 + $0x41] sm:$0xff]
      %v3214 = vld [vmem:[#allocation2 + $0x49] sm:$0xff]
      %v3215 = vld [vmem:[#allocation2 + $0x51] sm:$0xff]
      %v3216 = vld [vmem:[#allocation2 + $0x59] sm:$0xff]
      %v3217 = vld [vmem:[#allocation2 + $0x61] sm:$0xff]
      %v3218 = vld [vmem:[#allocation2 + $0x69] sm:$0xff]
      %v3219 = vld [vmem:[#allocation2 + $0x71] sm:$0xff]
      %v3220 = vld [vmem:[#allocation2 + $0x79] sm:$0xff]
      %v3221 = vld [vmem:[#allocation2 + $0x81] sm:$0xff]
      %v3222 = vld [vmem:[#allocation2 + $0x89] sm:$0xff]
      %v3223 = vld [vmem:[#allocation2 + $0x91] sm:$0xff]
      %v3224 = vld [vmem:[#allocation2 + $0x99] sm:$0xff]
      %v3225 = vld [vmem:[#allocation2 + $0xa1] sm:$0xff]
      %3226 = vset.pattern.permute.xlu0 1
      %3227 = vperm.xlu0 %3226, %v3047
      %v3228 = vpop.permute.xlu0 %3227
      %3230 = vset.pattern.permute.xlu0 1
      %3231 = vperm.xlu0 %3230, %v3048
      %v3232 = vpop.permute.xlu0 %3231
      %3234 = vset.pattern.permute.xlu0 1
      %3235 = vperm.xlu0 %3234, %v3049
      %v3236 = vpop.permute.xlu0 %3235
      %3238 = vset.pattern.permute.xlu0 1
      %3239 = vperm.xlu0 %3238, %v3050
      %v3240 = vpop.permute.xlu0 %3239
      %3242 = vset.pattern.permute.xlu0 1
      %3243 = vperm.xlu0 %3242, %v3051
      %v3244 = vpop.permute.xlu0 %3243
      %3246 = vset.pattern.permute.xlu0 1
      %3247 = vperm.xlu0 %3246, %v3052
      %v3248 = vpop.permute.xlu0 %3247
      %3250 = vset.pattern.permute.xlu0 1
      %3251 = vperm.xlu0 %3250, %v3053
      %v3252 = vpop.permute.xlu0 %3251
      %3254 = vset.pattern.permute.xlu0 1
      %3255 = vperm.xlu0 %3254, %v3054
      %v3256 = vpop.permute.xlu0 %3255
      %3258 = vset.pattern.permute.xlu0 1
      %3259 = vperm.xlu0 %3258, %v3055
      %v3260 = vpop.permute.xlu0 %3259
      %3262 = vset.pattern.permute.xlu0 1
      %3263 = vperm.xlu0 %3262, %v3056
      %v3264 = vpop.permute.xlu0 %3263
      %3266 = vset.pattern.permute.xlu0 1
      %3267 = vperm.xlu0 %3266, %v3057
      %v3268 = vpop.permute.xlu0 %3267
      %3270 = vset.pattern.permute.xlu0 1
      %3271 = vperm.xlu0 %3270, %v3058
      %v3272 = vpop.permute.xlu0 %3271
      %3274 = vset.pattern.permute.xlu0 1
      %3275 = vperm.xlu0 %3274, %v3059
      %v3276 = vpop.permute.xlu0 %3275
      %3278 = vset.pattern.permute.xlu0 1
      %3279 = vperm.xlu0 %3278, %v3060
      %v3280 = vpop.permute.xlu0 %3279
      %3282 = vset.pattern.permute.xlu0 1
      %3283 = vperm.xlu0 %3282, %v3061
      %v3284 = vpop.permute.xlu0 %3283
      %3286 = vset.pattern.permute.xlu0 1
      %3287 = vperm.xlu0 %3286, %v3062
      %v3288 = vpop.permute.xlu0 %3287
      %3290 = vset.pattern.permute.xlu0 1
      %3291 = vperm.xlu0 %3290, %v3063
      %v3292 = vpop.permute.xlu0 %3291
      %3294 = vset.pattern.permute.xlu0 1
      %3295 = vperm.xlu0 %3294, %v3064
      %v3296 = vpop.permute.xlu0 %3295
      %3298 = vset.pattern.permute.xlu0 1
      %3299 = vperm.xlu0 %3298, %v3065
      %v3300 = vpop.permute.xlu0 %3299
      %3302 = vset.pattern.permute.xlu0 1
      %3303 = vperm.xlu0 %3302, %v3066
      %v3304 = vpop.permute.xlu0 %3303
      %3306 = vset.pattern.permute.xlu0 1
      %3307 = vperm.xlu0 %3306, %v3067
      %v3308 = vpop.permute.xlu0 %3307
      %v3310 = vmul.f32 %v3205, %v3228
      %v3311 = vmul.f32 %v3206, %v3232
      %v3312 = vmul.f32 %v3207, %v3236
      %v3313 = vmul.f32 %v3208, %v3240
      %v3314 = vmul.f32 %v3209, %v3244
      %v3315 = vmul.f32 %v3210, %v3248
      %v3316 = vmul.f32 %v3211, %v3252
      %v3317 = vmul.f32 %v3212, %v3256
      %v3318 = vmul.f32 %v3213, %v3260
      %v3319 = vmul.f32 %v3214, %v3264
      %v3320 = vmul.f32 %v3215, %v3268
      %v3321 = vmul.f32 %v3216, %v3272
      %v3322 = vmul.f32 %v3217, %v3276
      %v3323 = vmul.f32 %v3218, %v3280
      %v3324 = vmul.f32 %v3219, %v3284
      %v3325 = vmul.f32 %v3220, %v3288
      %v3326 = vmul.f32 %v3221, %v3292
      %v3327 = vmul.f32 %v3222, %v3296
      %v3328 = vmul.f32 %v3223, %v3300
      %v3329 = vmul.f32 %v3224, %v3304
      %v3330 = vmul.f32 %v3225, %v3308
      %v3331 = vpack.c.bf16 %v3311, %v3310
      %v3332 = vpack.c.bf16 %v3313, %v3312
      %v3333 = vpack.c.bf16 %v3315, %v3314
      %v3334 = vpack.c.bf16 %v3317, %v3316
      %v3335 = vpack.c.bf16 %v3319, %v3318
      %v3336 = vpack.c.bf16 %v3321, %v3320
      %v3337 = vpack.c.bf16 %v3323, %v3322
      %v3338 = vpack.c.bf16 %v3325, %v3324
      %v3339 = vpack.c.bf16 %v3327, %v3326
      %v3340 = vpack.c.bf16 %v3329, %v3328
      %v3341 = vpack.c.bf16 %v3330, %v3330
      %v3342 = vld [vmem:[#allocation2 + $0x2] sm:$0xff]
      %v3343 = vld [vmem:[#allocation2 + $0xa] sm:$0xff]
      %v3344 = vld [vmem:[#allocation2 + $0x12] sm:$0xff]
      %v3345 = vld [vmem:[#allocation2 + $0x1a] sm:$0xff]
      %v3346 = vld [vmem:[#allocation2 + $0x22] sm:$0xff]
      %v3347 = vld [vmem:[#allocation2 + $0x2a] sm:$0xff]
      %v3348 = vld [vmem:[#allocation2 + $0x32] sm:$0xff]
      %v3349 = vld [vmem:[#allocation2 + $0x3a] sm:$0xff]
      %v3350 = vld [vmem:[#allocation2 + $0x42] sm:$0xff]
      %v3351 = vld [vmem:[#allocation2 + $0x4a] sm:$0xff]
      %v3352 = vld [vmem:[#allocation2 + $0x52] sm:$0xff]
      %v3353 = vld [vmem:[#allocation2 + $0x5a] sm:$0xff]
      %v3354 = vld [vmem:[#allocation2 + $0x62] sm:$0xff]
      %v3355 = vld [vmem:[#allocation2 + $0x6a] sm:$0xff]
      %v3356 = vld [vmem:[#allocation2 + $0x72] sm:$0xff]
      %v3357 = vld [vmem:[#allocation2 + $0x7a] sm:$0xff]
      %v3358 = vld [vmem:[#allocation2 + $0x82] sm:$0xff]
      %v3359 = vld [vmem:[#allocation2 + $0x8a] sm:$0xff]
      %v3360 = vld [vmem:[#allocation2 + $0x92] sm:$0xff]
      %v3361 = vld [vmem:[#allocation2 + $0x9a] sm:$0xff]
      %v3362 = vld [vmem:[#allocation2 + $0xa2] sm:$0xff]
      %3363 = vset.pattern.permute.xlu0 2
      %3364 = vperm.xlu0 %3363, %v3047
      %v3365 = vpop.permute.xlu0 %3364
      %3367 = vset.pattern.permute.xlu0 2
      %3368 = vperm.xlu0 %3367, %v3048
      %v3369 = vpop.permute.xlu0 %3368
      %3371 = vset.pattern.permute.xlu0 2
      %3372 = vperm.xlu0 %3371, %v3049
      %v3373 = vpop.permute.xlu0 %3372
      %3375 = vset.pattern.permute.xlu0 2
      %3376 = vperm.xlu0 %3375, %v3050
      %v3377 = vpop.permute.xlu0 %3376
      %3379 = vset.pattern.permute.xlu0 2
      %3380 = vperm.xlu0 %3379, %v3051
      %v3381 = vpop.permute.xlu0 %3380
      %3383 = vset.pattern.permute.xlu0 2
      %3384 = vperm.xlu0 %3383, %v3052
      %v3385 = vpop.permute.xlu0 %3384
      %3387 = vset.pattern.permute.xlu0 2
      %3388 = vperm.xlu0 %3387, %v3053
      %v3389 = vpop.permute.xlu0 %3388
      %3391 = vset.pattern.permute.xlu0 2
      %3392 = vperm.xlu0 %3391, %v3054
      %v3393 = vpop.permute.xlu0 %3392
      %3395 = vset.pattern.permute.xlu0 2
      %3396 = vperm.xlu0 %3395, %v3055
      %v3397 = vpop.permute.xlu0 %3396
      %3399 = vset.pattern.permute.xlu0 2
      %3400 = vperm.xlu0 %3399, %v3056
      %v3401 = vpop.permute.xlu0 %3400
      %3403 = vset.pattern.permute.xlu0 2
      %3404 = vperm.xlu0 %3403, %v3057
      %v3405 = vpop.permute.xlu0 %3404
      %3407 = vset.pattern.permute.xlu0 2
      %3408 = vperm.xlu0 %3407, %v3058
      %v3409 = vpop.permute.xlu0 %3408
      %3411 = vset.pattern.permute.xlu0 2
      %3412 = vperm.xlu0 %3411, %v3059
      %v3413 = vpop.permute.xlu0 %3412
      %3415 = vset.pattern.permute.xlu0 2
      %3416 = vperm.xlu0 %3415, %v3060
      %v3417 = vpop.permute.xlu0 %3416
      %3419 = vset.pattern.permute.xlu0 2
      %3420 = vperm.xlu0 %3419, %v3061
      %v3421 = vpop.permute.xlu0 %3420
      %3423 = vset.pattern.permute.xlu0 2
      %3424 = vperm.xlu0 %3423, %v3062
      %v3425 = vpop.permute.xlu0 %3424
      %3427 = vset.pattern.permute.xlu0 2
      %3428 = vperm.xlu0 %3427, %v3063
      %v3429 = vpop.permute.xlu0 %3428
      %3431 = vset.pattern.permute.xlu0 2
      %3432 = vperm.xlu0 %3431, %v3064
      %v3433 = vpop.permute.xlu0 %3432
      %3435 = vset.pattern.permute.xlu0 2
      %3436 = vperm.xlu0 %3435, %v3065
      %v3437 = vpop.permute.xlu0 %3436
      %3439 = vset.pattern.permute.xlu0 2
      %3440 = vperm.xlu0 %3439, %v3066
      %v3441 = vpop.permute.xlu0 %3440
      %3443 = vset.pattern.permute.xlu0 2
      %3444 = vperm.xlu0 %3443, %v3067
      %v3445 = vpop.permute.xlu0 %3444
      %v3447 = vmul.f32 %v3342, %v3365
      %v3448 = vmul.f32 %v3343, %v3369
      %v3449 = vmul.f32 %v3344, %v3373
      %v3450 = vmul.f32 %v3345, %v3377
      %v3451 = vmul.f32 %v3346, %v3381
      %v3452 = vmul.f32 %v3347, %v3385
      %v3453 = vmul.f32 %v3348, %v3389
      %v3454 = vmul.f32 %v3349, %v3393
      %v3455 = vmul.f32 %v3350, %v3397
      %v3456 = vmul.f32 %v3351, %v3401
      %v3457 = vmul.f32 %v3352, %v3405
      %v3458 = vmul.f32 %v3353, %v3409
      %v3459 = vmul.f32 %v3354, %v3413
      %v3460 = vmul.f32 %v3355, %v3417
      %v3461 = vmul.f32 %v3356, %v3421
      %v3462 = vmul.f32 %v3357, %v3425
      %v3463 = vmul.f32 %v3358, %v3429
      %v3464 = vmul.f32 %v3359, %v3433
      %v3465 = vmul.f32 %v3360, %v3437
      %v3466 = vmul.f32 %v3361, %v3441
      %v3467 = vmul.f32 %v3362, %v3445
      %v3468 = vpack.c.bf16 %v3448, %v3447
      %v3469 = vpack.c.bf16 %v3450, %v3449
      %v3470 = vpack.c.bf16 %v3452, %v3451
      %v3471 = vpack.c.bf16 %v3454, %v3453
      %v3472 = vpack.c.bf16 %v3456, %v3455
      %v3473 = vpack.c.bf16 %v3458, %v3457
      %v3474 = vpack.c.bf16 %v3460, %v3459
      %v3475 = vpack.c.bf16 %v3462, %v3461
      %v3476 = vpack.c.bf16 %v3464, %v3463
      %v3477 = vpack.c.bf16 %v3466, %v3465
      %v3478 = vpack.c.bf16 %v3467, %v3467
      %v3479 = vld [vmem:[#allocation2 + $0x7] sm:$0xff]
      %v3480 = vld [vmem:[#allocation2 + $0xf] sm:$0xff]
      %v3481 = vld [vmem:[#allocation2 + $0x17] sm:$0xff]
      %v3482 = vld [vmem:[#allocation2 + $0x1f] sm:$0xff]
      %v3483 = vld [vmem:[#allocation2 + $0x27] sm:$0xff]
      %v3484 = vld [vmem:[#allocation2 + $0x2f] sm:$0xff]
      %v3485 = vld [vmem:[#allocation2 + $0x37] sm:$0xff]
      %v3486 = vld [vmem:[#allocation2 + $0x3f] sm:$0xff]
      %v3487 = vld [vmem:[#allocation2 + $0x47] sm:$0xff]
      %v3488 = vld [vmem:[#allocation2 + $0x4f] sm:$0xff]
      %v3489 = vld [vmem:[#allocation2 + $0x57] sm:$0xff]
      %v3490 = vld [vmem:[#allocation2 + $0x5f] sm:$0xff]
      %v3491 = vld [vmem:[#allocation2 + $0x67] sm:$0xff]
      %v3492 = vld [vmem:[#allocation2 + $0x6f] sm:$0xff]
      %v3493 = vld [vmem:[#allocation2 + $0x77] sm:$0xff]
      %v3494 = vld [vmem:[#allocation2 + $0x7f] sm:$0xff]
      %v3495 = vld [vmem:[#allocation2 + $0x87] sm:$0xff]
      %v3496 = vld [vmem:[#allocation2 + $0x8f] sm:$0xff]
      %v3497 = vld [vmem:[#allocation2 + $0x97] sm:$0xff]
      %v3498 = vld [vmem:[#allocation2 + $0x9f] sm:$0xff]
      %v3499 = vld [vmem:[#allocation2 + $0xa7] sm:$0xff]
      %3500 = vset.pattern.permute.xlu0 3
      %3501 = vperm.xlu0 %3500, %v3047
      %v3502 = vpop.permute.xlu0 %3501
      %3504 = vset.pattern.permute.xlu0 3
      %3505 = vperm.xlu0 %3504, %v3048
      %v3506 = vpop.permute.xlu0 %3505
      %3508 = vset.pattern.permute.xlu0 3
      %3509 = vperm.xlu0 %3508, %v3049
      %v3510 = vpop.permute.xlu0 %3509
      %3512 = vset.pattern.permute.xlu0 3
      %3513 = vperm.xlu0 %3512, %v3050
      %v3514 = vpop.permute.xlu0 %3513
      %3516 = vset.pattern.permute.xlu0 3
      %3517 = vperm.xlu0 %3516, %v3051
      %v3518 = vpop.permute.xlu0 %3517
      %3520 = vset.pattern.permute.xlu0 3
      %3521 = vperm.xlu0 %3520, %v3052
      %v3522 = vpop.permute.xlu0 %3521
      %3524 = vset.pattern.permute.xlu0 3
      %3525 = vperm.xlu0 %3524, %v3053
      %v3526 = vpop.permute.xlu0 %3525
      %3528 = vset.pattern.permute.xlu0 3
      %3529 = vperm.xlu0 %3528, %v3054
      %v3530 = vpop.permute.xlu0 %3529
      %3532 = vset.pattern.permute.xlu0 3
      %3533 = vperm.xlu0 %3532, %v3055
      %v3534 = vpop.permute.xlu0 %3533
      %3536 = vset.pattern.permute.xlu0 3
      %3537 = vperm.xlu0 %3536, %v3056
      %v3538 = vpop.permute.xlu0 %3537
      %3540 = vset.pattern.permute.xlu0 3
      %3541 = vperm.xlu0 %3540, %v3057
      %v3542 = vpop.permute.xlu0 %3541
      %3544 = vset.pattern.permute.xlu0 3
      %3545 = vperm.xlu0 %3544, %v3058
      %v3546 = vpop.permute.xlu0 %3545
      %3548 = vset.pattern.permute.xlu0 3
      %3549 = vperm.xlu0 %3548, %v3059
      %v3550 = vpop.permute.xlu0 %3549
      %3552 = vset.pattern.permute.xlu0 3
      %3553 = vperm.xlu0 %3552, %v3060
      %v3554 = vpop.permute.xlu0 %3553
      %3556 = vset.pattern.permute.xlu0 3
      %3557 = vperm.xlu0 %3556, %v3061
      %v3558 = vpop.permute.xlu0 %3557
      %3560 = vset.pattern.permute.xlu0 3
      %3561 = vperm.xlu0 %3560, %v3062
      %v3562 = vpop.permute.xlu0 %3561
      %3564 = vset.pattern.permute.xlu0 3
      %3565 = vperm.xlu0 %3564, %v3063
      %v3566 = vpop.permute.xlu0 %3565
      %3568 = vset.pattern.permute.xlu0 3
      %3569 = vperm.xlu0 %3568, %v3064
      %v3570 = vpop.permute.xlu0 %3569
      %3572 = vset.pattern.permute.xlu0 3
      %3573 = vperm.xlu0 %3572, %v3065
      %v3574 = vpop.permute.xlu0 %3573
      %3576 = vset.pattern.permute.xlu0 3
      %3577 = vperm.xlu0 %3576, %v3066
      %v3578 = vpop.permute.xlu0 %3577
      %3580 = vset.pattern.permute.xlu0 3
      %3581 = vperm.xlu0 %3580, %v3067
      %v3582 = vpop.permute.xlu0 %3581
      %v3584 = vmul.f32 %v3479, %v3502
      %v3585 = vmul.f32 %v3480, %v3506
      %v3586 = vmul.f32 %v3481, %v3510
      %v3587 = vmul.f32 %v3482, %v3514
      %v3588 = vmul.f32 %v3483, %v3518
      %v3589 = vmul.f32 %v3484, %v3522
      %v3590 = vmul.f32 %v3485, %v3526
      %v3591 = vmul.f32 %v3486, %v3530
      %v3592 = vmul.f32 %v3487, %v3534
      %v3593 = vmul.f32 %v3488, %v3538
      %v3594 = vmul.f32 %v3489, %v3542
      %v3595 = vmul.f32 %v3490, %v3546
      %v3596 = vmul.f32 %v3491, %v3550
      %v3597 = vmul.f32 %v3492, %v3554
      %v3598 = vmul.f32 %v3493, %v3558
      %v3599 = vmul.f32 %v3494, %v3562
      %v3600 = vmul.f32 %v3495, %v3566
      %v3601 = vmul.f32 %v3496, %v3570
      %v3602 = vmul.f32 %v3497, %v3574
      %v3603 = vmul.f32 %v3498, %v3578
      %v3604 = vmul.f32 %v3499, %v3582
      %v3605 = vpack.c.bf16 %v3585, %v3584
      %v3606 = vpack.c.bf16 %v3587, %v3586
      %v3607 = vpack.c.bf16 %v3589, %v3588
      %v3608 = vpack.c.bf16 %v3591, %v3590
      %v3609 = vpack.c.bf16 %v3593, %v3592
      %v3610 = vpack.c.bf16 %v3595, %v3594
      %v3611 = vpack.c.bf16 %v3597, %v3596
      %v3612 = vpack.c.bf16 %v3599, %v3598
      %v3613 = vpack.c.bf16 %v3601, %v3600
      %v3614 = vpack.c.bf16 %v3603, %v3602
      %v3615 = vpack.c.bf16 %v3604, %v3604
      %v3616 = vld [vmem:[#allocation2 + $0x8] sm:$0xff]
      %v3617 = vld [vmem:[#allocation2 + $0x10] sm:$0xff]
      %v3618 = vld [vmem:[#allocation2 + $0x18] sm:$0xff]
      %v3619 = vld [vmem:[#allocation2 + $0x20] sm:$0xff]
      %v3620 = vld [vmem:[#allocation2 + $0x28] sm:$0xff]
      %v3621 = vld [vmem:[#allocation2 + $0x30] sm:$0xff]
      %v3622 = vld [vmem:[#allocation2 + $0x38] sm:$0xff]
      %v3623 = vld [vmem:[#allocation2 + $0x40] sm:$0xff]
      %v3624 = vld [vmem:[#allocation2 + $0x48] sm:$0xff]
      %v3625 = vld [vmem:[#allocation2 + $0x50] sm:$0xff]
      %v3626 = vld [vmem:[#allocation2 + $0x58] sm:$0xff]
      %v3627 = vld [vmem:[#allocation2 + $0x60] sm:$0xff]
      %v3628 = vld [vmem:[#allocation2 + $0x68] sm:$0xff]
      %v3629 = vld [vmem:[#allocation2 + $0x70] sm:$0xff]
      %v3630 = vld [vmem:[#allocation2 + $0x78] sm:$0xff]
      %v3631 = vld [vmem:[#allocation2 + $0x80] sm:$0xff]
      %v3632 = vld [vmem:[#allocation2 + $0x88] sm:$0xff]
      %v3633 = vld [vmem:[#allocation2 + $0x90] sm:$0xff]
      %v3634 = vld [vmem:[#allocation2 + $0x98] sm:$0xff]
      %v3635 = vld [vmem:[#allocation2 + $0xa0] sm:$0xff]
      %v3636 = vld [vmem:[#allocation2 + $0xa8] sm:$0xff]
      %3637 = vset.pattern.permute.xlu0 4
      %3638 = vperm.xlu0 %3637, %v3047
      %v3639 = vpop.permute.xlu0 %3638
      %3641 = vset.pattern.permute.xlu0 4
      %3642 = vperm.xlu0 %3641, %v3048
      %v3643 = vpop.permute.xlu0 %3642
      %3645 = vset.pattern.permute.xlu0 4
      %3646 = vperm.xlu0 %3645, %v3049
      %v3647 = vpop.permute.xlu0 %3646
      %3649 = vset.pattern.permute.xlu0 4
      %3650 = vperm.xlu0 %3649, %v3050
      %v3651 = vpop.permute.xlu0 %3650
      %3653 = vset.pattern.permute.xlu0 4
      %3654 = vperm.xlu0 %3653, %v3051
      %v3655 = vpop.permute.xlu0 %3654
      %3657 = vset.pattern.permute.xlu0 4
      %3658 = vperm.xlu0 %3657, %v3052
      %v3659 = vpop.permute.xlu0 %3658
      %3661 = vset.pattern.permute.xlu0 4
      %3662 = vperm.xlu0 %3661, %v3053
      %v3663 = vpop.permute.xlu0 %3662
      %3665 = vset.pattern.permute.xlu0 4
      %3666 = vperm.xlu0 %3665, %v3054
      %v3667 = vpop.permute.xlu0 %3666
      %3669 = vset.pattern.permute.xlu0 4
      %3670 = vperm.xlu0 %3669, %v3055
      %v3671 = vpop.permute.xlu0 %3670
      %3673 = vset.pattern.permute.xlu0 4
      %3674 = vperm.xlu0 %3673, %v3056
      %v3675 = vpop.permute.xlu0 %3674
      %3677 = vset.pattern.permute.xlu0 4
      %3678 = vperm.xlu0 %3677, %v3057
      %v3679 = vpop.permute.xlu0 %3678
      %3681 = vset.pattern.permute.xlu0 4
      %3682 = vperm.xlu0 %3681, %v3058
      %v3683 = vpop.permute.xlu0 %3682
      %3685 = vset.pattern.permute.xlu0 4
      %3686 = vperm.xlu0 %3685, %v3059
      %v3687 = vpop.permute.xlu0 %3686
      %3689 = vset.pattern.permute.xlu0 4
      %3690 = vperm.xlu0 %3689, %v3060
      %v3691 = vpop.permute.xlu0 %3690
      %3693 = vset.pattern.permute.xlu0 4
      %3694 = vperm.xlu0 %3693, %v3061
      %v3695 = vpop.permute.xlu0 %3694
      %3697 = vset.pattern.permute.xlu0 4
      %3698 = vperm.xlu0 %3697, %v3062
      %v3699 = vpop.permute.xlu0 %3698
      %3701 = vset.pattern.permute.xlu0 4
      %3702 = vperm.xlu0 %3701, %v3063
      %v3703 = vpop.permute.xlu0 %3702
      %3705 = vset.pattern.permute.xlu0 4
      %3706 = vperm.xlu0 %3705, %v3064
      %v3707 = vpop.permute.xlu0 %3706
      %3709 = vset.pattern.permute.xlu0 4
      %3710 = vperm.xlu0 %3709, %v3065
      %v3711 = vpop.permute.xlu0 %3710
      %3713 = vset.pattern.permute.xlu0 4
      %3714 = vperm.xlu0 %3713, %v3066
      %v3715 = vpop.permute.xlu0 %3714
      %3717 = vset.pattern.permute.xlu0 4
      %3718 = vperm.xlu0 %3717, %v3067
      %v3719 = vpop.permute.xlu0 %3718
      %v3721 = vmul.f32 %v3616, %v3639
      %v3722 = vmul.f32 %v3617, %v3643
      %v3723 = vmul.f32 %v3618, %v3647
      %v3724 = vmul.f32 %v3619, %v3651
      %v3725 = vmul.f32 %v3620, %v3655
      %v3726 = vmul.f32 %v3621, %v3659
      %v3727 = vmul.f32 %v3622, %v3663
      %v3728 = vmul.f32 %v3623, %v3667
      %v3729 = vmul.f32 %v3624, %v3671
      %v3730 = vmul.f32 %v3625, %v3675
      %v3731 = vmul.f32 %v3626, %v3679
      %v3732 = vmul.f32 %v3627, %v3683
      %v3733 = vmul.f32 %v3628, %v3687
      %v3734 = vmul.f32 %v3629, %v3691
      %v3735 = vmul.f32 %v3630, %v3695
      %v3736 = vmul.f32 %v3631, %v3699
      %v3737 = vmul.f32 %v3632, %v3703
      %v3738 = vmul.f32 %v3633, %v3707
      %v3739 = vmul.f32 %v3634, %v3711
      %v3740 = vmul.f32 %v3635, %v3715
      %v3741 = vmul.f32 %v3636, %v3719
      %v3742 = vpack.c.bf16 %v3722, %v3721
      %v3743 = vpack.c.bf16 %v3724, %v3723
      %v3744 = vpack.c.bf16 %v3726, %v3725
      %v3745 = vpack.c.bf16 %v3728, %v3727
      %v3746 = vpack.c.bf16 %v3730, %v3729
      %v3747 = vpack.c.bf16 %v3732, %v3731
      %v3748 = vpack.c.bf16 %v3734, %v3733
      %v3749 = vpack.c.bf16 %v3736, %v3735
      %v3750 = vpack.c.bf16 %v3738, %v3737
      %v3751 = vpack.c.bf16 %v3740, %v3739
      %v3752 = vpack.c.bf16 %v3741, %v3741
      %v3753 = vld [vmem:[#allocation2 + $0x9] sm:$0xff]
      %v3754 = vld [vmem:[#allocation2 + $0x11] sm:$0xff]
      %v3755 = vld [vmem:[#allocation2 + $0x19] sm:$0xff]
      %v3756 = vld [vmem:[#allocation2 + $0x21] sm:$0xff]
      %v3757 = vld [vmem:[#allocation2 + $0x29] sm:$0xff]
      %v3758 = vld [vmem:[#allocation2 + $0x31] sm:$0xff]
      %v3759 = vld [vmem:[#allocation2 + $0x39] sm:$0xff]
      %v3760 = vld [vmem:[#allocation2 + $0x41] sm:$0xff]
      %v3761 = vld [vmem:[#allocation2 + $0x49] sm:$0xff]
      %v3762 = vld [vmem:[#allocation2 + $0x51] sm:$0xff]
      %v3763 = vld [vmem:[#allocation2 + $0x59] sm:$0xff]
      %v3764 = vld [vmem:[#allocation2 + $0x61] sm:$0xff]
      %v3765 = vld [vmem:[#allocation2 + $0x69] sm:$0xff]
      %v3766 = vld [vmem:[#allocation2 + $0x71] sm:$0xff]
      %v3767 = vld [vmem:[#allocation2 + $0x79] sm:$0xff]
      %v3768 = vld [vmem:[#allocation2 + $0x81] sm:$0xff]
      %v3769 = vld [vmem:[#allocation2 + $0x89] sm:$0xff]
      %v3770 = vld [vmem:[#allocation2 + $0x91] sm:$0xff]
      %v3771 = vld [vmem:[#allocation2 + $0x99] sm:$0xff]
      %v3772 = vld [vmem:[#allocation2 + $0xa1] sm:$0xff]
      %v3773 = vld [vmem:[#allocation2 + $0xa9] sm:$0xff]
      %3774 = vset.pattern.permute.xlu0 5
      %3775 = vperm.xlu0 %3774, %v3047
      %v3776 = vpop.permute.xlu0 %3775
      %3778 = vset.pattern.permute.xlu0 5
      %3779 = vperm.xlu0 %3778, %v3048
      %v3780 = vpop.permute.xlu0 %3779
      %3782 = vset.pattern.permute.xlu0 5
      %3783 = vperm.xlu0 %3782, %v3049
      %v3784 = vpop.permute.xlu0 %3783
      %3786 = vset.pattern.permute.xlu0 5
      %3787 = vperm.xlu0 %3786, %v3050
      %v3788 = vpop.permute.xlu0 %3787
      %3790 = vset.pattern.permute.xlu0 5
      %3791 = vperm.xlu0 %3790, %v3051
      %v3792 = vpop.permute.xlu0 %3791
      %3794 = vset.pattern.permute.xlu0 5
      %3795 = vperm.xlu0 %3794, %v3052
      %v3796 = vpop.permute.xlu0 %3795
      %3798 = vset.pattern.permute.xlu0 5
      %3799 = vperm.xlu0 %3798, %v3053
      %v3800 = vpop.permute.xlu0 %3799
      %3802 = vset.pattern.permute.xlu0 5
      %3803 = vperm.xlu0 %3802, %v3054
      %v3804 = vpop.permute.xlu0 %3803
      %3806 = vset.pattern.permute.xlu0 5
      %3807 = vperm.xlu0 %3806, %v3055
      %v3808 = vpop.permute.xlu0 %3807
      %3810 = vset.pattern.permute.xlu0 5
      %3811 = vperm.xlu0 %3810, %v3056
      %v3812 = vpop.permute.xlu0 %3811
      %3814 = vset.pattern.permute.xlu0 5
      %3815 = vperm.xlu0 %3814, %v3057
      %v3816 = vpop.permute.xlu0 %3815
      %3818 = vset.pattern.permute.xlu0 5
      %3819 = vperm.xlu0 %3818, %v3058
      %v3820 = vpop.permute.xlu0 %3819
      %3822 = vset.pattern.permute.xlu0 5
      %3823 = vperm.xlu0 %3822, %v3059
      %v3824 = vpop.permute.xlu0 %3823
      %3826 = vset.pattern.permute.xlu0 5
      %3827 = vperm.xlu0 %3826, %v3060
      %v3828 = vpop.permute.xlu0 %3827
      %3830 = vset.pattern.permute.xlu0 5
      %3831 = vperm.xlu0 %3830, %v3061
      %v3832 = vpop.permute.xlu0 %3831
      %3834 = vset.pattern.permute.xlu0 5
      %3835 = vperm.xlu0 %3834, %v3062
      %v3836 = vpop.permute.xlu0 %3835
      %3838 = vset.pattern.permute.xlu0 5
      %3839 = vperm.xlu0 %3838, %v3063
      %v3840 = vpop.permute.xlu0 %3839
      %3842 = vset.pattern.permute.xlu0 5
      %3843 = vperm.xlu0 %3842, %v3064
      %v3844 = vpop.permute.xlu0 %3843
      %3846 = vset.pattern.permute.xlu0 5
      %3847 = vperm.xlu0 %3846, %v3065
      %v3848 = vpop.permute.xlu0 %3847
      %3850 = vset.pattern.permute.xlu0 5
      %3851 = vperm.xlu0 %3850, %v3066
      %v3852 = vpop.permute.xlu0 %3851
      %3854 = vset.pattern.permute.xlu0 5
      %3855 = vperm.xlu0 %3854, %v3067
      %v3856 = vpop.permute.xlu0 %3855
      %v3858 = vmul.f32 %v3753, %v3776
      %v3859 = vmul.f32 %v3754, %v3780
      %v3860 = vmul.f32 %v3755, %v3784
      %v3861 = vmul.f32 %v3756, %v3788
      %v3862 = vmul.f32 %v3757, %v3792
      %v3863 = vmul.f32 %v3758, %v3796
      %v3864 = vmul.f32 %v3759, %v3800
      %v3865 = vmul.f32 %v3760, %v3804
      %v3866 = vmul.f32 %v3761, %v3808
      %v3867 = vmul.f32 %v3762, %v3812
      %v3868 = vmul.f32 %v3763, %v3816
      %v3869 = vmul.f32 %v3764, %v3820
      %v3870 = vmul.f32 %v3765, %v3824
      %v3871 = vmul.f32 %v3766, %v3828
      %v3872 = vmul.f32 %v3767, %v3832
      %v3873 = vmul.f32 %v3768, %v3836
      %v3874 = vmul.f32 %v3769, %v3840
      %v3875 = vmul.f32 %v3770, %v3844
      %v3876 = vmul.f32 %v3771, %v3848
      %v3877 = vmul.f32 %v3772, %v3852
      %v3878 = vmul.f32 %v3773, %v3856
      %v3879 = vpack.c.bf16 %v3859, %v3858
      %v3880 = vpack.c.bf16 %v3861, %v3860
      %v3881 = vpack.c.bf16 %v3863, %v3862
      %v3882 = vpack.c.bf16 %v3865, %v3864
      %v3883 = vpack.c.bf16 %v3867, %v3866
      %v3884 = vpack.c.bf16 %v3869, %v3868
      %v3885 = vpack.c.bf16 %v3871, %v3870
      %v3886 = vpack.c.bf16 %v3873, %v3872
      %v3887 = vpack.c.bf16 %v3875, %v3874
      %v3888 = vpack.c.bf16 %v3877, %v3876
      %v3889 = vpack.c.bf16 %v3878, %v3878
      %v3890 = vld [vmem:[#allocation2 + $0xe] sm:$0xff]
      %v3891 = vld [vmem:[#allocation2 + $0x16] sm:$0xff]
      %v3892 = vld [vmem:[#allocation2 + $0x1e] sm:$0xff]
      %v3893 = vld [vmem:[#allocation2 + $0x26] sm:$0xff]
      %v3894 = vld [vmem:[#allocation2 + $0x2e] sm:$0xff]
      %v3895 = vld [vmem:[#allocation2 + $0x36] sm:$0xff]
      %v3896 = vld [vmem:[#allocation2 + $0x3e] sm:$0xff]
      %v3897 = vld [vmem:[#allocation2 + $0x46] sm:$0xff]
      %v3898 = vld [vmem:[#allocation2 + $0x4e] sm:$0xff]
      %v3899 = vld [vmem:[#allocation2 + $0x56] sm:$0xff]
      %v3900 = vld [vmem:[#allocation2 + $0x5e] sm:$0xff]
      %v3901 = vld [vmem:[#allocation2 + $0x66] sm:$0xff]
      %v3902 = vld [vmem:[#allocation2 + $0x6e] sm:$0xff]
      %v3903 = vld [vmem:[#allocation2 + $0x76] sm:$0xff]
      %v3904 = vld [vmem:[#allocation2 + $0x7e] sm:$0xff]
      %v3905 = vld [vmem:[#allocation2 + $0x86] sm:$0xff]
      %v3906 = vld [vmem:[#allocation2 + $0x8e] sm:$0xff]
      %v3907 = vld [vmem:[#allocation2 + $0x96] sm:$0xff]
      %v3908 = vld [vmem:[#allocation2 + $0x9e] sm:$0xff]
      %v3909 = vld [vmem:[#allocation2 + $0xa6] sm:$0xff]
      %v3910 = vld [vmem:[#allocation2 + $0xae] sm:$0xff]
      %3911 = vset.pattern.permute.xlu0 6
      %3912 = vperm.xlu0 %3911, %v3047
      %v3913 = vpop.permute.xlu0 %3912
      %3915 = vset.pattern.permute.xlu0 6
      %3916 = vperm.xlu0 %3915, %v3048
      %v3917 = vpop.permute.xlu0 %3916
      %3919 = vset.pattern.permute.xlu0 6
      %3920 = vperm.xlu0 %3919, %v3049
      %v3921 = vpop.permute.xlu0 %3920
      %3923 = vset.pattern.permute.xlu0 6
      %3924 = vperm.xlu0 %3923, %v3050
      %v3925 = vpop.permute.xlu0 %3924
      %3927 = vset.pattern.permute.xlu0 6
      %3928 = vperm.xlu0 %3927, %v3051
      %v3929 = vpop.permute.xlu0 %3928
      %3931 = vset.pattern.permute.xlu0 6
      %3932 = vperm.xlu0 %3931, %v3052
      %v3933 = vpop.permute.xlu0 %3932
      %3935 = vset.pattern.permute.xlu0 6
      %3936 = vperm.xlu0 %3935, %v3053
      %v3937 = vpop.permute.xlu0 %3936
      %3939 = vset.pattern.permute.xlu0 6
      %3940 = vperm.xlu0 %3939, %v3054
      %v3941 = vpop.permute.xlu0 %3940
      %3943 = vset.pattern.permute.xlu0 6
      %3944 = vperm.xlu0 %3943, %v3055
      %v3945 = vpop.permute.xlu0 %3944
      %3947 = vset.pattern.permute.xlu0 6
      %3948 = vperm.xlu0 %3947, %v3056
      %v3949 = vpop.permute.xlu0 %3948
      %3951 = vset.pattern.permute.xlu0 6
      %3952 = vperm.xlu0 %3951, %v3057
      %v3953 = vpop.permute.xlu0 %3952
      %3955 = vset.pattern.permute.xlu0 6
      %3956 = vperm.xlu0 %3955, %v3058
      %v3957 = vpop.permute.xlu0 %3956
      %3959 = vset.pattern.permute.xlu0 6
      %3960 = vperm.xlu0 %3959, %v3059
      %v3961 = vpop.permute.xlu0 %3960
      %3963 = vset.pattern.permute.xlu0 6
      %3964 = vperm.xlu0 %3963, %v3060
      %v3965 = vpop.permute.xlu0 %3964
      %3967 = vset.pattern.permute.xlu0 6
      %3968 = vperm.xlu0 %3967, %v3061
      %v3969 = vpop.permute.xlu0 %3968
      %3971 = vset.pattern.permute.xlu0 6
      %3972 = vperm.xlu0 %3971, %v3062
      %v3973 = vpop.permute.xlu0 %3972
      %3975 = vset.pattern.permute.xlu0 6
      %3976 = vperm.xlu0 %3975, %v3063
      %v3977 = vpop.permute.xlu0 %3976
      %3979 = vset.pattern.permute.xlu0 6
      %3980 = vperm.xlu0 %3979, %v3064
      %v3981 = vpop.permute.xlu0 %3980
      %3983 = vset.pattern.permute.xlu0 6
      %3984 = vperm.xlu0 %3983, %v3065
      %v3985 = vpop.permute.xlu0 %3984
      %3987 = vset.pattern.permute.xlu0 6
      %3988 = vperm.xlu0 %3987, %v3066
      %v3989 = vpop.permute.xlu0 %3988
      %3991 = vset.pattern.permute.xlu0 6
      %3992 = vperm.xlu0 %3991, %v3067
      %v3993 = vpop.permute.xlu0 %3992
      %v3995 = vmul.f32 %v3890, %v3913
      %v3996 = vmul.f32 %v3891, %v3917
      %v3997 = vmul.f32 %v3892, %v3921
      %v3998 = vmul.f32 %v3893, %v3925
      %v3999 = vmul.f32 %v3894, %v3929
      %v4000 = vmul.f32 %v3895, %v3933
      %v4001 = vmul.f32 %v3896, %v3937
      %v4002 = vmul.f32 %v3897, %v3941
      %v4003 = vmul.f32 %v3898, %v3945
      %v4004 = vmul.f32 %v3899, %v3949
      %v4005 = vmul.f32 %v3900, %v3953
      %v4006 = vmul.f32 %v3901, %v3957
      %v4007 = vmul.f32 %v3902, %v3961
      %v4008 = vmul.f32 %v3903, %v3965
      %v4009 = vmul.f32 %v3904, %v3969
      %v4010 = vmul.f32 %v3905, %v3973
      %v4011 = vmul.f32 %v3906, %v3977
      %v4012 = vmul.f32 %v3907, %v3981
      %v4013 = vmul.f32 %v3908, %v3985
      %v4014 = vmul.f32 %v3909, %v3989
      %v4015 = vmul.f32 %v3910, %v3993
      %v4016 = vpack.c.bf16 %v3996, %v3995
      %v4017 = vpack.c.bf16 %v3998, %v3997
      %v4018 = vpack.c.bf16 %v4000, %v3999
      %v4019 = vpack.c.bf16 %v4002, %v4001
      %v4020 = vpack.c.bf16 %v4004, %v4003
      %v4021 = vpack.c.bf16 %v4006, %v4005
      %v4022 = vpack.c.bf16 %v4008, %v4007
      %v4023 = vpack.c.bf16 %v4010, %v4009
      %v4024 = vpack.c.bf16 %v4012, %v4011
      %v4025 = vpack.c.bf16 %v4014, %v4013
      %v4026 = vpack.c.bf16 %v4015, %v4015
      %v4027 = vld [vmem:[#allocation2 + $0xf] sm:$0xff]
      %v4028 = vld [vmem:[#allocation2 + $0x17] sm:$0xff]
      %v4029 = vld [vmem:[#allocation2 + $0x1f] sm:$0xff]
      %v4030 = vld [vmem:[#allocation2 + $0x27] sm:$0xff]
      %v4031 = vld [vmem:[#allocation2 + $0x2f] sm:$0xff]
      %v4032 = vld [vmem:[#allocation2 + $0x37] sm:$0xff]
      %v4033 = vld [vmem:[#allocation2 + $0x3f] sm:$0xff]
      %v4034 = vld [vmem:[#allocation2 + $0x47] sm:$0xff]
      %v4035 = vld [vmem:[#allocation2 + $0x4f] sm:$0xff]
      %v4036 = vld [vmem:[#allocation2 + $0x57] sm:$0xff]
      %v4037 = vld [vmem:[#allocation2 + $0x5f] sm:$0xff]
      %v4038 = vld [vmem:[#allocation2 + $0x67] sm:$0xff]
      %v4039 = vld [vmem:[#allocation2 + $0x6f] sm:$0xff]
      %v4040 = vld [vmem:[#allocation2 + $0x77] sm:$0xff]
      %v4041 = vld [vmem:[#allocation2 + $0x7f] sm:$0xff]
      %v4042 = vld [vmem:[#allocation2 + $0x87] sm:$0xff]
      %v4043 = vld [vmem:[#allocation2 + $0x8f] sm:$0xff]
      %v4044 = vld [vmem:[#allocation2 + $0x97] sm:$0xff]
      %v4045 = vld [vmem:[#allocation2 + $0x9f] sm:$0xff]
      %v4046 = vld [vmem:[#allocation2 + $0xa7] sm:$0xff]
      %v4047 = vld [vmem:[#allocation2 + $0xaf] sm:$0xff]
      %4048 = vset.pattern.permute.xlu0 7
      %4049 = vperm.xlu0 %4048, %v3047
      %v4050 = vpop.permute.xlu0 %4049
      %4052 = vset.pattern.permute.xlu0 7
      %4053 = vperm.xlu0 %4052, %v3048
      %v4054 = vpop.permute.xlu0 %4053
      %4056 = vset.pattern.permute.xlu0 7
      %4057 = vperm.xlu0 %4056, %v3049
      %v4058 = vpop.permute.xlu0 %4057
      %4060 = vset.pattern.permute.xlu0 7
      %4061 = vperm.xlu0 %4060, %v3050
      %v4062 = vpop.permute.xlu0 %4061
      %4064 = vset.pattern.permute.xlu0 7
      %4065 = vperm.xlu0 %4064, %v3051
      %v4066 = vpop.permute.xlu0 %4065
      %4068 = vset.pattern.permute.xlu0 7
      %4069 = vperm.xlu0 %4068, %v3052
      %v4070 = vpop.permute.xlu0 %4069
      %4072 = vset.pattern.permute.xlu0 7
      %4073 = vperm.xlu0 %4072, %v3053
      %v4074 = vpop.permute.xlu0 %4073
      %4076 = vset.pattern.permute.xlu0 7
      %4077 = vperm.xlu0 %4076, %v3054
      %v4078 = vpop.permute.xlu0 %4077
      %4080 = vset.pattern.permute.xlu0 7
      %4081 = vperm.xlu0 %4080, %v3055
      %v4082 = vpop.permute.xlu0 %4081
      %4084 = vset.pattern.permute.xlu0 7
      %4085 = vperm.xlu0 %4084, %v3056
      %v4086 = vpop.permute.xlu0 %4085
      %4088 = vset.pattern.permute.xlu0 7
      %4089 = vperm.xlu0 %4088, %v3057
      %v4090 = vpop.permute.xlu0 %4089
      %4092 = vset.pattern.permute.xlu0 7
      %4093 = vperm.xlu0 %4092, %v3058
      %v4094 = vpop.permute.xlu0 %4093
      %4096 = vset.pattern.permute.xlu0 7
      %4097 = vperm.xlu0 %4096, %v3059
      %v4098 = vpop.permute.xlu0 %4097
      %4100 = vset.pattern.permute.xlu0 7
      %4101 = vperm.xlu0 %4100, %v3060
      %v4102 = vpop.permute.xlu0 %4101
      %4104 = vset.pattern.permute.xlu0 7
      %4105 = vperm.xlu0 %4104, %v3061
      %v4106 = vpop.permute.xlu0 %4105
      %4108 = vset.pattern.permute.xlu0 7
      %4109 = vperm.xlu0 %4108, %v3062
      %v4110 = vpop.permute.xlu0 %4109
      %4112 = vset.pattern.permute.xlu0 7
      %4113 = vperm.xlu0 %4112, %v3063
      %v4114 = vpop.permute.xlu0 %4113
      %4116 = vset.pattern.permute.xlu0 7
      %4117 = vperm.xlu0 %4116, %v3064
      %v4118 = vpop.permute.xlu0 %4117
      %4120 = vset.pattern.permute.xlu0 7
      %4121 = vperm.xlu0 %4120, %v3065
      %v4122 = vpop.permute.xlu0 %4121
      %4124 = vset.pattern.permute.xlu0 7
      %4125 = vperm.xlu0 %4124, %v3066
      %v4126 = vpop.permute.xlu0 %4125
      %4128 = vset.pattern.permute.xlu0 7
      %4129 = vperm.xlu0 %4128, %v3067
      %v4130 = vpop.permute.xlu0 %4129
      %v4132 = vmul.f32 %v4027, %v4050
      %v4133 = vmul.f32 %v4028, %v4054
      %v4134 = vmul.f32 %v4029, %v4058
      %v4135 = vmul.f32 %v4030, %v4062
      %v4136 = vmul.f32 %v4031, %v4066
      %v4137 = vmul.f32 %v4032, %v4070
      %v4138 = vmul.f32 %v4033, %v4074
      %v4139 = vmul.f32 %v4034, %v4078
      %v4140 = vmul.f32 %v4035, %v4082
      %v4141 = vmul.f32 %v4036, %v4086
      %v4142 = vmul.f32 %v4037, %v4090
      %v4143 = vmul.f32 %v4038, %v4094
      %v4144 = vmul.f32 %v4039, %v4098
      %v4145 = vmul.f32 %v4040, %v4102
      %v4146 = vmul.f32 %v4041, %v4106
      %v4147 = vmul.f32 %v4042, %v4110
      %v4148 = vmul.f32 %v4043, %v4114
      %v4149 = vmul.f32 %v4044, %v4118
      %v4150 = vmul.f32 %v4045, %v4122
      %v4151 = vmul.f32 %v4046, %v4126
      %v4152 = vmul.f32 %v4047, %v4130
      %v4153 = vpack.c.bf16 %v4133, %v4132
      %v4154 = vpack.c.bf16 %v4135, %v4134
      %v4155 = vpack.c.bf16 %v4137, %v4136
      %v4156 = vpack.c.bf16 %v4139, %v4138
      %v4157 = vpack.c.bf16 %v4141, %v4140
      %v4158 = vpack.c.bf16 %v4143, %v4142
      %v4159 = vpack.c.bf16 %v4145, %v4144
      %v4160 = vpack.c.bf16 %v4147, %v4146
      %v4161 = vpack.c.bf16 %v4149, %v4148
      %v4162 = vpack.c.bf16 %v4151, %v4150
      %v4163 = vpack.c.bf16 %v4152, %v4152
      %v4164 = vld [vmem:[#allocation2 + $0x10] sm:$0xff]
      %v4165 = vld [vmem:[#allocation2 + $0x18] sm:$0xff]
      %v4166 = vld [vmem:[#allocation2 + $0x20] sm:$0xff]
      %v4167 = vld [vmem:[#allocation2 + $0x28] sm:$0xff]
      %v4168 = vld [vmem:[#allocation2 + $0x30] sm:$0xff]
      %v4169 = vld [vmem:[#allocation2 + $0x38] sm:$0xff]
      %v4170 = vld [vmem:[#allocation2 + $0x40] sm:$0xff]
      %v4171 = vld [vmem:[#allocation2 + $0x48] sm:$0xff]
      %v4172 = vld [vmem:[#allocation2 + $0x50] sm:$0xff]
      %v4173 = vld [vmem:[#allocation2 + $0x58] sm:$0xff]
      %v4174 = vld [vmem:[#allocation2 + $0x60] sm:$0xff]
      %v4175 = vld [vmem:[#allocation2 + $0x68] sm:$0xff]
      %v4176 = vld [vmem:[#allocation2 + $0x70] sm:$0xff]
      %v4177 = vld [vmem:[#allocation2 + $0x78] sm:$0xff]
      %v4178 = vld [vmem:[#allocation2 + $0x80] sm:$0xff]
      %v4179 = vld [vmem:[#allocation2 + $0x88] sm:$0xff]
      %v4180 = vld [vmem:[#allocation2 + $0x90] sm:$0xff]
      %v4181 = vld [vmem:[#allocation2 + $0x98] sm:$0xff]
      %v4182 = vld [vmem:[#allocation2 + $0xa0] sm:$0xff]
      %v4183 = vld [vmem:[#allocation2 + $0xa8] sm:$0xff]
      %v4184 = vld [vmem:[#allocation2 + $0xb0] sm:$0xff]
      %4185 = vset.pattern.permute.xlu0 8
      %4186 = vperm.xlu0 %4185, %v3047
      %v4187 = vpop.permute.xlu0 %4186
      %4189 = vset.pattern.permute.xlu0 8
      %4190 = vperm.xlu0 %4189, %v3048
      %v4191 = vpop.permute.xlu0 %4190
      %4193 = vset.pattern.permute.xlu0 8
      %4194 = vperm.xlu0 %4193, %v3049
      %v4195 = vpop.permute.xlu0 %4194
      %4197 = vset.pattern.permute.xlu0 8
      %4198 = vperm.xlu0 %4197, %v3050
      %v4199 = vpop.permute.xlu0 %4198
      %4201 = vset.pattern.permute.xlu0 8
      %4202 = vperm.xlu0 %4201, %v3051
      %v4203 = vpop.permute.xlu0 %4202
      %4205 = vset.pattern.permute.xlu0 8
      %4206 = vperm.xlu0 %4205, %v3052
      %v4207 = vpop.permute.xlu0 %4206
      %4209 = vset.pattern.permute.xlu0 8
      %4210 = vperm.xlu0 %4209, %v3053
      %v4211 = vpop.permute.xlu0 %4210
      %4213 = vset.pattern.permute.xlu0 8
      %4214 = vperm.xlu0 %4213, %v3054
      %v4215 = vpop.permute.xlu0 %4214
      %4217 = vset.pattern.permute.xlu0 8
      %4218 = vperm.xlu0 %4217, %v3055
      %v4219 = vpop.permute.xlu0 %4218
      %4221 = vset.pattern.permute.xlu0 8
      %4222 = vperm.xlu0 %4221, %v3056
      %v4223 = vpop.permute.xlu0 %4222
      %4225 = vset.pattern.permute.xlu0 8
      %4226 = vperm.xlu0 %4225, %v3057
      %v4227 = vpop.permute.xlu0 %4226
      %4229 = vset.pattern.permute.xlu0 8
      %4230 = vperm.xlu0 %4229, %v3058
      %v4231 = vpop.permute.xlu0 %4230
      %4233 = vset.pattern.permute.xlu0 8
      %4234 = vperm.xlu0 %4233, %v3059
      %v4235 = vpop.permute.xlu0 %4234
      %4237 = vset.pattern.permute.xlu0 8
      %4238 = vperm.xlu0 %4237, %v3060
      %v4239 = vpop.permute.xlu0 %4238
      %4241 = vset.pattern.permute.xlu0 8
      %4242 = vperm.xlu0 %4241, %v3061
      %v4243 = vpop.permute.xlu0 %4242
      %4245 = vset.pattern.permute.xlu0 8
      %4246 = vperm.xlu0 %4245, %v3062
      %v4247 = vpop.permute.xlu0 %4246
      %4249 = vset.pattern.permute.xlu0 8
      %4250 = vperm.xlu0 %4249, %v3063
      %v4251 = vpop.permute.xlu0 %4250
      %4253 = vset.pattern.permute.xlu0 8
      %4254 = vperm.xlu0 %4253, %v3064
      %v4255 = vpop.permute.xlu0 %4254
      %4257 = vset.pattern.permute.xlu0 8
      %4258 = vperm.xlu0 %4257, %v3065
      %v4259 = vpop.permute.xlu0 %4258
      %4261 = vset.pattern.permute.xlu0 8
      %4262 = vperm.xlu0 %4261, %v3066
      %v4263 = vpop.permute.xlu0 %4262
      %4265 = vset.pattern.permute.xlu0 8
      %4266 = vperm.xlu0 %4265, %v3067
      %v4267 = vpop.permute.xlu0 %4266
      %v4269 = vmul.f32 %v4164, %v4187
      %v4270 = vmul.f32 %v4165, %v4191
      %v4271 = vmul.f32 %v4166, %v4195
      %v4272 = vmul.f32 %v4167, %v4199
      %v4273 = vmul.f32 %v4168, %v4203
      %v4274 = vmul.f32 %v4169, %v4207
      %v4275 = vmul.f32 %v4170, %v4211
      %v4276 = vmul.f32 %v4171, %v4215
      %v4277 = vmul.f32 %v4172, %v4219
      %v4278 = vmul.f32 %v4173, %v4223
      %v4279 = vmul.f32 %v4174, %v4227
      %v4280 = vmul.f32 %v4175, %v4231
      %v4281 = vmul.f32 %v4176, %v4235
      %v4282 = vmul.f32 %v4177, %v4239
      %v4283 = vmul.f32 %v4178, %v4243
      %v4284 = vmul.f32 %v4179, %v4247
      %v4285 = vmul.f32 %v4180, %v4251
      %v4286 = vmul.f32 %v4181, %v4255
      %v4287 = vmul.f32 %v4182, %v4259
      %v4288 = vmul.f32 %v4183, %v4263
      %v4289 = vmul.f32 %v4184, %v4267
      %v4290 = vpack.c.bf16 %v4270, %v4269
      %v4291 = vpack.c.bf16 %v4272, %v4271
      %v4292 = vpack.c.bf16 %v4274, %v4273
      %v4293 = vpack.c.bf16 %v4276, %v4275
      %v4294 = vpack.c.bf16 %v4278, %v4277
      %v4295 = vpack.c.bf16 %v4280, %v4279
      %v4296 = vpack.c.bf16 %v4282, %v4281
      %v4297 = vpack.c.bf16 %v4284, %v4283
      %v4298 = vpack.c.bf16 %v4286, %v4285
      %v4299 = vpack.c.bf16 %v4288, %v4287
      %v4300 = vpack.c.bf16 %v4289, %v4289
      %4312 = vrot.lane.b32.xlu0 %v3331, 64
      %v4313 = vpop.permute.xlu0 %4312
      %4314 = vrot.lane.b32.xlu0 %v3332, 64
      %v4315 = vpop.permute.xlu0 %4314
      %4316 = vrot.lane.b32.xlu0 %v3333, 64
      %v4317 = vpop.permute.xlu0 %4316
      %4318 = vrot.lane.b32.xlu0 %v3334, 64
      %v4319 = vpop.permute.xlu0 %4318
      %4320 = vrot.lane.b32.xlu0 %v3335, 64
      %v4321 = vpop.permute.xlu0 %4320
      %4322 = vrot.lane.b32.xlu0 %v3336, 64
      %v4323 = vpop.permute.xlu0 %4322
      %4324 = vrot.lane.b32.xlu0 %v3337, 64
      %v4325 = vpop.permute.xlu0 %4324
      %4326 = vrot.lane.b32.xlu0 %v3338, 64
      %v4327 = vpop.permute.xlu0 %4326
      %4328 = vrot.lane.b32.xlu0 %v3339, 64
      %v4329 = vpop.permute.xlu0 %4328
      %4330 = vrot.lane.b32.xlu0 %v3340, 64
      %v4331 = vpop.permute.xlu0 %4330
      %4332 = vrot.lane.b32.xlu0 %v3341, 64
      %v4333 = vpop.permute.xlu0 %4332
      %4345 = vrot.lane.b32.xlu0 %v3605, 64
      %v4346 = vpop.permute.xlu0 %4345
      %4347 = vrot.lane.b32.xlu0 %v3606, 64
      %v4348 = vpop.permute.xlu0 %4347
      %4349 = vrot.lane.b32.xlu0 %v3607, 64
      %v4350 = vpop.permute.xlu0 %4349
      %4351 = vrot.lane.b32.xlu0 %v3608, 64
      %v4352 = vpop.permute.xlu0 %4351
      %4353 = vrot.lane.b32.xlu0 %v3609, 64
      %v4354 = vpop.permute.xlu0 %4353
      %4355 = vrot.lane.b32.xlu0 %v3610, 64
      %v4356 = vpop.permute.xlu0 %4355
      %4357 = vrot.lane.b32.xlu0 %v3611, 64
      %v4358 = vpop.permute.xlu0 %4357
      %4359 = vrot.lane.b32.xlu0 %v3612, 64
      %v4360 = vpop.permute.xlu0 %4359
      %4361 = vrot.lane.b32.xlu0 %v3613, 64
      %v4362 = vpop.permute.xlu0 %4361
      %4363 = vrot.lane.b32.xlu0 %v3614, 64
      %v4364 = vpop.permute.xlu0 %4363
      %4365 = vrot.lane.b32.xlu0 %v3615, 64
      %v4366 = vpop.permute.xlu0 %4365
      %4378 = vrot.lane.b32.xlu0 %v3879, 64
      %v4379 = vpop.permute.xlu0 %4378
      %4380 = vrot.lane.b32.xlu0 %v3880, 64
      %v4381 = vpop.permute.xlu0 %4380
      %4382 = vrot.lane.b32.xlu0 %v3881, 64
      %v4383 = vpop.permute.xlu0 %4382
      %4384 = vrot.lane.b32.xlu0 %v3882, 64
      %v4385 = vpop.permute.xlu0 %4384
      %4386 = vrot.lane.b32.xlu0 %v3883, 64
      %v4387 = vpop.permute.xlu0 %4386
      %4388 = vrot.lane.b32.xlu0 %v3884, 64
      %v4389 = vpop.permute.xlu0 %4388
      %4390 = vrot.lane.b32.xlu0 %v3885, 64
      %v4391 = vpop.permute.xlu0 %4390
      %4392 = vrot.lane.b32.xlu0 %v3886, 64
      %v4393 = vpop.permute.xlu0 %4392
      %4394 = vrot.lane.b32.xlu0 %v3887, 64
      %v4395 = vpop.permute.xlu0 %4394
      %4396 = vrot.lane.b32.xlu0 %v3888, 64
      %v4397 = vpop.permute.xlu0 %4396
      %4398 = vrot.lane.b32.xlu0 %v3889, 64
      %v4399 = vpop.permute.xlu0 %4398
      %4411 = vrot.lane.b32.xlu0 %v4153, 64
      %v4412 = vpop.permute.xlu0 %4411
      %4413 = vrot.lane.b32.xlu0 %v4154, 64
      %v4414 = vpop.permute.xlu0 %4413
      %4415 = vrot.lane.b32.xlu0 %v4155, 64
      %v4416 = vpop.permute.xlu0 %4415
      %4417 = vrot.lane.b32.xlu0 %v4156, 64
      %v4418 = vpop.permute.xlu0 %4417
      %4419 = vrot.lane.b32.xlu0 %v4157, 64
      %v4420 = vpop.permute.xlu0 %4419
      %4421 = vrot.lane.b32.xlu0 %v4158, 64
      %v4422 = vpop.permute.xlu0 %4421
      %4423 = vrot.lane.b32.xlu0 %v4159, 64
      %v4424 = vpop.permute.xlu0 %4423
      %4425 = vrot.lane.b32.xlu0 %v4160, 64
      %v4426 = vpop.permute.xlu0 %4425
      %4427 = vrot.lane.b32.xlu0 %v4161, 64
      %v4428 = vpop.permute.xlu0 %4427
      %4429 = vrot.lane.b32.xlu0 %v4162, 64
      %v4430 = vpop.permute.xlu0 %4429
      %4431 = vrot.lane.b32.xlu0 %v4163, 64
      %v4432 = vpop.permute.xlu0 %4431
      %v4435 = vsel %vm305, %v3194, %v4313
      %v4439 = vsel %vm305, %v3195, %v4315
      %v4443 = vsel %vm305, %v3196, %v4317
      %v4447 = vsel %vm305, %v3197, %v4319
      %v4451 = vsel %vm305, %v3198, %v4321
      %v4455 = vsel %vm305, %v3199, %v4323
      %v4459 = vsel %vm305, %v3200, %v4325
      %v4463 = vsel %vm305, %v3201, %v4327
      %v4467 = vsel %vm305, %v3202, %v4329
      %v4471 = vsel %vm305, %v3203, %v4331
      %v4475 = vsel %vm305, %v3204, %v4333
      %v4479 = vsel %vm305, %v3468, %v4346
      %v4483 = vsel %vm305, %v3469, %v4348
      %v4487 = vsel %vm305, %v3470, %v4350
      %v4491 = vsel %vm305, %v3471, %v4352
      %v4495 = vsel %vm305, %v3472, %v4354
      %v4499 = vsel %vm305, %v3473, %v4356
      %v4503 = vsel %vm305, %v3474, %v4358
      %v4507 = vsel %vm305, %v3475, %v4360
      %v4511 = vsel %vm305, %v3476, %v4362
      %v4515 = vsel %vm305, %v3477, %v4364
      %v4519 = vsel %vm305, %v3478, %v4366
      %v4523 = vsel %vm305, %v3742, %v4379
      %v4527 = vsel %vm305, %v3743, %v4381
      %v4531 = vsel %vm305, %v3744, %v4383
      %v4535 = vsel %vm305, %v3745, %v4385
      %v4539 = vsel %vm305, %v3746, %v4387
      %v4543 = vsel %vm305, %v3747, %v4389
      %v4547 = vsel %vm305, %v3748, %v4391
      %v4551 = vsel %vm305, %v3749, %v4393
      %v4555 = vsel %vm305, %v3750, %v4395
      %v4559 = vsel %vm305, %v3751, %v4397
      %v4563 = vsel %vm305, %v3752, %v4399
      %v4567 = vsel %vm305, %v4016, %v4412
      %v4571 = vsel %vm305, %v4017, %v4414
      %v4575 = vsel %vm305, %v4018, %v4416
      %v4579 = vsel %vm305, %v4019, %v4418
      %v4583 = vsel %vm305, %v4020, %v4420
      %v4587 = vsel %vm305, %v4021, %v4422
      %v4591 = vsel %vm305, %v4022, %v4424
      %v4595 = vsel %vm305, %v4023, %v4426
      %v4599 = vsel %vm305, %v4024, %v4428
      %v4603 = vsel %vm305, %v4025, %v4430
      %v4607 = vsel %vm305, %v4026, %v4432
      %v4609 = vlaneseq
      %v4610 = vshrl.u32 %v4609, 7
      %v4611 = vsub.s32 0, %v4610
      %v4612 = vrot.slane %v2983, %v4611
      %v4685 = vunpack.c.l.b16 %v2911
      %v4686 = vunpack.c.l.b16 %v2912
      %v4687 = vunpack.c.l.b16 %v2913
      %v4688 = vunpack.c.l.b16 %v2914
      %v4689 = vunpack.c.l.b16 %v2915
      %v4690 = vunpack.c.l.b16 %v2916
      %v4691 = vunpack.c.l.b16 %v2917
      %v4692 = vunpack.c.l.b16 %v2918
      %v4693 = vunpack.c.l.b16 %v2919
      %v4694 = vunpack.c.l.b16 %v2920
      %v4695 = vunpack.c.l.b16 %v2921
      %v4696 = vunpack.c.l.b16 %v2922
      %v4697 = vunpack.c.l.b16 %v2923
      %v4698 = vunpack.c.l.b16 %v2924
      %v4699 = vunpack.c.l.b16 %v2925
      %v4700 = vunpack.c.l.b16 %v2926
      %v4701 = vunpack.c.l.b16 %v2927
      %v4702 = vunpack.c.l.b16 %v2928
      %v4703 = vunpack.c.l.b16 %v2929
      %v4704 = vunpack.c.l.b16 %v2930
      %v4705 = vunpack.c.l.b16 %v2931
      %v4706 = vunpack.c.l.b16 %v2932
      %v4707 = vunpack.c.l.b16 %v2933
      %v4708 = vunpack.c.l.b16 %v2934
      %v4709 = vunpack.c.l.b16 %v2935
      %v4710 = vunpack.c.l.b16 %v2936
      %v4711 = vunpack.c.l.b16 %v2937
      %v4712 = vunpack.c.l.b16 %v2938
      %v4713 = vunpack.c.l.b16 %v2939
      %v4714 = vunpack.c.l.b16 %v2940
      %v4715 = vunpack.c.l.b16 %v2941
      %v4716 = vunpack.c.l.b16 %v2942
      %v4717 = vunpack.c.l.b16 %v2943
      %v4718 = vunpack.c.l.b16 %v2944
      %v4719 = vunpack.c.l.b16 %v2945
      %v4720 = vunpack.c.l.b16 %v2946
      %v4721 = vunpack.c.l.b16 %v2947
      %v4722 = vunpack.c.l.b16 %v2948
      %v4723 = vunpack.c.l.b16 %v2949
      %v4724 = vunpack.c.l.b16 %v2950
      %v4725 = vunpack.c.l.b16 %v2951
      %v4726 = vunpack.c.l.b16 %v2952
      %v4727 = vunpack.c.l.b16 %v2953
      %v4728 = vunpack.c.l.b16 %v2954
      %v4729 = vunpack.c.l.b16 %v2955
      %v4730 = vunpack.c.l.b16 %v2956
      %v4731 = vunpack.c.l.b16 %v2957
      %v4732 = vunpack.c.l.b16 %v2958
      %v4733 = vunpack.c.l.b16 %v2959
      %v4734 = vunpack.c.l.b16 %v2960
      %v4735 = vunpack.c.l.b16 %v2961
      %v4736 = vunpack.c.l.b16 %v2962
      %v4737 = vunpack.c.l.b16 %v2963
      %v4738 = vunpack.c.l.b16 %v2964
      %v4739 = vunpack.c.l.b16 %v2965
      %v4740 = vunpack.c.l.b16 %v2966
      %v4741 = vunpack.c.l.b16 %v2967
      %v4742 = vunpack.c.l.b16 %v2968
      %v4743 = vunpack.c.l.b16 %v2969
      %v4744 = vunpack.c.l.b16 %v2970
      %v4745 = vunpack.c.l.b16 %v2971
      %v4746 = vunpack.c.l.b16 %v2972
      %v4747 = vunpack.c.l.b16 %v2973
      %v4748 = vunpack.c.l.b16 %v2974
      %v4749 = vunpack.c.l.b16 %v2975
      %v4750 = vunpack.c.l.b16 %v2976
      %v4751 = vunpack.c.l.b16 %v2977
      %v4752 = vunpack.c.l.b16 %v2978
      %v4753 = vunpack.c.l.b16 %v2979
      %v4754 = vunpack.c.l.b16 %v2980
      %v4755 = vunpack.c.l.b16 %v2981
      %v4756 = vunpack.c.l.b16 %v2982
      %v4757 = vpack.c.b16 %v4686, %v4685
      %v4758 = vpack.c.b16 %v4688, %v4687
      %v4759 = vpack.c.b16 %v4690, %v4689
      %v4760 = vpack.c.b16 %v4692, %v4691
      %v4761 = vpack.c.b16 %v4694, %v4693
      %v4762 = vpack.c.b16 %v4696, %v4695
      %v4763 = vpack.c.b16 %v4698, %v4697
      %v4764 = vpack.c.b16 %v4700, %v4699
      %v4765 = vpack.c.b16 %v4702, %v4701
      %v4766 = vpack.c.b16 %v4704, %v4703
      %v4767 = vpack.c.b16 %v4706, %v4705
      %v4768 = vpack.c.b16 %v4708, %v4707
      %v4769 = vpack.c.b16 %v4710, %v4709
      %v4770 = vpack.c.b16 %v4712, %v4711
      %v4771 = vpack.c.b16 %v4714, %v4713
      %v4772 = vpack.c.b16 %v4716, %v4715
      %v4773 = vpack.c.b16 %v4718, %v4717
      %v4774 = vpack.c.b16 %v4720, %v4719
      %v4775 = vpack.c.b16 %v4722, %v4721
      %v4776 = vpack.c.b16 %v4724, %v4723
      %v4777 = vpack.c.b16 %v4726, %v4725
      %v4778 = vpack.c.b16 %v4728, %v4727
      %v4779 = vpack.c.b16 %v4730, %v4729
      %v4780 = vpack.c.b16 %v4732, %v4731
      %v4781 = vpack.c.b16 %v4734, %v4733
      %v4782 = vpack.c.b16 %v4736, %v4735
      %v4783 = vpack.c.b16 %v4738, %v4737
      %v4784 = vpack.c.b16 %v4740, %v4739
      %v4785 = vpack.c.b16 %v4742, %v4741
      %v4786 = vpack.c.b16 %v4744, %v4743
      %v4787 = vpack.c.b16 %v4746, %v4745
      %v4788 = vpack.c.b16 %v4748, %v4747
      %v4789 = vpack.c.b16 %v4750, %v4749
      %v4790 = vpack.c.b16 %v4752, %v4751
      %v4791 = vpack.c.b16 %v4754, %v4753
      %v4792 = vpack.c.b16 %v4756, %v4755
      %v4830 = vsel %vm305, %v4290, 0
      %v4833 = vsel %vm305, %v4291, 0
      %v4836 = vsel %vm305, %v4292, 0
      %v4839 = vsel %vm305, %v4293, 0
      %v4842 = vsel %vm305, %v4294, 0
      %v4845 = vsel %vm305, %v4295, 0
      %v4848 = vsel %vm305, %v4296, 0
      %v4851 = vsel %vm305, %v4297, 0
      %v4854 = vsel %vm305, %v4298, 0
      %v4857 = vsel %vm305, %v4299, 0
      %v4860 = vsel %vm305, %v4300, 0
      %4862 = vmatprep.subr.bf16.mxu0 0
      %4863 = vmatpush1.bf16.msra.mxu0 %v4764
      %4864 = vmatprep.subr.bf16.mxu0 0
      %4865 = vmatpush1.bf16.msra.mxu0 %v4763
      %4866 = vmatprep.subr.bf16.mxu0 0
      %4867 = vmatpush1.bf16.msra.mxu0 %v4762
      %4868 = vmatprep.subr.bf16.mxu0 0
      %4869 = vmatpush1.bf16.msra.mxu0 %v4761
      %4870 = vmatprep.subr.bf16.mxu0 0
      %4871 = vmatpush1.bf16.msra.mxu0 %v4760
      %4872 = vmatprep.subr.bf16.mxu0 0
      %4873 = vmatpush1.bf16.msra.mxu0 %v4759
      %4874 = vmatprep.subr.bf16.mxu0 0
      %4875 = vmatpush1.bf16.msra.mxu0 %v4758
      %4876 = vmatprep.subr.bf16.mxu0 0
      %4877 = vmatpush1.bf16.msra.mxu0 %v4757
      %4878 = vmatprep.subr.bf16.mxu0 0
      %4879 = vmatpush2.bf16.msra.mxu0 %v4772
      %4880 = vmatprep.subr.bf16.mxu0 0
      %4881 = vmatpush2.bf16.msra.mxu0 %v4771
      %4882 = vmatprep.subr.bf16.mxu0 0
      %4883 = vmatpush2.bf16.msra.mxu0 %v4770
      %4884 = vmatprep.subr.bf16.mxu0 0
      %4885 = vmatpush2.bf16.msra.mxu0 %v4769
      %4886 = vmatprep.subr.bf16.mxu0 0
      %4887 = vmatpush2.bf16.msra.mxu0 %v4768
      %4888 = vmatprep.subr.bf16.mxu0 0
      %4889 = vmatpush2.bf16.msra.mxu0 %v4767
      %4890 = vmatprep.subr.bf16.mxu0 0
      %4891 = vmatpush2.bf16.msra.mxu0 %v4766
      %4892 = vmatprep.subr.bf16.mxu0 0
      %4893 = vmatpush2.bf16.msra.mxu0 %v4765
      %4894 = vmatprep.mubr.bf16.mxu0 %v4479
      %4895 = vmatmul.mubr.bf16.gmra.mxu0 %v4435
      %v4896 = vpop.f32.mrf.mxu0
      %v4897 = vadd.f32 %v4612, %v4896
      %v4898 = vpop.f32.mrf.mxu0
      %v4899 = vpop.f32.mrf.mxu0
      %v4900 = vadd.f32 %v4612, %v4899
      %v4901 = vpop.f32.mrf.mxu0
      %4902 = vmatprep.mubr.bf16.mxu0 %v4483
      %4903 = vmatmul.mubr.bf16.gmra.mxu0 %v4439
      %v4904 = vpop.f32.mrf.mxu0
      %v4905 = vadd.f32 %v4612, %v4904
      %v4906 = vpop.f32.mrf.mxu0
      %v4907 = vpop.f32.mrf.mxu0
      %v4908 = vadd.f32 %v4612, %v4907
      %v4909 = vpop.f32.mrf.mxu0
      %4910 = vmatprep.mubr.bf16.mxu0 %v4487
      %4911 = vmatmul.mubr.bf16.gmra.mxu0 %v4443
      %v4912 = vpop.f32.mrf.mxu0
      %v4913 = vadd.f32 %v4612, %v4912
      %v4914 = vpop.f32.mrf.mxu0
      %v4915 = vpop.f32.mrf.mxu0
      %v4916 = vadd.f32 %v4612, %v4915
      %v4917 = vpop.f32.mrf.mxu0
      %4918 = vmatprep.mubr.bf16.mxu0 %v4491
      %4919 = vmatmul.mubr.bf16.gmra.mxu0 %v4447
      %v4920 = vpop.f32.mrf.mxu0
      %v4921 = vadd.f32 %v4612, %v4920
      %v4922 = vpop.f32.mrf.mxu0
      %v4923 = vpop.f32.mrf.mxu0
      %v4924 = vadd.f32 %v4612, %v4923
      %v4925 = vpop.f32.mrf.mxu0
      %4926 = vmatprep.mubr.bf16.mxu0 %v4495
      %4927 = vmatmul.mubr.bf16.gmra.mxu0 %v4451
      %v4928 = vpop.f32.mrf.mxu0
      %v4929 = vadd.f32 %v4612, %v4928
      %v4930 = vpop.f32.mrf.mxu0
      %v4931 = vpop.f32.mrf.mxu0
      %v4932 = vadd.f32 %v4612, %v4931
      %v4933 = vpop.f32.mrf.mxu0
      %4934 = vmatprep.mubr.bf16.mxu0 %v4499
      %4935 = vmatmul.mubr.bf16.gmra.mxu0 %v4455
      %v4936 = vpop.f32.mrf.mxu0
      %v4937 = vadd.f32 %v4612, %v4936
      %v4938 = vpop.f32.mrf.mxu0
      %v4939 = vpop.f32.mrf.mxu0
      %v4940 = vadd.f32 %v4612, %v4939
      %v4941 = vpop.f32.mrf.mxu0
      %4942 = vmatprep.mubr.bf16.mxu0 %v4503
      %4943 = vmatmul.mubr.bf16.gmra.mxu0 %v4459
      %v4944 = vpop.f32.mrf.mxu0
      %v4945 = vadd.f32 %v4612, %v4944
      %v4946 = vpop.f32.mrf.mxu0
      %v4947 = vpop.f32.mrf.mxu0
      %v4948 = vadd.f32 %v4612, %v4947
      %v4949 = vpop.f32.mrf.mxu0
      %4950 = vmatprep.mubr.bf16.mxu0 %v4507
      %4951 = vmatmul.mubr.bf16.gmra.mxu0 %v4463
      %v4952 = vpop.f32.mrf.mxu0
      %v4953 = vadd.f32 %v4612, %v4952
      %v4954 = vpop.f32.mrf.mxu0
      %v4955 = vpop.f32.mrf.mxu0
      %v4956 = vadd.f32 %v4612, %v4955
      %v4957 = vpop.f32.mrf.mxu0
      %4958 = vmatprep.mubr.bf16.mxu0 %v4511
      %4959 = vmatmul.mubr.bf16.gmra.mxu0 %v4467
      %v4960 = vpop.f32.mrf.mxu0
      %v4961 = vadd.f32 %v4612, %v4960
      %v4962 = vpop.f32.mrf.mxu0
      %v4963 = vpop.f32.mrf.mxu0
      %v4964 = vadd.f32 %v4612, %v4963
      %v4965 = vpop.f32.mrf.mxu0
      %4966 = vmatprep.mubr.bf16.mxu0 %v4515
      %4967 = vmatmul.mubr.bf16.gmra.mxu0 %v4471
      %v4968 = vpop.f32.mrf.mxu0
      %v4969 = vadd.f32 %v4612, %v4968
      %v4970 = vpop.f32.mrf.mxu0
      %v4971 = vpop.f32.mrf.mxu0
      %v4972 = vadd.f32 %v4612, %v4971
      %v4973 = vpop.f32.mrf.mxu0
      %4974 = vmatprep.mubr.bf16.mxu0 %v4519
      %4975 = vmatmul.mubr.bf16.gmra.mxu0 %v4475
      %v4976 = vpop.f32.mrf.mxu0
      %v4977 = vadd.f32 %v4612, %v4976
      %v4978 = vpop.f32.mrf.mxu0
      %v4979 = vpop.f32.mrf.mxu0
      %v4980 = vpop.f32.mrf.mxu0
      %4981 = vdwg.mxu0
      %4982 = vmatprep.subr.bf16.mxu0 0
      %4983 = vmatpush1.bf16.msra.mxu0 %v4780
      %4984 = vmatprep.subr.bf16.mxu0 0
      %4985 = vmatpush1.bf16.msra.mxu0 %v4779
      %4986 = vmatprep.subr.bf16.mxu0 0
      %4987 = vmatpush1.bf16.msra.mxu0 %v4778
      %4988 = vmatprep.subr.bf16.mxu0 0
      %4989 = vmatpush1.bf16.msra.mxu0 %v4777
      %4990 = vmatprep.subr.bf16.mxu0 0
      %4991 = vmatpush1.bf16.msra.mxu0 %v4776
      %4992 = vmatprep.subr.bf16.mxu0 0
      %4993 = vmatpush1.bf16.msra.mxu0 %v4775
      %4994 = vmatprep.subr.bf16.mxu0 0
      %4995 = vmatpush1.bf16.msra.mxu0 %v4774
      %4996 = vmatprep.subr.bf16.mxu0 0
      %4997 = vmatpush1.bf16.msra.mxu0 %v4773
      %4998 = vmatprep.subr.bf16.mxu0 0
      %4999 = vmatpush2.bf16.msra.mxu0 %v4788
      %5000 = vmatprep.subr.bf16.mxu0 0
      %5001 = vmatpush2.bf16.msra.mxu0 %v4787
      %5002 = vmatprep.subr.bf16.mxu0 0
      %5003 = vmatpush2.bf16.msra.mxu0 %v4786
      %5004 = vmatprep.subr.bf16.mxu0 0
      %5005 = vmatpush2.bf16.msra.mxu0 %v4785
      %5006 = vmatprep.subr.bf16.mxu0 0
      %5007 = vmatpush2.bf16.msra.mxu0 %v4784
      %5008 = vmatprep.subr.bf16.mxu0 0
      %5009 = vmatpush2.bf16.msra.mxu0 %v4783
      %5010 = vmatprep.subr.bf16.mxu0 0
      %5011 = vmatpush2.bf16.msra.mxu0 %v4782
      %5012 = vmatprep.subr.bf16.mxu0 0
      %5013 = vmatpush2.bf16.msra.mxu0 %v4781
      %5014 = vmatprep.mubr.bf16.mxu0 %v4567
      %5015 = vmatmul.mubr.bf16.gmra.mxu0 %v4523
      %v5016 = vpop.f32.mrf.mxu0
      %v5017 = vadd.f32 %v4897, %v5016
      %v5018 = vpop.f32.mrf.mxu0
      %v5019 = vpop.f32.mrf.mxu0
      %v5020 = vadd.f32 %v4900, %v5019
      %v5021 = vpop.f32.mrf.mxu0
      %5022 = vmatprep.mubr.bf16.mxu0 %v4571
      %5023 = vmatmul.mubr.bf16.gmra.mxu0 %v4527
      %v5024 = vpop.f32.mrf.mxu0
      %v5025 = vadd.f32 %v4905, %v5024
      %v5026 = vpop.f32.mrf.mxu0
      %v5027 = vpop.f32.mrf.mxu0
      %v5028 = vadd.f32 %v4908, %v5027
      %v5029 = vpop.f32.mrf.mxu0
      %5030 = vmatprep.mubr.bf16.mxu0 %v4575
      %5031 = vmatmul.mubr.bf16.gmra.mxu0 %v4531
      %v5032 = vpop.f32.mrf.mxu0
      %v5033 = vadd.f32 %v4913, %v5032
      %v5034 = vpop.f32.mrf.mxu0
      %v5035 = vpop.f32.mrf.mxu0
      %v5036 = vadd.f32 %v4916, %v5035
      %v5037 = vpop.f32.mrf.mxu0
      %5038 = vmatprep.mubr.bf16.mxu0 %v4579
      %5039 = vmatmul.mubr.bf16.gmra.mxu0 %v4535
      %v5040 = vpop.f32.mrf.mxu0
      %v5041 = vadd.f32 %v4921, %v5040
      %v5042 = vpop.f32.mrf.mxu0
      %v5043 = vpop.f32.mrf.mxu0
      %v5044 = vadd.f32 %v4924, %v5043
      %v5045 = vpop.f32.mrf.mxu0
      %5046 = vmatprep.mubr.bf16.mxu0 %v4583
      %5047 = vmatmul.mubr.bf16.gmra.mxu0 %v4539
      %v5048 = vpop.f32.mrf.mxu0
      %v5049 = vadd.f32 %v4929, %v5048
      %v5050 = vpop.f32.mrf.mxu0
      %v5051 = vpop.f32.mrf.mxu0
      %v5052 = vadd.f32 %v4932, %v5051
      %v5053 = vpop.f32.mrf.mxu0
      %5054 = vmatprep.mubr.bf16.mxu0 %v4587
      %5055 = vmatmul.mubr.bf16.gmra.mxu0 %v4543
      %v5056 = vpop.f32.mrf.mxu0
      %v5057 = vadd.f32 %v4937, %v5056
      %v5058 = vpop.f32.mrf.mxu0
      %v5059 = vpop.f32.mrf.mxu0
      %v5060 = vadd.f32 %v4940, %v5059
      %v5061 = vpop.f32.mrf.mxu0
      %5062 = vmatprep.mubr.bf16.mxu0 %v4591
      %5063 = vmatmul.mubr.bf16.gmra.mxu0 %v4547
      %v5064 = vpop.f32.mrf.mxu0
      %v5065 = vadd.f32 %v4945, %v5064
      %v5066 = vpop.f32.mrf.mxu0
      %v5067 = vpop.f32.mrf.mxu0
      %v5068 = vadd.f32 %v4948, %v5067
      %v5069 = vpop.f32.mrf.mxu0
      %5070 = vmatprep.mubr.bf16.mxu0 %v4595
      %5071 = vmatmul.mubr.bf16.gmra.mxu0 %v4551
      %v5072 = vpop.f32.mrf.mxu0
      %v5073 = vadd.f32 %v4953, %v5072
      %v5074 = vpop.f32.mrf.mxu0
      %v5075 = vpop.f32.mrf.mxu0
      %v5076 = vadd.f32 %v4956, %v5075
      %v5077 = vpop.f32.mrf.mxu0
      %5078 = vmatprep.mubr.bf16.mxu0 %v4599
      %5079 = vmatmul.mubr.bf16.gmra.mxu0 %v4555
      %v5080 = vpop.f32.mrf.mxu0
      %v5081 = vadd.f32 %v4961, %v5080
      %v5082 = vpop.f32.mrf.mxu0
      %v5083 = vpop.f32.mrf.mxu0
      %v5084 = vadd.f32 %v4964, %v5083
      %v5085 = vpop.f32.mrf.mxu0
      %5086 = vmatprep.mubr.bf16.mxu0 %v4603
      %5087 = vmatmul.mubr.bf16.gmra.mxu0 %v4559
      %v5088 = vpop.f32.mrf.mxu0
      %v5089 = vadd.f32 %v4969, %v5088
      %v5090 = vpop.f32.mrf.mxu0
      %v5091 = vpop.f32.mrf.mxu0
      %v5092 = vadd.f32 %v4972, %v5091
      %v5093 = vpop.f32.mrf.mxu0
      %5094 = vmatprep.mubr.bf16.mxu0 %v4607
      %5095 = vmatmul.mubr.bf16.gmra.mxu0 %v4563
      %v5096 = vpop.f32.mrf.mxu0
      %v5097 = vadd.f32 %v4977, %v5096
      %v5098 = vpop.f32.mrf.mxu0
      %v5099 = vpop.f32.mrf.mxu0
      %v5100 = vpop.f32.mrf.mxu0
      %5101 = vdwg.mxu0
      %5102 = vmatprep.subr.bf16.mxu0 0
      %5103 = vmatpush1.bf16.msra.mxu0 0
      %5104 = vmatprep.subr.bf16.mxu0 0
      %5105 = vmatpush1.bf16.msra.mxu0 0
      %5106 = vmatprep.subr.bf16.mxu0 0
      %5107 = vmatpush1.bf16.msra.mxu0 0
      %5108 = vmatprep.subr.bf16.mxu0 0
      %5109 = vmatpush1.bf16.msra.mxu0 0
      %5110 = vmatprep.subr.bf16.mxu0 0
      %5111 = vmatpush1.bf16.msra.mxu0 %v4792
      %5112 = vmatprep.subr.bf16.mxu0 0
      %5113 = vmatpush1.bf16.msra.mxu0 %v4791
      %5114 = vmatprep.subr.bf16.mxu0 0
      %5115 = vmatpush1.bf16.msra.mxu0 %v4790
      %5116 = vmatprep.subr.bf16.mxu0 0
      %5117 = vmatpush1.bf16.msra.mxu0 %v4789
      %5118 = vmatprep.subr.bf16.mxu0 0
      %5119 = vmatpush2.bf16.msra.mxu0 0
      %5120 = vmatprep.subr.bf16.mxu0 0
      %5121 = vmatpush2.bf16.msra.mxu0 0
      %5122 = vmatprep.subr.bf16.mxu0 0
      %5123 = vmatpush2.bf16.msra.mxu0 0
      %5124 = vmatprep.subr.bf16.mxu0 0
      %5125 = vmatpush2.bf16.msra.mxu0 0
      %5126 = vmatprep.subr.bf16.mxu0 0
      %5127 = vmatpush2.bf16.msra.mxu0 0
      %5128 = vmatprep.subr.bf16.mxu0 0
      %5129 = vmatpush2.bf16.msra.mxu0 0
      %5130 = vmatprep.subr.bf16.mxu0 0
      %5131 = vmatpush2.bf16.msra.mxu0 0
      %5132 = vmatprep.subr.bf16.mxu0 0
      %5133 = vmatpush2.bf16.msra.mxu0 0
      %5134 = vmatprep.mubr.bf16.mxu0 0
      %5135 = vmatmul.mubr.bf16.gmra.mxu0 %v4830
      %v5136 = vpop.f32.mrf.mxu0
      %v5137 = vadd.f32 %v5017, %v5136
      %v5138 = vpop.f32.mrf.mxu0
      %v5139 = vpop.f32.mrf.mxu0
      %v5140 = vadd.f32 %v5020, %v5139
      %v5141 = vpop.f32.mrf.mxu0
      %5142 = vmatprep.mubr.bf16.mxu0 0
      %5143 = vmatmul.mubr.bf16.gmra.mxu0 %v4833
      %v5144 = vpop.f32.mrf.mxu0
      %v5145 = vadd.f32 %v5025, %v5144
      %v5146 = vpop.f32.mrf.mxu0
      %v5147 = vpop.f32.mrf.mxu0
      %v5148 = vadd.f32 %v5028, %v5147
      %v5149 = vpop.f32.mrf.mxu0
      %5150 = vmatprep.mubr.bf16.mxu0 0
      %5151 = vmatmul.mubr.bf16.gmra.mxu0 %v4836
      %v5152 = vpop.f32.mrf.mxu0
      %v5153 = vadd.f32 %v5033, %v5152
      %v5154 = vpop.f32.mrf.mxu0
      %v5155 = vpop.f32.mrf.mxu0
      %v5156 = vadd.f32 %v5036, %v5155
      %v5157 = vpop.f32.mrf.mxu0
      %5158 = vmatprep.mubr.bf16.mxu0 0
      %5159 = vmatmul.mubr.bf16.gmra.mxu0 %v4839
      %v5160 = vpop.f32.mrf.mxu0
      %v5161 = vadd.f32 %v5041, %v5160
      %v5162 = vpop.f32.mrf.mxu0
      %v5163 = vpop.f32.mrf.mxu0
      %v5164 = vadd.f32 %v5044, %v5163
      %v5165 = vpop.f32.mrf.mxu0
      %5166 = vmatprep.mubr.bf16.mxu0 0
      %5167 = vmatmul.mubr.bf16.gmra.mxu0 %v4842
      %v5168 = vpop.f32.mrf.mxu0
      %v5169 = vadd.f32 %v5049, %v5168
      %v5170 = vpop.f32.mrf.mxu0
      %v5171 = vpop.f32.mrf.mxu0
      %v5172 = vadd.f32 %v5052, %v5171
      %v5173 = vpop.f32.mrf.mxu0
      %5174 = vmatprep.mubr.bf16.mxu0 0
      %5175 = vmatmul.mubr.bf16.gmra.mxu0 %v4845
      %v5176 = vpop.f32.mrf.mxu0
      %v5177 = vadd.f32 %v5057, %v5176
      %v5178 = vpop.f32.mrf.mxu0
      %v5179 = vpop.f32.mrf.mxu0
      %v5180 = vadd.f32 %v5060, %v5179
      %v5181 = vpop.f32.mrf.mxu0
      %5182 = vmatprep.mubr.bf16.mxu0 0
      %5183 = vmatmul.mubr.bf16.gmra.mxu0 %v4848
      %v5184 = vpop.f32.mrf.mxu0
      %v5185 = vadd.f32 %v5065, %v5184
      %v5186 = vpop.f32.mrf.mxu0
      %v5187 = vpop.f32.mrf.mxu0
      %v5188 = vadd.f32 %v5068, %v5187
      %v5189 = vpop.f32.mrf.mxu0
      %5190 = vmatprep.mubr.bf16.mxu0 0
      %5191 = vmatmul.mubr.bf16.gmra.mxu0 %v4851
      %v5192 = vpop.f32.mrf.mxu0
      %v5193 = vadd.f32 %v5073, %v5192
      %v5194 = vpop.f32.mrf.mxu0
      %v5195 = vpop.f32.mrf.mxu0
      %v5196 = vadd.f32 %v5076, %v5195
      %v5197 = vpop.f32.mrf.mxu0
      %5198 = vmatprep.mubr.bf16.mxu0 0
      %5199 = vmatmul.mubr.bf16.gmra.mxu0 %v4854
      %v5200 = vpop.f32.mrf.mxu0
      %v5201 = vadd.f32 %v5081, %v5200
      %v5202 = vpop.f32.mrf.mxu0
      %v5203 = vpop.f32.mrf.mxu0
      %v5204 = vadd.f32 %v5084, %v5203
      %v5205 = vpop.f32.mrf.mxu0
      %5206 = vmatprep.mubr.bf16.mxu0 0
      %5207 = vmatmul.mubr.bf16.gmra.mxu0 %v4857
      %v5208 = vpop.f32.mrf.mxu0
      %v5209 = vadd.f32 %v5089, %v5208
      %v5210 = vpop.f32.mrf.mxu0
      %v5211 = vpop.f32.mrf.mxu0
      %v5212 = vadd.f32 %v5092, %v5211
      %v5213 = vpop.f32.mrf.mxu0
      %5214 = vmatprep.mubr.bf16.mxu0 0
      %5215 = vmatmul.mubr.bf16.gmra.mxu0 %v4860
      %v5216 = vpop.f32.mrf.mxu0
      %v5217 = vadd.f32 %v5097, %v5216
      %v5218 = vpop.f32.mrf.mxu0
      %v5219 = vpop.f32.mrf.mxu0
      %v5220 = vpop.f32.mrf.mxu0
      %5221 = vdwg.mxu0
      %v5222 = vadd.f32 %v5137, %v557
      %v5223 = vadd.f32 %v5140, %v558
      %v5224 = vadd.f32 %v5145, %v559
      %v5225 = vadd.f32 %v5148, %v560
      %v5226 = vadd.f32 %v5153, %v561
      %v5227 = vadd.f32 %v5156, %v562
      %v5228 = vadd.f32 %v5161, %v563
      %v5229 = vadd.f32 %v5164, %v564
      %v5230 = vadd.f32 %v5169, %v565
      %v5231 = vadd.f32 %v5172, %v566
      %v5232 = vadd.f32 %v5177, %v567
      %v5233 = vadd.f32 %v5180, %v568
      %v5234 = vadd.f32 %v5185, %v569
      %v5235 = vadd.f32 %v5188, %v570
      %v5236 = vadd.f32 %v5193, %v571
      %v5237 = vadd.f32 %v5196, %v572
      %v5238 = vadd.f32 %v5201, %v573
      %v5239 = vadd.f32 %v5204, %v574
      %v5240 = vadd.f32 %v5209, %v575
      %v5241 = vadd.f32 %v5212, %v576
      %v5242 = vadd.f32 %v5217, %v577
      %v5243 = vmax.f32 %v5222, 0.0
      %v5244 = vmax.f32 %v5223, 0.0
      %v5245 = vmax.f32 %v5224, 0.0
      %v5246 = vmax.f32 %v5225, 0.0
      %v5247 = vmax.f32 %v5226, 0.0
      %v5248 = vmax.f32 %v5227, 0.0
      %v5249 = vmax.f32 %v5228, 0.0
      %v5250 = vmax.f32 %v5229, 0.0
      %v5251 = vmax.f32 %v5230, 0.0
      %v5252 = vmax.f32 %v5231, 0.0
      %v5253 = vmax.f32 %v5232, 0.0
      %v5254 = vmax.f32 %v5233, 0.0
      %v5255 = vmax.f32 %v5234, 0.0
      %v5256 = vmax.f32 %v5235, 0.0
      %v5257 = vmax.f32 %v5236, 0.0
      %v5258 = vmax.f32 %v5237, 0.0
      %v5259 = vmax.f32 %v5238, 0.0
      %v5260 = vmax.f32 %v5239, 0.0
      %v5261 = vmax.f32 %v5240, 0.0
      %v5262 = vmax.f32 %v5241, 0.0
      %v5263 = vmax.f32 %v5242, 0.0
      %s5264 = scalar_lea.vmem %s4, 576
      %v5265 = vld [vmem:[%s5264] sm:$0xf]
      %v5266 = vld [vmem:[%s5264 + $0x4] sm:$0xf]
      %v5267 = vld [vmem:[%s5264 + $0x8] sm:$0xf]
      %v5268 = vld [vmem:[%s5264 + $0xc] sm:$0xf]
      %v5269 = vld [vmem:[%s5264 + $0x10] sm:$0xf]
      %v5270 = vld [vmem:[%s5264 + $0x14] sm:$0xf]
      %v5271 = vld [vmem:[%s5264 + $0x18] sm:$0xf]
      %v5272 = vld [vmem:[%s5264 + $0x1c] sm:$0xf]
      %v5273 = vld [vmem:[%s5264 + $0x20] sm:$0xf]
      %v5274 = vld [vmem:[%s5264 + $0x24] sm:$0xf]
      %v5275 = vld [vmem:[%s5264 + $0x28] sm:$0xf]
      %v5276 = vld [vmem:[%s5264 + $0x2c] sm:$0xf]
      %v5277 = vld [vmem:[%s5264 + $0x30] sm:$0xf]
      %v5278 = vld [vmem:[%s5264 + $0x34] sm:$0xf]
      %v5279 = vld [vmem:[%s5264 + $0x38] sm:$0xf]
      %v5280 = vld [vmem:[%s5264 + $0x3c] sm:$0xf]
      %v5281 = vld [vmem:[%s5264 + $0x40] sm:$0xf]
      %v5282 = vld [vmem:[%s5264 + $0x44] sm:$0xf]
      %v5283 = vld [vmem:[%s5264 + $0x48] sm:$0xf]
      %v5284 = vld [vmem:[%s5264 + $0x4c] sm:$0xf]
      %v5285 = vld [vmem:[%s5264 + $0x50] sm:$0xf]
      %v5286 = vld [vmem:[%s5264 + $0x54] sm:$0xf]
      %v5287 = vld [vmem:[%s5264 + $0x58] sm:$0xf]
      %v5288 = vld [vmem:[%s5264 + $0x5c] sm:$0xf]
      %v5289 = vld [vmem:[%s5264 + $0x60] sm:$0xf]
      %v5290 = vld [vmem:[%s5264 + $0x64] sm:$0xf]
      %v5291 = vld [vmem:[%s5264 + $0x68] sm:$0xf]
      %v5292 = vld [vmem:[%s5264 + $0x6c] sm:$0xf]
      %v5293 = vld [vmem:[%s5264 + $0x70] sm:$0xf]
      %v5294 = vld [vmem:[%s5264 + $0x74] sm:$0xf]
      %v5295 = vld [vmem:[%s5264 + $0x78] sm:$0xf]
      %v5296 = vld [vmem:[%s5264 + $0x7c] sm:$0xf]
      %v5297 = vld [vmem:[%s5264 + $0x80] sm:$0xf]
      %v5298 = vld [vmem:[%s5264 + $0x84] sm:$0xf]
      %v5299 = vld [vmem:[%s5264 + $0x88] sm:$0xf]
      %v5300 = vld [vmem:[%s5264 + $0x8c] sm:$0xf]
      %v5301 = vld [vmem:[%s5264 + $0x90] sm:$0xf]
      %v5302 = vld [vmem:[%s5264 + $0x94] sm:$0xf]
      %v5303 = vld [vmem:[%s5264 + $0x98] sm:$0xf]
      %v5304 = vld [vmem:[%s5264 + $0x9c] sm:$0xf]
      %v5305 = vld [vmem:[%s5264 + $0xa0] sm:$0xf]
      %v5306 = vld [vmem:[%s5264 + $0xa4] sm:$0xf]
      %v5307 = vld [vmem:[%s5264 + $0xa8] sm:$0xf]
      %v5308 = vld [vmem:[%s5264 + $0xac] sm:$0xf]
      %v5309 = vld [vmem:[%s5264 + $0xb0] sm:$0xf]
      %v5310 = vld [vmem:[%s5264 + $0xb4] sm:$0xf]
      %v5311 = vld [vmem:[%s5264 + $0xb8] sm:$0xf]
      %v5312 = vld [vmem:[%s5264 + $0xbc] sm:$0xf]
      %v5313 = vld [vmem:[%s5264 + $0xc0] sm:$0xf]
      %v5314 = vld [vmem:[%s5264 + $0xc4] sm:$0xf]
      %v5315 = vld [vmem:[%s5264 + $0xc8] sm:$0xf]
      %v5316 = vld [vmem:[%s5264 + $0xcc] sm:$0xf]
      %v5317 = vld [vmem:[%s5264 + $0xd0] sm:$0xf]
      %v5318 = vld [vmem:[%s5264 + $0xd4] sm:$0xf]
      %v5319 = vld [vmem:[%s5264 + $0xd8] sm:$0xf]
      %v5320 = vld [vmem:[%s5264 + $0xdc] sm:$0xf]
      %v5321 = vld [vmem:[%s5264 + $0xe0] sm:$0xf]
      %v5322 = vld [vmem:[%s5264 + $0xe4] sm:$0xf]
      %v5323 = vld [vmem:[%s5264 + $0xe8] sm:$0xf]
      %v5324 = vld [vmem:[%s5264 + $0xec] sm:$0xf]
      %v5325 = vld [vmem:[%s5264 + $0xf0] sm:$0xf]
      %v5326 = vld [vmem:[%s5264 + $0xf4] sm:$0xf]
      %v5327 = vld [vmem:[%s5264 + $0xf8] sm:$0xf]
      %v5328 = vld [vmem:[%s5264 + $0xfc] sm:$0xf]
      %v5329 = vld [vmem:[%s5264 + $0x100] sm:$0xf]
      %v5330 = vld [vmem:[%s5264 + $0x104] sm:$0xf]
      %v5331 = vld [vmem:[%s5264 + $0x108] sm:$0xf]
      %v5332 = vld [vmem:[%s5264 + $0x10c] sm:$0xf]
      %v5333 = vld [vmem:[%s5264 + $0x110] sm:$0xf]
      %v5334 = vld [vmem:[%s5264 + $0x114] sm:$0xf]
      %v5335 = vld [vmem:[%s5264 + $0x118] sm:$0xf]
      %v5336 = vld [vmem:[%s5264 + $0x11c] sm:$0xf]
      %v5337 = vld [vmem:[%s6 + $0x3] sm:$0x1]
      %5338 = vst.msk [vmem:[#allocation2 + $0x8] sm:$0xff] %vm305, %v5243
      %5339 = vst.msk [vmem:[#allocation2 + $0x10] sm:$0xff] %vm305, %v5244
      %5340 = vst.msk [vmem:[#allocation2 + $0x18] sm:$0xff] %vm305, %v5245
      %5341 = vst.msk [vmem:[#allocation2 + $0x20] sm:$0xff] %vm305, %v5246
      %5342 = vst.msk [vmem:[#allocation2 + $0x28] sm:$0xff] %vm305, %v5247
      %5343 = vst.msk [vmem:[#allocation2 + $0x30] sm:$0xff] %vm305, %v5248
      %5344 = vst.msk [vmem:[#allocation2 + $0x38] sm:$0xff] %vm305, %v5249
      %5345 = vst.msk [vmem:[#allocation2 + $0x40] sm:$0xff] %vm305, %v5250
      %5346 = vst.msk [vmem:[#allocation2 + $0x48] sm:$0xff] %vm305, %v5251
      %5347 = vst.msk [vmem:[#allocation2 + $0x50] sm:$0xff] %vm305, %v5252
      %5348 = vst.msk [vmem:[#allocation2 + $0x58] sm:$0xff] %vm305, %v5253
      %5349 = vst.msk [vmem:[#allocation2 + $0x60] sm:$0xff] %vm305, %v5254
      %5350 = vst.msk [vmem:[#allocation2 + $0x68] sm:$0xff] %vm305, %v5255
      %5351 = vst.msk [vmem:[#allocation2 + $0x70] sm:$0xff] %vm305, %v5256
      %5352 = vst.msk [vmem:[#allocation2 + $0x78] sm:$0xff] %vm305, %v5257
      %5353 = vst.msk [vmem:[#allocation2 + $0x80] sm:$0xff] %vm305, %v5258
      %5354 = vst.msk [vmem:[#allocation2 + $0x88] sm:$0xff] %vm305, %v5259
      %5355 = vst.msk [vmem:[#allocation2 + $0x90] sm:$0xff] %vm305, %v5260
      %5356 = vst.msk [vmem:[#allocation2 + $0x98] sm:$0xff] %vm305, %v5261
      %5357 = vst.msk [vmem:[#allocation2 + $0xa0] sm:$0xff] %vm305, %v5262
      %5358 = vst.msk [vmem:[#allocation2 + $0xa8] sm:$0xff] %vm305, %v5263
      %v5359 = vld [vmem:[#allocation2] sm:$0xff]
      %v5360 = vld [vmem:[#allocation2 + $0x8] sm:$0xff]
      %v5361 = vld [vmem:[#allocation2 + $0x10] sm:$0xff]
      %v5362 = vld [vmem:[#allocation2 + $0x18] sm:$0xff]
      %v5363 = vld [vmem:[#allocation2 + $0x20] sm:$0xff]
      %v5364 = vld [vmem:[#allocation2 + $0x28] sm:$0xff]
      %v5365 = vld [vmem:[#allocation2 + $0x30] sm:$0xff]
      %v5366 = vld [vmem:[#allocation2 + $0x38] sm:$0xff]
      %v5367 = vld [vmem:[#allocation2 + $0x40] sm:$0xff]
      %v5368 = vld [vmem:[#allocation2 + $0x48] sm:$0xff]
      %v5369 = vld [vmem:[#allocation2 + $0x50] sm:$0xff]
      %v5370 = vld [vmem:[#allocation2 + $0x58] sm:$0xff]
      %v5371 = vld [vmem:[#allocation2 + $0x60] sm:$0xff]
      %v5372 = vld [vmem:[#allocation2 + $0x68] sm:$0xff]
      %v5373 = vld [vmem:[#allocation2 + $0x70] sm:$0xff]
      %v5374 = vld [vmem:[#allocation2 + $0x78] sm:$0xff]
      %v5375 = vld [vmem:[#allocation2 + $0x80] sm:$0xff]
      %v5376 = vld [vmem:[#allocation2 + $0x88] sm:$0xff]
      %v5377 = vld [vmem:[#allocation2 + $0x90] sm:$0xff]
      %v5378 = vld [vmem:[#allocation2 + $0x98] sm:$0xff]
      %v5379 = vld [vmem:[#allocation2 + $0xa0] sm:$0xff]
      %v5380 = vld [vmem:[%s1] sm:$0xf]
      %v5381 = vld [vmem:[%s1 + $0x4] sm:$0xf]
      %v5382 = vld [vmem:[%s1 + $0x8] sm:$0xf]
      %v5383 = vld [vmem:[%s1 + $0xc] sm:$0xf]
      %v5384 = vld [vmem:[%s1 + $0x10] sm:$0xf]
      %v5385 = vld [vmem:[%s1 + $0x14] sm:$0xf]
      %v5386 = vld [vmem:[%s1 + $0x18] sm:$0xf]
      %v5387 = vld [vmem:[%s1 + $0x1c] sm:$0xf]
      %v5388 = vld [vmem:[%s1 + $0x20] sm:$0xf]
      %v5389 = vld [vmem:[%s1 + $0x24] sm:$0xf]
      %v5390 = vld [vmem:[%s1 + $0x28] sm:$0xf]
      %v5391 = vld [vmem:[%s1 + $0x2c] sm:$0xf]
      %v5392 = vld [vmem:[%s1 + $0x30] sm:$0xf]
      %v5393 = vld [vmem:[%s1 + $0x34] sm:$0xf]
      %v5394 = vld [vmem:[%s1 + $0x38] sm:$0xf]
      %v5395 = vld [vmem:[%s1 + $0x3c] sm:$0xf]
      %v5396 = vld [vmem:[%s1 + $0x40] sm:$0xf]
      %v5397 = vld [vmem:[%s1 + $0x44] sm:$0xf]
      %v5398 = vld [vmem:[%s1 + $0x48] sm:$0xf]
      %v5399 = vld [vmem:[%s1 + $0x4c] sm:$0xf]
      %v5400 = vld [vmem:[%s1 + $0x50] sm:$0xf]
      %v5401 = vunpack.c.l.bf16 %v5380
      %v5402 = vunpack.c.l.bf16 %v5381
      %v5403 = vunpack.c.l.bf16 %v5382
      %v5404 = vunpack.c.l.bf16 %v5383
      %v5405 = vunpack.c.l.bf16 %v5384
      %v5406 = vunpack.c.l.bf16 %v5385
      %v5407 = vunpack.c.l.bf16 %v5386
      %v5408 = vunpack.c.l.bf16 %v5387
      %v5409 = vunpack.c.l.bf16 %v5388
      %v5410 = vunpack.c.l.bf16 %v5389
      %v5411 = vunpack.c.l.bf16 %v5390
      %v5412 = vunpack.c.l.bf16 %v5391
      %v5413 = vunpack.c.l.bf16 %v5392
      %v5414 = vunpack.c.l.bf16 %v5393
      %v5415 = vunpack.c.l.bf16 %v5394
      %v5416 = vunpack.c.l.bf16 %v5395
      %v5417 = vunpack.c.l.bf16 %v5396
      %v5418 = vunpack.c.l.bf16 %v5397
      %v5419 = vunpack.c.l.bf16 %v5398
      %v5420 = vunpack.c.l.bf16 %v5399
      %v5421 = vunpack.c.l.bf16 %v5400
      %5423 = vset.pattern.permute.xlu0 0
      %5424 = vperm.xlu0 %5423, %v5401
      %v5425 = vpop.permute.xlu0 %5424
      %5428 = vset.pattern.permute.xlu0 0
      %5429 = vperm.xlu0 %5428, %v5402
      %v5430 = vpop.permute.xlu0 %5429
      %5433 = vset.pattern.permute.xlu0 0
      %5434 = vperm.xlu0 %5433, %v5403
      %v5435 = vpop.permute.xlu0 %5434
      %5438 = vset.pattern.permute.xlu0 0
      %5439 = vperm.xlu0 %5438, %v5404
      %v5440 = vpop.permute.xlu0 %5439
      %5443 = vset.pattern.permute.xlu0 0
      %5444 = vperm.xlu0 %5443, %v5405
      %v5445 = vpop.permute.xlu0 %5444
      %5448 = vset.pattern.permute.xlu0 0
      %5449 = vperm.xlu0 %5448, %v5406
      %v5450 = vpop.permute.xlu0 %5449
      %5453 = vset.pattern.permute.xlu0 0
      %5454 = vperm.xlu0 %5453, %v5407
      %v5455 = vpop.permute.xlu0 %5454
      %5458 = vset.pattern.permute.xlu0 0
      %5459 = vperm.xlu0 %5458, %v5408
      %v5460 = vpop.permute.xlu0 %5459
      %5463 = vset.pattern.permute.xlu0 0
      %5464 = vperm.xlu0 %5463, %v5409
      %v5465 = vpop.permute.xlu0 %5464
      %5468 = vset.pattern.permute.xlu0 0
      %5469 = vperm.xlu0 %5468, %v5410
      %v5470 = vpop.permute.xlu0 %5469
      %5473 = vset.pattern.permute.xlu0 0
      %5474 = vperm.xlu0 %5473, %v5411
      %v5475 = vpop.permute.xlu0 %5474
      %5478 = vset.pattern.permute.xlu0 0
      %5479 = vperm.xlu0 %5478, %v5412
      %v5480 = vpop.permute.xlu0 %5479
      %5483 = vset.pattern.permute.xlu0 0
      %5484 = vperm.xlu0 %5483, %v5413
      %v5485 = vpop.permute.xlu0 %5484
      %5488 = vset.pattern.permute.xlu0 0
      %5489 = vperm.xlu0 %5488, %v5414
      %v5490 = vpop.permute.xlu0 %5489
      %5493 = vset.pattern.permute.xlu0 0
      %5494 = vperm.xlu0 %5493, %v5415
      %v5495 = vpop.permute.xlu0 %5494
      %5498 = vset.pattern.permute.xlu0 0
      %5499 = vperm.xlu0 %5498, %v5416
      %v5500 = vpop.permute.xlu0 %5499
      %5503 = vset.pattern.permute.xlu0 0
      %5504 = vperm.xlu0 %5503, %v5417
      %v5505 = vpop.permute.xlu0 %5504
      %5508 = vset.pattern.permute.xlu0 0
      %5509 = vperm.xlu0 %5508, %v5418
      %v5510 = vpop.permute.xlu0 %5509
      %5513 = vset.pattern.permute.xlu0 0
      %5514 = vperm.xlu0 %5513, %v5419
      %v5515 = vpop.permute.xlu0 %5514
      %5518 = vset.pattern.permute.xlu0 0
      %5519 = vperm.xlu0 %5518, %v5420
      %v5520 = vpop.permute.xlu0 %5519
      %5523 = vset.pattern.permute.xlu0 0
      %5524 = vperm.xlu0 %5523, %v5421
      %v5525 = vpop.permute.xlu0 %5524
      %v5527 = vmul.f32 %v5359, %v5425
      %v5528 = vmul.f32 %v5360, %v5430
      %v5529 = vmul.f32 %v5361, %v5435
      %v5530 = vmul.f32 %v5362, %v5440
      %v5531 = vmul.f32 %v5363, %v5445
      %v5532 = vmul.f32 %v5364, %v5450
      %v5533 = vmul.f32 %v5365, %v5455
      %v5534 = vmul.f32 %v5366, %v5460
      %v5535 = vmul.f32 %v5367, %v5465
      %v5536 = vmul.f32 %v5368, %v5470
      %v5537 = vmul.f32 %v5369, %v5475
      %v5538 = vmul.f32 %v5370, %v5480
      %v5539 = vmul.f32 %v5371, %v5485
      %v5540 = vmul.f32 %v5372, %v5490
      %v5541 = vmul.f32 %v5373, %v5495
      %v5542 = vmul.f32 %v5374, %v5500
      %v5543 = vmul.f32 %v5375, %v5505
      %v5544 = vmul.f32 %v5376, %v5510
      %v5545 = vmul.f32 %v5377, %v5515
      %v5546 = vmul.f32 %v5378, %v5520
      %v5547 = vmul.f32 %v5379, %v5525
      %v5548 = vpack.c.bf16 %v5528, %v5527
      %v5549 = vpack.c.bf16 %v5530, %v5529
      %v5550 = vpack.c.bf16 %v5532, %v5531
      %v5551 = vpack.c.bf16 %v5534, %v5533
      %v5552 = vpack.c.bf16 %v5536, %v5535
      %v5553 = vpack.c.bf16 %v5538, %v5537
      %v5554 = vpack.c.bf16 %v5540, %v5539
      %v5555 = vpack.c.bf16 %v5542, %v5541
      %v5556 = vpack.c.bf16 %v5544, %v5543
      %v5557 = vpack.c.bf16 %v5546, %v5545
      %v5558 = vpack.c.bf16 %v5547, %v5547
      %v5559 = vld [vmem:[#allocation2 + $0x1] sm:$0xff]
      %v5560 = vld [vmem:[#allocation2 + $0x9] sm:$0xff]
      %v5561 = vld [vmem:[#allocation2 + $0x11] sm:$0xff]
      %v5562 = vld [vmem:[#allocation2 + $0x19] sm:$0xff]
      %v5563 = vld [vmem:[#allocation2 + $0x21] sm:$0xff]
      %v5564 = vld [vmem:[#allocation2 + $0x29] sm:$0xff]
      %v5565 = vld [vmem:[#allocation2 + $0x31] sm:$0xff]
      %v5566 = vld [vmem:[#allocation2 + $0x39] sm:$0xff]
      %v5567 = vld [vmem:[#allocation2 + $0x41] sm:$0xff]
      %v5568 = vld [vmem:[#allocation2 + $0x49] sm:$0xff]
      %v5569 = vld [vmem:[#allocation2 + $0x51] sm:$0xff]
      %v5570 = vld [vmem:[#allocation2 + $0x59] sm:$0xff]
      %v5571 = vld [vmem:[#allocation2 + $0x61] sm:$0xff]
      %v5572 = vld [vmem:[#allocation2 + $0x69] sm:$0xff]
      %v5573 = vld [vmem:[#allocation2 + $0x71] sm:$0xff]
      %v5574 = vld [vmem:[#allocation2 + $0x79] sm:$0xff]
      %v5575 = vld [vmem:[#allocation2 + $0x81] sm:$0xff]
      %v5576 = vld [vmem:[#allocation2 + $0x89] sm:$0xff]
      %v5577 = vld [vmem:[#allocation2 + $0x91] sm:$0xff]
      %v5578 = vld [vmem:[#allocation2 + $0x99] sm:$0xff]
      %v5579 = vld [vmem:[#allocation2 + $0xa1] sm:$0xff]
      %5580 = vset.pattern.permute.xlu0 1
      %5581 = vperm.xlu0 %5580, %v5401
      %v5582 = vpop.permute.xlu0 %5581
      %5584 = vset.pattern.permute.xlu0 1
      %5585 = vperm.xlu0 %5584, %v5402
      %v5586 = vpop.permute.xlu0 %5585
      %5588 = vset.pattern.permute.xlu0 1
      %5589 = vperm.xlu0 %5588, %v5403
      %v5590 = vpop.permute.xlu0 %5589
      %5592 = vset.pattern.permute.xlu0 1
      %5593 = vperm.xlu0 %5592, %v5404
      %v5594 = vpop.permute.xlu0 %5593
      %5596 = vset.pattern.permute.xlu0 1
      %5597 = vperm.xlu0 %5596, %v5405
      %v5598 = vpop.permute.xlu0 %5597
      %5600 = vset.pattern.permute.xlu0 1
      %5601 = vperm.xlu0 %5600, %v5406
      %v5602 = vpop.permute.xlu0 %5601
      %5604 = vset.pattern.permute.xlu0 1
      %5605 = vperm.xlu0 %5604, %v5407
      %v5606 = vpop.permute.xlu0 %5605
      %5608 = vset.pattern.permute.xlu0 1
      %5609 = vperm.xlu0 %5608, %v5408
      %v5610 = vpop.permute.xlu0 %5609
      %5612 = vset.pattern.permute.xlu0 1
      %5613 = vperm.xlu0 %5612, %v5409
      %v5614 = vpop.permute.xlu0 %5613
      %5616 = vset.pattern.permute.xlu0 1
      %5617 = vperm.xlu0 %5616, %v5410
      %v5618 = vpop.permute.xlu0 %5617
      %5620 = vset.pattern.permute.xlu0 1
      %5621 = vperm.xlu0 %5620, %v5411
      %v5622 = vpop.permute.xlu0 %5621
      %5624 = vset.pattern.permute.xlu0 1
      %5625 = vperm.xlu0 %5624, %v5412
      %v5626 = vpop.permute.xlu0 %5625
      %5628 = vset.pattern.permute.xlu0 1
      %5629 = vperm.xlu0 %5628, %v5413
      %v5630 = vpop.permute.xlu0 %5629
      %5632 = vset.pattern.permute.xlu0 1
      %5633 = vperm.xlu0 %5632, %v5414
      %v5634 = vpop.permute.xlu0 %5633
      %5636 = vset.pattern.permute.xlu0 1
      %5637 = vperm.xlu0 %5636, %v5415
      %v5638 = vpop.permute.xlu0 %5637
      %5640 = vset.pattern.permute.xlu0 1
      %5641 = vperm.xlu0 %5640, %v5416
      %v5642 = vpop.permute.xlu0 %5641
      %5644 = vset.pattern.permute.xlu0 1
      %5645 = vperm.xlu0 %5644, %v5417
      %v5646 = vpop.permute.xlu0 %5645
      %5648 = vset.pattern.permute.xlu0 1
      %5649 = vperm.xlu0 %5648, %v5418
      %v5650 = vpop.permute.xlu0 %5649
      %5652 = vset.pattern.permute.xlu0 1
      %5653 = vperm.xlu0 %5652, %v5419
      %v5654 = vpop.permute.xlu0 %5653
      %5656 = vset.pattern.permute.xlu0 1
      %5657 = vperm.xlu0 %5656, %v5420
      %v5658 = vpop.permute.xlu0 %5657
      %5660 = vset.pattern.permute.xlu0 1
      %5661 = vperm.xlu0 %5660, %v5421
      %v5662 = vpop.permute.xlu0 %5661
      %v5664 = vmul.f32 %v5559, %v5582
      %v5665 = vmul.f32 %v5560, %v5586
      %v5666 = vmul.f32 %v5561, %v5590
      %v5667 = vmul.f32 %v5562, %v5594
      %v5668 = vmul.f32 %v5563, %v5598
      %v5669 = vmul.f32 %v5564, %v5602
      %v5670 = vmul.f32 %v5565, %v5606
      %v5671 = vmul.f32 %v5566, %v5610
      %v5672 = vmul.f32 %v5567, %v5614
      %v5673 = vmul.f32 %v5568, %v5618
      %v5674 = vmul.f32 %v5569, %v5622
      %v5675 = vmul.f32 %v5570, %v5626
      %v5676 = vmul.f32 %v5571, %v5630
      %v5677 = vmul.f32 %v5572, %v5634
      %v5678 = vmul.f32 %v5573, %v5638
      %v5679 = vmul.f32 %v5574, %v5642
      %v5680 = vmul.f32 %v5575, %v5646
      %v5681 = vmul.f32 %v5576, %v5650
      %v5682 = vmul.f32 %v5577, %v5654
      %v5683 = vmul.f32 %v5578, %v5658
      %v5684 = vmul.f32 %v5579, %v5662
      %v5685 = vpack.c.bf16 %v5665, %v5664
      %v5686 = vpack.c.bf16 %v5667, %v5666
      %v5687 = vpack.c.bf16 %v5669, %v5668
      %v5688 = vpack.c.bf16 %v5671, %v5670
      %v5689 = vpack.c.bf16 %v5673, %v5672
      %v5690 = vpack.c.bf16 %v5675, %v5674
      %v5691 = vpack.c.bf16 %v5677, %v5676
      %v5692 = vpack.c.bf16 %v5679, %v5678
      %v5693 = vpack.c.bf16 %v5681, %v5680
      %v5694 = vpack.c.bf16 %v5683, %v5682
      %v5695 = vpack.c.bf16 %v5684, %v5684
      %v5696 = vld [vmem:[#allocation2 + $0x2] sm:$0xff]
      %v5697 = vld [vmem:[#allocation2 + $0xa] sm:$0xff]
      %v5698 = vld [vmem:[#allocation2 + $0x12] sm:$0xff]
      %v5699 = vld [vmem:[#allocation2 + $0x1a] sm:$0xff]
      %v5700 = vld [vmem:[#allocation2 + $0x22] sm:$0xff]
      %v5701 = vld [vmem:[#allocation2 + $0x2a] sm:$0xff]
      %v5702 = vld [vmem:[#allocation2 + $0x32] sm:$0xff]
      %v5703 = vld [vmem:[#allocation2 + $0x3a] sm:$0xff]
      %v5704 = vld [vmem:[#allocation2 + $0x42] sm:$0xff]
      %v5705 = vld [vmem:[#allocation2 + $0x4a] sm:$0xff]
      %v5706 = vld [vmem:[#allocation2 + $0x52] sm:$0xff]
      %v5707 = vld [vmem:[#allocation2 + $0x5a] sm:$0xff]
      %v5708 = vld [vmem:[#allocation2 + $0x62] sm:$0xff]
      %v5709 = vld [vmem:[#allocation2 + $0x6a] sm:$0xff]
      %v5710 = vld [vmem:[#allocation2 + $0x72] sm:$0xff]
      %v5711 = vld [vmem:[#allocation2 + $0x7a] sm:$0xff]
      %v5712 = vld [vmem:[#allocation2 + $0x82] sm:$0xff]
      %v5713 = vld [vmem:[#allocation2 + $0x8a] sm:$0xff]
      %v5714 = vld [vmem:[#allocation2 + $0x92] sm:$0xff]
      %v5715 = vld [vmem:[#allocation2 + $0x9a] sm:$0xff]
      %v5716 = vld [vmem:[#allocation2 + $0xa2] sm:$0xff]
      %5717 = vset.pattern.permute.xlu0 2
      %5718 = vperm.xlu0 %5717, %v5401
      %v5719 = vpop.permute.xlu0 %5718
      %5721 = vset.pattern.permute.xlu0 2
      %5722 = vperm.xlu0 %5721, %v5402
      %v5723 = vpop.permute.xlu0 %5722
      %5725 = vset.pattern.permute.xlu0 2
      %5726 = vperm.xlu0 %5725, %v5403
      %v5727 = vpop.permute.xlu0 %5726
      %5729 = vset.pattern.permute.xlu0 2
      %5730 = vperm.xlu0 %5729, %v5404
      %v5731 = vpop.permute.xlu0 %5730
      %5733 = vset.pattern.permute.xlu0 2
      %5734 = vperm.xlu0 %5733, %v5405
      %v5735 = vpop.permute.xlu0 %5734
      %5737 = vset.pattern.permute.xlu0 2
      %5738 = vperm.xlu0 %5737, %v5406
      %v5739 = vpop.permute.xlu0 %5738
      %5741 = vset.pattern.permute.xlu0 2
      %5742 = vperm.xlu0 %5741, %v5407
      %v5743 = vpop.permute.xlu0 %5742
      %5745 = vset.pattern.permute.xlu0 2
      %5746 = vperm.xlu0 %5745, %v5408
      %v5747 = vpop.permute.xlu0 %5746
      %5749 = vset.pattern.permute.xlu0 2
      %5750 = vperm.xlu0 %5749, %v5409
      %v5751 = vpop.permute.xlu0 %5750
      %5753 = vset.pattern.permute.xlu0 2
      %5754 = vperm.xlu0 %5753, %v5410
      %v5755 = vpop.permute.xlu0 %5754
      %5757 = vset.pattern.permute.xlu0 2
      %5758 = vperm.xlu0 %5757, %v5411
      %v5759 = vpop.permute.xlu0 %5758
      %5761 = vset.pattern.permute.xlu0 2
      %5762 = vperm.xlu0 %5761, %v5412
      %v5763 = vpop.permute.xlu0 %5762
      %5765 = vset.pattern.permute.xlu0 2
      %5766 = vperm.xlu0 %5765, %v5413
      %v5767 = vpop.permute.xlu0 %5766
      %5769 = vset.pattern.permute.xlu0 2
      %5770 = vperm.xlu0 %5769, %v5414
      %v5771 = vpop.permute.xlu0 %5770
      %5773 = vset.pattern.permute.xlu0 2
      %5774 = vperm.xlu0 %5773, %v5415
      %v5775 = vpop.permute.xlu0 %5774
      %5777 = vset.pattern.permute.xlu0 2
      %5778 = vperm.xlu0 %5777, %v5416
      %v5779 = vpop.permute.xlu0 %5778
      %5781 = vset.pattern.permute.xlu0 2
      %5782 = vperm.xlu0 %5781, %v5417
      %v5783 = vpop.permute.xlu0 %5782
      %5785 = vset.pattern.permute.xlu0 2
      %5786 = vperm.xlu0 %5785, %v5418
      %v5787 = vpop.permute.xlu0 %5786
      %5789 = vset.pattern.permute.xlu0 2
      %5790 = vperm.xlu0 %5789, %v5419
      %v5791 = vpop.permute.xlu0 %5790
      %5793 = vset.pattern.permute.xlu0 2
      %5794 = vperm.xlu0 %5793, %v5420
      %v5795 = vpop.permute.xlu0 %5794
      %5797 = vset.pattern.permute.xlu0 2
      %5798 = vperm.xlu0 %5797, %v5421
      %v5799 = vpop.permute.xlu0 %5798
      %v5801 = vmul.f32 %v5696, %v5719
      %v5802 = vmul.f32 %v5697, %v5723
      %v5803 = vmul.f32 %v5698, %v5727
      %v5804 = vmul.f32 %v5699, %v5731
      %v5805 = vmul.f32 %v5700, %v5735
      %v5806 = vmul.f32 %v5701, %v5739
      %v5807 = vmul.f32 %v5702, %v5743
      %v5808 = vmul.f32 %v5703, %v5747
      %v5809 = vmul.f32 %v5704, %v5751
      %v5810 = vmul.f32 %v5705, %v5755
      %v5811 = vmul.f32 %v5706, %v5759
      %v5812 = vmul.f32 %v5707, %v5763
      %v5813 = vmul.f32 %v5708, %v5767
      %v5814 = vmul.f32 %v5709, %v5771
      %v5815 = vmul.f32 %v5710, %v5775
      %v5816 = vmul.f32 %v5711, %v5779
      %v5817 = vmul.f32 %v5712, %v5783
      %v5818 = vmul.f32 %v5713, %v5787
      %v5819 = vmul.f32 %v5714, %v5791
      %v5820 = vmul.f32 %v5715, %v5795
      %v5821 = vmul.f32 %v5716, %v5799
      %v5822 = vpack.c.bf16 %v5802, %v5801
      %v5823 = vpack.c.bf16 %v5804, %v5803
      %v5824 = vpack.c.bf16 %v5806, %v5805
      %v5825 = vpack.c.bf16 %v5808, %v5807
      %v5826 = vpack.c.bf16 %v5810, %v5809
      %v5827 = vpack.c.bf16 %v5812, %v5811
      %v5828 = vpack.c.bf16 %v5814, %v5813
      %v5829 = vpack.c.bf16 %v5816, %v5815
      %v5830 = vpack.c.bf16 %v5818, %v5817
      %v5831 = vpack.c.bf16 %v5820, %v5819
      %v5832 = vpack.c.bf16 %v5821, %v5821
      %v5833 = vld [vmem:[#allocation2 + $0x7] sm:$0xff]
      %v5834 = vld [vmem:[#allocation2 + $0xf] sm:$0xff]
      %v5835 = vld [vmem:[#allocation2 + $0x17] sm:$0xff]
      %v5836 = vld [vmem:[#allocation2 + $0x1f] sm:$0xff]
      %v5837 = vld [vmem:[#allocation2 + $0x27] sm:$0xff]
      %v5838 = vld [vmem:[#allocation2 + $0x2f] sm:$0xff]
      %v5839 = vld [vmem:[#allocation2 + $0x37] sm:$0xff]
      %v5840 = vld [vmem:[#allocation2 + $0x3f] sm:$0xff]
      %v5841 = vld [vmem:[#allocation2 + $0x47] sm:$0xff]
      %v5842 = vld [vmem:[#allocation2 + $0x4f] sm:$0xff]
      %v5843 = vld [vmem:[#allocation2 + $0x57] sm:$0xff]
      %v5844 = vld [vmem:[#allocation2 + $0x5f] sm:$0xff]
      %v5845 = vld [vmem:[#allocation2 + $0x67] sm:$0xff]
      %v5846 = vld [vmem:[#allocation2 + $0x6f] sm:$0xff]
      %v5847 = vld [vmem:[#allocation2 + $0x77] sm:$0xff]
      %v5848 = vld [vmem:[#allocation2 + $0x7f] sm:$0xff]
      %v5849 = vld [vmem:[#allocation2 + $0x87] sm:$0xff]
      %v5850 = vld [vmem:[#allocation2 + $0x8f] sm:$0xff]
      %v5851 = vld [vmem:[#allocation2 + $0x97] sm:$0xff]
      %v5852 = vld [vmem:[#allocation2 + $0x9f] sm:$0xff]
      %v5853 = vld [vmem:[#allocation2 + $0xa7] sm:$0xff]
      %5854 = vset.pattern.permute.xlu0 3
      %5855 = vperm.xlu0 %5854, %v5401
      %v5856 = vpop.permute.xlu0 %5855
      %5858 = vset.pattern.permute.xlu0 3
      %5859 = vperm.xlu0 %5858, %v5402
      %v5860 = vpop.permute.xlu0 %5859
      %5862 = vset.pattern.permute.xlu0 3
      %5863 = vperm.xlu0 %5862, %v5403
      %v5864 = vpop.permute.xlu0 %5863
      %5866 = vset.pattern.permute.xlu0 3
      %5867 = vperm.xlu0 %5866, %v5404
      %v5868 = vpop.permute.xlu0 %5867
      %5870 = vset.pattern.permute.xlu0 3
      %5871 = vperm.xlu0 %5870, %v5405
      %v5872 = vpop.permute.xlu0 %5871
      %5874 = vset.pattern.permute.xlu0 3
      %5875 = vperm.xlu0 %5874, %v5406
      %v5876 = vpop.permute.xlu0 %5875
      %5878 = vset.pattern.permute.xlu0 3
      %5879 = vperm.xlu0 %5878, %v5407
      %v5880 = vpop.permute.xlu0 %5879
      %5882 = vset.pattern.permute.xlu0 3
      %5883 = vperm.xlu0 %5882, %v5408
      %v5884 = vpop.permute.xlu0 %5883
      %5886 = vset.pattern.permute.xlu0 3
      %5887 = vperm.xlu0 %5886, %v5409
      %v5888 = vpop.permute.xlu0 %5887
      %5890 = vset.pattern.permute.xlu0 3
      %5891 = vperm.xlu0 %5890, %v5410
      %v5892 = vpop.permute.xlu0 %5891
      %5894 = vset.pattern.permute.xlu0 3
      %5895 = vperm.xlu0 %5894, %v5411
      %v5896 = vpop.permute.xlu0 %5895
      %5898 = vset.pattern.permute.xlu0 3
      %5899 = vperm.xlu0 %5898, %v5412
      %v5900 = vpop.permute.xlu0 %5899
      %5902 = vset.pattern.permute.xlu0 3
      %5903 = vperm.xlu0 %5902, %v5413
      %v5904 = vpop.permute.xlu0 %5903
      %5906 = vset.pattern.permute.xlu0 3
      %5907 = vperm.xlu0 %5906, %v5414
      %v5908 = vpop.permute.xlu0 %5907
      %5910 = vset.pattern.permute.xlu0 3
      %5911 = vperm.xlu0 %5910, %v5415
      %v5912 = vpop.permute.xlu0 %5911
      %5914 = vset.pattern.permute.xlu0 3
      %5915 = vperm.xlu0 %5914, %v5416
      %v5916 = vpop.permute.xlu0 %5915
      %5918 = vset.pattern.permute.xlu0 3
      %5919 = vperm.xlu0 %5918, %v5417
      %v5920 = vpop.permute.xlu0 %5919
      %5922 = vset.pattern.permute.xlu0 3
      %5923 = vperm.xlu0 %5922, %v5418
      %v5924 = vpop.permute.xlu0 %5923
      %5926 = vset.pattern.permute.xlu0 3
      %5927 = vperm.xlu0 %5926, %v5419
      %v5928 = vpop.permute.xlu0 %5927
      %5930 = vset.pattern.permute.xlu0 3
      %5931 = vperm.xlu0 %5930, %v5420
      %v5932 = vpop.permute.xlu0 %5931
      %5934 = vset.pattern.permute.xlu0 3
      %5935 = vperm.xlu0 %5934, %v5421
      %v5936 = vpop.permute.xlu0 %5935
      %v5938 = vmul.f32 %v5833, %v5856
      %v5939 = vmul.f32 %v5834, %v5860
      %v5940 = vmul.f32 %v5835, %v5864
      %v5941 = vmul.f32 %v5836, %v5868
      %v5942 = vmul.f32 %v5837, %v5872
      %v5943 = vmul.f32 %v5838, %v5876
      %v5944 = vmul.f32 %v5839, %v5880
      %v5945 = vmul.f32 %v5840, %v5884
      %v5946 = vmul.f32 %v5841, %v5888
      %v5947 = vmul.f32 %v5842, %v5892
      %v5948 = vmul.f32 %v5843, %v5896
      %v5949 = vmul.f32 %v5844, %v5900
      %v5950 = vmul.f32 %v5845, %v5904
      %v5951 = vmul.f32 %v5846, %v5908
      %v5952 = vmul.f32 %v5847, %v5912
      %v5953 = vmul.f32 %v5848, %v5916
      %v5954 = vmul.f32 %v5849, %v5920
      %v5955 = vmul.f32 %v5850, %v5924
      %v5956 = vmul.f32 %v5851, %v5928
      %v5957 = vmul.f32 %v5852, %v5932
      %v5958 = vmul.f32 %v5853, %v5936
      %v5959 = vpack.c.bf16 %v5939, %v5938
      %v5960 = vpack.c.bf16 %v5941, %v5940
      %v5961 = vpack.c.bf16 %v5943, %v5942
      %v5962 = vpack.c.bf16 %v5945, %v5944
      %v5963 = vpack.c.bf16 %v5947, %v5946
      %v5964 = vpack.c.bf16 %v5949, %v5948
      %v5965 = vpack.c.bf16 %v5951, %v5950
      %v5966 = vpack.c.bf16 %v5953, %v5952
      %v5967 = vpack.c.bf16 %v5955, %v5954
      %v5968 = vpack.c.bf16 %v5957, %v5956
      %v5969 = vpack.c.bf16 %v5958, %v5958
      %v5970 = vld [vmem:[#allocation2 + $0x8] sm:$0xff]
      %v5971 = vld [vmem:[#allocation2 + $0x10] sm:$0xff]
      %v5972 = vld [vmem:[#allocation2 + $0x18] sm:$0xff]
      %v5973 = vld [vmem:[#allocation2 + $0x20] sm:$0xff]
      %v5974 = vld [vmem:[#allocation2 + $0x28] sm:$0xff]
      %v5975 = vld [vmem:[#allocation2 + $0x30] sm:$0xff]
      %v5976 = vld [vmem:[#allocation2 + $0x38] sm:$0xff]
      %v5977 = vld [vmem:[#allocation2 + $0x40] sm:$0xff]
      %v5978 = vld [vmem:[#allocation2 + $0x48] sm:$0xff]
      %v5979 = vld [vmem:[#allocation2 + $0x50] sm:$0xff]
      %v5980 = vld [vmem:[#allocation2 + $0x58] sm:$0xff]
      %v5981 = vld [vmem:[#allocation2 + $0x60] sm:$0xff]
      %v5982 = vld [vmem:[#allocation2 + $0x68] sm:$0xff]
      %v5983 = vld [vmem:[#allocation2 + $0x70] sm:$0xff]
      %v5984 = vld [vmem:[#allocation2 + $0x78] sm:$0xff]
      %v5985 = vld [vmem:[#allocation2 + $0x80] sm:$0xff]
      %v5986 = vld [vmem:[#allocation2 + $0x88] sm:$0xff]
      %v5987 = vld [vmem:[#allocation2 + $0x90] sm:$0xff]
      %v5988 = vld [vmem:[#allocation2 + $0x98] sm:$0xff]
      %v5989 = vld [vmem:[#allocation2 + $0xa0] sm:$0xff]
      %v5990 = vld [vmem:[#allocation2 + $0xa8] sm:$0xff]
      %5991 = vset.pattern.permute.xlu0 4
      %5992 = vperm.xlu0 %5991, %v5401
      %v5993 = vpop.permute.xlu0 %5992
      %5995 = vset.pattern.permute.xlu0 4
      %5996 = vperm.xlu0 %5995, %v5402
      %v5997 = vpop.permute.xlu0 %5996
      %5999 = vset.pattern.permute.xlu0 4
      %6000 = vperm.xlu0 %5999, %v5403
      %v6001 = vpop.permute.xlu0 %6000
      %6003 = vset.pattern.permute.xlu0 4
      %6004 = vperm.xlu0 %6003, %v5404
      %v6005 = vpop.permute.xlu0 %6004
      %6007 = vset.pattern.permute.xlu0 4
      %6008 = vperm.xlu0 %6007, %v5405
      %v6009 = vpop.permute.xlu0 %6008
      %6011 = vset.pattern.permute.xlu0 4
      %6012 = vperm.xlu0 %6011, %v5406
      %v6013 = vpop.permute.xlu0 %6012
      %6015 = vset.pattern.permute.xlu0 4
      %6016 = vperm.xlu0 %6015, %v5407
      %v6017 = vpop.permute.xlu0 %6016
      %6019 = vset.pattern.permute.xlu0 4
      %6020 = vperm.xlu0 %6019, %v5408
      %v6021 = vpop.permute.xlu0 %6020
      %6023 = vset.pattern.permute.xlu0 4
      %6024 = vperm.xlu0 %6023, %v5409
      %v6025 = vpop.permute.xlu0 %6024
      %6027 = vset.pattern.permute.xlu0 4
      %6028 = vperm.xlu0 %6027, %v5410
      %v6029 = vpop.permute.xlu0 %6028
      %6031 = vset.pattern.permute.xlu0 4
      %6032 = vperm.xlu0 %6031, %v5411
      %v6033 = vpop.permute.xlu0 %6032
      %6035 = vset.pattern.permute.xlu0 4
      %6036 = vperm.xlu0 %6035, %v5412
      %v6037 = vpop.permute.xlu0 %6036
      %6039 = vset.pattern.permute.xlu0 4
      %6040 = vperm.xlu0 %6039, %v5413
      %v6041 = vpop.permute.xlu0 %6040
      %6043 = vset.pattern.permute.xlu0 4
      %6044 = vperm.xlu0 %6043, %v5414
      %v6045 = vpop.permute.xlu0 %6044
      %6047 = vset.pattern.permute.xlu0 4
      %6048 = vperm.xlu0 %6047, %v5415
      %v6049 = vpop.permute.xlu0 %6048
      %6051 = vset.pattern.permute.xlu0 4
      %6052 = vperm.xlu0 %6051, %v5416
      %v6053 = vpop.permute.xlu0 %6052
      %6055 = vset.pattern.permute.xlu0 4
      %6056 = vperm.xlu0 %6055, %v5417
      %v6057 = vpop.permute.xlu0 %6056
      %6059 = vset.pattern.permute.xlu0 4
      %6060 = vperm.xlu0 %6059, %v5418
      %v6061 = vpop.permute.xlu0 %6060
      %6063 = vset.pattern.permute.xlu0 4
      %6064 = vperm.xlu0 %6063, %v5419
      %v6065 = vpop.permute.xlu0 %6064
      %6067 = vset.pattern.permute.xlu0 4
      %6068 = vperm.xlu0 %6067, %v5420
      %v6069 = vpop.permute.xlu0 %6068
      %6071 = vset.pattern.permute.xlu0 4
      %6072 = vperm.xlu0 %6071, %v5421
      %v6073 = vpop.permute.xlu0 %6072
      %v6075 = vmul.f32 %v5970, %v5993
      %v6076 = vmul.f32 %v5971, %v5997
      %v6077 = vmul.f32 %v5972, %v6001
      %v6078 = vmul.f32 %v5973, %v6005
      %v6079 = vmul.f32 %v5974, %v6009
      %v6080 = vmul.f32 %v5975, %v6013
      %v6081 = vmul.f32 %v5976, %v6017
      %v6082 = vmul.f32 %v5977, %v6021
      %v6083 = vmul.f32 %v5978, %v6025
      %v6084 = vmul.f32 %v5979, %v6029
      %v6085 = vmul.f32 %v5980, %v6033
      %v6086 = vmul.f32 %v5981, %v6037
      %v6087 = vmul.f32 %v5982, %v6041
      %v6088 = vmul.f32 %v5983, %v6045
      %v6089 = vmul.f32 %v5984, %v6049
      %v6090 = vmul.f32 %v5985, %v6053
      %v6091 = vmul.f32 %v5986, %v6057
      %v6092 = vmul.f32 %v5987, %v6061
      %v6093 = vmul.f32 %v5988, %v6065
      %v6094 = vmul.f32 %v5989, %v6069
      %v6095 = vmul.f32 %v5990, %v6073
      %v6096 = vpack.c.bf16 %v6076, %v6075
      %v6097 = vpack.c.bf16 %v6078, %v6077
      %v6098 = vpack.c.bf16 %v6080, %v6079
      %v6099 = vpack.c.bf16 %v6082, %v6081
      %v6100 = vpack.c.bf16 %v6084, %v6083
      %v6101 = vpack.c.bf16 %v6086, %v6085
      %v6102 = vpack.c.bf16 %v6088, %v6087
      %v6103 = vpack.c.bf16 %v6090, %v6089
      %v6104 = vpack.c.bf16 %v6092, %v6091
      %v6105 = vpack.c.bf16 %v6094, %v6093
      %v6106 = vpack.c.bf16 %v6095, %v6095
      %v6107 = vld [vmem:[#allocation2 + $0x9] sm:$0xff]
      %v6108 = vld [vmem:[#allocation2 + $0x11] sm:$0xff]
      %v6109 = vld [vmem:[#allocation2 + $0x19] sm:$0xff]
      %v6110 = vld [vmem:[#allocation2 + $0x21] sm:$0xff]
      %v6111 = vld [vmem:[#allocation2 + $0x29] sm:$0xff]
      %v6112 = vld [vmem:[#allocation2 + $0x31] sm:$0xff]
      %v6113 = vld [vmem:[#allocation2 + $0x39] sm:$0xff]
      %v6114 = vld [vmem:[#allocation2 + $0x41] sm:$0xff]
      %v6115 = vld [vmem:[#allocation2 + $0x49] sm:$0xff]
      %v6116 = vld [vmem:[#allocation2 + $0x51] sm:$0xff]
      %v6117 = vld [vmem:[#allocation2 + $0x59] sm:$0xff]
      %v6118 = vld [vmem:[#allocation2 + $0x61] sm:$0xff]
      %v6119 = vld [vmem:[#allocation2 + $0x69] sm:$0xff]
      %v6120 = vld [vmem:[#allocation2 + $0x71] sm:$0xff]
      %v6121 = vld [vmem:[#allocation2 + $0x79] sm:$0xff]
      %v6122 = vld [vmem:[#allocation2 + $0x81] sm:$0xff]
      %v6123 = vld [vmem:[#allocation2 + $0x89] sm:$0xff]
      %v6124 = vld [vmem:[#allocation2 + $0x91] sm:$0xff]
      %v6125 = vld [vmem:[#allocation2 + $0x99] sm:$0xff]
      %v6126 = vld [vmem:[#allocation2 + $0xa1] sm:$0xff]
      %v6127 = vld [vmem:[#allocation2 + $0xa9] sm:$0xff]
      %6128 = vset.pattern.permute.xlu0 5
      %6129 = vperm.xlu0 %6128, %v5401
      %v6130 = vpop.permute.xlu0 %6129
      %6132 = vset.pattern.permute.xlu0 5
      %6133 = vperm.xlu0 %6132, %v5402
      %v6134 = vpop.permute.xlu0 %6133
      %6136 = vset.pattern.permute.xlu0 5
      %6137 = vperm.xlu0 %6136, %v5403
      %v6138 = vpop.permute.xlu0 %6137
      %6140 = vset.pattern.permute.xlu0 5
      %6141 = vperm.xlu0 %6140, %v5404
      %v6142 = vpop.permute.xlu0 %6141
      %6144 = vset.pattern.permute.xlu0 5
      %6145 = vperm.xlu0 %6144, %v5405
      %v6146 = vpop.permute.xlu0 %6145
      %6148 = vset.pattern.permute.xlu0 5
      %6149 = vperm.xlu0 %6148, %v5406
      %v6150 = vpop.permute.xlu0 %6149
      %6152 = vset.pattern.permute.xlu0 5
      %6153 = vperm.xlu0 %6152, %v5407
      %v6154 = vpop.permute.xlu0 %6153
      %6156 = vset.pattern.permute.xlu0 5
      %6157 = vperm.xlu0 %6156, %v5408
      %v6158 = vpop.permute.xlu0 %6157
      %6160 = vset.pattern.permute.xlu0 5
      %6161 = vperm.xlu0 %6160, %v5409
      %v6162 = vpop.permute.xlu0 %6161
      %6164 = vset.pattern.permute.xlu0 5
      %6165 = vperm.xlu0 %6164, %v5410
      %v6166 = vpop.permute.xlu0 %6165
      %6168 = vset.pattern.permute.xlu0 5
      %6169 = vperm.xlu0 %6168, %v5411
      %v6170 = vpop.permute.xlu0 %6169
      %6172 = vset.pattern.permute.xlu0 5
      %6173 = vperm.xlu0 %6172, %v5412
      %v6174 = vpop.permute.xlu0 %6173
      %6176 = vset.pattern.permute.xlu0 5
      %6177 = vperm.xlu0 %6176, %v5413
      %v6178 = vpop.permute.xlu0 %6177
      %6180 = vset.pattern.permute.xlu0 5
      %6181 = vperm.xlu0 %6180, %v5414
      %v6182 = vpop.permute.xlu0 %6181
      %6184 = vset.pattern.permute.xlu0 5
      %6185 = vperm.xlu0 %6184, %v5415
      %v6186 = vpop.permute.xlu0 %6185
      %6188 = vset.pattern.permute.xlu0 5
      %6189 = vperm.xlu0 %6188, %v5416
      %v6190 = vpop.permute.xlu0 %6189
      %6192 = vset.pattern.permute.xlu0 5
      %6193 = vperm.xlu0 %6192, %v5417
      %v6194 = vpop.permute.xlu0 %6193
      %6196 = vset.pattern.permute.xlu0 5
      %6197 = vperm.xlu0 %6196, %v5418
      %v6198 = vpop.permute.xlu0 %6197
      %6200 = vset.pattern.permute.xlu0 5
      %6201 = vperm.xlu0 %6200, %v5419
      %v6202 = vpop.permute.xlu0 %6201
      %6204 = vset.pattern.permute.xlu0 5
      %6205 = vperm.xlu0 %6204, %v5420
      %v6206 = vpop.permute.xlu0 %6205
      %6208 = vset.pattern.permute.xlu0 5
      %6209 = vperm.xlu0 %6208, %v5421
      %v6210 = vpop.permute.xlu0 %6209
      %v6212 = vmul.f32 %v6107, %v6130
      %v6213 = vmul.f32 %v6108, %v6134
      %v6214 = vmul.f32 %v6109, %v6138
      %v6215 = vmul.f32 %v6110, %v6142
      %v6216 = vmul.f32 %v6111, %v6146
      %v6217 = vmul.f32 %v6112, %v6150
      %v6218 = vmul.f32 %v6113, %v6154
      %v6219 = vmul.f32 %v6114, %v6158
      %v6220 = vmul.f32 %v6115, %v6162
      %v6221 = vmul.f32 %v6116, %v6166
      %v6222 = vmul.f32 %v6117, %v6170
      %v6223 = vmul.f32 %v6118, %v6174
      %v6224 = vmul.f32 %v6119, %v6178
      %v6225 = vmul.f32 %v6120, %v6182
      %v6226 = vmul.f32 %v6121, %v6186
      %v6227 = vmul.f32 %v6122, %v6190
      %v6228 = vmul.f32 %v6123, %v6194
      %v6229 = vmul.f32 %v6124, %v6198
      %v6230 = vmul.f32 %v6125, %v6202
      %v6231 = vmul.f32 %v6126, %v6206
      %v6232 = vmul.f32 %v6127, %v6210
      %v6233 = vpack.c.bf16 %v6213, %v6212
      %v6234 = vpack.c.bf16 %v6215, %v6214
      %v6235 = vpack.c.bf16 %v6217, %v6216
      %v6236 = vpack.c.bf16 %v6219, %v6218
      %v6237 = vpack.c.bf16 %v6221, %v6220
      %v6238 = vpack.c.bf16 %v6223, %v6222
      %v6239 = vpack.c.bf16 %v6225, %v6224
      %v6240 = vpack.c.bf16 %v6227, %v6226
      %v6241 = vpack.c.bf16 %v6229, %v6228
      %v6242 = vpack.c.bf16 %v6231, %v6230
      %v6243 = vpack.c.bf16 %v6232, %v6232
      %v6244 = vld [vmem:[#allocation2 + $0xe] sm:$0xff]
      %v6245 = vld [vmem:[#allocation2 + $0x16] sm:$0xff]
      %v6246 = vld [vmem:[#allocation2 + $0x1e] sm:$0xff]
      %v6247 = vld [vmem:[#allocation2 + $0x26] sm:$0xff]
      %v6248 = vld [vmem:[#allocation2 + $0x2e] sm:$0xff]
      %v6249 = vld [vmem:[#allocation2 + $0x36] sm:$0xff]
      %v6250 = vld [vmem:[#allocation2 + $0x3e] sm:$0xff]
      %v6251 = vld [vmem:[#allocation2 + $0x46] sm:$0xff]
      %v6252 = vld [vmem:[#allocation2 + $0x4e] sm:$0xff]
      %v6253 = vld [vmem:[#allocation2 + $0x56] sm:$0xff]
      %v6254 = vld [vmem:[#allocation2 + $0x5e] sm:$0xff]
      %v6255 = vld [vmem:[#allocation2 + $0x66] sm:$0xff]
      %v6256 = vld [vmem:[#allocation2 + $0x6e] sm:$0xff]
      %v6257 = vld [vmem:[#allocation2 + $0x76] sm:$0xff]
      %v6258 = vld [vmem:[#allocation2 + $0x7e] sm:$0xff]
      %v6259 = vld [vmem:[#allocation2 + $0x86] sm:$0xff]
      %v6260 = vld [vmem:[#allocation2 + $0x8e] sm:$0xff]
      %v6261 = vld [vmem:[#allocation2 + $0x96] sm:$0xff]
      %v6262 = vld [vmem:[#allocation2 + $0x9e] sm:$0xff]
      %v6263 = vld [vmem:[#allocation2 + $0xa6] sm:$0xff]
      %v6264 = vld [vmem:[#allocation2 + $0xae] sm:$0xff]
      %6265 = vset.pattern.permute.xlu0 6
      %6266 = vperm.xlu0 %6265, %v5401
      %v6267 = vpop.permute.xlu0 %6266
      %6269 = vset.pattern.permute.xlu0 6
      %6270 = vperm.xlu0 %6269, %v5402
      %v6271 = vpop.permute.xlu0 %6270
      %6273 = vset.pattern.permute.xlu0 6
      %6274 = vperm.xlu0 %6273, %v5403
      %v6275 = vpop.permute.xlu0 %6274
      %6277 = vset.pattern.permute.xlu0 6
      %6278 = vperm.xlu0 %6277, %v5404
      %v6279 = vpop.permute.xlu0 %6278
      %6281 = vset.pattern.permute.xlu0 6
      %6282 = vperm.xlu0 %6281, %v5405
      %v6283 = vpop.permute.xlu0 %6282
      %6285 = vset.pattern.permute.xlu0 6
      %6286 = vperm.xlu0 %6285, %v5406
      %v6287 = vpop.permute.xlu0 %6286
      %6289 = vset.pattern.permute.xlu0 6
      %6290 = vperm.xlu0 %6289, %v5407
      %v6291 = vpop.permute.xlu0 %6290
      %6293 = vset.pattern.permute.xlu0 6
      %6294 = vperm.xlu0 %6293, %v5408
      %v6295 = vpop.permute.xlu0 %6294
      %6297 = vset.pattern.permute.xlu0 6
      %6298 = vperm.xlu0 %6297, %v5409
      %v6299 = vpop.permute.xlu0 %6298
      %6301 = vset.pattern.permute.xlu0 6
      %6302 = vperm.xlu0 %6301, %v5410
      %v6303 = vpop.permute.xlu0 %6302
      %6305 = vset.pattern.permute.xlu0 6
      %6306 = vperm.xlu0 %6305, %v5411
      %v6307 = vpop.permute.xlu0 %6306
      %6309 = vset.pattern.permute.xlu0 6
      %6310 = vperm.xlu0 %6309, %v5412
      %v6311 = vpop.permute.xlu0 %6310
      %6313 = vset.pattern.permute.xlu0 6
      %6314 = vperm.xlu0 %6313, %v5413
      %v6315 = vpop.permute.xlu0 %6314
      %6317 = vset.pattern.permute.xlu0 6
      %6318 = vperm.xlu0 %6317, %v5414
      %v6319 = vpop.permute.xlu0 %6318
      %6321 = vset.pattern.permute.xlu0 6
      %6322 = vperm.xlu0 %6321, %v5415
      %v6323 = vpop.permute.xlu0 %6322
      %6325 = vset.pattern.permute.xlu0 6
      %6326 = vperm.xlu0 %6325, %v5416
      %v6327 = vpop.permute.xlu0 %6326
      %6329 = vset.pattern.permute.xlu0 6
      %6330 = vperm.xlu0 %6329, %v5417
      %v6331 = vpop.permute.xlu0 %6330
      %6333 = vset.pattern.permute.xlu0 6
      %6334 = vperm.xlu0 %6333, %v5418
      %v6335 = vpop.permute.xlu0 %6334
      %6337 = vset.pattern.permute.xlu0 6
      %6338 = vperm.xlu0 %6337, %v5419
      %v6339 = vpop.permute.xlu0 %6338
      %6341 = vset.pattern.permute.xlu0 6
      %6342 = vperm.xlu0 %6341, %v5420
      %v6343 = vpop.permute.xlu0 %6342
      %6345 = vset.pattern.permute.xlu0 6
      %6346 = vperm.xlu0 %6345, %v5421
      %v6347 = vpop.permute.xlu0 %6346
      %v6349 = vmul.f32 %v6244, %v6267
      %v6350 = vmul.f32 %v6245, %v6271
      %v6351 = vmul.f32 %v6246, %v6275
      %v6352 = vmul.f32 %v6247, %v6279
      %v6353 = vmul.f32 %v6248, %v6283
      %v6354 = vmul.f32 %v6249, %v6287
      %v6355 = vmul.f32 %v6250, %v6291
      %v6356 = vmul.f32 %v6251, %v6295
      %v6357 = vmul.f32 %v6252, %v6299
      %v6358 = vmul.f32 %v6253, %v6303
      %v6359 = vmul.f32 %v6254, %v6307
      %v6360 = vmul.f32 %v6255, %v6311
      %v6361 = vmul.f32 %v6256, %v6315
      %v6362 = vmul.f32 %v6257, %v6319
      %v6363 = vmul.f32 %v6258, %v6323
      %v6364 = vmul.f32 %v6259, %v6327
      %v6365 = vmul.f32 %v6260, %v6331
      %v6366 = vmul.f32 %v6261, %v6335
      %v6367 = vmul.f32 %v6262, %v6339
      %v6368 = vmul.f32 %v6263, %v6343
      %v6369 = vmul.f32 %v6264, %v6347
      %v6370 = vpack.c.bf16 %v6350, %v6349
      %v6371 = vpack.c.bf16 %v6352, %v6351
      %v6372 = vpack.c.bf16 %v6354, %v6353
      %v6373 = vpack.c.bf16 %v6356, %v6355
      %v6374 = vpack.c.bf16 %v6358, %v6357
      %v6375 = vpack.c.bf16 %v6360, %v6359
      %v6376 = vpack.c.bf16 %v6362, %v6361
      %v6377 = vpack.c.bf16 %v6364, %v6363
      %v6378 = vpack.c.bf16 %v6366, %v6365
      %v6379 = vpack.c.bf16 %v6368, %v6367
      %v6380 = vpack.c.bf16 %v6369, %v6369
      %v6381 = vld [vmem:[#allocation2 + $0xf] sm:$0xff]
      %v6382 = vld [vmem:[#allocation2 + $0x17] sm:$0xff]
      %v6383 = vld [vmem:[#allocation2 + $0x1f] sm:$0xff]
      %v6384 = vld [vmem:[#allocation2 + $0x27] sm:$0xff]
      %v6385 = vld [vmem:[#allocation2 + $0x2f] sm:$0xff]
      %v6386 = vld [vmem:[#allocation2 + $0x37] sm:$0xff]
      %v6387 = vld [vmem:[#allocation2 + $0x3f] sm:$0xff]
      %v6388 = vld [vmem:[#allocation2 + $0x47] sm:$0xff]
      %v6389 = vld [vmem:[#allocation2 + $0x4f] sm:$0xff]
      %v6390 = vld [vmem:[#allocation2 + $0x57] sm:$0xff]
      %v6391 = vld [vmem:[#allocation2 + $0x5f] sm:$0xff]
      %v6392 = vld [vmem:[#allocation2 + $0x67] sm:$0xff]
      %v6393 = vld [vmem:[#allocation2 + $0x6f] sm:$0xff]
      %v6394 = vld [vmem:[#allocation2 + $0x77] sm:$0xff]
      %v6395 = vld [vmem:[#allocation2 + $0x7f] sm:$0xff]
      %v6396 = vld [vmem:[#allocation2 + $0x87] sm:$0xff]
      %v6397 = vld [vmem:[#allocation2 + $0x8f] sm:$0xff]
      %v6398 = vld [vmem:[#allocation2 + $0x97] sm:$0xff]
      %v6399 = vld [vmem:[#allocation2 + $0x9f] sm:$0xff]
      %v6400 = vld [vmem:[#allocation2 + $0xa7] sm:$0xff]
      %v6401 = vld [vmem:[#allocation2 + $0xaf] sm:$0xff]
      %6402 = vset.pattern.permute.xlu0 7
      %6403 = vperm.xlu0 %6402, %v5401
      %v6404 = vpop.permute.xlu0 %6403
      %6406 = vset.pattern.permute.xlu0 7
      %6407 = vperm.xlu0 %6406, %v5402
      %v6408 = vpop.permute.xlu0 %6407
      %6410 = vset.pattern.permute.xlu0 7
      %6411 = vperm.xlu0 %6410, %v5403
      %v6412 = vpop.permute.xlu0 %6411
      %6414 = vset.pattern.permute.xlu0 7
      %6415 = vperm.xlu0 %6414, %v5404
      %v6416 = vpop.permute.xlu0 %6415
      %6418 = vset.pattern.permute.xlu0 7
      %6419 = vperm.xlu0 %6418, %v5405
      %v6420 = vpop.permute.xlu0 %6419
      %6422 = vset.pattern.permute.xlu0 7
      %6423 = vperm.xlu0 %6422, %v5406
      %v6424 = vpop.permute.xlu0 %6423
      %6426 = vset.pattern.permute.xlu0 7
      %6427 = vperm.xlu0 %6426, %v5407
      %v6428 = vpop.permute.xlu0 %6427
      %6430 = vset.pattern.permute.xlu0 7
      %6431 = vperm.xlu0 %6430, %v5408
      %v6432 = vpop.permute.xlu0 %6431
      %6434 = vset.pattern.permute.xlu0 7
      %6435 = vperm.xlu0 %6434, %v5409
      %v6436 = vpop.permute.xlu0 %6435
      %6438 = vset.pattern.permute.xlu0 7
      %6439 = vperm.xlu0 %6438, %v5410
      %v6440 = vpop.permute.xlu0 %6439
      %6442 = vset.pattern.permute.xlu0 7
      %6443 = vperm.xlu0 %6442, %v5411
      %v6444 = vpop.permute.xlu0 %6443
      %6446 = vset.pattern.permute.xlu0 7
      %6447 = vperm.xlu0 %6446, %v5412
      %v6448 = vpop.permute.xlu0 %6447
      %6450 = vset.pattern.permute.xlu0 7
      %6451 = vperm.xlu0 %6450, %v5413
      %v6452 = vpop.permute.xlu0 %6451
      %6454 = vset.pattern.permute.xlu0 7
      %6455 = vperm.xlu0 %6454, %v5414
      %v6456 = vpop.permute.xlu0 %6455
      %6458 = vset.pattern.permute.xlu0 7
      %6459 = vperm.xlu0 %6458, %v5415
      %v6460 = vpop.permute.xlu0 %6459
      %6462 = vset.pattern.permute.xlu0 7
      %6463 = vperm.xlu0 %6462, %v5416
      %v6464 = vpop.permute.xlu0 %6463
      %6466 = vset.pattern.permute.xlu0 7
      %6467 = vperm.xlu0 %6466, %v5417
      %v6468 = vpop.permute.xlu0 %6467
      %6470 = vset.pattern.permute.xlu0 7
      %6471 = vperm.xlu0 %6470, %v5418
      %v6472 = vpop.permute.xlu0 %6471
      %6474 = vset.pattern.permute.xlu0 7
      %6475 = vperm.xlu0 %6474, %v5419
      %v6476 = vpop.permute.xlu0 %6475
      %6478 = vset.pattern.permute.xlu0 7
      %6479 = vperm.xlu0 %6478, %v5420
      %v6480 = vpop.permute.xlu0 %6479
      %6482 = vset.pattern.permute.xlu0 7
      %6483 = vperm.xlu0 %6482, %v5421
      %v6484 = vpop.permute.xlu0 %6483
      %v6486 = vmul.f32 %v6381, %v6404
      %v6487 = vmul.f32 %v6382, %v6408
      %v6488 = vmul.f32 %v6383, %v6412
      %v6489 = vmul.f32 %v6384, %v6416
      %v6490 = vmul.f32 %v6385, %v6420
      %v6491 = vmul.f32 %v6386, %v6424
      %v6492 = vmul.f32 %v6387, %v6428
      %v6493 = vmul.f32 %v6388, %v6432
      %v6494 = vmul.f32 %v6389, %v6436
      %v6495 = vmul.f32 %v6390, %v6440
      %v6496 = vmul.f32 %v6391, %v6444
      %v6497 = vmul.f32 %v6392, %v6448
      %v6498 = vmul.f32 %v6393, %v6452
      %v6499 = vmul.f32 %v6394, %v6456
      %v6500 = vmul.f32 %v6395, %v6460
      %v6501 = vmul.f32 %v6396, %v6464
      %v6502 = vmul.f32 %v6397, %v6468
      %v6503 = vmul.f32 %v6398, %v6472
      %v6504 = vmul.f32 %v6399, %v6476
      %v6505 = vmul.f32 %v6400, %v6480
      %v6506 = vmul.f32 %v6401, %v6484
      %v6507 = vpack.c.bf16 %v6487, %v6486
      %v6508 = vpack.c.bf16 %v6489, %v6488
      %v6509 = vpack.c.bf16 %v6491, %v6490
      %v6510 = vpack.c.bf16 %v6493, %v6492
      %v6511 = vpack.c.bf16 %v6495, %v6494
      %v6512 = vpack.c.bf16 %v6497, %v6496
      %v6513 = vpack.c.bf16 %v6499, %v6498
      %v6514 = vpack.c.bf16 %v6501, %v6500
      %v6515 = vpack.c.bf16 %v6503, %v6502
      %v6516 = vpack.c.bf16 %v6505, %v6504
      %v6517 = vpack.c.bf16 %v6506, %v6506
      %v6518 = vld [vmem:[#allocation2 + $0x10] sm:$0xff]
      %v6519 = vld [vmem:[#allocation2 + $0x18] sm:$0xff]
      %v6520 = vld [vmem:[#allocation2 + $0x20] sm:$0xff]
      %v6521 = vld [vmem:[#allocation2 + $0x28] sm:$0xff]
      %v6522 = vld [vmem:[#allocation2 + $0x30] sm:$0xff]
      %v6523 = vld [vmem:[#allocation2 + $0x38] sm:$0xff]
      %v6524 = vld [vmem:[#allocation2 + $0x40] sm:$0xff]
      %v6525 = vld [vmem:[#allocation2 + $0x48] sm:$0xff]
      %v6526 = vld [vmem:[#allocation2 + $0x50] sm:$0xff]
      %v6527 = vld [vmem:[#allocation2 + $0x58] sm:$0xff]
      %v6528 = vld [vmem:[#allocation2 + $0x60] sm:$0xff]
      %v6529 = vld [vmem:[#allocation2 + $0x68] sm:$0xff]
      %v6530 = vld [vmem:[#allocation2 + $0x70] sm:$0xff]
      %v6531 = vld [vmem:[#allocation2 + $0x78] sm:$0xff]
      %v6532 = vld [vmem:[#allocation2 + $0x80] sm:$0xff]
      %v6533 = vld [vmem:[#allocation2 + $0x88] sm:$0xff]
      %v6534 = vld [vmem:[#allocation2 + $0x90] sm:$0xff]
      %v6535 = vld [vmem:[#allocation2 + $0x98] sm:$0xff]
      %v6536 = vld [vmem:[#allocation2 + $0xa0] sm:$0xff]
      %v6537 = vld [vmem:[#allocation2 + $0xa8] sm:$0xff]
      %v6538 = vld [vmem:[#allocation2 + $0xb0] sm:$0xff]
      %6539 = vset.pattern.permute.xlu0 8
      %6540 = vperm.xlu0 %6539, %v5401
      %v6541 = vpop.permute.xlu0 %6540
      %6543 = vset.pattern.permute.xlu0 8
      %6544 = vperm.xlu0 %6543, %v5402
      %v6545 = vpop.permute.xlu0 %6544
      %6547 = vset.pattern.permute.xlu0 8
      %6548 = vperm.xlu0 %6547, %v5403
      %v6549 = vpop.permute.xlu0 %6548
      %6551 = vset.pattern.permute.xlu0 8
      %6552 = vperm.xlu0 %6551, %v5404
      %v6553 = vpop.permute.xlu0 %6552
      %6555 = vset.pattern.permute.xlu0 8
      %6556 = vperm.xlu0 %6555, %v5405
      %v6557 = vpop.permute.xlu0 %6556
      %6559 = vset.pattern.permute.xlu0 8
      %6560 = vperm.xlu0 %6559, %v5406
      %v6561 = vpop.permute.xlu0 %6560
      %6563 = vset.pattern.permute.xlu0 8
      %6564 = vperm.xlu0 %6563, %v5407
      %v6565 = vpop.permute.xlu0 %6564
      %6567 = vset.pattern.permute.xlu0 8
      %6568 = vperm.xlu0 %6567, %v5408
      %v6569 = vpop.permute.xlu0 %6568
      %6571 = vset.pattern.permute.xlu0 8
      %6572 = vperm.xlu0 %6571, %v5409
      %v6573 = vpop.permute.xlu0 %6572
      %6575 = vset.pattern.permute.xlu0 8
      %6576 = vperm.xlu0 %6575, %v5410
      %v6577 = vpop.permute.xlu0 %6576
      %6579 = vset.pattern.permute.xlu0 8
      %6580 = vperm.xlu0 %6579, %v5411
      %v6581 = vpop.permute.xlu0 %6580
      %6583 = vset.pattern.permute.xlu0 8
      %6584 = vperm.xlu0 %6583, %v5412
      %v6585 = vpop.permute.xlu0 %6584
      %6587 = vset.pattern.permute.xlu0 8
      %6588 = vperm.xlu0 %6587, %v5413
      %v6589 = vpop.permute.xlu0 %6588
      %6591 = vset.pattern.permute.xlu0 8
      %6592 = vperm.xlu0 %6591, %v5414
      %v6593 = vpop.permute.xlu0 %6592
      %6595 = vset.pattern.permute.xlu0 8
      %6596 = vperm.xlu0 %6595, %v5415
      %v6597 = vpop.permute.xlu0 %6596
      %6599 = vset.pattern.permute.xlu0 8
      %6600 = vperm.xlu0 %6599, %v5416
      %v6601 = vpop.permute.xlu0 %6600
      %6603 = vset.pattern.permute.xlu0 8
      %6604 = vperm.xlu0 %6603, %v5417
      %v6605 = vpop.permute.xlu0 %6604
      %6607 = vset.pattern.permute.xlu0 8
      %6608 = vperm.xlu0 %6607, %v5418
      %v6609 = vpop.permute.xlu0 %6608
      %6611 = vset.pattern.permute.xlu0 8
      %6612 = vperm.xlu0 %6611, %v5419
      %v6613 = vpop.permute.xlu0 %6612
      %6615 = vset.pattern.permute.xlu0 8
      %6616 = vperm.xlu0 %6615, %v5420
      %v6617 = vpop.permute.xlu0 %6616
      %6619 = vset.pattern.permute.xlu0 8
      %6620 = vperm.xlu0 %6619, %v5421
      %v6621 = vpop.permute.xlu0 %6620
      %v6623 = vmul.f32 %v6518, %v6541
      %v6624 = vmul.f32 %v6519, %v6545
      %v6625 = vmul.f32 %v6520, %v6549
      %v6626 = vmul.f32 %v6521, %v6553
      %v6627 = vmul.f32 %v6522, %v6557
      %v6628 = vmul.f32 %v6523, %v6561
      %v6629 = vmul.f32 %v6524, %v6565
      %v6630 = vmul.f32 %v6525, %v6569
      %v6631 = vmul.f32 %v6526, %v6573
      %v6632 = vmul.f32 %v6527, %v6577
      %v6633 = vmul.f32 %v6528, %v6581
      %v6634 = vmul.f32 %v6529, %v6585
      %v6635 = vmul.f32 %v6530, %v6589
      %v6636 = vmul.f32 %v6531, %v6593
      %v6637 = vmul.f32 %v6532, %v6597
      %v6638 = vmul.f32 %v6533, %v6601
      %v6639 = vmul.f32 %v6534, %v6605
      %v6640 = vmul.f32 %v6535, %v6609
      %v6641 = vmul.f32 %v6536, %v6613
      %v6642 = vmul.f32 %v6537, %v6617
      %v6643 = vmul.f32 %v6538, %v6621
      %v6644 = vpack.c.bf16 %v6624, %v6623
      %v6645 = vpack.c.bf16 %v6626, %v6625
      %v6646 = vpack.c.bf16 %v6628, %v6627
      %v6647 = vpack.c.bf16 %v6630, %v6629
      %v6648 = vpack.c.bf16 %v6632, %v6631
      %v6649 = vpack.c.bf16 %v6634, %v6633
      %v6650 = vpack.c.bf16 %v6636, %v6635
      %v6651 = vpack.c.bf16 %v6638, %v6637
      %v6652 = vpack.c.bf16 %v6640, %v6639
      %v6653 = vpack.c.bf16 %v6642, %v6641
      %v6654 = vpack.c.bf16 %v6643, %v6643
      %6666 = vrot.lane.b32.xlu0 %v5685, 64
      %v6667 = vpop.permute.xlu0 %6666
      %6668 = vrot.lane.b32.xlu0 %v5686, 64
      %v6669 = vpop.permute.xlu0 %6668
      %6670 = vrot.lane.b32.xlu0 %v5687, 64
      %v6671 = vpop.permute.xlu0 %6670
      %6672 = vrot.lane.b32.xlu0 %v5688, 64
      %v6673 = vpop.permute.xlu0 %6672
      %6674 = vrot.lane.b32.xlu0 %v5689, 64
      %v6675 = vpop.permute.xlu0 %6674
      %6676 = vrot.lane.b32.xlu0 %v5690, 64
      %v6677 = vpop.permute.xlu0 %6676
      %6678 = vrot.lane.b32.xlu0 %v5691, 64
      %v6679 = vpop.permute.xlu0 %6678
      %6680 = vrot.lane.b32.xlu0 %v5692, 64
      %v6681 = vpop.permute.xlu0 %6680
      %6682 = vrot.lane.b32.xlu0 %v5693, 64
      %v6683 = vpop.permute.xlu0 %6682
      %6684 = vrot.lane.b32.xlu0 %v5694, 64
      %v6685 = vpop.permute.xlu0 %6684
      %6686 = vrot.lane.b32.xlu0 %v5695, 64
      %v6687 = vpop.permute.xlu0 %6686
      %6699 = vrot.lane.b32.xlu0 %v5959, 64
      %v6700 = vpop.permute.xlu0 %6699
      %6701 = vrot.lane.b32.xlu0 %v5960, 64
      %v6702 = vpop.permute.xlu0 %6701
      %6703 = vrot.lane.b32.xlu0 %v5961, 64
      %v6704 = vpop.permute.xlu0 %6703
      %6705 = vrot.lane.b32.xlu0 %v5962, 64
      %v6706 = vpop.permute.xlu0 %6705
      %6707 = vrot.lane.b32.xlu0 %v5963, 64
      %v6708 = vpop.permute.xlu0 %6707
      %6709 = vrot.lane.b32.xlu0 %v5964, 64
      %v6710 = vpop.permute.xlu0 %6709
      %6711 = vrot.lane.b32.xlu0 %v5965, 64
      %v6712 = vpop.permute.xlu0 %6711
      %6713 = vrot.lane.b32.xlu0 %v5966, 64
      %v6714 = vpop.permute.xlu0 %6713
      %6715 = vrot.lane.b32.xlu0 %v5967, 64
      %v6716 = vpop.permute.xlu0 %6715
      %6717 = vrot.lane.b32.xlu0 %v5968, 64
      %v6718 = vpop.permute.xlu0 %6717
      %6719 = vrot.lane.b32.xlu0 %v5969, 64
      %v6720 = vpop.permute.xlu0 %6719
      %6732 = vrot.lane.b32.xlu0 %v6233, 64
      %v6733 = vpop.permute.xlu0 %6732
      %6734 = vrot.lane.b32.xlu0 %v6234, 64
      %v6735 = vpop.permute.xlu0 %6734
      %6736 = vrot.lane.b32.xlu0 %v6235, 64
      %v6737 = vpop.permute.xlu0 %6736
      %6738 = vrot.lane.b32.xlu0 %v6236, 64
      %v6739 = vpop.permute.xlu0 %6738
      %6740 = vrot.lane.b32.xlu0 %v6237, 64
      %v6741 = vpop.permute.xlu0 %6740
      %6742 = vrot.lane.b32.xlu0 %v6238, 64
      %v6743 = vpop.permute.xlu0 %6742
      %6744 = vrot.lane.b32.xlu0 %v6239, 64
      %v6745 = vpop.permute.xlu0 %6744
      %6746 = vrot.lane.b32.xlu0 %v6240, 64
      %v6747 = vpop.permute.xlu0 %6746
      %6748 = vrot.lane.b32.xlu0 %v6241, 64
      %v6749 = vpop.permute.xlu0 %6748
      %6750 = vrot.lane.b32.xlu0 %v6242, 64
      %v6751 = vpop.permute.xlu0 %6750
      %6752 = vrot.lane.b32.xlu0 %v6243, 64
      %v6753 = vpop.permute.xlu0 %6752
      %6765 = vrot.lane.b32.xlu0 %v6507, 64
      %v6766 = vpop.permute.xlu0 %6765
      %6767 = vrot.lane.b32.xlu0 %v6508, 64
      %v6768 = vpop.permute.xlu0 %6767
      %6769 = vrot.lane.b32.xlu0 %v6509, 64
      %v6770 = vpop.permute.xlu0 %6769
      %6771 = vrot.lane.b32.xlu0 %v6510, 64
      %v6772 = vpop.permute.xlu0 %6771
      %6773 = vrot.lane.b32.xlu0 %v6511, 64
      %v6774 = vpop.permute.xlu0 %6773
      %6775 = vrot.lane.b32.xlu0 %v6512, 64
      %v6776 = vpop.permute.xlu0 %6775
      %6777 = vrot.lane.b32.xlu0 %v6513, 64
      %v6778 = vpop.permute.xlu0 %6777
      %6779 = vrot.lane.b32.xlu0 %v6514, 64
      %v6780 = vpop.permute.xlu0 %6779
      %6781 = vrot.lane.b32.xlu0 %v6515, 64
      %v6782 = vpop.permute.xlu0 %6781
      %6783 = vrot.lane.b32.xlu0 %v6516, 64
      %v6784 = vpop.permute.xlu0 %6783
      %6785 = vrot.lane.b32.xlu0 %v6517, 64
      %v6786 = vpop.permute.xlu0 %6785
      %v6789 = vsel %vm305, %v5548, %v6667
      %v6793 = vsel %vm305, %v5549, %v6669
      %v6797 = vsel %vm305, %v5550, %v6671
      %v6801 = vsel %vm305, %v5551, %v6673
      %v6805 = vsel %vm305, %v5552, %v6675
      %v6809 = vsel %vm305, %v5553, %v6677
      %v6813 = vsel %vm305, %v5554, %v6679
      %v6817 = vsel %vm305, %v5555, %v6681
      %v6821 = vsel %vm305, %v5556, %v6683
      %v6825 = vsel %vm305, %v5557, %v6685
      %v6829 = vsel %vm305, %v5558, %v6687
      %v6833 = vsel %vm305, %v5822, %v6700
      %v6837 = vsel %vm305, %v5823, %v6702
      %v6841 = vsel %vm305, %v5824, %v6704
      %v6845 = vsel %vm305, %v5825, %v6706
      %v6849 = vsel %vm305, %v5826, %v6708
      %v6853 = vsel %vm305, %v5827, %v6710
      %v6857 = vsel %vm305, %v5828, %v6712
      %v6861 = vsel %vm305, %v5829, %v6714
      %v6865 = vsel %vm305, %v5830, %v6716
      %v6869 = vsel %vm305, %v5831, %v6718
      %v6873 = vsel %vm305, %v5832, %v6720
      %v6877 = vsel %vm305, %v6096, %v6733
      %v6881 = vsel %vm305, %v6097, %v6735
      %v6885 = vsel %vm305, %v6098, %v6737
      %v6889 = vsel %vm305, %v6099, %v6739
      %v6893 = vsel %vm305, %v6100, %v6741
      %v6897 = vsel %vm305, %v6101, %v6743
      %v6901 = vsel %vm305, %v6102, %v6745
      %v6905 = vsel %vm305, %v6103, %v6747
      %v6909 = vsel %vm305, %v6104, %v6749
      %v6913 = vsel %vm305, %v6105, %v6751
      %v6917 = vsel %vm305, %v6106, %v6753
      %v6921 = vsel %vm305, %v6370, %v6766
      %v6925 = vsel %vm305, %v6371, %v6768
      %v6929 = vsel %vm305, %v6372, %v6770
      %v6933 = vsel %vm305, %v6373, %v6772
      %v6937 = vsel %vm305, %v6374, %v6774
      %v6941 = vsel %vm305, %v6375, %v6776
      %v6945 = vsel %vm305, %v6376, %v6778
      %v6949 = vsel %vm305, %v6377, %v6780
      %v6953 = vsel %vm305, %v6378, %v6782
      %v6957 = vsel %vm305, %v6379, %v6784
      %v6961 = vsel %vm305, %v6380, %v6786
      %v6963 = vlaneseq
      %v6964 = vshrl.u32 %v6963, 7
      %v6965 = vsub.s32 0, %v6964
      %v6966 = vrot.slane %v5337, %v6965
      %v7039 = vunpack.c.l.b16 %v5265
      %v7040 = vunpack.c.l.b16 %v5266
      %v7041 = vunpack.c.l.b16 %v5267
      %v7042 = vunpack.c.l.b16 %v5268
      %v7043 = vunpack.c.l.b16 %v5269
      %v7044 = vunpack.c.l.b16 %v5270
      %v7045 = vunpack.c.l.b16 %v5271
      %v7046 = vunpack.c.l.b16 %v5272
      %v7047 = vunpack.c.l.b16 %v5273
      %v7048 = vunpack.c.l.b16 %v5274
      %v7049 = vunpack.c.l.b16 %v5275
      %v7050 = vunpack.c.l.b16 %v5276
      %v7051 = vunpack.c.l.b16 %v5277
      %v7052 = vunpack.c.l.b16 %v5278
      %v7053 = vunpack.c.l.b16 %v5279
      %v7054 = vunpack.c.l.b16 %v5280
      %v7055 = vunpack.c.l.b16 %v5281
      %v7056 = vunpack.c.l.b16 %v5282
      %v7057 = vunpack.c.l.b16 %v5283
      %v7058 = vunpack.c.l.b16 %v5284
      %v7059 = vunpack.c.l.b16 %v5285
      %v7060 = vunpack.c.l.b16 %v5286
      %v7061 = vunpack.c.l.b16 %v5287
      %v7062 = vunpack.c.l.b16 %v5288
      %v7063 = vunpack.c.l.b16 %v5289
      %v7064 = vunpack.c.l.b16 %v5290
      %v7065 = vunpack.c.l.b16 %v5291
      %v7066 = vunpack.c.l.b16 %v5292
      %v7067 = vunpack.c.l.b16 %v5293
      %v7068 = vunpack.c.l.b16 %v5294
      %v7069 = vunpack.c.l.b16 %v5295
      %v7070 = vunpack.c.l.b16 %v5296
      %v7071 = vunpack.c.l.b16 %v5297
      %v7072 = vunpack.c.l.b16 %v5298
      %v7073 = vunpack.c.l.b16 %v5299
      %v7074 = vunpack.c.l.b16 %v5300
      %v7075 = vunpack.c.l.b16 %v5301
      %v7076 = vunpack.c.l.b16 %v5302
      %v7077 = vunpack.c.l.b16 %v5303
      %v7078 = vunpack.c.l.b16 %v5304
      %v7079 = vunpack.c.l.b16 %v5305
      %v7080 = vunpack.c.l.b16 %v5306
      %v7081 = vunpack.c.l.b16 %v5307
      %v7082 = vunpack.c.l.b16 %v5308
      %v7083 = vunpack.c.l.b16 %v5309
      %v7084 = vunpack.c.l.b16 %v5310
      %v7085 = vunpack.c.l.b16 %v5311
      %v7086 = vunpack.c.l.b16 %v5312
      %v7087 = vunpack.c.l.b16 %v5313
      %v7088 = vunpack.c.l.b16 %v5314
      %v7089 = vunpack.c.l.b16 %v5315
      %v7090 = vunpack.c.l.b16 %v5316
      %v7091 = vunpack.c.l.b16 %v5317
      %v7092 = vunpack.c.l.b16 %v5318
      %v7093 = vunpack.c.l.b16 %v5319
      %v7094 = vunpack.c.l.b16 %v5320
      %v7095 = vunpack.c.l.b16 %v5321
      %v7096 = vunpack.c.l.b16 %v5322
      %v7097 = vunpack.c.l.b16 %v5323
      %v7098 = vunpack.c.l.b16 %v5324
      %v7099 = vunpack.c.l.b16 %v5325
      %v7100 = vunpack.c.l.b16 %v5326
      %v7101 = vunpack.c.l.b16 %v5327
      %v7102 = vunpack.c.l.b16 %v5328
      %v7103 = vunpack.c.l.b16 %v5329
      %v7104 = vunpack.c.l.b16 %v5330
      %v7105 = vunpack.c.l.b16 %v5331
      %v7106 = vunpack.c.l.b16 %v5332
      %v7107 = vunpack.c.l.b16 %v5333
      %v7108 = vunpack.c.l.b16 %v5334
      %v7109 = vunpack.c.l.b16 %v5335
      %v7110 = vunpack.c.l.b16 %v5336
      %v7111 = vpack.c.b16 %v7040, %v7039
      %v7112 = vpack.c.b16 %v7042, %v7041
      %v7113 = vpack.c.b16 %v7044, %v7043
      %v7114 = vpack.c.b16 %v7046, %v7045
      %v7115 = vpack.c.b16 %v7048, %v7047
      %v7116 = vpack.c.b16 %v7050, %v7049
      %v7117 = vpack.c.b16 %v7052, %v7051
      %v7118 = vpack.c.b16 %v7054, %v7053
      %v7119 = vpack.c.b16 %v7056, %v7055
      %v7120 = vpack.c.b16 %v7058, %v7057
      %v7121 = vpack.c.b16 %v7060, %v7059
      %v7122 = vpack.c.b16 %v7062, %v7061
      %v7123 = vpack.c.b16 %v7064, %v7063
      %v7124 = vpack.c.b16 %v7066, %v7065
      %v7125 = vpack.c.b16 %v7068, %v7067
      %v7126 = vpack.c.b16 %v7070, %v7069
      %v7127 = vpack.c.b16 %v7072, %v7071
      %v7128 = vpack.c.b16 %v7074, %v7073
      %v7129 = vpack.c.b16 %v7076, %v7075
      %v7130 = vpack.c.b16 %v7078, %v7077
      %v7131 = vpack.c.b16 %v7080, %v7079
      %v7132 = vpack.c.b16 %v7082, %v7081
      %v7133 = vpack.c.b16 %v7084, %v7083
      %v7134 = vpack.c.b16 %v7086, %v7085
      %v7135 = vpack.c.b16 %v7088, %v7087
      %v7136 = vpack.c.b16 %v7090, %v7089
      %v7137 = vpack.c.b16 %v7092, %v7091
      %v7138 = vpack.c.b16 %v7094, %v7093
      %v7139 = vpack.c.b16 %v7096, %v7095
      %v7140 = vpack.c.b16 %v7098, %v7097
      %v7141 = vpack.c.b16 %v7100, %v7099
      %v7142 = vpack.c.b16 %v7102, %v7101
      %v7143 = vpack.c.b16 %v7104, %v7103
      %v7144 = vpack.c.b16 %v7106, %v7105
      %v7145 = vpack.c.b16 %v7108, %v7107
      %v7146 = vpack.c.b16 %v7110, %v7109
      %v7184 = vsel %vm305, %v6644, 0
      %v7187 = vsel %vm305, %v6645, 0
      %v7190 = vsel %vm305, %v6646, 0
      %v7193 = vsel %vm305, %v6647, 0
      %v7196 = vsel %vm305, %v6648, 0
      %v7199 = vsel %vm305, %v6649, 0
      %v7202 = vsel %vm305, %v6650, 0
      %v7205 = vsel %vm305, %v6651, 0
      %v7208 = vsel %vm305, %v6652, 0
      %v7211 = vsel %vm305, %v6653, 0
      %v7214 = vsel %vm305, %v6654, 0
      %7216 = vmatprep.subr.bf16.mxu0 0
      %7217 = vmatpush1.bf16.msra.mxu0 %v7118
      %7218 = vmatprep.subr.bf16.mxu0 0
      %7219 = vmatpush1.bf16.msra.mxu0 %v7117
      %7220 = vmatprep.subr.bf16.mxu0 0
      %7221 = vmatpush1.bf16.msra.mxu0 %v7116
      %7222 = vmatprep.subr.bf16.mxu0 0
      %7223 = vmatpush1.bf16.msra.mxu0 %v7115
      %7224 = vmatprep.subr.bf16.mxu0 0
      %7225 = vmatpush1.bf16.msra.mxu0 %v7114
      %7226 = vmatprep.subr.bf16.mxu0 0
      %7227 = vmatpush1.bf16.msra.mxu0 %v7113
      %7228 = vmatprep.subr.bf16.mxu0 0
      %7229 = vmatpush1.bf16.msra.mxu0 %v7112
      %7230 = vmatprep.subr.bf16.mxu0 0
      %7231 = vmatpush1.bf16.msra.mxu0 %v7111
      %7232 = vmatprep.subr.bf16.mxu0 0
      %7233 = vmatpush2.bf16.msra.mxu0 %v7126
      %7234 = vmatprep.subr.bf16.mxu0 0
      %7235 = vmatpush2.bf16.msra.mxu0 %v7125
      %7236 = vmatprep.subr.bf16.mxu0 0
      %7237 = vmatpush2.bf16.msra.mxu0 %v7124
      %7238 = vmatprep.subr.bf16.mxu0 0
      %7239 = vmatpush2.bf16.msra.mxu0 %v7123
      %7240 = vmatprep.subr.bf16.mxu0 0
      %7241 = vmatpush2.bf16.msra.mxu0 %v7122
      %7242 = vmatprep.subr.bf16.mxu0 0
      %7243 = vmatpush2.bf16.msra.mxu0 %v7121
      %7244 = vmatprep.subr.bf16.mxu0 0
      %7245 = vmatpush2.bf16.msra.mxu0 %v7120
      %7246 = vmatprep.subr.bf16.mxu0 0
      %7247 = vmatpush2.bf16.msra.mxu0 %v7119
      %7248 = vmatprep.mubr.bf16.mxu0 %v6833
      %7249 = vmatmul.mubr.bf16.gmra.mxu0 %v6789
      %v7250 = vpop.f32.mrf.mxu0
      %v7251 = vadd.f32 %v6966, %v7250
      %v7252 = vpop.f32.mrf.mxu0
      %v7253 = vpop.f32.mrf.mxu0
      %v7254 = vadd.f32 %v6966, %v7253
      %v7255 = vpop.f32.mrf.mxu0
      %7256 = vmatprep.mubr.bf16.mxu0 %v6837
      %7257 = vmatmul.mubr.bf16.gmra.mxu0 %v6793
      %v7258 = vpop.f32.mrf.mxu0
      %v7259 = vadd.f32 %v6966, %v7258
      %v7260 = vpop.f32.mrf.mxu0
      %v7261 = vpop.f32.mrf.mxu0
      %v7262 = vadd.f32 %v6966, %v7261
      %v7263 = vpop.f32.mrf.mxu0
      %7264 = vmatprep.mubr.bf16.mxu0 %v6841
      %7265 = vmatmul.mubr.bf16.gmra.mxu0 %v6797
      %v7266 = vpop.f32.mrf.mxu0
      %v7267 = vadd.f32 %v6966, %v7266
      %v7268 = vpop.f32.mrf.mxu0
      %v7269 = vpop.f32.mrf.mxu0
      %v7270 = vadd.f32 %v6966, %v7269
      %v7271 = vpop.f32.mrf.mxu0
      %7272 = vmatprep.mubr.bf16.mxu0 %v6845
      %7273 = vmatmul.mubr.bf16.gmra.mxu0 %v6801
      %v7274 = vpop.f32.mrf.mxu0
      %v7275 = vadd.f32 %v6966, %v7274
      %v7276 = vpop.f32.mrf.mxu0
      %v7277 = vpop.f32.mrf.mxu0
      %v7278 = vadd.f32 %v6966, %v7277
      %v7279 = vpop.f32.mrf.mxu0
      %7280 = vmatprep.mubr.bf16.mxu0 %v6849
      %7281 = vmatmul.mubr.bf16.gmra.mxu0 %v6805
      %v7282 = vpop.f32.mrf.mxu0
      %v7283 = vadd.f32 %v6966, %v7282
      %v7284 = vpop.f32.mrf.mxu0
      %v7285 = vpop.f32.mrf.mxu0
      %v7286 = vadd.f32 %v6966, %v7285
      %v7287 = vpop.f32.mrf.mxu0
      %7288 = vmatprep.mubr.bf16.mxu0 %v6853
      %7289 = vmatmul.mubr.bf16.gmra.mxu0 %v6809
      %v7290 = vpop.f32.mrf.mxu0
      %v7291 = vadd.f32 %v6966, %v7290
      %v7292 = vpop.f32.mrf.mxu0
      %v7293 = vpop.f32.mrf.mxu0
      %v7294 = vadd.f32 %v6966, %v7293
      %v7295 = vpop.f32.mrf.mxu0
      %7296 = vmatprep.mubr.bf16.mxu0 %v6857
      %7297 = vmatmul.mubr.bf16.gmra.mxu0 %v6813
      %v7298 = vpop.f32.mrf.mxu0
      %v7299 = vadd.f32 %v6966, %v7298
      %v7300 = vpop.f32.mrf.mxu0
      %v7301 = vpop.f32.mrf.mxu0
      %v7302 = vadd.f32 %v6966, %v7301
      %v7303 = vpop.f32.mrf.mxu0
      %7304 = vmatprep.mubr.bf16.mxu0 %v6861
      %7305 = vmatmul.mubr.bf16.gmra.mxu0 %v6817
      %v7306 = vpop.f32.mrf.mxu0
      %v7307 = vadd.f32 %v6966, %v7306
      %v7308 = vpop.f32.mrf.mxu0
      %v7309 = vpop.f32.mrf.mxu0
      %v7310 = vadd.f32 %v6966, %v7309
      %v7311 = vpop.f32.mrf.mxu0
      %7312 = vmatprep.mubr.bf16.mxu0 %v6865
      %7313 = vmatmul.mubr.bf16.gmra.mxu0 %v6821
      %v7314 = vpop.f32.mrf.mxu0
      %v7315 = vadd.f32 %v6966, %v7314
      %v7316 = vpop.f32.mrf.mxu0
      %v7317 = vpop.f32.mrf.mxu0
      %v7318 = vadd.f32 %v6966, %v7317
      %v7319 = vpop.f32.mrf.mxu0
      %7320 = vmatprep.mubr.bf16.mxu0 %v6869
      %7321 = vmatmul.mubr.bf16.gmra.mxu0 %v6825
      %v7322 = vpop.f32.mrf.mxu0
      %v7323 = vadd.f32 %v6966, %v7322
      %v7324 = vpop.f32.mrf.mxu0
      %v7325 = vpop.f32.mrf.mxu0
      %v7326 = vadd.f32 %v6966, %v7325
      %v7327 = vpop.f32.mrf.mxu0
      %7328 = vmatprep.mubr.bf16.mxu0 %v6873
      %7329 = vmatmul.mubr.bf16.gmra.mxu0 %v6829
      %v7330 = vpop.f32.mrf.mxu0
      %v7331 = vadd.f32 %v6966, %v7330
      %v7332 = vpop.f32.mrf.mxu0
      %v7333 = vpop.f32.mrf.mxu0
      %v7334 = vpop.f32.mrf.mxu0
      %7335 = vdwg.mxu0
      %7336 = vmatprep.subr.bf16.mxu0 0
      %7337 = vmatpush1.bf16.msra.mxu0 %v7134
      %7338 = vmatprep.subr.bf16.mxu0 0
      %7339 = vmatpush1.bf16.msra.mxu0 %v7133
      %7340 = vmatprep.subr.bf16.mxu0 0
      %7341 = vmatpush1.bf16.msra.mxu0 %v7132
      %7342 = vmatprep.subr.bf16.mxu0 0
      %7343 = vmatpush1.bf16.msra.mxu0 %v7131
      %7344 = vmatprep.subr.bf16.mxu0 0
      %7345 = vmatpush1.bf16.msra.mxu0 %v7130
      %7346 = vmatprep.subr.bf16.mxu0 0
      %7347 = vmatpush1.bf16.msra.mxu0 %v7129
      %7348 = vmatprep.subr.bf16.mxu0 0
      %7349 = vmatpush1.bf16.msra.mxu0 %v7128
      %7350 = vmatprep.subr.bf16.mxu0 0
      %7351 = vmatpush1.bf16.msra.mxu0 %v7127
      %7352 = vmatprep.subr.bf16.mxu0 0
      %7353 = vmatpush2.bf16.msra.mxu0 %v7142
      %7354 = vmatprep.subr.bf16.mxu0 0
      %7355 = vmatpush2.bf16.msra.mxu0 %v7141
      %7356 = vmatprep.subr.bf16.mxu0 0
      %7357 = vmatpush2.bf16.msra.mxu0 %v7140
      %7358 = vmatprep.subr.bf16.mxu0 0
      %7359 = vmatpush2.bf16.msra.mxu0 %v7139
      %7360 = vmatprep.subr.bf16.mxu0 0
      %7361 = vmatpush2.bf16.msra.mxu0 %v7138
      %7362 = vmatprep.subr.bf16.mxu0 0
      %7363 = vmatpush2.bf16.msra.mxu0 %v7137
      %7364 = vmatprep.subr.bf16.mxu0 0
      %7365 = vmatpush2.bf16.msra.mxu0 %v7136
      %7366 = vmatprep.subr.bf16.mxu0 0
      %7367 = vmatpush2.bf16.msra.mxu0 %v7135
      %7368 = vmatprep.mubr.bf16.mxu0 %v6921
      %7369 = vmatmul.mubr.bf16.gmra.mxu0 %v6877
      %v7370 = vpop.f32.mrf.mxu0
      %v7371 = vadd.f32 %v7251, %v7370
      %v7372 = vpop.f32.mrf.mxu0
      %v7373 = vpop.f32.mrf.mxu0
      %v7374 = vadd.f32 %v7254, %v7373
      %v7375 = vpop.f32.mrf.mxu0
      %7376 = vmatprep.mubr.bf16.mxu0 %v6925
      %7377 = vmatmul.mubr.bf16.gmra.mxu0 %v6881
      %v7378 = vpop.f32.mrf.mxu0
      %v7379 = vadd.f32 %v7259, %v7378
      %v7380 = vpop.f32.mrf.mxu0
      %v7381 = vpop.f32.mrf.mxu0
      %v7382 = vadd.f32 %v7262, %v7381
      %v7383 = vpop.f32.mrf.mxu0
      %7384 = vmatprep.mubr.bf16.mxu0 %v6929
      %7385 = vmatmul.mubr.bf16.gmra.mxu0 %v6885
      %v7386 = vpop.f32.mrf.mxu0
      %v7387 = vadd.f32 %v7267, %v7386
      %v7388 = vpop.f32.mrf.mxu0
      %v7389 = vpop.f32.mrf.mxu0
      %v7390 = vadd.f32 %v7270, %v7389
      %v7391 = vpop.f32.mrf.mxu0
      %7392 = vmatprep.mubr.bf16.mxu0 %v6933
      %7393 = vmatmul.mubr.bf16.gmra.mxu0 %v6889
      %v7394 = vpop.f32.mrf.mxu0
      %v7395 = vadd.f32 %v7275, %v7394
      %v7396 = vpop.f32.mrf.mxu0
      %v7397 = vpop.f32.mrf.mxu0
      %v7398 = vadd.f32 %v7278, %v7397
      %v7399 = vpop.f32.mrf.mxu0
      %7400 = vmatprep.mubr.bf16.mxu0 %v6937
      %7401 = vmatmul.mubr.bf16.gmra.mxu0 %v6893
      %v7402 = vpop.f32.mrf.mxu0
      %v7403 = vadd.f32 %v7283, %v7402
      %v7404 = vpop.f32.mrf.mxu0
      %v7405 = vpop.f32.mrf.mxu0
      %v7406 = vadd.f32 %v7286, %v7405
      %v7407 = vpop.f32.mrf.mxu0
      %7408 = vmatprep.mubr.bf16.mxu0 %v6941
      %7409 = vmatmul.mubr.bf16.gmra.mxu0 %v6897
      %v7410 = vpop.f32.mrf.mxu0
      %v7411 = vadd.f32 %v7291, %v7410
      %v7412 = vpop.f32.mrf.mxu0
      %v7413 = vpop.f32.mrf.mxu0
      %v7414 = vadd.f32 %v7294, %v7413
      %v7415 = vpop.f32.mrf.mxu0
      %7416 = vmatprep.mubr.bf16.mxu0 %v6945
      %7417 = vmatmul.mubr.bf16.gmra.mxu0 %v6901
      %v7418 = vpop.f32.mrf.mxu0
      %v7419 = vadd.f32 %v7299, %v7418
      %v7420 = vpop.f32.mrf.mxu0
      %v7421 = vpop.f32.mrf.mxu0
      %v7422 = vadd.f32 %v7302, %v7421
      %v7423 = vpop.f32.mrf.mxu0
      %7424 = vmatprep.mubr.bf16.mxu0 %v6949
      %7425 = vmatmul.mubr.bf16.gmra.mxu0 %v6905
      %v7426 = vpop.f32.mrf.mxu0
      %v7427 = vadd.f32 %v7307, %v7426
      %v7428 = vpop.f32.mrf.mxu0
      %v7429 = vpop.f32.mrf.mxu0
      %v7430 = vadd.f32 %v7310, %v7429
      %v7431 = vpop.f32.mrf.mxu0
      %7432 = vmatprep.mubr.bf16.mxu0 %v6953
      %7433 = vmatmul.mubr.bf16.gmra.mxu0 %v6909
      %v7434 = vpop.f32.mrf.mxu0
      %v7435 = vadd.f32 %v7315, %v7434
      %v7436 = vpop.f32.mrf.mxu0
      %v7437 = vpop.f32.mrf.mxu0
      %v7438 = vadd.f32 %v7318, %v7437
      %v7439 = vpop.f32.mrf.mxu0
      %7440 = vmatprep.mubr.bf16.mxu0 %v6957
      %7441 = vmatmul.mubr.bf16.gmra.mxu0 %v6913
      %v7442 = vpop.f32.mrf.mxu0
      %v7443 = vadd.f32 %v7323, %v7442
      %v7444 = vpop.f32.mrf.mxu0
      %v7445 = vpop.f32.mrf.mxu0
      %v7446 = vadd.f32 %v7326, %v7445
      %v7447 = vpop.f32.mrf.mxu0
      %7448 = vmatprep.mubr.bf16.mxu0 %v6961
      %7449 = vmatmul.mubr.bf16.gmra.mxu0 %v6917
      %v7450 = vpop.f32.mrf.mxu0
      %v7451 = vadd.f32 %v7331, %v7450
      %v7452 = vpop.f32.mrf.mxu0
      %v7453 = vpop.f32.mrf.mxu0
      %v7454 = vpop.f32.mrf.mxu0
      %7455 = vdwg.mxu0
      %7456 = vmatprep.subr.bf16.mxu0 0
      %7457 = vmatpush1.bf16.msra.mxu0 0
      %7458 = vmatprep.subr.bf16.mxu0 0
      %7459 = vmatpush1.bf16.msra.mxu0 0
      %7460 = vmatprep.subr.bf16.mxu0 0
      %7461 = vmatpush1.bf16.msra.mxu0 0
      %7462 = vmatprep.subr.bf16.mxu0 0
      %7463 = vmatpush1.bf16.msra.mxu0 0
      %7464 = vmatprep.subr.bf16.mxu0 0
      %7465 = vmatpush1.bf16.msra.mxu0 %v7146
      %7466 = vmatprep.subr.bf16.mxu0 0
      %7467 = vmatpush1.bf16.msra.mxu0 %v7145
      %7468 = vmatprep.subr.bf16.mxu0 0
      %7469 = vmatpush1.bf16.msra.mxu0 %v7144
      %7470 = vmatprep.subr.bf16.mxu0 0
      %7471 = vmatpush1.bf16.msra.mxu0 %v7143
      %7472 = vmatprep.subr.bf16.mxu0 0
      %7473 = vmatpush2.bf16.msra.mxu0 0
      %7474 = vmatprep.subr.bf16.mxu0 0
      %7475 = vmatpush2.bf16.msra.mxu0 0
      %7476 = vmatprep.subr.bf16.mxu0 0
      %7477 = vmatpush2.bf16.msra.mxu0 0
      %7478 = vmatprep.subr.bf16.mxu0 0
      %7479 = vmatpush2.bf16.msra.mxu0 0
      %7480 = vmatprep.subr.bf16.mxu0 0
      %7481 = vmatpush2.bf16.msra.mxu0 0
      %7482 = vmatprep.subr.bf16.mxu0 0
      %7483 = vmatpush2.bf16.msra.mxu0 0
      %7484 = vmatprep.subr.bf16.mxu0 0
      %7485 = vmatpush2.bf16.msra.mxu0 0
      %7486 = vmatprep.subr.bf16.mxu0 0
      %7487 = vmatpush2.bf16.msra.mxu0 0
      %7488 = vmatprep.mubr.bf16.mxu0 0
      %7489 = vmatmul.mubr.bf16.gmra.mxu0 %v7184
      %v7490 = vpop.f32.mrf.mxu0
      %v7491 = vadd.f32 %v7371, %v7490
      %v7492 = vpop.f32.mrf.mxu0
      %v7493 = vpop.f32.mrf.mxu0
      %v7494 = vadd.f32 %v7374, %v7493
      %v7495 = vpop.f32.mrf.mxu0
      %7496 = vmatprep.mubr.bf16.mxu0 0
      %7497 = vmatmul.mubr.bf16.gmra.mxu0 %v7187
      %v7498 = vpop.f32.mrf.mxu0
      %v7499 = vadd.f32 %v7379, %v7498
      %v7500 = vpop.f32.mrf.mxu0
      %v7501 = vpop.f32.mrf.mxu0
      %v7502 = vadd.f32 %v7382, %v7501
      %v7503 = vpop.f32.mrf.mxu0
      %7504 = vmatprep.mubr.bf16.mxu0 0
      %7505 = vmatmul.mubr.bf16.gmra.mxu0 %v7190
      %v7506 = vpop.f32.mrf.mxu0
      %v7507 = vadd.f32 %v7387, %v7506
      %v7508 = vpop.f32.mrf.mxu0
      %v7509 = vpop.f32.mrf.mxu0
      %v7510 = vadd.f32 %v7390, %v7509
      %v7511 = vpop.f32.mrf.mxu0
      %7512 = vmatprep.mubr.bf16.mxu0 0
      %7513 = vmatmul.mubr.bf16.gmra.mxu0 %v7193
      %v7514 = vpop.f32.mrf.mxu0
      %v7515 = vadd.f32 %v7395, %v7514
      %v7516 = vpop.f32.mrf.mxu0
      %v7517 = vpop.f32.mrf.mxu0
      %v7518 = vadd.f32 %v7398, %v7517
      %v7519 = vpop.f32.mrf.mxu0
      %7520 = vmatprep.mubr.bf16.mxu0 0
      %7521 = vmatmul.mubr.bf16.gmra.mxu0 %v7196
      %v7522 = vpop.f32.mrf.mxu0
      %v7523 = vadd.f32 %v7403, %v7522
      %v7524 = vpop.f32.mrf.mxu0
      %v7525 = vpop.f32.mrf.mxu0
      %v7526 = vadd.f32 %v7406, %v7525
      %v7527 = vpop.f32.mrf.mxu0
      %7528 = vmatprep.mubr.bf16.mxu0 0
      %7529 = vmatmul.mubr.bf16.gmra.mxu0 %v7199
      %v7530 = vpop.f32.mrf.mxu0
      %v7531 = vadd.f32 %v7411, %v7530
      %v7532 = vpop.f32.mrf.mxu0
      %v7533 = vpop.f32.mrf.mxu0
      %v7534 = vadd.f32 %v7414, %v7533
      %v7535 = vpop.f32.mrf.mxu0
      %7536 = vmatprep.mubr.bf16.mxu0 0
      %7537 = vmatmul.mubr.bf16.gmra.mxu0 %v7202
      %v7538 = vpop.f32.mrf.mxu0
      %v7539 = vadd.f32 %v7419, %v7538
      %v7540 = vpop.f32.mrf.mxu0
      %v7541 = vpop.f32.mrf.mxu0
      %v7542 = vadd.f32 %v7422, %v7541
      %v7543 = vpop.f32.mrf.mxu0
      %7544 = vmatprep.mubr.bf16.mxu0 0
      %7545 = vmatmul.mubr.bf16.gmra.mxu0 %v7205
      %v7546 = vpop.f32.mrf.mxu0
      %v7547 = vadd.f32 %v7427, %v7546
      %v7548 = vpop.f32.mrf.mxu0
      %v7549 = vpop.f32.mrf.mxu0
      %v7550 = vadd.f32 %v7430, %v7549
      %v7551 = vpop.f32.mrf.mxu0
      %7552 = vmatprep.mubr.bf16.mxu0 0
      %7553 = vmatmul.mubr.bf16.gmra.mxu0 %v7208
      %v7554 = vpop.f32.mrf.mxu0
      %v7555 = vadd.f32 %v7435, %v7554
      %v7556 = vpop.f32.mrf.mxu0
      %v7557 = vpop.f32.mrf.mxu0
      %v7558 = vadd.f32 %v7438, %v7557
      %v7559 = vpop.f32.mrf.mxu0
      %7560 = vmatprep.mubr.bf16.mxu0 0
      %7561 = vmatmul.mubr.bf16.gmra.mxu0 %v7211
      %v7562 = vpop.f32.mrf.mxu0
      %v7563 = vadd.f32 %v7443, %v7562
      %v7564 = vpop.f32.mrf.mxu0
      %v7565 = vpop.f32.mrf.mxu0
      %v7566 = vadd.f32 %v7446, %v7565
      %v7567 = vpop.f32.mrf.mxu0
      %7568 = vmatprep.mubr.bf16.mxu0 0
      %7569 = vmatmul.mubr.bf16.gmra.mxu0 %v7214
      %v7570 = vpop.f32.mrf.mxu0
      %v7571 = vadd.f32 %v7451, %v7570
      %v7572 = vpop.f32.mrf.mxu0
      %v7573 = vpop.f32.mrf.mxu0
      %v7574 = vpop.f32.mrf.mxu0
      %7575 = vdwg.mxu0
      %v7576 = vmax.f32 %v7491, 0.0
      %v7577 = vmax.f32 %v7494, 0.0
      %v7578 = vmax.f32 %v7499, 0.0
      %v7579 = vmax.f32 %v7502, 0.0
      %v7580 = vmax.f32 %v7507, 0.0
      %v7581 = vmax.f32 %v7510, 0.0
      %v7582 = vmax.f32 %v7515, 0.0
      %v7583 = vmax.f32 %v7518, 0.0
      %v7584 = vmax.f32 %v7523, 0.0
      %v7585 = vmax.f32 %v7526, 0.0
      %v7586 = vmax.f32 %v7531, 0.0
      %v7587 = vmax.f32 %v7534, 0.0
      %v7588 = vmax.f32 %v7539, 0.0
      %v7589 = vmax.f32 %v7542, 0.0
      %v7590 = vmax.f32 %v7547, 0.0
      %v7591 = vmax.f32 %v7550, 0.0
      %v7592 = vmax.f32 %v7555, 0.0
      %v7593 = vmax.f32 %v7558, 0.0
      %v7594 = vmax.f32 %v7563, 0.0
      %v7595 = vmax.f32 %v7566, 0.0
      %v7596 = vmax.f32 %v7571, 0.0
      %s7597 = scalar_lea.vmem %s4, 864
      %v7598 = vld [vmem:[%s7597] sm:$0xf]
      %v7599 = vld [vmem:[%s7597 + $0x4] sm:$0xf]
      %v7600 = vld [vmem:[%s7597 + $0x8] sm:$0xf]
      %v7601 = vld [vmem:[%s7597 + $0xc] sm:$0xf]
      %v7602 = vld [vmem:[%s7597 + $0x10] sm:$0xf]
      %v7603 = vld [vmem:[%s7597 + $0x14] sm:$0xf]
      %v7604 = vld [vmem:[%s7597 + $0x18] sm:$0xf]
      %v7605 = vld [vmem:[%s7597 + $0x1c] sm:$0xf]
      %v7606 = vld [vmem:[%s7597 + $0x20] sm:$0xf]
      %v7607 = vld [vmem:[%s7597 + $0x24] sm:$0xf]
      %v7608 = vld [vmem:[%s7597 + $0x28] sm:$0xf]
      %v7609 = vld [vmem:[%s7597 + $0x2c] sm:$0xf]
      %v7610 = vld [vmem:[%s7597 + $0x30] sm:$0xf]
      %v7611 = vld [vmem:[%s7597 + $0x34] sm:$0xf]
      %v7612 = vld [vmem:[%s7597 + $0x38] sm:$0xf]
      %v7613 = vld [vmem:[%s7597 + $0x3c] sm:$0xf]
      %v7614 = vld [vmem:[%s7597 + $0x40] sm:$0xf]
      %v7615 = vld [vmem:[%s7597 + $0x44] sm:$0xf]
      %v7616 = vld [vmem:[%s7597 + $0x48] sm:$0xf]
      %v7617 = vld [vmem:[%s7597 + $0x4c] sm:$0xf]
      %v7618 = vld [vmem:[%s7597 + $0x50] sm:$0xf]
      %v7619 = vld [vmem:[%s7597 + $0x54] sm:$0xf]
      %v7620 = vld [vmem:[%s7597 + $0x58] sm:$0xf]
      %v7621 = vld [vmem:[%s7597 + $0x5c] sm:$0xf]
      %v7622 = vld [vmem:[%s7597 + $0x60] sm:$0xf]
      %v7623 = vld [vmem:[%s7597 + $0x64] sm:$0xf]
      %v7624 = vld [vmem:[%s7597 + $0x68] sm:$0xf]
      %v7625 = vld [vmem:[%s7597 + $0x6c] sm:$0xf]
      %v7626 = vld [vmem:[%s7597 + $0x70] sm:$0xf]
      %v7627 = vld [vmem:[%s7597 + $0x74] sm:$0xf]
      %v7628 = vld [vmem:[%s7597 + $0x78] sm:$0xf]
      %v7629 = vld [vmem:[%s7597 + $0x7c] sm:$0xf]
      %v7630 = vld [vmem:[%s7597 + $0x80] sm:$0xf]
      %v7631 = vld [vmem:[%s7597 + $0x84] sm:$0xf]
      %v7632 = vld [vmem:[%s7597 + $0x88] sm:$0xf]
      %v7633 = vld [vmem:[%s7597 + $0x8c] sm:$0xf]
      %v7634 = vld [vmem:[%s7597 + $0x90] sm:$0xf]
      %v7635 = vld [vmem:[%s7597 + $0x94] sm:$0xf]
      %v7636 = vld [vmem:[%s7597 + $0x98] sm:$0xf]
      %v7637 = vld [vmem:[%s7597 + $0x9c] sm:$0xf]
      %v7638 = vld [vmem:[%s7597 + $0xa0] sm:$0xf]
      %v7639 = vld [vmem:[%s7597 + $0xa4] sm:$0xf]
      %v7640 = vld [vmem:[%s7597 + $0xa8] sm:$0xf]
      %v7641 = vld [vmem:[%s7597 + $0xac] sm:$0xf]
      %v7642 = vld [vmem:[%s7597 + $0xb0] sm:$0xf]
      %v7643 = vld [vmem:[%s7597 + $0xb4] sm:$0xf]
      %v7644 = vld [vmem:[%s7597 + $0xb8] sm:$0xf]
      %v7645 = vld [vmem:[%s7597 + $0xbc] sm:$0xf]
      %v7646 = vld [vmem:[%s7597 + $0xc0] sm:$0xf]
      %v7647 = vld [vmem:[%s7597 + $0xc4] sm:$0xf]
      %v7648 = vld [vmem:[%s7597 + $0xc8] sm:$0xf]
      %v7649 = vld [vmem:[%s7597 + $0xcc] sm:$0xf]
      %v7650 = vld [vmem:[%s7597 + $0xd0] sm:$0xf]
      %v7651 = vld [vmem:[%s7597 + $0xd4] sm:$0xf]
      %v7652 = vld [vmem:[%s7597 + $0xd8] sm:$0xf]
      %v7653 = vld [vmem:[%s7597 + $0xdc] sm:$0xf]
      %v7654 = vld [vmem:[%s7597 + $0xe0] sm:$0xf]
      %v7655 = vld [vmem:[%s7597 + $0xe4] sm:$0xf]
      %v7656 = vld [vmem:[%s7597 + $0xe8] sm:$0xf]
      %v7657 = vld [vmem:[%s7597 + $0xec] sm:$0xf]
      %v7658 = vld [vmem:[%s7597 + $0xf0] sm:$0xf]
      %v7659 = vld [vmem:[%s7597 + $0xf4] sm:$0xf]
      %v7660 = vld [vmem:[%s7597 + $0xf8] sm:$0xf]
      %v7661 = vld [vmem:[%s7597 + $0xfc] sm:$0xf]
      %v7662 = vld [vmem:[%s7597 + $0x100] sm:$0xf]
      %v7663 = vld [vmem:[%s7597 + $0x104] sm:$0xf]
      %v7664 = vld [vmem:[%s7597 + $0x108] sm:$0xf]
      %v7665 = vld [vmem:[%s7597 + $0x10c] sm:$0xf]
      %v7666 = vld [vmem:[%s7597 + $0x110] sm:$0xf]
      %v7667 = vld [vmem:[%s7597 + $0x114] sm:$0xf]
      %v7668 = vld [vmem:[%s7597 + $0x118] sm:$0xf]
      %v7669 = vld [vmem:[%s7597 + $0x11c] sm:$0xf]
      %v7670 = vld [vmem:[%s6 + $0x4] sm:$0x1]
      %7671 = vst.msk [vmem:[#allocation2 + $0x8] sm:$0xff] %vm305, %v7576
      %7672 = vst.msk [vmem:[#allocation2 + $0x10] sm:$0xff] %vm305, %v7577
      %7673 = vst.msk [vmem:[#allocation2 + $0x18] sm:$0xff] %vm305, %v7578
      %7674 = vst.msk [vmem:[#allocation2 + $0x20] sm:$0xff] %vm305, %v7579
      %7675 = vst.msk [vmem:[#allocation2 + $0x28] sm:$0xff] %vm305, %v7580
      %7676 = vst.msk [vmem:[#allocation2 + $0x30] sm:$0xff] %vm305, %v7581
      %7677 = vst.msk [vmem:[#allocation2 + $0x38] sm:$0xff] %vm305, %v7582
      %7678 = vst.msk [vmem:[#allocation2 + $0x40] sm:$0xff] %vm305, %v7583
      %7679 = vst.msk [vmem:[#allocation2 + $0x48] sm:$0xff] %vm305, %v7584
      %7680 = vst.msk [vmem:[#allocation2 + $0x50] sm:$0xff] %vm305, %v7585
      %7681 = vst.msk [vmem:[#allocation2 + $0x58] sm:$0xff] %vm305, %v7586
      %7682 = vst.msk [vmem:[#allocation2 + $0x60] sm:$0xff] %vm305, %v7587
      %7683 = vst.msk [vmem:[#allocation2 + $0x68] sm:$0xff] %vm305, %v7588
      %7684 = vst.msk [vmem:[#allocation2 + $0x70] sm:$0xff] %vm305, %v7589
      %7685 = vst.msk [vmem:[#allocation2 + $0x78] sm:$0xff] %vm305, %v7590
      %7686 = vst.msk [vmem:[#allocation2 + $0x80] sm:$0xff] %vm305, %v7591
      %7687 = vst.msk [vmem:[#allocation2 + $0x88] sm:$0xff] %vm305, %v7592
      %7688 = vst.msk [vmem:[#allocation2 + $0x90] sm:$0xff] %vm305, %v7593
      %7689 = vst.msk [vmem:[#allocation2 + $0x98] sm:$0xff] %vm305, %v7594
      %7690 = vst.msk [vmem:[#allocation2 + $0xa0] sm:$0xff] %vm305, %v7595
      %7691 = vst.msk [vmem:[#allocation2 + $0xa8] sm:$0xff] %vm305, %v7596
      %v7692 = vld [vmem:[#allocation2] sm:$0xff]
      %v7693 = vld [vmem:[#allocation2 + $0x8] sm:$0xff]
      %v7694 = vld [vmem:[#allocation2 + $0x10] sm:$0xff]
      %v7695 = vld [vmem:[#allocation2 + $0x18] sm:$0xff]
      %v7696 = vld [vmem:[#allocation2 + $0x20] sm:$0xff]
      %v7697 = vld [vmem:[#allocation2 + $0x28] sm:$0xff]
      %v7698 = vld [vmem:[#allocation2 + $0x30] sm:$0xff]
      %v7699 = vld [vmem:[#allocation2 + $0x38] sm:$0xff]
      %v7700 = vld [vmem:[#allocation2 + $0x40] sm:$0xff]
      %v7701 = vld [vmem:[#allocation2 + $0x48] sm:$0xff]
      %v7702 = vld [vmem:[#allocation2 + $0x50] sm:$0xff]
      %v7703 = vld [vmem:[#allocation2 + $0x58] sm:$0xff]
      %v7704 = vld [vmem:[#allocation2 + $0x60] sm:$0xff]
      %v7705 = vld [vmem:[#allocation2 + $0x68] sm:$0xff]
      %v7706 = vld [vmem:[#allocation2 + $0x70] sm:$0xff]
      %v7707 = vld [vmem:[#allocation2 + $0x78] sm:$0xff]
      %v7708 = vld [vmem:[#allocation2 + $0x80] sm:$0xff]
      %v7709 = vld [vmem:[#allocation2 + $0x88] sm:$0xff]
      %v7710 = vld [vmem:[#allocation2 + $0x90] sm:$0xff]
      %v7711 = vld [vmem:[#allocation2 + $0x98] sm:$0xff]
      %v7712 = vld [vmem:[#allocation2 + $0xa0] sm:$0xff]
      %v7713 = vld [vmem:[%s1] sm:$0xf]
      %v7714 = vld [vmem:[%s1 + $0x4] sm:$0xf]
      %v7715 = vld [vmem:[%s1 + $0x8] sm:$0xf]
      %v7716 = vld [vmem:[%s1 + $0xc] sm:$0xf]
      %v7717 = vld [vmem:[%s1 + $0x10] sm:$0xf]
      %v7718 = vld [vmem:[%s1 + $0x14] sm:$0xf]
      %v7719 = vld [vmem:[%s1 + $0x18] sm:$0xf]
      %v7720 = vld [vmem:[%s1 + $0x1c] sm:$0xf]
      %v7721 = vld [vmem:[%s1 + $0x20] sm:$0xf]
      %v7722 = vld [vmem:[%s1 + $0x24] sm:$0xf]
      %v7723 = vld [vmem:[%s1 + $0x28] sm:$0xf]
      %v7724 = vld [vmem:[%s1 + $0x2c] sm:$0xf]
      %v7725 = vld [vmem:[%s1 + $0x30] sm:$0xf]
      %v7726 = vld [vmem:[%s1 + $0x34] sm:$0xf]
      %v7727 = vld [vmem:[%s1 + $0x38] sm:$0xf]
      %v7728 = vld [vmem:[%s1 + $0x3c] sm:$0xf]
      %v7729 = vld [vmem:[%s1 + $0x40] sm:$0xf]
      %v7730 = vld [vmem:[%s1 + $0x44] sm:$0xf]
      %v7731 = vld [vmem:[%s1 + $0x48] sm:$0xf]
      %v7732 = vld [vmem:[%s1 + $0x4c] sm:$0xf]
      %v7733 = vld [vmem:[%s1 + $0x50] sm:$0xf]
      %v7734 = vunpack.c.l.bf16 %v7713
      %v7735 = vunpack.c.l.bf16 %v7714
      %v7736 = vunpack.c.l.bf16 %v7715
      %v7737 = vunpack.c.l.bf16 %v7716
      %v7738 = vunpack.c.l.bf16 %v7717
      %v7739 = vunpack.c.l.bf16 %v7718
      %v7740 = vunpack.c.l.bf16 %v7719
      %v7741 = vunpack.c.l.bf16 %v7720
      %v7742 = vunpack.c.l.bf16 %v7721
      %v7743 = vunpack.c.l.bf16 %v7722
      %v7744 = vunpack.c.l.bf16 %v7723
      %v7745 = vunpack.c.l.bf16 %v7724
      %v7746 = vunpack.c.l.bf16 %v7725
      %v7747 = vunpack.c.l.bf16 %v7726
      %v7748 = vunpack.c.l.bf16 %v7727
      %v7749 = vunpack.c.l.bf16 %v7728
      %v7750 = vunpack.c.l.bf16 %v7729
      %v7751 = vunpack.c.l.bf16 %v7730
      %v7752 = vunpack.c.l.bf16 %v7731
      %v7753 = vunpack.c.l.bf16 %v7732
      %v7754 = vunpack.c.l.bf16 %v7733
      %7756 = vset.pattern.permute.xlu0 0
      %7757 = vperm.xlu0 %7756, %v7734
      %v7758 = vpop.permute.xlu0 %7757
      %7761 = vset.pattern.permute.xlu0 0
      %7762 = vperm.xlu0 %7761, %v7735
      %v7763 = vpop.permute.xlu0 %7762
      %7766 = vset.pattern.permute.xlu0 0
      %7767 = vperm.xlu0 %7766, %v7736
      %v7768 = vpop.permute.xlu0 %7767
      %7771 = vset.pattern.permute.xlu0 0
      %7772 = vperm.xlu0 %7771, %v7737
      %v7773 = vpop.permute.xlu0 %7772
      %7776 = vset.pattern.permute.xlu0 0
      %7777 = vperm.xlu0 %7776, %v7738
      %v7778 = vpop.permute.xlu0 %7777
      %7781 = vset.pattern.permute.xlu0 0
      %7782 = vperm.xlu0 %7781, %v7739
      %v7783 = vpop.permute.xlu0 %7782
      %7786 = vset.pattern.permute.xlu0 0
      %7787 = vperm.xlu0 %7786, %v7740
      %v7788 = vpop.permute.xlu0 %7787
      %7791 = vset.pattern.permute.xlu0 0
      %7792 = vperm.xlu0 %7791, %v7741
      %v7793 = vpop.permute.xlu0 %7792
      %7796 = vset.pattern.permute.xlu0 0
      %7797 = vperm.xlu0 %7796, %v7742
      %v7798 = vpop.permute.xlu0 %7797
      %7801 = vset.pattern.permute.xlu0 0
      %7802 = vperm.xlu0 %7801, %v7743
      %v7803 = vpop.permute.xlu0 %7802
      %7806 = vset.pattern.permute.xlu0 0
      %7807 = vperm.xlu0 %7806, %v7744
      %v7808 = vpop.permute.xlu0 %7807
      %7811 = vset.pattern.permute.xlu0 0
      %7812 = vperm.xlu0 %7811, %v7745
      %v7813 = vpop.permute.xlu0 %7812
      %7816 = vset.pattern.permute.xlu0 0
      %7817 = vperm.xlu0 %7816, %v7746
      %v7818 = vpop.permute.xlu0 %7817
      %7821 = vset.pattern.permute.xlu0 0
      %7822 = vperm.xlu0 %7821, %v7747
      %v7823 = vpop.permute.xlu0 %7822
      %7826 = vset.pattern.permute.xlu0 0
      %7827 = vperm.xlu0 %7826, %v7748
      %v7828 = vpop.permute.xlu0 %7827
      %7831 = vset.pattern.permute.xlu0 0
      %7832 = vperm.xlu0 %7831, %v7749
      %v7833 = vpop.permute.xlu0 %7832
      %7836 = vset.pattern.permute.xlu0 0
      %7837 = vperm.xlu0 %7836, %v7750
      %v7838 = vpop.permute.xlu0 %7837
      %7841 = vset.pattern.permute.xlu0 0
      %7842 = vperm.xlu0 %7841, %v7751
      %v7843 = vpop.permute.xlu0 %7842
      %7846 = vset.pattern.permute.xlu0 0
      %7847 = vperm.xlu0 %7846, %v7752
      %v7848 = vpop.permute.xlu0 %7847
      %7851 = vset.pattern.permute.xlu0 0
      %7852 = vperm.xlu0 %7851, %v7753
      %v7853 = vpop.permute.xlu0 %7852
      %7856 = vset.pattern.permute.xlu0 0
      %7857 = vperm.xlu0 %7856, %v7754
      %v7858 = vpop.permute.xlu0 %7857
      %v7860 = vmul.f32 %v7692, %v7758
      %v7861 = vmul.f32 %v7693, %v7763
      %v7862 = vmul.f32 %v7694, %v7768
      %v7863 = vmul.f32 %v7695, %v7773
      %v7864 = vmul.f32 %v7696, %v7778
      %v7865 = vmul.f32 %v7697, %v7783
      %v7866 = vmul.f32 %v7698, %v7788
      %v7867 = vmul.f32 %v7699, %v7793
      %v7868 = vmul.f32 %v7700, %v7798
      %v7869 = vmul.f32 %v7701, %v7803
      %v7870 = vmul.f32 %v7702, %v7808
      %v7871 = vmul.f32 %v7703, %v7813
      %v7872 = vmul.f32 %v7704, %v7818
      %v7873 = vmul.f32 %v7705, %v7823
      %v7874 = vmul.f32 %v7706, %v7828
      %v7875 = vmul.f32 %v7707, %v7833
      %v7876 = vmul.f32 %v7708, %v7838
      %v7877 = vmul.f32 %v7709, %v7843
      %v7878 = vmul.f32 %v7710, %v7848
      %v7879 = vmul.f32 %v7711, %v7853
      %v7880 = vmul.f32 %v7712, %v7858
      %v7881 = vpack.c.bf16 %v7861, %v7860
      %v7882 = vpack.c.bf16 %v7863, %v7862
      %v7883 = vpack.c.bf16 %v7865, %v7864
      %v7884 = vpack.c.bf16 %v7867, %v7866
      %v7885 = vpack.c.bf16 %v7869, %v7868
      %v7886 = vpack.c.bf16 %v7871, %v7870
      %v7887 = vpack.c.bf16 %v7873, %v7872
      %v7888 = vpack.c.bf16 %v7875, %v7874
      %v7889 = vpack.c.bf16 %v7877, %v7876
      %v7890 = vpack.c.bf16 %v7879, %v7878
      %v7891 = vpack.c.bf16 %v7880, %v7880
      %v7892 = vld [vmem:[#allocation2 + $0x1] sm:$0xff]
      %v7893 = vld [vmem:[#allocation2 + $0x9] sm:$0xff]
      %v7894 = vld [vmem:[#allocation2 + $0x11] sm:$0xff]
      %v7895 = vld [vmem:[#allocation2 + $0x19] sm:$0xff]
      %v7896 = vld [vmem:[#allocation2 + $0x21] sm:$0xff]
      %v7897 = vld [vmem:[#allocation2 + $0x29] sm:$0xff]
      %v7898 = vld [vmem:[#allocation2 + $0x31] sm:$0xff]
      %v7899 = vld [vmem:[#allocation2 + $0x39] sm:$0xff]
      %v7900 = vld [vmem:[#allocation2 + $0x41] sm:$0xff]
      %v7901 = vld [vmem:[#allocation2 + $0x49] sm:$0xff]
      %v7902 = vld [vmem:[#allocation2 + $0x51] sm:$0xff]
      %v7903 = vld [vmem:[#allocation2 + $0x59] sm:$0xff]
      %v7904 = vld [vmem:[#allocation2 + $0x61] sm:$0xff]
      %v7905 = vld [vmem:[#allocation2 + $0x69] sm:$0xff]
      %v7906 = vld [vmem:[#allocation2 + $0x71] sm:$0xff]
      %v7907 = vld [vmem:[#allocation2 + $0x79] sm:$0xff]
      %v7908 = vld [vmem:[#allocation2 + $0x81] sm:$0xff]
      %v7909 = vld [vmem:[#allocation2 + $0x89] sm:$0xff]
      %v7910 = vld [vmem:[#allocation2 + $0x91] sm:$0xff]
      %v7911 = vld [vmem:[#allocation2 + $0x99] sm:$0xff]
      %v7912 = vld [vmem:[#allocation2 + $0xa1] sm:$0xff]
      %7913 = vset.pattern.permute.xlu0 1
      %7914 = vperm.xlu0 %7913, %v7734
      %v7915 = vpop.permute.xlu0 %7914
      %7917 = vset.pattern.permute.xlu0 1
      %7918 = vperm.xlu0 %7917, %v7735
      %v7919 = vpop.permute.xlu0 %7918
      %7921 = vset.pattern.permute.xlu0 1
      %7922 = vperm.xlu0 %7921, %v7736
      %v7923 = vpop.permute.xlu0 %7922
      %7925 = vset.pattern.permute.xlu0 1
      %7926 = vperm.xlu0 %7925, %v7737
      %v7927 = vpop.permute.xlu0 %7926
      %7929 = vset.pattern.permute.xlu0 1
      %7930 = vperm.xlu0 %7929, %v7738
      %v7931 = vpop.permute.xlu0 %7930
      %7933 = vset.pattern.permute.xlu0 1
      %7934 = vperm.xlu0 %7933, %v7739
      %v7935 = vpop.permute.xlu0 %7934
      %7937 = vset.pattern.permute.xlu0 1
      %7938 = vperm.xlu0 %7937, %v7740
      %v7939 = vpop.permute.xlu0 %7938
      %7941 = vset.pattern.permute.xlu0 1
      %7942 = vperm.xlu0 %7941, %v7741
      %v7943 = vpop.permute.xlu0 %7942
      %7945 = vset.pattern.permute.xlu0 1
      %7946 = vperm.xlu0 %7945, %v7742
      %v7947 = vpop.permute.xlu0 %7946
      %7949 = vset.pattern.permute.xlu0 1
      %7950 = vperm.xlu0 %7949, %v7743
      %v7951 = vpop.permute.xlu0 %7950
      %7953 = vset.pattern.permute.xlu0 1
      %7954 = vperm.xlu0 %7953, %v7744
      %v7955 = vpop.permute.xlu0 %7954
      %7957 = vset.pattern.permute.xlu0 1
      %7958 = vperm.xlu0 %7957, %v7745
      %v7959 = vpop.permute.xlu0 %7958
      %7961 = vset.pattern.permute.xlu0 1
      %7962 = vperm.xlu0 %7961, %v7746
      %v7963 = vpop.permute.xlu0 %7962
      %7965 = vset.pattern.permute.xlu0 1
      %7966 = vperm.xlu0 %7965, %v7747
      %v7967 = vpop.permute.xlu0 %7966
      %7969 = vset.pattern.permute.xlu0 1
      %7970 = vperm.xlu0 %7969, %v7748
      %v7971 = vpop.permute.xlu0 %7970
      %7973 = vset.pattern.permute.xlu0 1
      %7974 = vperm.xlu0 %7973, %v7749
      %v7975 = vpop.permute.xlu0 %7974
      %7977 = vset.pattern.permute.xlu0 1
      %7978 = vperm.xlu0 %7977, %v7750
      %v7979 = vpop.permute.xlu0 %7978
      %7981 = vset.pattern.permute.xlu0 1
      %7982 = vperm.xlu0 %7981, %v7751
      %v7983 = vpop.permute.xlu0 %7982
      %7985 = vset.pattern.permute.xlu0 1
      %7986 = vperm.xlu0 %7985, %v7752
      %v7987 = vpop.permute.xlu0 %7986
      %7989 = vset.pattern.permute.xlu0 1
      %7990 = vperm.xlu0 %7989, %v7753
      %v7991 = vpop.permute.xlu0 %7990
      %7993 = vset.pattern.permute.xlu0 1
      %7994 = vperm.xlu0 %7993, %v7754
      %v7995 = vpop.permute.xlu0 %7994
      %v7997 = vmul.f32 %v7892, %v7915
      %v7998 = vmul.f32 %v7893, %v7919
      %v7999 = vmul.f32 %v7894, %v7923
      %v8000 = vmul.f32 %v7895, %v7927
      %v8001 = vmul.f32 %v7896, %v7931
      %v8002 = vmul.f32 %v7897, %v7935
      %v8003 = vmul.f32 %v7898, %v7939
      %v8004 = vmul.f32 %v7899, %v7943
      %v8005 = vmul.f32 %v7900, %v7947
      %v8006 = vmul.f32 %v7901, %v7951
      %v8007 = vmul.f32 %v7902, %v7955
      %v8008 = vmul.f32 %v7903, %v7959
      %v8009 = vmul.f32 %v7904, %v7963
      %v8010 = vmul.f32 %v7905, %v7967
      %v8011 = vmul.f32 %v7906, %v7971
      %v8012 = vmul.f32 %v7907, %v7975
      %v8013 = vmul.f32 %v7908, %v7979
      %v8014 = vmul.f32 %v7909, %v7983
      %v8015 = vmul.f32 %v7910, %v7987
      %v8016 = vmul.f32 %v7911, %v7991
      %v8017 = vmul.f32 %v7912, %v7995
      %v8018 = vpack.c.bf16 %v7998, %v7997
      %v8019 = vpack.c.bf16 %v8000, %v7999
      %v8020 = vpack.c.bf16 %v8002, %v8001
      %v8021 = vpack.c.bf16 %v8004, %v8003
      %v8022 = vpack.c.bf16 %v8006, %v8005
      %v8023 = vpack.c.bf16 %v8008, %v8007
      %v8024 = vpack.c.bf16 %v8010, %v8009
      %v8025 = vpack.c.bf16 %v8012, %v8011
      %v8026 = vpack.c.bf16 %v8014, %v8013
      %v8027 = vpack.c.bf16 %v8016, %v8015
      %v8028 = vpack.c.bf16 %v8017, %v8017
      %v8029 = vld [vmem:[#allocation2 + $0x2] sm:$0xff]
      %v8030 = vld [vmem:[#allocation2 + $0xa] sm:$0xff]
      %v8031 = vld [vmem:[#allocation2 + $0x12] sm:$0xff]
      %v8032 = vld [vmem:[#allocation2 + $0x1a] sm:$0xff]
      %v8033 = vld [vmem:[#allocation2 + $0x22] sm:$0xff]
      %v8034 = vld [vmem:[#allocation2 + $0x2a] sm:$0xff]
      %v8035 = vld [vmem:[#allocation2 + $0x32] sm:$0xff]
      %v8036 = vld [vmem:[#allocation2 + $0x3a] sm:$0xff]
      %v8037 = vld [vmem:[#allocation2 + $0x42] sm:$0xff]
      %v8038 = vld [vmem:[#allocation2 + $0x4a] sm:$0xff]
      %v8039 = vld [vmem:[#allocation2 + $0x52] sm:$0xff]
      %v8040 = vld [vmem:[#allocation2 + $0x5a] sm:$0xff]
      %v8041 = vld [vmem:[#allocation2 + $0x62] sm:$0xff]
      %v8042 = vld [vmem:[#allocation2 + $0x6a] sm:$0xff]
      %v8043 = vld [vmem:[#allocation2 + $0x72] sm:$0xff]
      %v8044 = vld [vmem:[#allocation2 + $0x7a] sm:$0xff]
      %v8045 = vld [vmem:[#allocation2 + $0x82] sm:$0xff]
      %v8046 = vld [vmem:[#allocation2 + $0x8a] sm:$0xff]
      %v8047 = vld [vmem:[#allocation2 + $0x92] sm:$0xff]
      %v8048 = vld [vmem:[#allocation2 + $0x9a] sm:$0xff]
      %v8049 = vld [vmem:[#allocation2 + $0xa2] sm:$0xff]
      %8050 = vset.pattern.permute.xlu0 2
      %8051 = vperm.xlu0 %8050, %v7734
      %v8052 = vpop.permute.xlu0 %8051
      %8054 = vset.pattern.permute.xlu0 2
      %8055 = vperm.xlu0 %8054, %v7735
      %v8056 = vpop.permute.xlu0 %8055
      %8058 = vset.pattern.permute.xlu0 2
      %8059 = vperm.xlu0 %8058, %v7736
      %v8060 = vpop.permute.xlu0 %8059
      %8062 = vset.pattern.permute.xlu0 2
      %8063 = vperm.xlu0 %8062, %v7737
      %v8064 = vpop.permute.xlu0 %8063
      %8066 = vset.pattern.permute.xlu0 2
      %8067 = vperm.xlu0 %8066, %v7738
      %v8068 = vpop.permute.xlu0 %8067
      %8070 = vset.pattern.permute.xlu0 2
      %8071 = vperm.xlu0 %8070, %v7739
      %v8072 = vpop.permute.xlu0 %8071
      %8074 = vset.pattern.permute.xlu0 2
      %8075 = vperm.xlu0 %8074, %v7740
      %v8076 = vpop.permute.xlu0 %8075
      %8078 = vset.pattern.permute.xlu0 2
      %8079 = vperm.xlu0 %8078, %v7741
      %v8080 = vpop.permute.xlu0 %8079
      %8082 = vset.pattern.permute.xlu0 2
      %8083 = vperm.xlu0 %8082, %v7742
      %v8084 = vpop.permute.xlu0 %8083
      %8086 = vset.pattern.permute.xlu0 2
      %8087 = vperm.xlu0 %8086, %v7743
      %v8088 = vpop.permute.xlu0 %8087
      %8090 = vset.pattern.permute.xlu0 2
      %8091 = vperm.xlu0 %8090, %v7744
      %v8092 = vpop.permute.xlu0 %8091
      %8094 = vset.pattern.permute.xlu0 2
      %8095 = vperm.xlu0 %8094, %v7745
      %v8096 = vpop.permute.xlu0 %8095
      %8098 = vset.pattern.permute.xlu0 2
      %8099 = vperm.xlu0 %8098, %v7746
      %v8100 = vpop.permute.xlu0 %8099
      %8102 = vset.pattern.permute.xlu0 2
      %8103 = vperm.xlu0 %8102, %v7747
      %v8104 = vpop.permute.xlu0 %8103
      %8106 = vset.pattern.permute.xlu0 2
      %8107 = vperm.xlu0 %8106, %v7748
      %v8108 = vpop.permute.xlu0 %8107
      %8110 = vset.pattern.permute.xlu0 2
      %8111 = vperm.xlu0 %8110, %v7749
      %v8112 = vpop.permute.xlu0 %8111
      %8114 = vset.pattern.permute.xlu0 2
      %8115 = vperm.xlu0 %8114, %v7750
      %v8116 = vpop.permute.xlu0 %8115
      %8118 = vset.pattern.permute.xlu0 2
      %8119 = vperm.xlu0 %8118, %v7751
      %v8120 = vpop.permute.xlu0 %8119
      %8122 = vset.pattern.permute.xlu0 2
      %8123 = vperm.xlu0 %8122, %v7752
      %v8124 = vpop.permute.xlu0 %8123
      %8126 = vset.pattern.permute.xlu0 2
      %8127 = vperm.xlu0 %8126, %v7753
      %v8128 = vpop.permute.xlu0 %8127
      %8130 = vset.pattern.permute.xlu0 2
      %8131 = vperm.xlu0 %8130, %v7754
      %v8132 = vpop.permute.xlu0 %8131
      %v8134 = vmul.f32 %v8029, %v8052
      %v8135 = vmul.f32 %v8030, %v8056
      %v8136 = vmul.f32 %v8031, %v8060
      %v8137 = vmul.f32 %v8032, %v8064
      %v8138 = vmul.f32 %v8033, %v8068
      %v8139 = vmul.f32 %v8034, %v8072
      %v8140 = vmul.f32 %v8035, %v8076
      %v8141 = vmul.f32 %v8036, %v8080
      %v8142 = vmul.f32 %v8037, %v8084
      %v8143 = vmul.f32 %v8038, %v8088
      %v8144 = vmul.f32 %v8039, %v8092
      %v8145 = vmul.f32 %v8040, %v8096
      %v8146 = vmul.f32 %v8041, %v8100
      %v8147 = vmul.f32 %v8042, %v8104
      %v8148 = vmul.f32 %v8043, %v8108
      %v8149 = vmul.f32 %v8044, %v8112
      %v8150 = vmul.f32 %v8045, %v8116
      %v8151 = vmul.f32 %v8046, %v8120
      %v8152 = vmul.f32 %v8047, %v8124
      %v8153 = vmul.f32 %v8048, %v8128
      %v8154 = vmul.f32 %v8049, %v8132
      %v8155 = vpack.c.bf16 %v8135, %v8134
      %v8156 = vpack.c.bf16 %v8137, %v8136
      %v8157 = vpack.c.bf16 %v8139, %v8138
      %v8158 = vpack.c.bf16 %v8141, %v8140
      %v8159 = vpack.c.bf16 %v8143, %v8142
      %v8160 = vpack.c.bf16 %v8145, %v8144
      %v8161 = vpack.c.bf16 %v8147, %v8146
      %v8162 = vpack.c.bf16 %v8149, %v8148
      %v8163 = vpack.c.bf16 %v8151, %v8150
      %v8164 = vpack.c.bf16 %v8153, %v8152
      %v8165 = vpack.c.bf16 %v8154, %v8154
      %v8166 = vld [vmem:[#allocation2 + $0x7] sm:$0xff]
      %v8167 = vld [vmem:[#allocation2 + $0xf] sm:$0xff]
      %v8168 = vld [vmem:[#allocation2 + $0x17] sm:$0xff]
      %v8169 = vld [vmem:[#allocation2 + $0x1f] sm:$0xff]
      %v8170 = vld [vmem:[#allocation2 + $0x27] sm:$0xff]
      %v8171 = vld [vmem:[#allocation2 + $0x2f] sm:$0xff]
      %v8172 = vld [vmem:[#allocation2 + $0x37] sm:$0xff]
      %v8173 = vld [vmem:[#allocation2 + $0x3f] sm:$0xff]
      %v8174 = vld [vmem:[#allocation2 + $0x47] sm:$0xff]
      %v8175 = vld [vmem:[#allocation2 + $0x4f] sm:$0xff]
      %v8176 = vld [vmem:[#allocation2 + $0x57] sm:$0xff]
      %v8177 = vld [vmem:[#allocation2 + $0x5f] sm:$0xff]
      %v8178 = vld [vmem:[#allocation2 + $0x67] sm:$0xff]
      %v8179 = vld [vmem:[#allocation2 + $0x6f] sm:$0xff]
      %v8180 = vld [vmem:[#allocation2 + $0x77] sm:$0xff]
      %v8181 = vld [vmem:[#allocation2 + $0x7f] sm:$0xff]
      %v8182 = vld [vmem:[#allocation2 + $0x87] sm:$0xff]
      %v8183 = vld [vmem:[#allocation2 + $0x8f] sm:$0xff]
      %v8184 = vld [vmem:[#allocation2 + $0x97] sm:$0xff]
      %v8185 = vld [vmem:[#allocation2 + $0x9f] sm:$0xff]
      %v8186 = vld [vmem:[#allocation2 + $0xa7] sm:$0xff]
      %8187 = vset.pattern.permute.xlu0 3
      %8188 = vperm.xlu0 %8187, %v7734
      %v8189 = vpop.permute.xlu0 %8188
      %8191 = vset.pattern.permute.xlu0 3
      %8192 = vperm.xlu0 %8191, %v7735
      %v8193 = vpop.permute.xlu0 %8192
      %8195 = vset.pattern.permute.xlu0 3
      %8196 = vperm.xlu0 %8195, %v7736
      %v8197 = vpop.permute.xlu0 %8196
      %8199 = vset.pattern.permute.xlu0 3
      %8200 = vperm.xlu0 %8199, %v7737
      %v8201 = vpop.permute.xlu0 %8200
      %8203 = vset.pattern.permute.xlu0 3
      %8204 = vperm.xlu0 %8203, %v7738
      %v8205 = vpop.permute.xlu0 %8204
      %8207 = vset.pattern.permute.xlu0 3
      %8208 = vperm.xlu0 %8207, %v7739
      %v8209 = vpop.permute.xlu0 %8208
      %8211 = vset.pattern.permute.xlu0 3
      %8212 = vperm.xlu0 %8211, %v7740
      %v8213 = vpop.permute.xlu0 %8212
      %8215 = vset.pattern.permute.xlu0 3
      %8216 = vperm.xlu0 %8215, %v7741
      %v8217 = vpop.permute.xlu0 %8216
      %8219 = vset.pattern.permute.xlu0 3
      %8220 = vperm.xlu0 %8219, %v7742
      %v8221 = vpop.permute.xlu0 %8220
      %8223 = vset.pattern.permute.xlu0 3
      %8224 = vperm.xlu0 %8223, %v7743
      %v8225 = vpop.permute.xlu0 %8224
      %8227 = vset.pattern.permute.xlu0 3
      %8228 = vperm.xlu0 %8227, %v7744
      %v8229 = vpop.permute.xlu0 %8228
      %8231 = vset.pattern.permute.xlu0 3
      %8232 = vperm.xlu0 %8231, %v7745
      %v8233 = vpop.permute.xlu0 %8232
      %8235 = vset.pattern.permute.xlu0 3
      %8236 = vperm.xlu0 %8235, %v7746
      %v8237 = vpop.permute.xlu0 %8236
      %8239 = vset.pattern.permute.xlu0 3
      %8240 = vperm.xlu0 %8239, %v7747
      %v8241 = vpop.permute.xlu0 %8240
      %8243 = vset.pattern.permute.xlu0 3
      %8244 = vperm.xlu0 %8243, %v7748
      %v8245 = vpop.permute.xlu0 %8244
      %8247 = vset.pattern.permute.xlu0 3
      %8248 = vperm.xlu0 %8247, %v7749
      %v8249 = vpop.permute.xlu0 %8248
      %8251 = vset.pattern.permute.xlu0 3
      %8252 = vperm.xlu0 %8251, %v7750
      %v8253 = vpop.permute.xlu0 %8252
      %8255 = vset.pattern.permute.xlu0 3
      %8256 = vperm.xlu0 %8255, %v7751
      %v8257 = vpop.permute.xlu0 %8256
      %8259 = vset.pattern.permute.xlu0 3
      %8260 = vperm.xlu0 %8259, %v7752
      %v8261 = vpop.permute.xlu0 %8260
      %8263 = vset.pattern.permute.xlu0 3
      %8264 = vperm.xlu0 %8263, %v7753
      %v8265 = vpop.permute.xlu0 %8264
      %8267 = vset.pattern.permute.xlu0 3
      %8268 = vperm.xlu0 %8267, %v7754
      %v8269 = vpop.permute.xlu0 %8268
      %v8271 = vmul.f32 %v8166, %v8189
      %v8272 = vmul.f32 %v8167, %v8193
      %v8273 = vmul.f32 %v8168, %v8197
      %v8274 = vmul.f32 %v8169, %v8201
      %v8275 = vmul.f32 %v8170, %v8205
      %v8276 = vmul.f32 %v8171, %v8209
      %v8277 = vmul.f32 %v8172, %v8213
      %v8278 = vmul.f32 %v8173, %v8217
      %v8279 = vmul.f32 %v8174, %v8221
      %v8280 = vmul.f32 %v8175, %v8225
      %v8281 = vmul.f32 %v8176, %v8229
      %v8282 = vmul.f32 %v8177, %v8233
      %v8283 = vmul.f32 %v8178, %v8237
      %v8284 = vmul.f32 %v8179, %v8241
      %v8285 = vmul.f32 %v8180, %v8245
      %v8286 = vmul.f32 %v8181, %v8249
      %v8287 = vmul.f32 %v8182, %v8253
      %v8288 = vmul.f32 %v8183, %v8257
      %v8289 = vmul.f32 %v8184, %v8261
      %v8290 = vmul.f32 %v8185, %v8265
      %v8291 = vmul.f32 %v8186, %v8269
      %v8292 = vpack.c.bf16 %v8272, %v8271
      %v8293 = vpack.c.bf16 %v8274, %v8273
      %v8294 = vpack.c.bf16 %v8276, %v8275
      %v8295 = vpack.c.bf16 %v8278, %v8277
      %v8296 = vpack.c.bf16 %v8280, %v8279
      %v8297 = vpack.c.bf16 %v8282, %v8281
      %v8298 = vpack.c.bf16 %v8284, %v8283
      %v8299 = vpack.c.bf16 %v8286, %v8285
      %v8300 = vpack.c.bf16 %v8288, %v8287
      %v8301 = vpack.c.bf16 %v8290, %v8289
      %v8302 = vpack.c.bf16 %v8291, %v8291
      %v8303 = vld [vmem:[#allocation2 + $0x8] sm:$0xff]
      %v8304 = vld [vmem:[#allocation2 + $0x10] sm:$0xff]
      %v8305 = vld [vmem:[#allocation2 + $0x18] sm:$0xff]
      %v8306 = vld [vmem:[#allocation2 + $0x20] sm:$0xff]
      %v8307 = vld [vmem:[#allocation2 + $0x28] sm:$0xff]
      %v8308 = vld [vmem:[#allocation2 + $0x30] sm:$0xff]
      %v8309 = vld [vmem:[#allocation2 + $0x38] sm:$0xff]
      %v8310 = vld [vmem:[#allocation2 + $0x40] sm:$0xff]
      %v8311 = vld [vmem:[#allocation2 + $0x48] sm:$0xff]
      %v8312 = vld [vmem:[#allocation2 + $0x50] sm:$0xff]
      %v8313 = vld [vmem:[#allocation2 + $0x58] sm:$0xff]
      %v8314 = vld [vmem:[#allocation2 + $0x60] sm:$0xff]
      %v8315 = vld [vmem:[#allocation2 + $0x68] sm:$0xff]
      %v8316 = vld [vmem:[#allocation2 + $0x70] sm:$0xff]
      %v8317 = vld [vmem:[#allocation2 + $0x78] sm:$0xff]
      %v8318 = vld [vmem:[#allocation2 + $0x80] sm:$0xff]
      %v8319 = vld [vmem:[#allocation2 + $0x88] sm:$0xff]
      %v8320 = vld [vmem:[#allocation2 + $0x90] sm:$0xff]
      %v8321 = vld [vmem:[#allocation2 + $0x98] sm:$0xff]
      %v8322 = vld [vmem:[#allocation2 + $0xa0] sm:$0xff]
      %v8323 = vld [vmem:[#allocation2 + $0xa8] sm:$0xff]
      %8324 = vset.pattern.permute.xlu0 4
      %8325 = vperm.xlu0 %8324, %v7734
      %v8326 = vpop.permute.xlu0 %8325
      %8328 = vset.pattern.permute.xlu0 4
      %8329 = vperm.xlu0 %8328, %v7735
      %v8330 = vpop.permute.xlu0 %8329
      %8332 = vset.pattern.permute.xlu0 4
      %8333 = vperm.xlu0 %8332, %v7736
      %v8334 = vpop.permute.xlu0 %8333
      %8336 = vset.pattern.permute.xlu0 4
      %8337 = vperm.xlu0 %8336, %v7737
      %v8338 = vpop.permute.xlu0 %8337
      %8340 = vset.pattern.permute.xlu0 4
      %8341 = vperm.xlu0 %8340, %v7738
      %v8342 = vpop.permute.xlu0 %8341
      %8344 = vset.pattern.permute.xlu0 4
      %8345 = vperm.xlu0 %8344, %v7739
      %v8346 = vpop.permute.xlu0 %8345
      %8348 = vset.pattern.permute.xlu0 4
      %8349 = vperm.xlu0 %8348, %v7740
      %v8350 = vpop.permute.xlu0 %8349
      %8352 = vset.pattern.permute.xlu0 4
      %8353 = vperm.xlu0 %8352, %v7741
      %v8354 = vpop.permute.xlu0 %8353
      %8356 = vset.pattern.permute.xlu0 4
      %8357 = vperm.xlu0 %8356, %v7742
      %v8358 = vpop.permute.xlu0 %8357
      %8360 = vset.pattern.permute.xlu0 4
      %8361 = vperm.xlu0 %8360, %v7743
      %v8362 = vpop.permute.xlu0 %8361
      %8364 = vset.pattern.permute.xlu0 4
      %8365 = vperm.xlu0 %8364, %v7744
      %v8366 = vpop.permute.xlu0 %8365
      %8368 = vset.pattern.permute.xlu0 4
      %8369 = vperm.xlu0 %8368, %v7745
      %v8370 = vpop.permute.xlu0 %8369
      %8372 = vset.pattern.permute.xlu0 4
      %8373 = vperm.xlu0 %8372, %v7746
      %v8374 = vpop.permute.xlu0 %8373
      %8376 = vset.pattern.permute.xlu0 4
      %8377 = vperm.xlu0 %8376, %v7747
      %v8378 = vpop.permute.xlu0 %8377
      %8380 = vset.pattern.permute.xlu0 4
      %8381 = vperm.xlu0 %8380, %v7748
      %v8382 = vpop.permute.xlu0 %8381
      %8384 = vset.pattern.permute.xlu0 4
      %8385 = vperm.xlu0 %8384, %v7749
      %v8386 = vpop.permute.xlu0 %8385
      %8388 = vset.pattern.permute.xlu0 4
      %8389 = vperm.xlu0 %8388, %v7750
      %v8390 = vpop.permute.xlu0 %8389
      %8392 = vset.pattern.permute.xlu0 4
      %8393 = vperm.xlu0 %8392, %v7751
      %v8394 = vpop.permute.xlu0 %8393
      %8396 = vset.pattern.permute.xlu0 4
      %8397 = vperm.xlu0 %8396, %v7752
      %v8398 = vpop.permute.xlu0 %8397
      %8400 = vset.pattern.permute.xlu0 4
      %8401 = vperm.xlu0 %8400, %v7753
      %v8402 = vpop.permute.xlu0 %8401
      %8404 = vset.pattern.permute.xlu0 4
      %8405 = vperm.xlu0 %8404, %v7754
      %v8406 = vpop.permute.xlu0 %8405
      %v8408 = vmul.f32 %v8303, %v8326
      %v8409 = vmul.f32 %v8304, %v8330
      %v8410 = vmul.f32 %v8305, %v8334
      %v8411 = vmul.f32 %v8306, %v8338
      %v8412 = vmul.f32 %v8307, %v8342
      %v8413 = vmul.f32 %v8308, %v8346
      %v8414 = vmul.f32 %v8309, %v8350
      %v8415 = vmul.f32 %v8310, %v8354
      %v8416 = vmul.f32 %v8311, %v8358
      %v8417 = vmul.f32 %v8312, %v8362
      %v8418 = vmul.f32 %v8313, %v8366
      %v8419 = vmul.f32 %v8314, %v8370
      %v8420 = vmul.f32 %v8315, %v8374
      %v8421 = vmul.f32 %v8316, %v8378
      %v8422 = vmul.f32 %v8317, %v8382
      %v8423 = vmul.f32 %v8318, %v8386
      %v8424 = vmul.f32 %v8319, %v8390
      %v8425 = vmul.f32 %v8320, %v8394
      %v8426 = vmul.f32 %v8321, %v8398
      %v8427 = vmul.f32 %v8322, %v8402
      %v8428 = vmul.f32 %v8323, %v8406
      %v8429 = vpack.c.bf16 %v8409, %v8408
      %v8430 = vpack.c.bf16 %v8411, %v8410
      %v8431 = vpack.c.bf16 %v8413, %v8412
      %v8432 = vpack.c.bf16 %v8415, %v8414
      %v8433 = vpack.c.bf16 %v8417, %v8416
      %v8434 = vpack.c.bf16 %v8419, %v8418
      %v8435 = vpack.c.bf16 %v8421, %v8420
      %v8436 = vpack.c.bf16 %v8423, %v8422
      %v8437 = vpack.c.bf16 %v8425, %v8424
      %v8438 = vpack.c.bf16 %v8427, %v8426
      %v8439 = vpack.c.bf16 %v8428, %v8428
      %v8440 = vld [vmem:[#allocation2 + $0x9] sm:$0xff]
      %v8441 = vld [vmem:[#allocation2 + $0x11] sm:$0xff]
      %v8442 = vld [vmem:[#allocation2 + $0x19] sm:$0xff]
      %v8443 = vld [vmem:[#allocation2 + $0x21] sm:$0xff]
      %v8444 = vld [vmem:[#allocation2 + $0x29] sm:$0xff]
      %v8445 = vld [vmem:[#allocation2 + $0x31] sm:$0xff]
      %v8446 = vld [vmem:[#allocation2 + $0x39] sm:$0xff]
      %v8447 = vld [vmem:[#allocation2 + $0x41] sm:$0xff]
      %v8448 = vld [vmem:[#allocation2 + $0x49] sm:$0xff]
      %v8449 = vld [vmem:[#allocation2 + $0x51] sm:$0xff]
      %v8450 = vld [vmem:[#allocation2 + $0x59] sm:$0xff]
      %v8451 = vld [vmem:[#allocation2 + $0x61] sm:$0xff]
      %v8452 = vld [vmem:[#allocation2 + $0x69] sm:$0xff]
      %v8453 = vld [vmem:[#allocation2 + $0x71] sm:$0xff]
      %v8454 = vld [vmem:[#allocation2 + $0x79] sm:$0xff]
      %v8455 = vld [vmem:[#allocation2 + $0x81] sm:$0xff]
      %v8456 = vld [vmem:[#allocation2 + $0x89] sm:$0xff]
      %v8457 = vld [vmem:[#allocation2 + $0x91] sm:$0xff]
      %v8458 = vld [vmem:[#allocation2 + $0x99] sm:$0xff]
      %v8459 = vld [vmem:[#allocation2 + $0xa1] sm:$0xff]
      %v8460 = vld [vmem:[#allocation2 + $0xa9] sm:$0xff]
      %8461 = vset.pattern.permute.xlu0 5
      %8462 = vperm.xlu0 %8461, %v7734
      %v8463 = vpop.permute.xlu0 %8462
      %8465 = vset.pattern.permute.xlu0 5
      %8466 = vperm.xlu0 %8465, %v7735
      %v8467 = vpop.permute.xlu0 %8466
      %8469 = vset.pattern.permute.xlu0 5
      %8470 = vperm.xlu0 %8469, %v7736
      %v8471 = vpop.permute.xlu0 %8470
      %8473 = vset.pattern.permute.xlu0 5
      %8474 = vperm.xlu0 %8473, %v7737
      %v8475 = vpop.permute.xlu0 %8474
      %8477 = vset.pattern.permute.xlu0 5
      %8478 = vperm.xlu0 %8477, %v7738
      %v8479 = vpop.permute.xlu0 %8478
      %8481 = vset.pattern.permute.xlu0 5
      %8482 = vperm.xlu0 %8481, %v7739
      %v8483 = vpop.permute.xlu0 %8482
      %8485 = vset.pattern.permute.xlu0 5
      %8486 = vperm.xlu0 %8485, %v7740
      %v8487 = vpop.permute.xlu0 %8486
      %8489 = vset.pattern.permute.xlu0 5
      %8490 = vperm.xlu0 %8489, %v7741
      %v8491 = vpop.permute.xlu0 %8490
      %8493 = vset.pattern.permute.xlu0 5
      %8494 = vperm.xlu0 %8493, %v7742
      %v8495 = vpop.permute.xlu0 %8494
      %8497 = vset.pattern.permute.xlu0 5
      %8498 = vperm.xlu0 %8497, %v7743
      %v8499 = vpop.permute.xlu0 %8498
      %8501 = vset.pattern.permute.xlu0 5
      %8502 = vperm.xlu0 %8501, %v7744
      %v8503 = vpop.permute.xlu0 %8502
      %8505 = vset.pattern.permute.xlu0 5
      %8506 = vperm.xlu0 %8505, %v7745
      %v8507 = vpop.permute.xlu0 %8506
      %8509 = vset.pattern.permute.xlu0 5
      %8510 = vperm.xlu0 %8509, %v7746
      %v8511 = vpop.permute.xlu0 %8510
      %8513 = vset.pattern.permute.xlu0 5
      %8514 = vperm.xlu0 %8513, %v7747
      %v8515 = vpop.permute.xlu0 %8514
      %8517 = vset.pattern.permute.xlu0 5
      %8518 = vperm.xlu0 %8517, %v7748
      %v8519 = vpop.permute.xlu0 %8518
      %8521 = vset.pattern.permute.xlu0 5
      %8522 = vperm.xlu0 %8521, %v7749
      %v8523 = vpop.permute.xlu0 %8522
      %8525 = vset.pattern.permute.xlu0 5
      %8526 = vperm.xlu0 %8525, %v7750
      %v8527 = vpop.permute.xlu0 %8526
      %8529 = vset.pattern.permute.xlu0 5
      %8530 = vperm.xlu0 %8529, %v7751
      %v8531 = vpop.permute.xlu0 %8530
      %8533 = vset.pattern.permute.xlu0 5
      %8534 = vperm.xlu0 %8533, %v7752
      %v8535 = vpop.permute.xlu0 %8534
      %8537 = vset.pattern.permute.xlu0 5
      %8538 = vperm.xlu0 %8537, %v7753
      %v8539 = vpop.permute.xlu0 %8538
      %8541 = vset.pattern.permute.xlu0 5
      %8542 = vperm.xlu0 %8541, %v7754
      %v8543 = vpop.permute.xlu0 %8542
      %v8545 = vmul.f32 %v8440, %v8463
      %v8546 = vmul.f32 %v8441, %v8467
      %v8547 = vmul.f32 %v8442, %v8471
      %v8548 = vmul.f32 %v8443, %v8475
      %v8549 = vmul.f32 %v8444, %v8479
      %v8550 = vmul.f32 %v8445, %v8483
      %v8551 = vmul.f32 %v8446, %v8487
      %v8552 = vmul.f32 %v8447, %v8491
      %v8553 = vmul.f32 %v8448, %v8495
      %v8554 = vmul.f32 %v8449, %v8499
      %v8555 = vmul.f32 %v8450, %v8503
      %v8556 = vmul.f32 %v8451, %v8507
      %v8557 = vmul.f32 %v8452, %v8511
      %v8558 = vmul.f32 %v8453, %v8515
      %v8559 = vmul.f32 %v8454, %v8519
      %v8560 = vmul.f32 %v8455, %v8523
      %v8561 = vmul.f32 %v8456, %v8527
      %v8562 = vmul.f32 %v8457, %v8531
      %v8563 = vmul.f32 %v8458, %v8535
      %v8564 = vmul.f32 %v8459, %v8539
      %v8565 = vmul.f32 %v8460, %v8543
      %v8566 = vpack.c.bf16 %v8546, %v8545
      %v8567 = vpack.c.bf16 %v8548, %v8547
      %v8568 = vpack.c.bf16 %v8550, %v8549
      %v8569 = vpack.c.bf16 %v8552, %v8551
      %v8570 = vpack.c.bf16 %v8554, %v8553
      %v8571 = vpack.c.bf16 %v8556, %v8555
      %v8572 = vpack.c.bf16 %v8558, %v8557
      %v8573 = vpack.c.bf16 %v8560, %v8559
      %v8574 = vpack.c.bf16 %v8562, %v8561
      %v8575 = vpack.c.bf16 %v8564, %v8563
      %v8576 = vpack.c.bf16 %v8565, %v8565
      %v8577 = vld [vmem:[#allocation2 + $0xe] sm:$0xff]
      %v8578 = vld [vmem:[#allocation2 + $0x16] sm:$0xff]
      %v8579 = vld [vmem:[#allocation2 + $0x1e] sm:$0xff]
      %v8580 = vld [vmem:[#allocation2 + $0x26] sm:$0xff]
      %v8581 = vld [vmem:[#allocation2 + $0x2e] sm:$0xff]
      %v8582 = vld [vmem:[#allocation2 + $0x36] sm:$0xff]
      %v8583 = vld [vmem:[#allocation2 + $0x3e] sm:$0xff]
      %v8584 = vld [vmem:[#allocation2 + $0x46] sm:$0xff]
      %v8585 = vld [vmem:[#allocation2 + $0x4e] sm:$0xff]
      %v8586 = vld [vmem:[#allocation2 + $0x56] sm:$0xff]
      %v8587 = vld [vmem:[#allocation2 + $0x5e] sm:$0xff]
      %v8588 = vld [vmem:[#allocation2 + $0x66] sm:$0xff]
      %v8589 = vld [vmem:[#allocation2 + $0x6e] sm:$0xff]
      %v8590 = vld [vmem:[#allocation2 + $0x76] sm:$0xff]
      %v8591 = vld [vmem:[#allocation2 + $0x7e] sm:$0xff]
      %v8592 = vld [vmem:[#allocation2 + $0x86] sm:$0xff]
      %v8593 = vld [vmem:[#allocation2 + $0x8e] sm:$0xff]
      %v8594 = vld [vmem:[#allocation2 + $0x96] sm:$0xff]
      %v8595 = vld [vmem:[#allocation2 + $0x9e] sm:$0xff]
      %v8596 = vld [vmem:[#allocation2 + $0xa6] sm:$0xff]
      %v8597 = vld [vmem:[#allocation2 + $0xae] sm:$0xff]
      %8598 = vset.pattern.permute.xlu0 6
      %8599 = vperm.xlu0 %8598, %v7734
      %v8600 = vpop.permute.xlu0 %8599
      %8602 = vset.pattern.permute.xlu0 6
      %8603 = vperm.xlu0 %8602, %v7735
      %v8604 = vpop.permute.xlu0 %8603
      %8606 = vset.pattern.permute.xlu0 6
      %8607 = vperm.xlu0 %8606, %v7736
      %v8608 = vpop.permute.xlu0 %8607
      %8610 = vset.pattern.permute.xlu0 6
      %8611 = vperm.xlu0 %8610, %v7737
      %v8612 = vpop.permute.xlu0 %8611
      %8614 = vset.pattern.permute.xlu0 6
      %8615 = vperm.xlu0 %8614, %v7738
      %v8616 = vpop.permute.xlu0 %8615
      %8618 = vset.pattern.permute.xlu0 6
      %8619 = vperm.xlu0 %8618, %v7739
      %v8620 = vpop.permute.xlu0 %8619
      %8622 = vset.pattern.permute.xlu0 6
      %8623 = vperm.xlu0 %8622, %v7740
      %v8624 = vpop.permute.xlu0 %8623
      %8626 = vset.pattern.permute.xlu0 6
      %8627 = vperm.xlu0 %8626, %v7741
      %v8628 = vpop.permute.xlu0 %8627
      %8630 = vset.pattern.permute.xlu0 6
      %8631 = vperm.xlu0 %8630, %v7742
      %v8632 = vpop.permute.xlu0 %8631
      %8634 = vset.pattern.permute.xlu0 6
      %8635 = vperm.xlu0 %8634, %v7743
      %v8636 = vpop.permute.xlu0 %8635
      %8638 = vset.pattern.permute.xlu0 6
      %8639 = vperm.xlu0 %8638, %v7744
      %v8640 = vpop.permute.xlu0 %8639
      %8642 = vset.pattern.permute.xlu0 6
      %8643 = vperm.xlu0 %8642, %v7745
      %v8644 = vpop.permute.xlu0 %8643
      %8646 = vset.pattern.permute.xlu0 6
      %8647 = vperm.xlu0 %8646, %v7746
      %v8648 = vpop.permute.xlu0 %8647
      %8650 = vset.pattern.permute.xlu0 6
      %8651 = vperm.xlu0 %8650, %v7747
      %v8652 = vpop.permute.xlu0 %8651
      %8654 = vset.pattern.permute.xlu0 6
      %8655 = vperm.xlu0 %8654, %v7748
      %v8656 = vpop.permute.xlu0 %8655
      %8658 = vset.pattern.permute.xlu0 6
      %8659 = vperm.xlu0 %8658, %v7749
      %v8660 = vpop.permute.xlu0 %8659
      %8662 = vset.pattern.permute.xlu0 6
      %8663 = vperm.xlu0 %8662, %v7750
      %v8664 = vpop.permute.xlu0 %8663
      %8666 = vset.pattern.permute.xlu0 6
      %8667 = vperm.xlu0 %8666, %v7751
      %v8668 = vpop.permute.xlu0 %8667
      %8670 = vset.pattern.permute.xlu0 6
      %8671 = vperm.xlu0 %8670, %v7752
      %v8672 = vpop.permute.xlu0 %8671
      %8674 = vset.pattern.permute.xlu0 6
      %8675 = vperm.xlu0 %8674, %v7753
      %v8676 = vpop.permute.xlu0 %8675
      %8678 = vset.pattern.permute.xlu0 6
      %8679 = vperm.xlu0 %8678, %v7754
      %v8680 = vpop.permute.xlu0 %8679
      %v8682 = vmul.f32 %v8577, %v8600
      %v8683 = vmul.f32 %v8578, %v8604
      %v8684 = vmul.f32 %v8579, %v8608
      %v8685 = vmul.f32 %v8580, %v8612
      %v8686 = vmul.f32 %v8581, %v8616
      %v8687 = vmul.f32 %v8582, %v8620
      %v8688 = vmul.f32 %v8583, %v8624
      %v8689 = vmul.f32 %v8584, %v8628
      %v8690 = vmul.f32 %v8585, %v8632
      %v8691 = vmul.f32 %v8586, %v8636
      %v8692 = vmul.f32 %v8587, %v8640
      %v8693 = vmul.f32 %v8588, %v8644
      %v8694 = vmul.f32 %v8589, %v8648
      %v8695 = vmul.f32 %v8590, %v8652
      %v8696 = vmul.f32 %v8591, %v8656
      %v8697 = vmul.f32 %v8592, %v8660
      %v8698 = vmul.f32 %v8593, %v8664
      %v8699 = vmul.f32 %v8594, %v8668
      %v8700 = vmul.f32 %v8595, %v8672
      %v8701 = vmul.f32 %v8596, %v8676
      %v8702 = vmul.f32 %v8597, %v8680
      %v8703 = vpack.c.bf16 %v8683, %v8682
      %v8704 = vpack.c.bf16 %v8685, %v8684
      %v8705 = vpack.c.bf16 %v8687, %v8686
      %v8706 = vpack.c.bf16 %v8689, %v8688
      %v8707 = vpack.c.bf16 %v8691, %v8690
      %v8708 = vpack.c.bf16 %v8693, %v8692
      %v8709 = vpack.c.bf16 %v8695, %v8694
      %v8710 = vpack.c.bf16 %v8697, %v8696
      %v8711 = vpack.c.bf16 %v8699, %v8698
      %v8712 = vpack.c.bf16 %v8701, %v8700
      %v8713 = vpack.c.bf16 %v8702, %v8702
      %v8714 = vld [vmem:[#allocation2 + $0xf] sm:$0xff]
      %v8715 = vld [vmem:[#allocation2 + $0x17] sm:$0xff]
      %v8716 = vld [vmem:[#allocation2 + $0x1f] sm:$0xff]
      %v8717 = vld [vmem:[#allocation2 + $0x27] sm:$0xff]
      %v8718 = vld [vmem:[#allocation2 + $0x2f] sm:$0xff]
      %v8719 = vld [vmem:[#allocation2 + $0x37] sm:$0xff]
      %v8720 = vld [vmem:[#allocation2 + $0x3f] sm:$0xff]
      %v8721 = vld [vmem:[#allocation2 + $0x47] sm:$0xff]
      %v8722 = vld [vmem:[#allocation2 + $0x4f] sm:$0xff]
      %v8723 = vld [vmem:[#allocation2 + $0x57] sm:$0xff]
      %v8724 = vld [vmem:[#allocation2 + $0x5f] sm:$0xff]
      %v8725 = vld [vmem:[#allocation2 + $0x67] sm:$0xff]
      %v8726 = vld [vmem:[#allocation2 + $0x6f] sm:$0xff]
      %v8727 = vld [vmem:[#allocation2 + $0x77] sm:$0xff]
      %v8728 = vld [vmem:[#allocation2 + $0x7f] sm:$0xff]
      %v8729 = vld [vmem:[#allocation2 + $0x87] sm:$0xff]
      %v8730 = vld [vmem:[#allocation2 + $0x8f] sm:$0xff]
      %v8731 = vld [vmem:[#allocation2 + $0x97] sm:$0xff]
      %v8732 = vld [vmem:[#allocation2 + $0x9f] sm:$0xff]
      %v8733 = vld [vmem:[#allocation2 + $0xa7] sm:$0xff]
      %v8734 = vld [vmem:[#allocation2 + $0xaf] sm:$0xff]
      %8735 = vset.pattern.permute.xlu0 7
      %8736 = vperm.xlu0 %8735, %v7734
      %v8737 = vpop.permute.xlu0 %8736
      %8739 = vset.pattern.permute.xlu0 7
      %8740 = vperm.xlu0 %8739, %v7735
      %v8741 = vpop.permute.xlu0 %8740
      %8743 = vset.pattern.permute.xlu0 7
      %8744 = vperm.xlu0 %8743, %v7736
      %v8745 = vpop.permute.xlu0 %8744
      %8747 = vset.pattern.permute.xlu0 7
      %8748 = vperm.xlu0 %8747, %v7737
      %v8749 = vpop.permute.xlu0 %8748
      %8751 = vset.pattern.permute.xlu0 7
      %8752 = vperm.xlu0 %8751, %v7738
      %v8753 = vpop.permute.xlu0 %8752
      %8755 = vset.pattern.permute.xlu0 7
      %8756 = vperm.xlu0 %8755, %v7739
      %v8757 = vpop.permute.xlu0 %8756
      %8759 = vset.pattern.permute.xlu0 7
      %8760 = vperm.xlu0 %8759, %v7740
      %v8761 = vpop.permute.xlu0 %8760
      %8763 = vset.pattern.permute.xlu0 7
      %8764 = vperm.xlu0 %8763, %v7741
      %v8765 = vpop.permute.xlu0 %8764
      %8767 = vset.pattern.permute.xlu0 7
      %8768 = vperm.xlu0 %8767, %v7742
      %v8769 = vpop.permute.xlu0 %8768
      %8771 = vset.pattern.permute.xlu0 7
      %8772 = vperm.xlu0 %8771, %v7743
      %v8773 = vpop.permute.xlu0 %8772
      %8775 = vset.pattern.permute.xlu0 7
      %8776 = vperm.xlu0 %8775, %v7744
      %v8777 = vpop.permute.xlu0 %8776
      %8779 = vset.pattern.permute.xlu0 7
      %8780 = vperm.xlu0 %8779, %v7745
      %v8781 = vpop.permute.xlu0 %8780
      %8783 = vset.pattern.permute.xlu0 7
      %8784 = vperm.xlu0 %8783, %v7746
      %v8785 = vpop.permute.xlu0 %8784
      %8787 = vset.pattern.permute.xlu0 7
      %8788 = vperm.xlu0 %8787, %v7747
      %v8789 = vpop.permute.xlu0 %8788
      %8791 = vset.pattern.permute.xlu0 7
      %8792 = vperm.xlu0 %8791, %v7748
      %v8793 = vpop.permute.xlu0 %8792
      %8795 = vset.pattern.permute.xlu0 7
      %8796 = vperm.xlu0 %8795, %v7749
      %v8797 = vpop.permute.xlu0 %8796
      %8799 = vset.pattern.permute.xlu0 7
      %8800 = vperm.xlu0 %8799, %v7750
      %v8801 = vpop.permute.xlu0 %8800
      %8803 = vset.pattern.permute.xlu0 7
      %8804 = vperm.xlu0 %8803, %v7751
      %v8805 = vpop.permute.xlu0 %8804
      %8807 = vset.pattern.permute.xlu0 7
      %8808 = vperm.xlu0 %8807, %v7752
      %v8809 = vpop.permute.xlu0 %8808
      %8811 = vset.pattern.permute.xlu0 7
      %8812 = vperm.xlu0 %8811, %v7753
      %v8813 = vpop.permute.xlu0 %8812
      %8815 = vset.pattern.permute.xlu0 7
      %8816 = vperm.xlu0 %8815, %v7754
      %v8817 = vpop.permute.xlu0 %8816
      %v8819 = vmul.f32 %v8714, %v8737
      %v8820 = vmul.f32 %v8715, %v8741
      %v8821 = vmul.f32 %v8716, %v8745
      %v8822 = vmul.f32 %v8717, %v8749
      %v8823 = vmul.f32 %v8718, %v8753
      %v8824 = vmul.f32 %v8719, %v8757
      %v8825 = vmul.f32 %v8720, %v8761
      %v8826 = vmul.f32 %v8721, %v8765
      %v8827 = vmul.f32 %v8722, %v8769
      %v8828 = vmul.f32 %v8723, %v8773
      %v8829 = vmul.f32 %v8724, %v8777
      %v8830 = vmul.f32 %v8725, %v8781
      %v8831 = vmul.f32 %v8726, %v8785
      %v8832 = vmul.f32 %v8727, %v8789
      %v8833 = vmul.f32 %v8728, %v8793
      %v8834 = vmul.f32 %v8729, %v8797
      %v8835 = vmul.f32 %v8730, %v8801
      %v8836 = vmul.f32 %v8731, %v8805
      %v8837 = vmul.f32 %v8732, %v8809
      %v8838 = vmul.f32 %v8733, %v8813
      %v8839 = vmul.f32 %v8734, %v8817
      %v8840 = vpack.c.bf16 %v8820, %v8819
      %v8841 = vpack.c.bf16 %v8822, %v8821
      %v8842 = vpack.c.bf16 %v8824, %v8823
      %v8843 = vpack.c.bf16 %v8826, %v8825
      %v8844 = vpack.c.bf16 %v8828, %v8827
      %v8845 = vpack.c.bf16 %v8830, %v8829
      %v8846 = vpack.c.bf16 %v8832, %v8831
      %v8847 = vpack.c.bf16 %v8834, %v8833
      %v8848 = vpack.c.bf16 %v8836, %v8835
      %v8849 = vpack.c.bf16 %v8838, %v8837
      %v8850 = vpack.c.bf16 %v8839, %v8839
      %v8851 = vld [vmem:[#allocation2 + $0x10] sm:$0xff]
      %v8852 = vld [vmem:[#allocation2 + $0x18] sm:$0xff]
      %v8853 = vld [vmem:[#allocation2 + $0x20] sm:$0xff]
      %v8854 = vld [vmem:[#allocation2 + $0x28] sm:$0xff]
      %v8855 = vld [vmem:[#allocation2 + $0x30] sm:$0xff]
      %v8856 = vld [vmem:[#allocation2 + $0x38] sm:$0xff]
      %v8857 = vld [vmem:[#allocation2 + $0x40] sm:$0xff]
      %v8858 = vld [vmem:[#allocation2 + $0x48] sm:$0xff]
      %v8859 = vld [vmem:[#allocation2 + $0x50] sm:$0xff]
      %v8860 = vld [vmem:[#allocation2 + $0x58] sm:$0xff]
      %v8861 = vld [vmem:[#allocation2 + $0x60] sm:$0xff]
      %v8862 = vld [vmem:[#allocation2 + $0x68] sm:$0xff]
      %v8863 = vld [vmem:[#allocation2 + $0x70] sm:$0xff]
      %v8864 = vld [vmem:[#allocation2 + $0x78] sm:$0xff]
      %v8865 = vld [vmem:[#allocation2 + $0x80] sm:$0xff]
      %v8866 = vld [vmem:[#allocation2 + $0x88] sm:$0xff]
      %v8867 = vld [vmem:[#allocation2 + $0x90] sm:$0xff]
      %v8868 = vld [vmem:[#allocation2 + $0x98] sm:$0xff]
      %v8869 = vld [vmem:[#allocation2 + $0xa0] sm:$0xff]
      %v8870 = vld [vmem:[#allocation2 + $0xa8] sm:$0xff]
      %v8871 = vld [vmem:[#allocation2 + $0xb0] sm:$0xff]
      %8872 = vset.pattern.permute.xlu0 8
      %8873 = vperm.xlu0 %8872, %v7734
      %v8874 = vpop.permute.xlu0 %8873
      %8876 = vset.pattern.permute.xlu0 8
      %8877 = vperm.xlu0 %8876, %v7735
      %v8878 = vpop.permute.xlu0 %8877
      %8880 = vset.pattern.permute.xlu0 8
      %8881 = vperm.xlu0 %8880, %v7736
      %v8882 = vpop.permute.xlu0 %8881
      %8884 = vset.pattern.permute.xlu0 8
      %8885 = vperm.xlu0 %8884, %v7737
      %v8886 = vpop.permute.xlu0 %8885
      %8888 = vset.pattern.permute.xlu0 8
      %8889 = vperm.xlu0 %8888, %v7738
      %v8890 = vpop.permute.xlu0 %8889
      %8892 = vset.pattern.permute.xlu0 8
      %8893 = vperm.xlu0 %8892, %v7739
      %v8894 = vpop.permute.xlu0 %8893
      %8896 = vset.pattern.permute.xlu0 8
      %8897 = vperm.xlu0 %8896, %v7740
      %v8898 = vpop.permute.xlu0 %8897
      %8900 = vset.pattern.permute.xlu0 8
      %8901 = vperm.xlu0 %8900, %v7741
      %v8902 = vpop.permute.xlu0 %8901
      %8904 = vset.pattern.permute.xlu0 8
      %8905 = vperm.xlu0 %8904, %v7742
      %v8906 = vpop.permute.xlu0 %8905
      %8908 = vset.pattern.permute.xlu0 8
      %8909 = vperm.xlu0 %8908, %v7743
      %v8910 = vpop.permute.xlu0 %8909
      %8912 = vset.pattern.permute.xlu0 8
      %8913 = vperm.xlu0 %8912, %v7744
      %v8914 = vpop.permute.xlu0 %8913
      %8916 = vset.pattern.permute.xlu0 8
      %8917 = vperm.xlu0 %8916, %v7745
      %v8918 = vpop.permute.xlu0 %8917
      %8920 = vset.pattern.permute.xlu0 8
      %8921 = vperm.xlu0 %8920, %v7746
      %v8922 = vpop.permute.xlu0 %8921
      %8924 = vset.pattern.permute.xlu0 8
      %8925 = vperm.xlu0 %8924, %v7747
      %v8926 = vpop.permute.xlu0 %8925
      %8928 = vset.pattern.permute.xlu0 8
      %8929 = vperm.xlu0 %8928, %v7748
      %v8930 = vpop.permute.xlu0 %8929
      %8932 = vset.pattern.permute.xlu0 8
      %8933 = vperm.xlu0 %8932, %v7749
      %v8934 = vpop.permute.xlu0 %8933
      %8936 = vset.pattern.permute.xlu0 8
      %8937 = vperm.xlu0 %8936, %v7750
      %v8938 = vpop.permute.xlu0 %8937
      %8940 = vset.pattern.permute.xlu0 8
      %8941 = vperm.xlu0 %8940, %v7751
      %v8942 = vpop.permute.xlu0 %8941
      %8944 = vset.pattern.permute.xlu0 8
      %8945 = vperm.xlu0 %8944, %v7752
      %v8946 = vpop.permute.xlu0 %8945
      %8948 = vset.pattern.permute.xlu0 8
      %8949 = vperm.xlu0 %8948, %v7753
      %v8950 = vpop.permute.xlu0 %8949
      %8952 = vset.pattern.permute.xlu0 8
      %8953 = vperm.xlu0 %8952, %v7754
      %v8954 = vpop.permute.xlu0 %8953
      %v8956 = vmul.f32 %v8851, %v8874
      %v8957 = vmul.f32 %v8852, %v8878
      %v8958 = vmul.f32 %v8853, %v8882
      %v8959 = vmul.f32 %v8854, %v8886
      %v8960 = vmul.f32 %v8855, %v8890
      %v8961 = vmul.f32 %v8856, %v8894
      %v8962 = vmul.f32 %v8857, %v8898
      %v8963 = vmul.f32 %v8858, %v8902
      %v8964 = vmul.f32 %v8859, %v8906
      %v8965 = vmul.f32 %v8860, %v8910
      %v8966 = vmul.f32 %v8861, %v8914
      %v8967 = vmul.f32 %v8862, %v8918
      %v8968 = vmul.f32 %v8863, %v8922
      %v8969 = vmul.f32 %v8864, %v8926
      %v8970 = vmul.f32 %v8865, %v8930
      %v8971 = vmul.f32 %v8866, %v8934
      %v8972 = vmul.f32 %v8867, %v8938
      %v8973 = vmul.f32 %v8868, %v8942
      %v8974 = vmul.f32 %v8869, %v8946
      %v8975 = vmul.f32 %v8870, %v8950
      %v8976 = vmul.f32 %v8871, %v8954
      %v8977 = vpack.c.bf16 %v8957, %v8956
      %v8978 = vpack.c.bf16 %v8959, %v8958
      %v8979 = vpack.c.bf16 %v8961, %v8960
      %v8980 = vpack.c.bf16 %v8963, %v8962
      %v8981 = vpack.c.bf16 %v8965, %v8964
      %v8982 = vpack.c.bf16 %v8967, %v8966
      %v8983 = vpack.c.bf16 %v8969, %v8968
      %v8984 = vpack.c.bf16 %v8971, %v8970
      %v8985 = vpack.c.bf16 %v8973, %v8972
      %v8986 = vpack.c.bf16 %v8975, %v8974
      %v8987 = vpack.c.bf16 %v8976, %v8976
      %8999 = vrot.lane.b32.xlu0 %v8018, 64
      %v9000 = vpop.permute.xlu0 %8999
      %9001 = vrot.lane.b32.xlu0 %v8019, 64
      %v9002 = vpop.permute.xlu0 %9001
      %9003 = vrot.lane.b32.xlu0 %v8020, 64
      %v9004 = vpop.permute.xlu0 %9003
      %9005 = vrot.lane.b32.xlu0 %v8021, 64
      %v9006 = vpop.permute.xlu0 %9005
      %9007 = vrot.lane.b32.xlu0 %v8022, 64
      %v9008 = vpop.permute.xlu0 %9007
      %9009 = vrot.lane.b32.xlu0 %v8023, 64
      %v9010 = vpop.permute.xlu0 %9009
      %9011 = vrot.lane.b32.xlu0 %v8024, 64
      %v9012 = vpop.permute.xlu0 %9011
      %9013 = vrot.lane.b32.xlu0 %v8025, 64
      %v9014 = vpop.permute.xlu0 %9013
      %9015 = vrot.lane.b32.xlu0 %v8026, 64
      %v9016 = vpop.permute.xlu0 %9015
      %9017 = vrot.lane.b32.xlu0 %v8027, 64
      %v9018 = vpop.permute.xlu0 %9017
      %9019 = vrot.lane.b32.xlu0 %v8028, 64
      %v9020 = vpop.permute.xlu0 %9019
      %9032 = vrot.lane.b32.xlu0 %v8292, 64
      %v9033 = vpop.permute.xlu0 %9032
      %9034 = vrot.lane.b32.xlu0 %v8293, 64
      %v9035 = vpop.permute.xlu0 %9034
      %9036 = vrot.lane.b32.xlu0 %v8294, 64
      %v9037 = vpop.permute.xlu0 %9036
      %9038 = vrot.lane.b32.xlu0 %v8295, 64
      %v9039 = vpop.permute.xlu0 %9038
      %9040 = vrot.lane.b32.xlu0 %v8296, 64
      %v9041 = vpop.permute.xlu0 %9040
      %9042 = vrot.lane.b32.xlu0 %v8297, 64
      %v9043 = vpop.permute.xlu0 %9042
      %9044 = vrot.lane.b32.xlu0 %v8298, 64
      %v9045 = vpop.permute.xlu0 %9044
      %9046 = vrot.lane.b32.xlu0 %v8299, 64
      %v9047 = vpop.permute.xlu0 %9046
      %9048 = vrot.lane.b32.xlu0 %v8300, 64
      %v9049 = vpop.permute.xlu0 %9048
      %9050 = vrot.lane.b32.xlu0 %v8301, 64
      %v9051 = vpop.permute.xlu0 %9050
      %9052 = vrot.lane.b32.xlu0 %v8302, 64
      %v9053 = vpop.permute.xlu0 %9052
      %9065 = vrot.lane.b32.xlu0 %v8566, 64
      %v9066 = vpop.permute.xlu0 %9065
      %9067 = vrot.lane.b32.xlu0 %v8567, 64
      %v9068 = vpop.permute.xlu0 %9067
      %9069 = vrot.lane.b32.xlu0 %v8568, 64
      %v9070 = vpop.permute.xlu0 %9069
      %9071 = vrot.lane.b32.xlu0 %v8569, 64
      %v9072 = vpop.permute.xlu0 %9071
      %9073 = vrot.lane.b32.xlu0 %v8570, 64
      %v9074 = vpop.permute.xlu0 %9073
      %9075 = vrot.lane.b32.xlu0 %v8571, 64
      %v9076 = vpop.permute.xlu0 %9075
      %9077 = vrot.lane.b32.xlu0 %v8572, 64
      %v9078 = vpop.permute.xlu0 %9077
      %9079 = vrot.lane.b32.xlu0 %v8573, 64
      %v9080 = vpop.permute.xlu0 %9079
      %9081 = vrot.lane.b32.xlu0 %v8574, 64
      %v9082 = vpop.permute.xlu0 %9081
      %9083 = vrot.lane.b32.xlu0 %v8575, 64
      %v9084 = vpop.permute.xlu0 %9083
      %9085 = vrot.lane.b32.xlu0 %v8576, 64
      %v9086 = vpop.permute.xlu0 %9085
      %9098 = vrot.lane.b32.xlu0 %v8840, 64
      %v9099 = vpop.permute.xlu0 %9098
      %9100 = vrot.lane.b32.xlu0 %v8841, 64
      %v9101 = vpop.permute.xlu0 %9100
      %9102 = vrot.lane.b32.xlu0 %v8842, 64
      %v9103 = vpop.permute.xlu0 %9102
      %9104 = vrot.lane.b32.xlu0 %v8843, 64
      %v9105 = vpop.permute.xlu0 %9104
      %9106 = vrot.lane.b32.xlu0 %v8844, 64
      %v9107 = vpop.permute.xlu0 %9106
      %9108 = vrot.lane.b32.xlu0 %v8845, 64
      %v9109 = vpop.permute.xlu0 %9108
      %9110 = vrot.lane.b32.xlu0 %v8846, 64
      %v9111 = vpop.permute.xlu0 %9110
      %9112 = vrot.lane.b32.xlu0 %v8847, 64
      %v9113 = vpop.permute.xlu0 %9112
      %9114 = vrot.lane.b32.xlu0 %v8848, 64
      %v9115 = vpop.permute.xlu0 %9114
      %9116 = vrot.lane.b32.xlu0 %v8849, 64
      %v9117 = vpop.permute.xlu0 %9116
      %9118 = vrot.lane.b32.xlu0 %v8850, 64
      %v9119 = vpop.permute.xlu0 %9118
      %v9122 = vsel %vm305, %v7881, %v9000
      %v9126 = vsel %vm305, %v7882, %v9002
      %v9130 = vsel %vm305, %v7883, %v9004
      %v9134 = vsel %vm305, %v7884, %v9006
      %v9138 = vsel %vm305, %v7885, %v9008
      %v9142 = vsel %vm305, %v7886, %v9010
      %v9146 = vsel %vm305, %v7887, %v9012
      %v9150 = vsel %vm305, %v7888, %v9014
      %v9154 = vsel %vm305, %v7889, %v9016
      %v9158 = vsel %vm305, %v7890, %v9018
      %v9162 = vsel %vm305, %v7891, %v9020
      %v9166 = vsel %vm305, %v8155, %v9033
      %v9170 = vsel %vm305, %v8156, %v9035
      %v9174 = vsel %vm305, %v8157, %v9037
      %v9178 = vsel %vm305, %v8158, %v9039
      %v9182 = vsel %vm305, %v8159, %v9041
      %v9186 = vsel %vm305, %v8160, %v9043
      %v9190 = vsel %vm305, %v8161, %v9045
      %v9194 = vsel %vm305, %v8162, %v9047
      %v9198 = vsel %vm305, %v8163, %v9049
      %v9202 = vsel %vm305, %v8164, %v9051
      %v9206 = vsel %vm305, %v8165, %v9053
      %v9210 = vsel %vm305, %v8429, %v9066
      %v9214 = vsel %vm305, %v8430, %v9068
      %v9218 = vsel %vm305, %v8431, %v9070
      %v9222 = vsel %vm305, %v8432, %v9072
      %v9226 = vsel %vm305, %v8433, %v9074
      %v9230 = vsel %vm305, %v8434, %v9076
      %v9234 = vsel %vm305, %v8435, %v9078
      %v9238 = vsel %vm305, %v8436, %v9080
      %v9242 = vsel %vm305, %v8437, %v9082
      %v9246 = vsel %vm305, %v8438, %v9084
      %v9250 = vsel %vm305, %v8439, %v9086
      %v9254 = vsel %vm305, %v8703, %v9099
      %v9258 = vsel %vm305, %v8704, %v9101
      %v9262 = vsel %vm305, %v8705, %v9103
      %v9266 = vsel %vm305, %v8706, %v9105
      %v9270 = vsel %vm305, %v8707, %v9107
      %v9274 = vsel %vm305, %v8708, %v9109
      %v9278 = vsel %vm305, %v8709, %v9111
      %v9282 = vsel %vm305, %v8710, %v9113
      %v9286 = vsel %vm305, %v8711, %v9115
      %v9290 = vsel %vm305, %v8712, %v9117
      %v9294 = vsel %vm305, %v8713, %v9119
      %v9296 = vlaneseq
      %v9297 = vshrl.u32 %v9296, 7
      %v9298 = vsub.s32 0, %v9297
      %v9299 = vrot.slane %v7670, %v9298
      %v9372 = vunpack.c.l.b16 %v7598
      %v9373 = vunpack.c.l.b16 %v7599
      %v9374 = vunpack.c.l.b16 %v7600
      %v9375 = vunpack.c.l.b16 %v7601
      %v9376 = vunpack.c.l.b16 %v7602
      %v9377 = vunpack.c.l.b16 %v7603
      %v9378 = vunpack.c.l.b16 %v7604
      %v9379 = vunpack.c.l.b16 %v7605
      %v9380 = vunpack.c.l.b16 %v7606
      %v9381 = vunpack.c.l.b16 %v7607
      %v9382 = vunpack.c.l.b16 %v7608
      %v9383 = vunpack.c.l.b16 %v7609
      %v9384 = vunpack.c.l.b16 %v7610
      %v9385 = vunpack.c.l.b16 %v7611
      %v9386 = vunpack.c.l.b16 %v7612
      %v9387 = vunpack.c.l.b16 %v7613
      %v9388 = vunpack.c.l.b16 %v7614
      %v9389 = vunpack.c.l.b16 %v7615
      %v9390 = vunpack.c.l.b16 %v7616
      %v9391 = vunpack.c.l.b16 %v7617
      %v9392 = vunpack.c.l.b16 %v7618
      %v9393 = vunpack.c.l.b16 %v7619
      %v9394 = vunpack.c.l.b16 %v7620
      %v9395 = vunpack.c.l.b16 %v7621
      %v9396 = vunpack.c.l.b16 %v7622
      %v9397 = vunpack.c.l.b16 %v7623
      %v9398 = vunpack.c.l.b16 %v7624
      %v9399 = vunpack.c.l.b16 %v7625
      %v9400 = vunpack.c.l.b16 %v7626
      %v9401 = vunpack.c.l.b16 %v7627
      %v9402 = vunpack.c.l.b16 %v7628
      %v9403 = vunpack.c.l.b16 %v7629
      %v9404 = vunpack.c.l.b16 %v7630
      %v9405 = vunpack.c.l.b16 %v7631
      %v9406 = vunpack.c.l.b16 %v7632
      %v9407 = vunpack.c.l.b16 %v7633
      %v9408 = vunpack.c.l.b16 %v7634
      %v9409 = vunpack.c.l.b16 %v7635
      %v9410 = vunpack.c.l.b16 %v7636
      %v9411 = vunpack.c.l.b16 %v7637
      %v9412 = vunpack.c.l.b16 %v7638
      %v9413 = vunpack.c.l.b16 %v7639
      %v9414 = vunpack.c.l.b16 %v7640
      %v9415 = vunpack.c.l.b16 %v7641
      %v9416 = vunpack.c.l.b16 %v7642
      %v9417 = vunpack.c.l.b16 %v7643
      %v9418 = vunpack.c.l.b16 %v7644
      %v9419 = vunpack.c.l.b16 %v7645
      %v9420 = vunpack.c.l.b16 %v7646
      %v9421 = vunpack.c.l.b16 %v7647
      %v9422 = vunpack.c.l.b16 %v7648
      %v9423 = vunpack.c.l.b16 %v7649
      %v9424 = vunpack.c.l.b16 %v7650
      %v9425 = vunpack.c.l.b16 %v7651
      %v9426 = vunpack.c.l.b16 %v7652
      %v9427 = vunpack.c.l.b16 %v7653
      %v9428 = vunpack.c.l.b16 %v7654
      %v9429 = vunpack.c.l.b16 %v7655
      %v9430 = vunpack.c.l.b16 %v7656
      %v9431 = vunpack.c.l.b16 %v7657
      %v9432 = vunpack.c.l.b16 %v7658
      %v9433 = vunpack.c.l.b16 %v7659
      %v9434 = vunpack.c.l.b16 %v7660
      %v9435 = vunpack.c.l.b16 %v7661
      %v9436 = vunpack.c.l.b16 %v7662
      %v9437 = vunpack.c.l.b16 %v7663
      %v9438 = vunpack.c.l.b16 %v7664
      %v9439 = vunpack.c.l.b16 %v7665
      %v9440 = vunpack.c.l.b16 %v7666
      %v9441 = vunpack.c.l.b16 %v7667
      %v9442 = vunpack.c.l.b16 %v7668
      %v9443 = vunpack.c.l.b16 %v7669
      %v9444 = vpack.c.b16 %v9373, %v9372
      %v9445 = vpack.c.b16 %v9375, %v9374
      %v9446 = vpack.c.b16 %v9377, %v9376
      %v9447 = vpack.c.b16 %v9379, %v9378
      %v9448 = vpack.c.b16 %v9381, %v9380
      %v9449 = vpack.c.b16 %v9383, %v9382
      %v9450 = vpack.c.b16 %v9385, %v9384
      %v9451 = vpack.c.b16 %v9387, %v9386
      %v9452 = vpack.c.b16 %v9389, %v9388
      %v9453 = vpack.c.b16 %v9391, %v9390
      %v9454 = vpack.c.b16 %v9393, %v9392
      %v9455 = vpack.c.b16 %v9395, %v9394
      %v9456 = vpack.c.b16 %v9397, %v9396
      %v9457 = vpack.c.b16 %v9399, %v9398
      %v9458 = vpack.c.b16 %v9401, %v9400
      %v9459 = vpack.c.b16 %v9403, %v9402
      %v9460 = vpack.c.b16 %v9405, %v9404
      %v9461 = vpack.c.b16 %v9407, %v9406
      %v9462 = vpack.c.b16 %v9409, %v9408
      %v9463 = vpack.c.b16 %v9411, %v9410
      %v9464 = vpack.c.b16 %v9413, %v9412
      %v9465 = vpack.c.b16 %v9415, %v9414
      %v9466 = vpack.c.b16 %v9417, %v9416
      %v9467 = vpack.c.b16 %v9419, %v9418
      %v9468 = vpack.c.b16 %v9421, %v9420
      %v9469 = vpack.c.b16 %v9423, %v9422
      %v9470 = vpack.c.b16 %v9425, %v9424
      %v9471 = vpack.c.b16 %v9427, %v9426
      %v9472 = vpack.c.b16 %v9429, %v9428
      %v9473 = vpack.c.b16 %v9431, %v9430
      %v9474 = vpack.c.b16 %v9433, %v9432
      %v9475 = vpack.c.b16 %v9435, %v9434
      %v9476 = vpack.c.b16 %v9437, %v9436
      %v9477 = vpack.c.b16 %v9439, %v9438
      %v9478 = vpack.c.b16 %v9441, %v9440
      %v9479 = vpack.c.b16 %v9443, %v9442
      %v9517 = vsel %vm305, %v8977, 0
      %v9520 = vsel %vm305, %v8978, 0
      %v9523 = vsel %vm305, %v8979, 0
      %v9526 = vsel %vm305, %v8980, 0
      %v9529 = vsel %vm305, %v8981, 0
      %v9532 = vsel %vm305, %v8982, 0
      %v9535 = vsel %vm305, %v8983, 0
      %v9538 = vsel %vm305, %v8984, 0
      %v9541 = vsel %vm305, %v8985, 0
      %v9544 = vsel %vm305, %v8986, 0
      %v9547 = vsel %vm305, %v8987, 0
      %9549 = vmatprep.subr.bf16.mxu0 0
      %9550 = vmatpush1.bf16.msra.mxu0 %v9451
      %9551 = vmatprep.subr.bf16.mxu0 0
      %9552 = vmatpush1.bf16.msra.mxu0 %v9450
      %9553 = vmatprep.subr.bf16.mxu0 0
      %9554 = vmatpush1.bf16.msra.mxu0 %v9449
      %9555 = vmatprep.subr.bf16.mxu0 0
      %9556 = vmatpush1.bf16.msra.mxu0 %v9448
      %9557 = vmatprep.subr.bf16.mxu0 0
      %9558 = vmatpush1.bf16.msra.mxu0 %v9447
      %9559 = vmatprep.subr.bf16.mxu0 0
      %9560 = vmatpush1.bf16.msra.mxu0 %v9446
      %9561 = vmatprep.subr.bf16.mxu0 0
      %9562 = vmatpush1.bf16.msra.mxu0 %v9445
      %9563 = vmatprep.subr.bf16.mxu0 0
      %9564 = vmatpush1.bf16.msra.mxu0 %v9444
      %9565 = vmatprep.subr.bf16.mxu0 0
      %9566 = vmatpush2.bf16.msra.mxu0 %v9459
      %9567 = vmatprep.subr.bf16.mxu0 0
      %9568 = vmatpush2.bf16.msra.mxu0 %v9458
      %9569 = vmatprep.subr.bf16.mxu0 0
      %9570 = vmatpush2.bf16.msra.mxu0 %v9457
      %9571 = vmatprep.subr.bf16.mxu0 0
      %9572 = vmatpush2.bf16.msra.mxu0 %v9456
      %9573 = vmatprep.subr.bf16.mxu0 0
      %9574 = vmatpush2.bf16.msra.mxu0 %v9455
      %9575 = vmatprep.subr.bf16.mxu0 0
      %9576 = vmatpush2.bf16.msra.mxu0 %v9454
      %9577 = vmatprep.subr.bf16.mxu0 0
      %9578 = vmatpush2.bf16.msra.mxu0 %v9453
      %9579 = vmatprep.subr.bf16.mxu0 0
      %9580 = vmatpush2.bf16.msra.mxu0 %v9452
      %9581 = vmatprep.mubr.bf16.mxu0 %v9166
      %9582 = vmatmul.mubr.bf16.gmra.mxu0 %v9122
      %v9583 = vpop.f32.mrf.mxu0
      %v9584 = vadd.f32 %v9299, %v9583
      %v9585 = vpop.f32.mrf.mxu0
      %v9586 = vpop.f32.mrf.mxu0
      %v9587 = vadd.f32 %v9299, %v9586
      %v9588 = vpop.f32.mrf.mxu0
      %9589 = vmatprep.mubr.bf16.mxu0 %v9170
      %9590 = vmatmul.mubr.bf16.gmra.mxu0 %v9126
      %v9591 = vpop.f32.mrf.mxu0
      %v9592 = vadd.f32 %v9299, %v9591
      %v9593 = vpop.f32.mrf.mxu0
      %v9594 = vpop.f32.mrf.mxu0
      %v9595 = vadd.f32 %v9299, %v9594
      %v9596 = vpop.f32.mrf.mxu0
      %9597 = vmatprep.mubr.bf16.mxu0 %v9174
      %9598 = vmatmul.mubr.bf16.gmra.mxu0 %v9130
      %v9599 = vpop.f32.mrf.mxu0
      %v9600 = vadd.f32 %v9299, %v9599
      %v9601 = vpop.f32.mrf.mxu0
      %v9602 = vpop.f32.mrf.mxu0
      %v9603 = vadd.f32 %v9299, %v9602
      %v9604 = vpop.f32.mrf.mxu0
      %9605 = vmatprep.mubr.bf16.mxu0 %v9178
      %9606 = vmatmul.mubr.bf16.gmra.mxu0 %v9134
      %v9607 = vpop.f32.mrf.mxu0
      %v9608 = vadd.f32 %v9299, %v9607
      %v9609 = vpop.f32.mrf.mxu0
      %v9610 = vpop.f32.mrf.mxu0
      %v9611 = vadd.f32 %v9299, %v9610
      %v9612 = vpop.f32.mrf.mxu0
      %9613 = vmatprep.mubr.bf16.mxu0 %v9182
      %9614 = vmatmul.mubr.bf16.gmra.mxu0 %v9138
      %v9615 = vpop.f32.mrf.mxu0
      %v9616 = vadd.f32 %v9299, %v9615
      %v9617 = vpop.f32.mrf.mxu0
      %v9618 = vpop.f32.mrf.mxu0
      %v9619 = vadd.f32 %v9299, %v9618
      %v9620 = vpop.f32.mrf.mxu0
      %9621 = vmatprep.mubr.bf16.mxu0 %v9186
      %9622 = vmatmul.mubr.bf16.gmra.mxu0 %v9142
      %v9623 = vpop.f32.mrf.mxu0
      %v9624 = vadd.f32 %v9299, %v9623
      %v9625 = vpop.f32.mrf.mxu0
      %v9626 = vpop.f32.mrf.mxu0
      %v9627 = vadd.f32 %v9299, %v9626
      %v9628 = vpop.f32.mrf.mxu0
      %9629 = vmatprep.mubr.bf16.mxu0 %v9190
      %9630 = vmatmul.mubr.bf16.gmra.mxu0 %v9146
      %v9631 = vpop.f32.mrf.mxu0
      %v9632 = vadd.f32 %v9299, %v9631
      %v9633 = vpop.f32.mrf.mxu0
      %v9634 = vpop.f32.mrf.mxu0
      %v9635 = vadd.f32 %v9299, %v9634
      %v9636 = vpop.f32.mrf.mxu0
      %9637 = vmatprep.mubr.bf16.mxu0 %v9194
      %9638 = vmatmul.mubr.bf16.gmra.mxu0 %v9150
      %v9639 = vpop.f32.mrf.mxu0
      %v9640 = vadd.f32 %v9299, %v9639
      %v9641 = vpop.f32.mrf.mxu0
      %v9642 = vpop.f32.mrf.mxu0
      %v9643 = vadd.f32 %v9299, %v9642
      %v9644 = vpop.f32.mrf.mxu0
      %9645 = vmatprep.mubr.bf16.mxu0 %v9198
      %9646 = vmatmul.mubr.bf16.gmra.mxu0 %v9154
      %v9647 = vpop.f32.mrf.mxu0
      %v9648 = vadd.f32 %v9299, %v9647
      %v9649 = vpop.f32.mrf.mxu0
      %v9650 = vpop.f32.mrf.mxu0
      %v9651 = vadd.f32 %v9299, %v9650
      %v9652 = vpop.f32.mrf.mxu0
      %9653 = vmatprep.mubr.bf16.mxu0 %v9202
      %9654 = vmatmul.mubr.bf16.gmra.mxu0 %v9158
      %v9655 = vpop.f32.mrf.mxu0
      %v9656 = vadd.f32 %v9299, %v9655
      %v9657 = vpop.f32.mrf.mxu0
      %v9658 = vpop.f32.mrf.mxu0
      %v9659 = vadd.f32 %v9299, %v9658
      %v9660 = vpop.f32.mrf.mxu0
      %9661 = vmatprep.mubr.bf16.mxu0 %v9206
      %9662 = vmatmul.mubr.bf16.gmra.mxu0 %v9162
      %v9663 = vpop.f32.mrf.mxu0
      %v9664 = vadd.f32 %v9299, %v9663
      %v9665 = vpop.f32.mrf.mxu0
      %v9666 = vpop.f32.mrf.mxu0
      %v9667 = vpop.f32.mrf.mxu0
      %9668 = vdwg.mxu0
      %9669 = vmatprep.subr.bf16.mxu0 0
      %9670 = vmatpush1.bf16.msra.mxu0 %v9467
      %9671 = vmatprep.subr.bf16.mxu0 0
      %9672 = vmatpush1.bf16.msra.mxu0 %v9466
      %9673 = vmatprep.subr.bf16.mxu0 0
      %9674 = vmatpush1.bf16.msra.mxu0 %v9465
      %9675 = vmatprep.subr.bf16.mxu0 0
      %9676 = vmatpush1.bf16.msra.mxu0 %v9464
      %9677 = vmatprep.subr.bf16.mxu0 0
      %9678 = vmatpush1.bf16.msra.mxu0 %v9463
      %9679 = vmatprep.subr.bf16.mxu0 0
      %9680 = vmatpush1.bf16.msra.mxu0 %v9462
      %9681 = vmatprep.subr.bf16.mxu0 0
      %9682 = vmatpush1.bf16.msra.mxu0 %v9461
      %9683 = vmatprep.subr.bf16.mxu0 0
      %9684 = vmatpush1.bf16.msra.mxu0 %v9460
      %9685 = vmatprep.subr.bf16.mxu0 0
      %9686 = vmatpush2.bf16.msra.mxu0 %v9475
      %9687 = vmatprep.subr.bf16.mxu0 0
      %9688 = vmatpush2.bf16.msra.mxu0 %v9474
      %9689 = vmatprep.subr.bf16.mxu0 0
      %9690 = vmatpush2.bf16.msra.mxu0 %v9473
      %9691 = vmatprep.subr.bf16.mxu0 0
      %9692 = vmatpush2.bf16.msra.mxu0 %v9472
      %9693 = vmatprep.subr.bf16.mxu0 0
      %9694 = vmatpush2.bf16.msra.mxu0 %v9471
      %9695 = vmatprep.subr.bf16.mxu0 0
      %9696 = vmatpush2.bf16.msra.mxu0 %v9470
      %9697 = vmatprep.subr.bf16.mxu0 0
      %9698 = vmatpush2.bf16.msra.mxu0 %v9469
      %9699 = vmatprep.subr.bf16.mxu0 0
      %9700 = vmatpush2.bf16.msra.mxu0 %v9468
      %9701 = vmatprep.mubr.bf16.mxu0 %v9254
      %9702 = vmatmul.mubr.bf16.gmra.mxu0 %v9210
      %v9703 = vpop.f32.mrf.mxu0
      %v9704 = vadd.f32 %v9584, %v9703
      %v9705 = vpop.f32.mrf.mxu0
      %v9706 = vpop.f32.mrf.mxu0
      %v9707 = vadd.f32 %v9587, %v9706
      %v9708 = vpop.f32.mrf.mxu0
      %9709 = vmatprep.mubr.bf16.mxu0 %v9258
      %9710 = vmatmul.mubr.bf16.gmra.mxu0 %v9214
      %v9711 = vpop.f32.mrf.mxu0
      %v9712 = vadd.f32 %v9592, %v9711
      %v9713 = vpop.f32.mrf.mxu0
      %v9714 = vpop.f32.mrf.mxu0
      %v9715 = vadd.f32 %v9595, %v9714
      %v9716 = vpop.f32.mrf.mxu0
      %9717 = vmatprep.mubr.bf16.mxu0 %v9262
      %9718 = vmatmul.mubr.bf16.gmra.mxu0 %v9218
      %v9719 = vpop.f32.mrf.mxu0
      %v9720 = vadd.f32 %v9600, %v9719
      %v9721 = vpop.f32.mrf.mxu0
      %v9722 = vpop.f32.mrf.mxu0
      %v9723 = vadd.f32 %v9603, %v9722
      %v9724 = vpop.f32.mrf.mxu0
      %9725 = vmatprep.mubr.bf16.mxu0 %v9266
      %9726 = vmatmul.mubr.bf16.gmra.mxu0 %v9222
      %v9727 = vpop.f32.mrf.mxu0
      %v9728 = vadd.f32 %v9608, %v9727
      %v9729 = vpop.f32.mrf.mxu0
      %v9730 = vpop.f32.mrf.mxu0
      %v9731 = vadd.f32 %v9611, %v9730
      %v9732 = vpop.f32.mrf.mxu0
      %9733 = vmatprep.mubr.bf16.mxu0 %v9270
      %9734 = vmatmul.mubr.bf16.gmra.mxu0 %v9226
      %v9735 = vpop.f32.mrf.mxu0
      %v9736 = vadd.f32 %v9616, %v9735
      %v9737 = vpop.f32.mrf.mxu0
      %v9738 = vpop.f32.mrf.mxu0
      %v9739 = vadd.f32 %v9619, %v9738
      %v9740 = vpop.f32.mrf.mxu0
      %9741 = vmatprep.mubr.bf16.mxu0 %v9274
      %9742 = vmatmul.mubr.bf16.gmra.mxu0 %v9230
      %v9743 = vpop.f32.mrf.mxu0
      %v9744 = vadd.f32 %v9624, %v9743
      %v9745 = vpop.f32.mrf.mxu0
      %v9746 = vpop.f32.mrf.mxu0
      %v9747 = vadd.f32 %v9627, %v9746
      %v9748 = vpop.f32.mrf.mxu0
      %9749 = vmatprep.mubr.bf16.mxu0 %v9278
      %9750 = vmatmul.mubr.bf16.gmra.mxu0 %v9234
      %v9751 = vpop.f32.mrf.mxu0
      %v9752 = vadd.f32 %v9632, %v9751
      %v9753 = vpop.f32.mrf.mxu0
      %v9754 = vpop.f32.mrf.mxu0
      %v9755 = vadd.f32 %v9635, %v9754
      %v9756 = vpop.f32.mrf.mxu0
      %9757 = vmatprep.mubr.bf16.mxu0 %v9282
      %9758 = vmatmul.mubr.bf16.gmra.mxu0 %v9238
      %v9759 = vpop.f32.mrf.mxu0
      %v9760 = vadd.f32 %v9640, %v9759
      %v9761 = vpop.f32.mrf.mxu0
      %v9762 = vpop.f32.mrf.mxu0
      %v9763 = vadd.f32 %v9643, %v9762
      %v9764 = vpop.f32.mrf.mxu0
      %9765 = vmatprep.mubr.bf16.mxu0 %v9286
      %9766 = vmatmul.mubr.bf16.gmra.mxu0 %v9242
      %v9767 = vpop.f32.mrf.mxu0
      %v9768 = vadd.f32 %v9648, %v9767
      %v9769 = vpop.f32.mrf.mxu0
      %v9770 = vpop.f32.mrf.mxu0
      %v9771 = vadd.f32 %v9651, %v9770
      %v9772 = vpop.f32.mrf.mxu0
      %9773 = vmatprep.mubr.bf16.mxu0 %v9290
      %9774 = vmatmul.mubr.bf16.gmra.mxu0 %v9246
      %v9775 = vpop.f32.mrf.mxu0
      %v9776 = vadd.f32 %v9656, %v9775
      %v9777 = vpop.f32.mrf.mxu0
      %v9778 = vpop.f32.mrf.mxu0
      %v9779 = vadd.f32 %v9659, %v9778
      %v9780 = vpop.f32.mrf.mxu0
      %9781 = vmatprep.mubr.bf16.mxu0 %v9294
      %9782 = vmatmul.mubr.bf16.gmra.mxu0 %v9250
      %v9783 = vpop.f32.mrf.mxu0
      %v9784 = vadd.f32 %v9664, %v9783
      %v9785 = vpop.f32.mrf.mxu0
      %v9786 = vpop.f32.mrf.mxu0
      %v9787 = vpop.f32.mrf.mxu0
      %9788 = vdwg.mxu0
      %9789 = vmatprep.subr.bf16.mxu0 0
      %9790 = vmatpush1.bf16.msra.mxu0 0
      %9791 = vmatprep.subr.bf16.mxu0 0
      %9792 = vmatpush1.bf16.msra.mxu0 0
      %9793 = vmatprep.subr.bf16.mxu0 0
      %9794 = vmatpush1.bf16.msra.mxu0 0
      %9795 = vmatprep.subr.bf16.mxu0 0
      %9796 = vmatpush1.bf16.msra.mxu0 0
      %9797 = vmatprep.subr.bf16.mxu0 0
      %9798 = vmatpush1.bf16.msra.mxu0 %v9479
      %9799 = vmatprep.subr.bf16.mxu0 0
      %9800 = vmatpush1.bf16.msra.mxu0 %v9478
      %9801 = vmatprep.subr.bf16.mxu0 0
      %9802 = vmatpush1.bf16.msra.mxu0 %v9477
      %9803 = vmatprep.subr.bf16.mxu0 0
      %9804 = vmatpush1.bf16.msra.mxu0 %v9476
      %9805 = vmatprep.subr.bf16.mxu0 0
      %9806 = vmatpush2.bf16.msra.mxu0 0
      %9807 = vmatprep.subr.bf16.mxu0 0
      %9808 = vmatpush2.bf16.msra.mxu0 0
      %9809 = vmatprep.subr.bf16.mxu0 0
      %9810 = vmatpush2.bf16.msra.mxu0 0
      %9811 = vmatprep.subr.bf16.mxu0 0
      %9812 = vmatpush2.bf16.msra.mxu0 0
      %9813 = vmatprep.subr.bf16.mxu0 0
      %9814 = vmatpush2.bf16.msra.mxu0 0
      %9815 = vmatprep.subr.bf16.mxu0 0
      %9816 = vmatpush2.bf16.msra.mxu0 0
      %9817 = vmatprep.subr.bf16.mxu0 0
      %9818 = vmatpush2.bf16.msra.mxu0 0
      %9819 = vmatprep.subr.bf16.mxu0 0
      %9820 = vmatpush2.bf16.msra.mxu0 0
      %9821 = vmatprep.mubr.bf16.mxu0 0
      %9822 = vmatmul.mubr.bf16.gmra.mxu0 %v9517
      %v9823 = vpop.f32.mrf.mxu0
      %v9824 = vadd.f32 %v9704, %v9823
      %v9825 = vpop.f32.mrf.mxu0
      %v9826 = vpop.f32.mrf.mxu0
      %v9827 = vadd.f32 %v9707, %v9826
      %v9828 = vpop.f32.mrf.mxu0
      %9829 = vmatprep.mubr.bf16.mxu0 0
      %9830 = vmatmul.mubr.bf16.gmra.mxu0 %v9520
      %v9831 = vpop.f32.mrf.mxu0
      %v9832 = vadd.f32 %v9712, %v9831
      %v9833 = vpop.f32.mrf.mxu0
      %v9834 = vpop.f32.mrf.mxu0
      %v9835 = vadd.f32 %v9715, %v9834
      %v9836 = vpop.f32.mrf.mxu0
      %9837 = vmatprep.mubr.bf16.mxu0 0
      %9838 = vmatmul.mubr.bf16.gmra.mxu0 %v9523
      %v9839 = vpop.f32.mrf.mxu0
      %v9840 = vadd.f32 %v9720, %v9839
      %v9841 = vpop.f32.mrf.mxu0
      %v9842 = vpop.f32.mrf.mxu0
      %v9843 = vadd.f32 %v9723, %v9842
      %v9844 = vpop.f32.mrf.mxu0
      %9845 = vmatprep.mubr.bf16.mxu0 0
      %9846 = vmatmul.mubr.bf16.gmra.mxu0 %v9526
      %v9847 = vpop.f32.mrf.mxu0
      %v9848 = vadd.f32 %v9728, %v9847
      %v9849 = vpop.f32.mrf.mxu0
      %v9850 = vpop.f32.mrf.mxu0
      %v9851 = vadd.f32 %v9731, %v9850
      %v9852 = vpop.f32.mrf.mxu0
      %9853 = vmatprep.mubr.bf16.mxu0 0
      %9854 = vmatmul.mubr.bf16.gmra.mxu0 %v9529
      %v9855 = vpop.f32.mrf.mxu0
      %v9856 = vadd.f32 %v9736, %v9855
      %v9857 = vpop.f32.mrf.mxu0
      %v9858 = vpop.f32.mrf.mxu0
      %v9859 = vadd.f32 %v9739, %v9858
      %v9860 = vpop.f32.mrf.mxu0
      %9861 = vmatprep.mubr.bf16.mxu0 0
      %9862 = vmatmul.mubr.bf16.gmra.mxu0 %v9532
      %v9863 = vpop.f32.mrf.mxu0
      %v9864 = vadd.f32 %v9744, %v9863
      %v9865 = vpop.f32.mrf.mxu0
      %v9866 = vpop.f32.mrf.mxu0
      %v9867 = vadd.f32 %v9747, %v9866
      %v9868 = vpop.f32.mrf.mxu0
      %9869 = vmatprep.mubr.bf16.mxu0 0
      %9870 = vmatmul.mubr.bf16.gmra.mxu0 %v9535
      %v9871 = vpop.f32.mrf.mxu0
      %v9872 = vadd.f32 %v9752, %v9871
      %v9873 = vpop.f32.mrf.mxu0
      %v9874 = vpop.f32.mrf.mxu0
      %v9875 = vadd.f32 %v9755, %v9874
      %v9876 = vpop.f32.mrf.mxu0
      %9877 = vmatprep.mubr.bf16.mxu0 0
      %9878 = vmatmul.mubr.bf16.gmra.mxu0 %v9538
      %v9879 = vpop.f32.mrf.mxu0
      %v9880 = vadd.f32 %v9760, %v9879
      %v9881 = vpop.f32.mrf.mxu0
      %v9882 = vpop.f32.mrf.mxu0
      %v9883 = vadd.f32 %v9763, %v9882
      %v9884 = vpop.f32.mrf.mxu0
      %9885 = vmatprep.mubr.bf16.mxu0 0
      %9886 = vmatmul.mubr.bf16.gmra.mxu0 %v9541
      %v9887 = vpop.f32.mrf.mxu0
      %v9888 = vadd.f32 %v9768, %v9887
      %v9889 = vpop.f32.mrf.mxu0
      %v9890 = vpop.f32.mrf.mxu0
      %v9891 = vadd.f32 %v9771, %v9890
      %v9892 = vpop.f32.mrf.mxu0
      %9893 = vmatprep.mubr.bf16.mxu0 0
      %9894 = vmatmul.mubr.bf16.gmra.mxu0 %v9544
      %v9895 = vpop.f32.mrf.mxu0
      %v9896 = vadd.f32 %v9776, %v9895
      %v9897 = vpop.f32.mrf.mxu0
      %v9898 = vpop.f32.mrf.mxu0
      %v9899 = vadd.f32 %v9779, %v9898
      %v9900 = vpop.f32.mrf.mxu0
      %9901 = vmatprep.mubr.bf16.mxu0 0
      %9902 = vmatmul.mubr.bf16.gmra.mxu0 %v9547
      %v9903 = vpop.f32.mrf.mxu0
      %v9904 = vadd.f32 %v9784, %v9903
      %v9905 = vpop.f32.mrf.mxu0
      %v9906 = vpop.f32.mrf.mxu0
      %v9907 = vpop.f32.mrf.mxu0
      %9908 = vdwg.mxu0
      %v9909 = vadd.f32 %v9824, %v5243
      %v9910 = vadd.f32 %v9827, %v5244
      %v9911 = vadd.f32 %v9832, %v5245
      %v9912 = vadd.f32 %v9835, %v5246
      %v9913 = vadd.f32 %v9840, %v5247
      %v9914 = vadd.f32 %v9843, %v5248
      %v9915 = vadd.f32 %v9848, %v5249
      %v9916 = vadd.f32 %v9851, %v5250
      %v9917 = vadd.f32 %v9856, %v5251
      %v9918 = vadd.f32 %v9859, %v5252
      %v9919 = vadd.f32 %v9864, %v5253
      %v9920 = vadd.f32 %v9867, %v5254
      %v9921 = vadd.f32 %v9872, %v5255
      %v9922 = vadd.f32 %v9875, %v5256
      %v9923 = vadd.f32 %v9880, %v5257
      %v9924 = vadd.f32 %v9883, %v5258
      %v9925 = vadd.f32 %v9888, %v5259
      %v9926 = vadd.f32 %v9891, %v5260
      %v9927 = vadd.f32 %v9896, %v5261
      %v9928 = vadd.f32 %v9899, %v5262
      %v9929 = vadd.f32 %v9904, %v5263
      %v9930 = vmax.f32 %v9909, 0.0
      %v9931 = vmax.f32 %v9910, 0.0
      %v9932 = vmax.f32 %v9911, 0.0
      %v9933 = vmax.f32 %v9912, 0.0
      %v9934 = vmax.f32 %v9913, 0.0
      %v9935 = vmax.f32 %v9914, 0.0
      %v9936 = vmax.f32 %v9915, 0.0
      %v9937 = vmax.f32 %v9916, 0.0
      %v9938 = vmax.f32 %v9917, 0.0
      %v9939 = vmax.f32 %v9918, 0.0
      %v9940 = vmax.f32 %v9919, 0.0
      %v9941 = vmax.f32 %v9920, 0.0
      %v9942 = vmax.f32 %v9921, 0.0
      %v9943 = vmax.f32 %v9922, 0.0
      %v9944 = vmax.f32 %v9923, 0.0
      %v9945 = vmax.f32 %v9924, 0.0
      %v9946 = vmax.f32 %v9925, 0.0
      %v9947 = vmax.f32 %v9926, 0.0
      %v9948 = vmax.f32 %v9927, 0.0
      %v9949 = vmax.f32 %v9928, 0.0
      %v9950 = vmax.f32 %v9929, 0.0
      %v9951 = vpack.c.bf16 %v9931, %v9930
      %v9952 = vpack.c.bf16 %v9933, %v9932
      %v9953 = vpack.c.bf16 %v9935, %v9934
      %v9954 = vpack.c.bf16 %v9937, %v9936
      %v9955 = vpack.c.bf16 %v9939, %v9938
      %v9956 = vpack.c.bf16 %v9941, %v9940
      %v9957 = vpack.c.bf16 %v9943, %v9942
      %v9958 = vpack.c.bf16 %v9945, %v9944
      %v9959 = vpack.c.bf16 %v9947, %v9946
      %v9960 = vpack.c.bf16 %v9949, %v9948
      %v9961 = vpack.c.bf16 %v9950, %v9950
      %v9962 = vld [vmem:[%s5] sm:$0xf]
      %v9963 = vld [vmem:[%s5 + $0x4] sm:$0xf]
      %v9964 = vld [vmem:[%s5 + $0x8] sm:$0xf]
      %v9965 = vld [vmem:[%s5 + $0xc] sm:$0xf]
      %v9966 = vld [vmem:[%s5 + $0x10] sm:$0xf]
      %v9967 = vld [vmem:[%s5 + $0x14] sm:$0xf]
      %v9968 = vld [vmem:[%s5 + $0x18] sm:$0xf]
      %v9969 = vld [vmem:[%s5 + $0x1c] sm:$0xf]
      %v9970 = vld [vmem:[%s6 + $0x5] sm:$0x1]
      %v9971 = vlaneseq
      %v9972 = vshrl.u32 %v9971, 7
      %v9973 = vsub.s32 0, %v9972
      %v9974 = vrot.slane %v9970, %v9973
      %v9983 = vunpack.c.l.b16 %v9962
      %v9984 = vunpack.c.l.b16 %v9963
      %v9985 = vunpack.c.l.b16 %v9964
      %v9986 = vunpack.c.l.b16 %v9965
      %v9987 = vunpack.c.l.b16 %v9966
      %v9988 = vunpack.c.l.b16 %v9967
      %v9989 = vunpack.c.l.b16 %v9968
      %v9990 = vunpack.c.l.b16 %v9969
      %v9991 = vpack.c.b16 %v9984, %v9983
      %v9992 = vpack.c.b16 %v9986, %v9985
      %v9993 = vpack.c.b16 %v9988, %v9987
      %v9994 = vpack.c.b16 %v9990, %v9989
      %v10000 = vsel %vm305, %v9951, 0
      %v10003 = vsel %vm305, %v9952, 0
      %v10006 = vsel %vm305, %v9953, 0
      %v10009 = vsel %vm305, %v9954, 0
      %v10012 = vsel %vm305, %v9955, 0
      %v10015 = vsel %vm305, %v9956, 0
      %v10018 = vsel %vm305, %v9957, 0
      %v10021 = vsel %vm305, %v9958, 0
      %v10024 = vsel %vm305, %v9959, 0
      %v10027 = vsel %vm305, %v9960, 0
      %v10030 = vsel %vm305, %v9961, 0
      %10032 = vmatprep.subr.bf16.mxu0 0
      %10033 = vmatpush1.bf16.msra.mxu0 0
      %10034 = vmatprep.subr.bf16.mxu0 0
      %10035 = vmatpush1.bf16.msra.mxu0 0
      %10036 = vmatprep.subr.bf16.mxu0 0
      %10037 = vmatpush1.bf16.msra.mxu0 0
      %10038 = vmatprep.subr.bf16.mxu0 0
      %10039 = vmatpush1.bf16.msra.mxu0 0
      %10040 = vmatprep.subr.bf16.mxu0 0
      %10041 = vmatpush1.bf16.msra.mxu0 %v9994
      %10042 = vmatprep.subr.bf16.mxu0 0
      %10043 = vmatpush1.bf16.msra.mxu0 %v9993
      %10044 = vmatprep.subr.bf16.mxu0 0
      %10045 = vmatpush1.bf16.msra.mxu0 %v9992
      %10046 = vmatprep.subr.bf16.mxu0 0
      %10047 = vmatpush1.bf16.msra.mxu0 %v9991
      %10048 = vmatprep.subr.bf16.mxu0 0
      %10049 = vmatpush2.bf16.msra.mxu0 0
      %10050 = vmatprep.subr.bf16.mxu0 0
      %10051 = vmatpush2.bf16.msra.mxu0 0
      %10052 = vmatprep.subr.bf16.mxu0 0
      %10053 = vmatpush2.bf16.msra.mxu0 0
      %10054 = vmatprep.subr.bf16.mxu0 0
      %10055 = vmatpush2.bf16.msra.mxu0 0
      %10056 = vmatprep.subr.bf16.mxu0 0
      %10057 = vmatpush2.bf16.msra.mxu0 0
      %10058 = vmatprep.subr.bf16.mxu0 0
      %10059 = vmatpush2.bf16.msra.mxu0 0
      %10060 = vmatprep.subr.bf16.mxu0 0
      %10061 = vmatpush2.bf16.msra.mxu0 0
      %10062 = vmatprep.subr.bf16.mxu0 0
      %10063 = vmatpush2.bf16.msra.mxu0 0
      %10064 = vmatprep.mubr.bf16.mxu0 0
      %10065 = vmatmul.mubr.bf16.gmra.mxu0 %v10000
      %v10066 = vpop.f32.mrf.mxu0
      %v10067 = vadd.f32 %v9974, %v10066
      %v10068 = vpop.f32.mrf.mxu0
      %v10069 = vpop.f32.mrf.mxu0
      %v10070 = vadd.f32 %v9974, %v10069
      %v10071 = vpop.f32.mrf.mxu0
      %10072 = vmatprep.mubr.bf16.mxu0 0
      %10073 = vmatmul.mubr.bf16.gmra.mxu0 %v10003
      %v10074 = vpop.f32.mrf.mxu0
      %v10075 = vadd.f32 %v9974, %v10074
      %v10076 = vpop.f32.mrf.mxu0
      %v10077 = vpop.f32.mrf.mxu0
      %v10078 = vadd.f32 %v9974, %v10077
      %v10079 = vpop.f32.mrf.mxu0
      %10080 = vmatprep.mubr.bf16.mxu0 0
      %10081 = vmatmul.mubr.bf16.gmra.mxu0 %v10006
      %v10082 = vpop.f32.mrf.mxu0
      %v10083 = vadd.f32 %v9974, %v10082
      %v10084 = vpop.f32.mrf.mxu0
      %v10085 = vpop.f32.mrf.mxu0
      %v10086 = vadd.f32 %v9974, %v10085
      %v10087 = vpop.f32.mrf.mxu0
      %10088 = vmatprep.mubr.bf16.mxu0 0
      %10089 = vmatmul.mubr.bf16.gmra.mxu0 %v10009
      %v10090 = vpop.f32.mrf.mxu0
      %v10091 = vadd.f32 %v9974, %v10090
      %v10092 = vpop.f32.mrf.mxu0
      %v10093 = vpop.f32.mrf.mxu0
      %v10094 = vadd.f32 %v9974, %v10093
      %v10095 = vpop.f32.mrf.mxu0
      %10096 = vmatprep.mubr.bf16.mxu0 0
      %10097 = vmatmul.mubr.bf16.gmra.mxu0 %v10012
      %v10098 = vpop.f32.mrf.mxu0
      %v10099 = vadd.f32 %v9974, %v10098
      %v10100 = vpop.f32.mrf.mxu0
      %v10101 = vpop.f32.mrf.mxu0
      %v10102 = vadd.f32 %v9974, %v10101
      %v10103 = vpop.f32.mrf.mxu0
      %10104 = vmatprep.mubr.bf16.mxu0 0
      %10105 = vmatmul.mubr.bf16.gmra.mxu0 %v10015
      %v10106 = vpop.f32.mrf.mxu0
      %v10107 = vadd.f32 %v9974, %v10106
      %v10108 = vpop.f32.mrf.mxu0
      %v10109 = vpop.f32.mrf.mxu0
      %v10110 = vadd.f32 %v9974, %v10109
      %v10111 = vpop.f32.mrf.mxu0
      %10112 = vmatprep.mubr.bf16.mxu0 0
      %10113 = vmatmul.mubr.bf16.gmra.mxu0 %v10018
      %v10114 = vpop.f32.mrf.mxu0
      %v10115 = vadd.f32 %v9974, %v10114
      %v10116 = vpop.f32.mrf.mxu0
      %v10117 = vpop.f32.mrf.mxu0
      %v10118 = vadd.f32 %v9974, %v10117
      %v10119 = vpop.f32.mrf.mxu0
      %10120 = vmatprep.mubr.bf16.mxu0 0
      %10121 = vmatmul.mubr.bf16.gmra.mxu0 %v10021
      %v10122 = vpop.f32.mrf.mxu0
      %v10123 = vadd.f32 %v9974, %v10122
      %v10124 = vpop.f32.mrf.mxu0
      %v10125 = vpop.f32.mrf.mxu0
      %v10126 = vadd.f32 %v9974, %v10125
      %v10127 = vpop.f32.mrf.mxu0
      %10128 = vmatprep.mubr.bf16.mxu0 0
      %10129 = vmatmul.mubr.bf16.gmra.mxu0 %v10024
      %v10130 = vpop.f32.mrf.mxu0
      %v10131 = vadd.f32 %v9974, %v10130
      %v10132 = vpop.f32.mrf.mxu0
      %v10133 = vpop.f32.mrf.mxu0
      %v10134 = vadd.f32 %v9974, %v10133
      %v10135 = vpop.f32.mrf.mxu0
      %10136 = vmatprep.mubr.bf16.mxu0 0
      %10137 = vmatmul.mubr.bf16.gmra.mxu0 %v10027
      %v10138 = vpop.f32.mrf.mxu0
      %v10139 = vadd.f32 %v9974, %v10138
      %v10140 = vpop.f32.mrf.mxu0
      %v10141 = vpop.f32.mrf.mxu0
      %v10142 = vadd.f32 %v9974, %v10141
      %v10143 = vpop.f32.mrf.mxu0
      %10144 = vmatprep.mubr.bf16.mxu0 0
      %10145 = vmatmul.mubr.bf16.gmra.mxu0 %v10030
      %v10146 = vpop.f32.mrf.mxu0
      %v10147 = vadd.f32 %v9974, %v10146
      %v10148 = vpop.f32.mrf.mxu0
      %v10149 = vpop.f32.mrf.mxu0
      %v10150 = vpop.f32.mrf.mxu0
      %10151 = vdwg.mxu0
      %v10152 = vmax.f32 %v10067, 0.0
      %v10153 = vmax.f32 %v10070, 0.0
      %v10154 = vmax.f32 %v10075, 0.0
      %v10155 = vmax.f32 %v10078, 0.0
      %v10156 = vmax.f32 %v10083, 0.0
      %v10157 = vmax.f32 %v10086, 0.0
      %v10158 = vmax.f32 %v10091, 0.0
      %v10159 = vmax.f32 %v10094, 0.0
      %v10160 = vmax.f32 %v10099, 0.0
      %v10161 = vmax.f32 %v10102, 0.0
      %v10162 = vmax.f32 %v10107, 0.0
      %v10163 = vmax.f32 %v10110, 0.0
      %v10164 = vmax.f32 %v10115, 0.0
      %v10165 = vmax.f32 %v10118, 0.0
      %v10166 = vmax.f32 %v10123, 0.0
      %v10167 = vmax.f32 %v10126, 0.0
      %v10168 = vmax.f32 %v10131, 0.0
      %v10169 = vmax.f32 %v10134, 0.0
      %v10170 = vmax.f32 %v10139, 0.0
      %v10171 = vmax.f32 %v10142, 0.0
      %v10172 = vmax.f32 %v10147, 0.0
      %v10173 = vld [vmem:[%s7] sm:$0xf]
      %v10174 = vld [vmem:[%s7 + $0x4] sm:$0xf]
      %v10175 = vld [vmem:[%s7 + $0x8] sm:$0xf]
      %v10176 = vld [vmem:[%s7 + $0xc] sm:$0xf]
      %v10177 = vld [vmem:[%s7 + $0x10] sm:$0xf]
      %v10178 = vld [vmem:[%s7 + $0x14] sm:$0xf]
      %v10179 = vld [vmem:[%s7 + $0x18] sm:$0xf]
      %v10180 = vld [vmem:[%s7 + $0x1c] sm:$0xf]
      %v10181 = vld [vmem:[%s7 + $0x20] sm:$0xf]
      %v10182 = vld [vmem:[%s7 + $0x24] sm:$0xf]
      %v10183 = vld [vmem:[%s7 + $0x28] sm:$0xf]
      %v10184 = vld [vmem:[%s7 + $0x2c] sm:$0xf]
      %v10185 = vld [vmem:[%s7 + $0x30] sm:$0xf]
      %v10186 = vld [vmem:[%s7 + $0x34] sm:$0xf]
      %v10187 = vld [vmem:[%s7 + $0x38] sm:$0xf]
      %v10188 = vld [vmem:[%s7 + $0x3c] sm:$0xf]
      %v10189 = vld [vmem:[%s7 + $0x40] sm:$0xf]
      %v10190 = vld [vmem:[%s7 + $0x44] sm:$0xf]
      %v10191 = vld [vmem:[%s7 + $0x48] sm:$0xf]
      %v10192 = vld [vmem:[%s7 + $0x4c] sm:$0xf]
      %v10193 = vld [vmem:[%s7 + $0x50] sm:$0xf]
      %v10194 = vunpack.c.l.bf16 %v10173
      %v10195 = vunpack.c.l.bf16 %v10174
      %v10196 = vunpack.c.l.bf16 %v10175
      %v10197 = vunpack.c.l.bf16 %v10176
      %v10198 = vunpack.c.l.bf16 %v10177
      %v10199 = vunpack.c.l.bf16 %v10178
      %v10200 = vunpack.c.l.bf16 %v10179
      %v10201 = vunpack.c.l.bf16 %v10180
      %v10202 = vunpack.c.l.bf16 %v10181
      %v10203 = vunpack.c.l.bf16 %v10182
      %v10204 = vunpack.c.l.bf16 %v10183
      %v10205 = vunpack.c.l.bf16 %v10184
      %v10206 = vunpack.c.l.bf16 %v10185
      %v10207 = vunpack.c.l.bf16 %v10186
      %v10208 = vunpack.c.l.bf16 %v10187
      %v10209 = vunpack.c.l.bf16 %v10188
      %v10210 = vunpack.c.l.bf16 %v10189
      %v10211 = vunpack.c.l.bf16 %v10190
      %v10212 = vunpack.c.l.bf16 %v10191
      %v10213 = vunpack.c.l.bf16 %v10192
      %v10214 = vunpack.c.l.bf16 %v10193
      %10216 = vset.pattern.permute.xlu0 0
      %10217 = vperm.xlu0 %10216, %v10152
      %v10218 = vpop.permute.xlu0 %10217
      %10221 = vset.pattern.permute.xlu0 0
      %10222 = vperm.xlu0 %10221, %v10153
      %v10223 = vpop.permute.xlu0 %10222
      %10226 = vset.pattern.permute.xlu0 0
      %10227 = vperm.xlu0 %10226, %v10154
      %v10228 = vpop.permute.xlu0 %10227
      %10231 = vset.pattern.permute.xlu0 0
      %10232 = vperm.xlu0 %10231, %v10155
      %v10233 = vpop.permute.xlu0 %10232
      %10236 = vset.pattern.permute.xlu0 0
      %10237 = vperm.xlu0 %10236, %v10156
      %v10238 = vpop.permute.xlu0 %10237
      %10241 = vset.pattern.permute.xlu0 0
      %10242 = vperm.xlu0 %10241, %v10157
      %v10243 = vpop.permute.xlu0 %10242
      %10246 = vset.pattern.permute.xlu0 0
      %10247 = vperm.xlu0 %10246, %v10158
      %v10248 = vpop.permute.xlu0 %10247
      %10251 = vset.pattern.permute.xlu0 0
      %10252 = vperm.xlu0 %10251, %v10159
      %v10253 = vpop.permute.xlu0 %10252
      %10256 = vset.pattern.permute.xlu0 0
      %10257 = vperm.xlu0 %10256, %v10160
      %v10258 = vpop.permute.xlu0 %10257
      %10261 = vset.pattern.permute.xlu0 0
      %10262 = vperm.xlu0 %10261, %v10161
      %v10263 = vpop.permute.xlu0 %10262
      %10266 = vset.pattern.permute.xlu0 0
      %10267 = vperm.xlu0 %10266, %v10162
      %v10268 = vpop.permute.xlu0 %10267
      %10271 = vset.pattern.permute.xlu0 0
      %10272 = vperm.xlu0 %10271, %v10163
      %v10273 = vpop.permute.xlu0 %10272
      %10276 = vset.pattern.permute.xlu0 0
      %10277 = vperm.xlu0 %10276, %v10164
      %v10278 = vpop.permute.xlu0 %10277
      %10281 = vset.pattern.permute.xlu0 0
      %10282 = vperm.xlu0 %10281, %v10165
      %v10283 = vpop.permute.xlu0 %10282
      %10286 = vset.pattern.permute.xlu0 0
      %10287 = vperm.xlu0 %10286, %v10166
      %v10288 = vpop.permute.xlu0 %10287
      %10291 = vset.pattern.permute.xlu0 0
      %10292 = vperm.xlu0 %10291, %v10167
      %v10293 = vpop.permute.xlu0 %10292
      %10296 = vset.pattern.permute.xlu0 0
      %10297 = vperm.xlu0 %10296, %v10168
      %v10298 = vpop.permute.xlu0 %10297
      %10301 = vset.pattern.permute.xlu0 0
      %10302 = vperm.xlu0 %10301, %v10169
      %v10303 = vpop.permute.xlu0 %10302
      %10306 = vset.pattern.permute.xlu0 0
      %10307 = vperm.xlu0 %10306, %v10170
      %v10308 = vpop.permute.xlu0 %10307
      %10311 = vset.pattern.permute.xlu0 0
      %10312 = vperm.xlu0 %10311, %v10171
      %v10313 = vpop.permute.xlu0 %10312
      %10316 = vset.pattern.permute.xlu0 0
      %10317 = vperm.xlu0 %10316, %v10172
      %v10318 = vpop.permute.xlu0 %10317
      %v10320 = vmul.f32 %v10218, %v10194
      %v10321 = vmul.f32 %v10223, %v10195
      %v10322 = vmul.f32 %v10228, %v10196
      %v10323 = vmul.f32 %v10233, %v10197
      %v10324 = vmul.f32 %v10238, %v10198
      %v10325 = vmul.f32 %v10243, %v10199
      %v10326 = vmul.f32 %v10248, %v10200
      %v10327 = vmul.f32 %v10253, %v10201
      %v10328 = vmul.f32 %v10258, %v10202
      %v10329 = vmul.f32 %v10263, %v10203
      %v10330 = vmul.f32 %v10268, %v10204
      %v10331 = vmul.f32 %v10273, %v10205
      %v10332 = vmul.f32 %v10278, %v10206
      %v10333 = vmul.f32 %v10283, %v10207
      %v10334 = vmul.f32 %v10288, %v10208
      %v10335 = vmul.f32 %v10293, %v10209
      %v10336 = vmul.f32 %v10298, %v10210
      %v10337 = vmul.f32 %v10303, %v10211
      %v10338 = vmul.f32 %v10308, %v10212
      %v10339 = vmul.f32 %v10313, %v10213
      %v10340 = vmul.f32 %v10318, %v10214
      %s10341 = scalar_lea.vmem %s7, 84
      %v10342 = vld [vmem:[%s10341] sm:$0xf]
      %v10343 = vld [vmem:[%s10341 + $0x4] sm:$0xf]
      %v10344 = vld [vmem:[%s10341 + $0x8] sm:$0xf]
      %v10345 = vld [vmem:[%s10341 + $0xc] sm:$0xf]
      %v10346 = vld [vmem:[%s10341 + $0x10] sm:$0xf]
      %v10347 = vld [vmem:[%s10341 + $0x14] sm:$0xf]
      %v10348 = vld [vmem:[%s10341 + $0x18] sm:$0xf]
      %v10349 = vld [vmem:[%s10341 + $0x1c] sm:$0xf]
      %v10350 = vld [vmem:[%s10341 + $0x20] sm:$0xf]
      %v10351 = vld [vmem:[%s10341 + $0x24] sm:$0xf]
      %v10352 = vld [vmem:[%s10341 + $0x28] sm:$0xf]
      %v10353 = vld [vmem:[%s10341 + $0x2c] sm:$0xf]
      %v10354 = vld [vmem:[%s10341 + $0x30] sm:$0xf]
      %v10355 = vld [vmem:[%s10341 + $0x34] sm:$0xf]
      %v10356 = vld [vmem:[%s10341 + $0x38] sm:$0xf]
      %v10357 = vld [vmem:[%s10341 + $0x3c] sm:$0xf]
      %v10358 = vld [vmem:[%s10341 + $0x40] sm:$0xf]
      %v10359 = vld [vmem:[%s10341 + $0x44] sm:$0xf]
      %v10360 = vld [vmem:[%s10341 + $0x48] sm:$0xf]
      %v10361 = vld [vmem:[%s10341 + $0x4c] sm:$0xf]
      %v10362 = vld [vmem:[%s10341 + $0x50] sm:$0xf]
      %v10363 = vunpack.c.l.bf16 %v10342
      %v10364 = vunpack.c.l.bf16 %v10343
      %v10365 = vunpack.c.l.bf16 %v10344
      %v10366 = vunpack.c.l.bf16 %v10345
      %v10367 = vunpack.c.l.bf16 %v10346
      %v10368 = vunpack.c.l.bf16 %v10347
      %v10369 = vunpack.c.l.bf16 %v10348
      %v10370 = vunpack.c.l.bf16 %v10349
      %v10371 = vunpack.c.l.bf16 %v10350
      %v10372 = vunpack.c.l.bf16 %v10351
      %v10373 = vunpack.c.l.bf16 %v10352
      %v10374 = vunpack.c.l.bf16 %v10353
      %v10375 = vunpack.c.l.bf16 %v10354
      %v10376 = vunpack.c.l.bf16 %v10355
      %v10377 = vunpack.c.l.bf16 %v10356
      %v10378 = vunpack.c.l.bf16 %v10357
      %v10379 = vunpack.c.l.bf16 %v10358
      %v10380 = vunpack.c.l.bf16 %v10359
      %v10381 = vunpack.c.l.bf16 %v10360
      %v10382 = vunpack.c.l.bf16 %v10361
      %v10383 = vunpack.c.l.bf16 %v10362
      %10384 = vset.pattern.permute.xlu0 1
      %10385 = vperm.xlu0 %10384, %v10152
      %v10386 = vpop.permute.xlu0 %10385
      %10388 = vset.pattern.permute.xlu0 1
      %10389 = vperm.xlu0 %10388, %v10153
      %v10390 = vpop.permute.xlu0 %10389
      %10392 = vset.pattern.permute.xlu0 1
      %10393 = vperm.xlu0 %10392, %v10154
      %v10394 = vpop.permute.xlu0 %10393
      %10396 = vset.pattern.permute.xlu0 1
      %10397 = vperm.xlu0 %10396, %v10155
      %v10398 = vpop.permute.xlu0 %10397
      %10400 = vset.pattern.permute.xlu0 1
      %10401 = vperm.xlu0 %10400, %v10156
      %v10402 = vpop.permute.xlu0 %10401
      %10404 = vset.pattern.permute.xlu0 1
      %10405 = vperm.xlu0 %10404, %v10157
      %v10406 = vpop.permute.xlu0 %10405
      %10408 = vset.pattern.permute.xlu0 1
      %10409 = vperm.xlu0 %10408, %v10158
      %v10410 = vpop.permute.xlu0 %10409
      %10412 = vset.pattern.permute.xlu0 1
      %10413 = vperm.xlu0 %10412, %v10159
      %v10414 = vpop.permute.xlu0 %10413
      %10416 = vset.pattern.permute.xlu0 1
      %10417 = vperm.xlu0 %10416, %v10160
      %v10418 = vpop.permute.xlu0 %10417
      %10420 = vset.pattern.permute.xlu0 1
      %10421 = vperm.xlu0 %10420, %v10161
      %v10422 = vpop.permute.xlu0 %10421
      %10424 = vset.pattern.permute.xlu0 1
      %10425 = vperm.xlu0 %10424, %v10162
      %v10426 = vpop.permute.xlu0 %10425
      %10428 = vset.pattern.permute.xlu0 1
      %10429 = vperm.xlu0 %10428, %v10163
      %v10430 = vpop.permute.xlu0 %10429
      %10432 = vset.pattern.permute.xlu0 1
      %10433 = vperm.xlu0 %10432, %v10164
      %v10434 = vpop.permute.xlu0 %10433
      %10436 = vset.pattern.permute.xlu0 1
      %10437 = vperm.xlu0 %10436, %v10165
      %v10438 = vpop.permute.xlu0 %10437
      %10440 = vset.pattern.permute.xlu0 1
      %10441 = vperm.xlu0 %10440, %v10166
      %v10442 = vpop.permute.xlu0 %10441
      %10444 = vset.pattern.permute.xlu0 1
      %10445 = vperm.xlu0 %10444, %v10167
      %v10446 = vpop.permute.xlu0 %10445
      %10448 = vset.pattern.permute.xlu0 1
      %10449 = vperm.xlu0 %10448, %v10168
      %v10450 = vpop.permute.xlu0 %10449
      %10452 = vset.pattern.permute.xlu0 1
      %10453 = vperm.xlu0 %10452, %v10169
      %v10454 = vpop.permute.xlu0 %10453
      %10456 = vset.pattern.permute.xlu0 1
      %10457 = vperm.xlu0 %10456, %v10170
      %v10458 = vpop.permute.xlu0 %10457
      %10460 = vset.pattern.permute.xlu0 1
      %10461 = vperm.xlu0 %10460, %v10171
      %v10462 = vpop.permute.xlu0 %10461
      %10464 = vset.pattern.permute.xlu0 1
      %10465 = vperm.xlu0 %10464, %v10172
      %v10466 = vpop.permute.xlu0 %10465
      %v10468 = vmul.f32 %v10386, %v10363
      %v10469 = vmul.f32 %v10390, %v10364
      %v10470 = vmul.f32 %v10394, %v10365
      %v10471 = vmul.f32 %v10398, %v10366
      %v10472 = vmul.f32 %v10402, %v10367
      %v10473 = vmul.f32 %v10406, %v10368
      %v10474 = vmul.f32 %v10410, %v10369
      %v10475 = vmul.f32 %v10414, %v10370
      %v10476 = vmul.f32 %v10418, %v10371
      %v10477 = vmul.f32 %v10422, %v10372
      %v10478 = vmul.f32 %v10426, %v10373
      %v10479 = vmul.f32 %v10430, %v10374
      %v10480 = vmul.f32 %v10434, %v10375
      %v10481 = vmul.f32 %v10438, %v10376
      %v10482 = vmul.f32 %v10442, %v10377
      %v10483 = vmul.f32 %v10446, %v10378
      %v10484 = vmul.f32 %v10450, %v10379
      %v10485 = vmul.f32 %v10454, %v10380
      %v10486 = vmul.f32 %v10458, %v10381
      %v10487 = vmul.f32 %v10462, %v10382
      %v10488 = vmul.f32 %v10466, %v10383
      %v10489 = vadd.f32 %v10320, %v10468
      %v10490 = vadd.f32 %v10321, %v10469
      %v10491 = vadd.f32 %v10322, %v10470
      %v10492 = vadd.f32 %v10323, %v10471
      %v10493 = vadd.f32 %v10324, %v10472
      %v10494 = vadd.f32 %v10325, %v10473
      %v10495 = vadd.f32 %v10326, %v10474
      %v10496 = vadd.f32 %v10327, %v10475
      %v10497 = vadd.f32 %v10328, %v10476
      %v10498 = vadd.f32 %v10329, %v10477
      %v10499 = vadd.f32 %v10330, %v10478
      %v10500 = vadd.f32 %v10331, %v10479
      %v10501 = vadd.f32 %v10332, %v10480
      %v10502 = vadd.f32 %v10333, %v10481
      %v10503 = vadd.f32 %v10334, %v10482
      %v10504 = vadd.f32 %v10335, %v10483
      %v10505 = vadd.f32 %v10336, %v10484
      %v10506 = vadd.f32 %v10337, %v10485
      %v10507 = vadd.f32 %v10338, %v10486
      %v10508 = vadd.f32 %v10339, %v10487
      %v10509 = vadd.f32 %v10340, %v10488
      %s10510 = scalar_lea.vmem %s7, 168
      %v10511 = vld [vmem:[%s10510] sm:$0xf]
      %v10512 = vld [vmem:[%s10510 + $0x4] sm:$0xf]
      %v10513 = vld [vmem:[%s10510 + $0x8] sm:$0xf]
      %v10514 = vld [vmem:[%s10510 + $0xc] sm:$0xf]
      %v10515 = vld [vmem:[%s10510 + $0x10] sm:$0xf]
      %v10516 = vld [vmem:[%s10510 + $0x14] sm:$0xf]
      %v10517 = vld [vmem:[%s10510 + $0x18] sm:$0xf]
      %v10518 = vld [vmem:[%s10510 + $0x1c] sm:$0xf]
      %v10519 = vld [vmem:[%s10510 + $0x20] sm:$0xf]
      %v10520 = vld [vmem:[%s10510 + $0x24] sm:$0xf]
      %v10521 = vld [vmem:[%s10510 + $0x28] sm:$0xf]
      %v10522 = vld [vmem:[%s10510 + $0x2c] sm:$0xf]
      %v10523 = vld [vmem:[%s10510 + $0x30] sm:$0xf]
      %v10524 = vld [vmem:[%s10510 + $0x34] sm:$0xf]
      %v10525 = vld [vmem:[%s10510 + $0x38] sm:$0xf]
      %v10526 = vld [vmem:[%s10510 + $0x3c] sm:$0xf]
      %v10527 = vld [vmem:[%s10510 + $0x40] sm:$0xf]
      %v10528 = vld [vmem:[%s10510 + $0x44] sm:$0xf]
      %v10529 = vld [vmem:[%s10510 + $0x48] sm:$0xf]
      %v10530 = vld [vmem:[%s10510 + $0x4c] sm:$0xf]
      %v10531 = vld [vmem:[%s10510 + $0x50] sm:$0xf]
      %v10532 = vunpack.c.l.bf16 %v10511
      %v10533 = vunpack.c.l.bf16 %v10512
      %v10534 = vunpack.c.l.bf16 %v10513
      %v10535 = vunpack.c.l.bf16 %v10514
      %v10536 = vunpack.c.l.bf16 %v10515
      %v10537 = vunpack.c.l.bf16 %v10516
      %v10538 = vunpack.c.l.bf16 %v10517
      %v10539 = vunpack.c.l.bf16 %v10518
      %v10540 = vunpack.c.l.bf16 %v10519
      %v10541 = vunpack.c.l.bf16 %v10520
      %v10542 = vunpack.c.l.bf16 %v10521
      %v10543 = vunpack.c.l.bf16 %v10522
      %v10544 = vunpack.c.l.bf16 %v10523
      %v10545 = vunpack.c.l.bf16 %v10524
      %v10546 = vunpack.c.l.bf16 %v10525
      %v10547 = vunpack.c.l.bf16 %v10526
      %v10548 = vunpack.c.l.bf16 %v10527
      %v10549 = vunpack.c.l.bf16 %v10528
      %v10550 = vunpack.c.l.bf16 %v10529
      %v10551 = vunpack.c.l.bf16 %v10530
      %v10552 = vunpack.c.l.bf16 %v10531
      %10553 = vset.pattern.permute.xlu0 2
      %10554 = vperm.xlu0 %10553, %v10152
      %v10555 = vpop.permute.xlu0 %10554
      %10557 = vset.pattern.permute.xlu0 2
      %10558 = vperm.xlu0 %10557, %v10153
      %v10559 = vpop.permute.xlu0 %10558
      %10561 = vset.pattern.permute.xlu0 2
      %10562 = vperm.xlu0 %10561, %v10154
      %v10563 = vpop.permute.xlu0 %10562
      %10565 = vset.pattern.permute.xlu0 2
      %10566 = vperm.xlu0 %10565, %v10155
      %v10567 = vpop.permute.xlu0 %10566
      %10569 = vset.pattern.permute.xlu0 2
      %10570 = vperm.xlu0 %10569, %v10156
      %v10571 = vpop.permute.xlu0 %10570
      %10573 = vset.pattern.permute.xlu0 2
      %10574 = vperm.xlu0 %10573, %v10157
      %v10575 = vpop.permute.xlu0 %10574
      %10577 = vset.pattern.permute.xlu0 2
      %10578 = vperm.xlu0 %10577, %v10158
      %v10579 = vpop.permute.xlu0 %10578
      %10581 = vset.pattern.permute.xlu0 2
      %10582 = vperm.xlu0 %10581, %v10159
      %v10583 = vpop.permute.xlu0 %10582
      %10585 = vset.pattern.permute.xlu0 2
      %10586 = vperm.xlu0 %10585, %v10160
      %v10587 = vpop.permute.xlu0 %10586
      %10589 = vset.pattern.permute.xlu0 2
      %10590 = vperm.xlu0 %10589, %v10161
      %v10591 = vpop.permute.xlu0 %10590
      %10593 = vset.pattern.permute.xlu0 2
      %10594 = vperm.xlu0 %10593, %v10162
      %v10595 = vpop.permute.xlu0 %10594
      %10597 = vset.pattern.permute.xlu0 2
      %10598 = vperm.xlu0 %10597, %v10163
      %v10599 = vpop.permute.xlu0 %10598
      %10601 = vset.pattern.permute.xlu0 2
      %10602 = vperm.xlu0 %10601, %v10164
      %v10603 = vpop.permute.xlu0 %10602
      %10605 = vset.pattern.permute.xlu0 2
      %10606 = vperm.xlu0 %10605, %v10165
      %v10607 = vpop.permute.xlu0 %10606
      %10609 = vset.pattern.permute.xlu0 2
      %10610 = vperm.xlu0 %10609, %v10166
      %v10611 = vpop.permute.xlu0 %10610
      %10613 = vset.pattern.permute.xlu0 2
      %10614 = vperm.xlu0 %10613, %v10167
      %v10615 = vpop.permute.xlu0 %10614
      %10617 = vset.pattern.permute.xlu0 2
      %10618 = vperm.xlu0 %10617, %v10168
      %v10619 = vpop.permute.xlu0 %10618
      %10621 = vset.pattern.permute.xlu0 2
      %10622 = vperm.xlu0 %10621, %v10169
      %v10623 = vpop.permute.xlu0 %10622
      %10625 = vset.pattern.permute.xlu0 2
      %10626 = vperm.xlu0 %10625, %v10170
      %v10627 = vpop.permute.xlu0 %10626
      %10629 = vset.pattern.permute.xlu0 2
      %10630 = vperm.xlu0 %10629, %v10171
      %v10631 = vpop.permute.xlu0 %10630
      %10633 = vset.pattern.permute.xlu0 2
      %10634 = vperm.xlu0 %10633, %v10172
      %v10635 = vpop.permute.xlu0 %10634
      %v10637 = vmul.f32 %v10555, %v10532
      %v10638 = vmul.f32 %v10559, %v10533
      %v10639 = vmul.f32 %v10563, %v10534
      %v10640 = vmul.f32 %v10567, %v10535
      %v10641 = vmul.f32 %v10571, %v10536
      %v10642 = vmul.f32 %v10575, %v10537
      %v10643 = vmul.f32 %v10579, %v10538
      %v10644 = vmul.f32 %v10583, %v10539
      %v10645 = vmul.f32 %v10587, %v10540
      %v10646 = vmul.f32 %v10591, %v10541
      %v10647 = vmul.f32 %v10595, %v10542
      %v10648 = vmul.f32 %v10599, %v10543
      %v10649 = vmul.f32 %v10603, %v10544
      %v10650 = vmul.f32 %v10607, %v10545
      %v10651 = vmul.f32 %v10611, %v10546
      %v10652 = vmul.f32 %v10615, %v10547
      %v10653 = vmul.f32 %v10619, %v10548
      %v10654 = vmul.f32 %v10623, %v10549
      %v10655 = vmul.f32 %v10627, %v10550
      %v10656 = vmul.f32 %v10631, %v10551
      %v10657 = vmul.f32 %v10635, %v10552
      %v10658 = vadd.f32 %v10489, %v10637
      %v10659 = vadd.f32 %v10490, %v10638
      %v10660 = vadd.f32 %v10491, %v10639
      %v10661 = vadd.f32 %v10492, %v10640
      %v10662 = vadd.f32 %v10493, %v10641
      %v10663 = vadd.f32 %v10494, %v10642
      %v10664 = vadd.f32 %v10495, %v10643
      %v10665 = vadd.f32 %v10496, %v10644
      %v10666 = vadd.f32 %v10497, %v10645
      %v10667 = vadd.f32 %v10498, %v10646
      %v10668 = vadd.f32 %v10499, %v10647
      %v10669 = vadd.f32 %v10500, %v10648
      %v10670 = vadd.f32 %v10501, %v10649
      %v10671 = vadd.f32 %v10502, %v10650
      %v10672 = vadd.f32 %v10503, %v10651
      %v10673 = vadd.f32 %v10504, %v10652
      %v10674 = vadd.f32 %v10505, %v10653
      %v10675 = vadd.f32 %v10506, %v10654
      %v10676 = vadd.f32 %v10507, %v10655
      %v10677 = vadd.f32 %v10508, %v10656
      %v10678 = vadd.f32 %v10509, %v10657
      %v10679 = vpack.c.bf16 %v10659, %v10658
      %v10680 = vpack.c.bf16 %v10661, %v10660
      %v10681 = vpack.c.bf16 %v10663, %v10662
      %v10682 = vpack.c.bf16 %v10665, %v10664
      %v10683 = vpack.c.bf16 %v10667, %v10666
      %v10684 = vpack.c.bf16 %v10669, %v10668
      %v10685 = vpack.c.bf16 %v10671, %v10670
      %v10686 = vpack.c.bf16 %v10673, %v10672
      %v10687 = vpack.c.bf16 %v10675, %v10674
      %v10688 = vpack.c.bf16 %v10677, %v10676
      %v10689 = vpack.c.bf16 %v10678, %v10678
      %v10690 = vld [vmem:[%s2] sm:$0xf]
      %v10691 = vld [vmem:[%s6 + $0x6] sm:$0x1]
      %v10692 = vlaneseq
      %v10693 = vshrl.u32 %v10692, 7
      %v10694 = vsub.s32 0, %v10693
      %v10695 = vrot.slane %v10691, %v10694
      %v10698 = vunpack.c.l.s4 1983009808
      %v10699 = vunpack.c.0.s8 %v10698
      %v10700 = vlaneseq
      %v10701 = vshrl.u32 %v10700, 7
      %v10702 = vsub.s32 %v10699, %v10701
      %v10703 = vrot.slane %v10690, %v10702
      %v10704 = vcombine.high %v10703, %v10703
      %vm10706 = vcmask 326656
      %v10708 = vsel %vm10706, %v10704, 0
      %vm10710 = vcmask 1043456
      %v10712 = vsel %vm10710, %v10689, 0
      %10714 = vmatprep.subr.bf16.mxu0 0
      %10715 = vmatpush1.bf16.msra.mxu0 %v10686
      %10716 = vmatprep.subr.bf16.mxu0 0
      %10717 = vmatpush1.bf16.msra.mxu0 %v10685
      %10718 = vmatprep.subr.bf16.mxu0 0
      %10719 = vmatpush1.bf16.msra.mxu0 %v10684
      %10720 = vmatprep.subr.bf16.mxu0 0
      %10721 = vmatpush1.bf16.msra.mxu0 %v10683
      %10722 = vmatprep.subr.bf16.mxu0 0
      %10723 = vmatpush1.bf16.msra.mxu0 %v10682
      %10724 = vmatprep.subr.bf16.mxu0 0
      %10725 = vmatpush1.bf16.msra.mxu0 %v10681
      %10726 = vmatprep.subr.bf16.mxu0 0
      %10727 = vmatpush1.bf16.msra.mxu0 %v10680
      %10728 = vmatprep.subr.bf16.mxu0 0
      %10729 = vmatpush1.bf16.msra.mxu0 %v10679
      %10730 = vmatprep.subr.bf16.mxu0 0
      %10731 = vmatpush2.bf16.msra.mxu0 0
      %10732 = vmatprep.subr.bf16.mxu0 0
      %10733 = vmatpush2.bf16.msra.mxu0 0
      %10734 = vmatprep.subr.bf16.mxu0 0
      %10735 = vmatpush2.bf16.msra.mxu0 0
      %10736 = vmatprep.subr.bf16.mxu0 0
      %10737 = vmatpush2.bf16.msra.mxu0 0
      %10738 = vmatprep.subr.bf16.mxu0 0
      %10739 = vmatpush2.bf16.msra.mxu0 0
      %10740 = vmatprep.subr.bf16.mxu0 0
      %10741 = vmatpush2.bf16.msra.mxu0 %v10712
      %10742 = vmatprep.subr.bf16.mxu0 0
      %10743 = vmatpush2.bf16.msra.mxu0 %v10688
      %10744 = vmatprep.subr.bf16.mxu0 0
      %10745 = vmatpush2.bf16.msra.mxu0 %v10687
      %10746 = vmatprep.mubr.bf16.mxu0 %v10708
      %10747 = vmatmul.mubr.bf16.gmra.mxu0 %v10703
      %v10748 = vpop.f32.mrf.mxu0
      %v10749 = vadd.f32 %v10695, %v10748
      %v10750 = vpop.f32.mrf.mxu0
      %v10751 = vpop.f32.mrf.mxu0
      %v10752 = vpop.f32.mrf.mxu0
      %10753 = vdwg.mxu0
      %v10754 = vlaneseq
      %v10755 = vand.u32 %v10754, 127
      %vm10756 = vcmp.lt.s32.totalorder %v10755, 7
      %v10757 = vmax.f32 %v10749, 0.0
      %v10758 = vld [vmem:[%s6 + $0x7] sm:$0x1]
      %v10759 = vlaneseq
      %v10760 = vshrl.u32 %v10759, 7
      %v10761 = vsub.s32 0, %v10760
      %v10762 = vrot.slane %v10758, %v10761
      %v10763 = vmul.f32 %v10757, %v10762
      %v10764 = vsel %vm10710, %v10763, 0.0
      %10765 = vadd.xlane.f32.xlu0 %v10764
      %v10766 = vpop.xlane.xlu0 %10765
      %v10767 = vld [vmem:[%s6 + $0x6] sm:$0x1]
      %v10768 = vlaneseq
      %v10769 = vshrl.u32 %v10768, 7
      %v10770 = vsub.s32 0, %v10769
      %v10771 = vrot.slane %v10767, %v10770
      %v10772 = vadd.f32 %v10766, %v10771
      %v10773 = vtanh.pop %v10772
      %v10774 = vsel %vm10756, %v10749, -inf
      %v10775 = vsel %vm10710, %v10774, -inf
      %10776 = vmax.xlane.f32.xlu0 %v10775
      %v10777 = vpop.xlane.xlu0 %10776
      %v10778 = vsub.f32 %v10774, %v10777
      %v10779 = vmul.f32 %v10778, 1.442695
      %v10780 = vpow.pop %v10779
      %v10781 = vsel %vm10710, %v10780, 0.0
      %10782 = vadd.xlane.f32.xlu0 %v10781
      %v10783 = vpop.xlane.xlu0 %10782
      %v10784 = vlog2.pop %v10783
      %v10785 = vmul.f32 %v10784, 0.6931472
      %v10786 = vsub.f32 %v10778, %v10785
      %vm10787 = vcmp.eq.s32.totalorder %v10755, 7
      %10789 = vset.pattern.permute.xlu0 71
      %10790 = vperm.xlu0 %10789, %v10773
      %v10791 = vpop.permute.xlu0 %10790
      %v10793 = vsel %vm10787, %v10791, 0.0
      %v10794 = vsel %vm10756, %v10786, %v10793
      %10795 = vst [vmem:[%s303] sm:$0xf] %v10794
      %p10796 = scmp.lt.s32.totalorder %s19, 1
      %s10797 = scalar_select %p10796, %s19, 1
      %s10798 = smul.addr %s10797, 4
      %s10799 = scalar_lea.vmem %s8, %s10798
      // Predicated region
      $region53: #{connect4_forward.1} parent=51 // pred_check
        %p10800 = pneg %p210
      $region54: #{connect4_forward.1} parent=51 // pred_check_branch
        %10802 = sbr.rel (%p10800) target = $region56
      $region55: #{connect4_forward.1} parent=51 // pred_region
        _
      $region56: #{connect4_forward.1} parent=51 // pred_fallthru
        _
    $region52: #{connect4_forward.1} parent=5 // pred_fallthru
      _
    %p10803 = scmp.le.s32.totalorder 2, %s14
    // Predicated region
    $region57: #{connect4_forward.1} parent=5 // pred_check
      %p10804 = pneg %p10803
    $region58: #{connect4_forward.1} parent=5 // pred_check_branch
      %10806 = sbr.rel (%p10804) target = $region60
    $region59: #{connect4_forward.1} parent=5 // pred_region
      %s10807 = ssub.s32 %s14, 2
      // Predicated region
      $region61: #{connect4_forward.1} parent=59 // pred_check
        %p10808 = pneg %p216
      $region62: #{connect4_forward.1} parent=59 // pred_check_branch
        %10810 = sbr.rel (%p10808) target = $region64
      $region63: #{connect4_forward.1} parent=59 // pred_region
        %p10811 = scmp.lt.s32.totalorder %s20, 1
        %s10812 = scalar_select %p10811, %s20, 1
        %s10813 = smul.addr %s10812, 4
        %s10814 = scalar_lea.vmem %s8, %s10813
      $region64: #{connect4_forward.1} parent=59 // pred_fallthru
        _
    $region60: #{connect4_forward.1} parent=5 // pred_fallthru
      _
  $region6: #{connect4_forward.1} parent=0 // loop_footer
    %s18 = sadd.s32 1, %s14
  $region7: #{connect4_forward.1} parent=0 // loop_footer_branch
    %13 = sbr.rel target = $region3
  $region8: #{connect4_forward.1} parent=0 // loop_exit
    _

</llo_original>
